<compile_context>
chip_gen: v7x
topology: tpu7x:2x2x1
jax: 0.10.0
libtpu: 0.0.40
codegen_flags: <defaults>
</compile_context>

<pallas_src>
import functools
import math

import numpy as np
import jax
import jax.numpy as jnp
from jax import lax
from jax.experimental import pallas as pl
from jax.experimental.pallas import tpu as pltpu

# ----------------------------- configuration --------------------------------
B = 2                       # batch
L = 16                      # q_len / sequence length
D_MODEL = 32
N_HEADS = 4
D_K = D_MODEL // N_HEADS
D_V = D_MODEL // N_HEADS
D_FF = 64
# Mamba: Encoder_mamba defaults (d_conv=4, expand=2); d_state from Encoder_MFA default.
D_STATE = 21
D_CONV = 4
EXPAND = 2
D_INNER = EXPAND * D_MODEL
DT_RANK = math.ceil(D_MODEL / 16)
BN_EPS = 1e-5
BL = B * L
PAD = 8                     # aligned zero-pad rows for the causal-conv scratch
N_LAYERS = 1

# dot_general dimension numbers for A @ B^T (contract last dim of both operands)
NT_DIMS = (((1,), (1,)), ((), ()))

# position-within-sequence of every row of the flattened (B*L, ...) layout
_POS_NP = np.tile(np.arange(L, dtype=np.float32), B).reshape(BL, 1)


# ----------------------------- in-kernel helpers -----------------------------
def _sigmoid(x):
    return pl.reciprocal(1.0 + jnp.exp(-x), approx=True)


def _silu(x):
    return x * _sigmoid(x)


def _softplus(x):
    # numerically stable softplus (matches F.softplus up to fp error)
    return jnp.maximum(x, 0.0) + jnp.log(1.0 + jnp.exp(-jnp.abs(x)))


def _gelu(x):
    # TODO(synk): PyTorch nn.GELU defaults to the exact erf form; tanh approximation used here.
    c = math.sqrt(2.0 / math.pi)
    return 0.5 * x * (1.0 + jnp.tanh(c * (x + 0.044715 * x * x * x)))


def _batchnorm(s, gamma, beta):
    # BatchNorm1d over the channel (last) dim with per-forward batch statistics
    # (behaviour of a freshly constructed module; biased variance).
    mu = jnp.mean(s, axis=0, keepdims=True)
    var = jnp.mean(jnp.square(s - mu), axis=0, keepdims=True)
    return (s - mu) * lax.rsqrt(var + BN_EPS) * gamma + beta


# ------------------- fused Mamba + FeedForward + norm1 kernel ----------------
def _mamba_ffn_kernel(x_ref, pos_ref, w_in_ref, conv_w_ref, conv_b_ref,
                      w_dt_ref, b_dt_ref, w_bct_ref, a_t_ref, d_vec_ref,
                      w_out_ref, g_m_ref, b_m_ref,
                      fw1_ref, fb1_ref, fw2_ref, fb2_ref, g_n1_ref, b_n1_ref,
                      o_ref, conv_scr, y_scr):
    x2 = x_ref[...]                                            # (BL, D_MODEL)
    pos = pos_ref[...]                                         # (BL, 1) in-sequence position

    # ---- Mamba in_proj (bias=False): x- and z-branches in one 128-wide matmul
    xz = jnp.dot(x2, w_in_ref[...], preferred_element_type=jnp.float32)
    xm = xz[:, :D_INNER]                                       # (BL, D_INNER)
    zg = xz[:, D_INNER:]                                       # (BL, D_INNER)

    # ---- depthwise causal conv1d (kernel D_CONV) + SiLU -------------------
    # static slices of a zero-padded VMEM scratch; rows whose in-sequence
    # position is < k are masked so taps never leak across the batch boundary.
    conv_w = conv_w_ref[...]                                   # (D_CONV, D_INNER)
    conv_scr[0:PAD, :] = jnp.zeros((PAD, D_INNER), jnp.float32)
    conv_scr[PAD:PAD + BL, :] = xm
    acc = conv_b_ref[...] + xm * conv_w[D_CONV - 1:D_CONV, :]
    for k in range(1, D_CONV):
        tap = conv_scr[PAD - k:PAD - k + BL, :]                # rows shifted down by k
        tap = jnp.where(pos >= float(k), tap, 0.0)
        acc = acc + tap * conv_w[D_CONV - 1 - k:D_CONV - k, :]
    xc = _silu(acc)                                            # (BL, D_INNER)

    # ---- x_proj / dt_proj (dt_proj algebraically folded into x_proj) ------
    dt = _softplus(jnp.dot(xc, w_dt_ref[...], preferred_element_type=jnp.float32)
                   + b_dt_ref[...])                            # (BL, D_INNER)
    # B/C projections produced directly with d_state on sublanes: W_bc^T @ xc^T
    bc = lax.dot_general(w_bct_ref[...], xc, NT_DIMS,
                         preferred_element_type=jnp.float32)   # (2*D_STATE, BL)

    # ---- selective scan: fully unrolled, state carried in vregs -----------
    a_t = a_t_ref[...]                                         # (D_STATE, D_INNER) = A^T
    for b in range(B):
        h = jnp.zeros((D_STATE, D_INNER), jnp.float32)
        for t in range(L):
            r = b * L + t
            dt_r = dt[r:r + 1, :]                              # (1, D_INNER)
            u_r = xc[r:r + 1, :]
            b_col = bc[0:D_STATE, r:r + 1]                     # (D_STATE, 1)
            c_col = bc[D_STATE:2 * D_STATE, r:r + 1]
            h = jnp.exp(dt_r * a_t) * h + b_col * (dt_r * u_r)
            y_scr[r:r + 1, :] = jnp.sum(c_col * h, axis=0, keepdims=True)
    y = y_scr[...]                                             # (BL, D_INNER)
    y = (y + xc * d_vec_ref[...]) * _silu(zg)                  # D-skip + SiLU(z) gate
    out_m = jnp.dot(y, w_out_ref[...], preferred_element_type=jnp.float32)

    # ---- Encoder_mamba: residual + BatchNorm (dropout = identity) ---------
    s1 = _batchnorm(x2 + out_m, g_m_ref[...], b_m_ref[...])

    # ---- Encoder_MFA_block: x + FeedForward(x), then norm1 ----------------
    # TODO(synk): FeedForward(d_model, d_model, 2, dropout) is not defined in the
    # spec; implemented as Linear -> GELU -> Linear (dropout = identity).
    h1 = _gelu(jnp.dot(s1, fw1_ref[...], preferred_element_type=jnp.float32) + fb1_ref[...])
    f2 = jnp.dot(h1, fw2_ref[...], preferred_element_type=jnp.float32) + fb2_ref[...]
    o_ref[...] = _batchnorm(s1 + f2, g_n1_ref[...], b_n1_ref[...])


# ------------------------ fused TSTEncoderLayer kernel -----------------------
def _tst_kernel(x_ref, wqkv_ref, bqkv_ref, wo_ref, bo_ref, ga_ref, ba_ref,
                w1_ref, b1_ref, w2_ref, b2_ref, gf_ref, bf_ref,
                o_ref, attn_scr, *, scale):
    x2 = x_ref[...]                                            # (BL, D_MODEL)

    # ---- fused QKV projection (single 96-wide MXU push) -------------------
    qkv = jnp.dot(x2, wqkv_ref[...], preferred_element_type=jnp.float32) + bqkv_ref[...]
    wo = wo_ref[...]                                           # (H*Dv, D_MODEL)
    hdk = N_HEADS * D_K

    # ---- scaled dot-product attention: all batches & heads in one kernel ---
    for b in range(B):
        r0, r1 = b * L, (b + 1) * L
        acc_b = jnp.zeros((L, D_MODEL), jnp.float32)
        for h in range(N_HEADS):
            q_bh = qkv[r0:r1, h * D_K:(h + 1) * D_K]           # (L, Dk)
            k_bh = qkv[r0:r1, hdk + h * D_K:hdk + (h + 1) * D_K]
            v_bh = qkv[r0:r1, 2 * hdk + h * D_V:2 * hdk + (h + 1) * D_V]
            s = lax.dot_general(q_bh, k_bh, NT_DIMS,
                                preferred_element_type=jnp.float32) * scale
            s = s - jnp.max(s, axis=-1, keepdims=True)
            e = jnp.exp(s)
            p = e * pl.reciprocal(jnp.sum(e, axis=-1, keepdims=True), approx=True)
            o_bh = jnp.dot(p, v_bh, preferred_element_type=jnp.float32)   # (L, Dv)
            # fold this head's slice of the output projection into the accumulator
            acc_b = acc_b + jnp.dot(o_bh, wo[h * D_V:(h + 1) * D_V, :],
                                    preferred_element_type=jnp.float32)
        attn_scr[r0:r1, :] = acc_b
    src2 = attn_scr[...] + bo_ref[...]

    # ---- add & BatchNorm (attention path) ----------------------------------
    src = _batchnorm(x2 + src2, ga_ref[...], ba_ref[...])

    # ---- position-wise FFN (GELU), add & BatchNorm --------------------------
    h1 = _gelu(jnp.dot(src, w1_ref[...], preferred_element_type=jnp.float32) + b1_ref[...])
    ff = jnp.dot(h1, w2_ref[...], preferred_element_type=jnp.float32) + b2_ref[...]
    o_ref[...] = _batchnorm(src + ff, gf_ref[...], bf_ref[...])


# ----------------------------- wrappers --------------------------------------
def mamba_ffn_block(x2, p):
    pos = jnp.asarray(_POS_NP)
    return pl.pallas_call(
        _mamba_ffn_kernel,
        out_shape=jax.ShapeDtypeStruct((BL, D_MODEL), jnp.float32),
        scratch_shapes=[pltpu.VMEM((PAD + BL, D_INNER), jnp.float32),
                        pltpu.VMEM((BL, D_INNER), jnp.float32)],
    )(x2, pos, p["w_in"], p["conv_w"], p["conv_b"], p["w_dt"], p["b_dt"],
      p["w_bct"], p["a_t"], p["d_vec"], p["w_out"], p["g_m"], p["b_m"],
      p["fw1"], p["fb1"], p["fw2"], p["fb2"], p["g_n1"], p["b_n1"])


def tst_layer(x2, p):
    scale = float((D_MODEL // N_HEADS) ** -0.5)
    return pl.pallas_call(
        functools.partial(_tst_kernel, scale=scale),
        out_shape=jax.ShapeDtypeStruct((BL, D_MODEL), jnp.float32),
        scratch_shapes=[pltpu.VMEM((BL, D_MODEL), jnp.float32)],
    )(x2, p["wqkv"], p["bqkv"], p["wo"], p["bo"], p["g_attn"], p["b_attn"],
      p["w1"], p["b1"], p["w2"], p["b2"], p["g_ffn"], p["b_ffn"])


def encoder_mfa_block(x, p):
    bb, ll, dd = x.shape
    x2 = x.reshape(bb * ll, dd)
    z = mamba_ffn_block(x2, p["mamba_ffn"])
    z = tst_layer(z, p["tf"])
    return z.reshape(bb, ll, dd)


def encoder_mfa(x, params):
    # NB: Encoder_MFA.forward feeds the ORIGINAL x to every block (as written
    # in the reference code); with n_layers=1 this is a single block.
    out = x
    for blk in params["blocks"]:
        out = encoder_mfa_block(x, blk)
    return out


# ----------------------------- parameter init --------------------------------
def init_params(key):
    kit = iter(jax.random.split(key, 64))

    def nrm(shape, scale):
        return jax.random.normal(next(kit), shape, jnp.float32) * scale

    # --- fused Mamba + FeedForward + norm1 params ---
    w_xproj = nrm((D_INNER, DT_RANK + 2 * D_STATE), 1.0 / math.sqrt(D_INNER))
    w_dtp = nrm((DT_RANK, D_INNER), 1.0 / math.sqrt(DT_RANK))
    mamba_ffn = {
        "w_in": nrm((D_MODEL, 2 * D_INNER), 1.0 / math.sqrt(D_MODEL)),
        "conv_w": nrm((D_CONV, D_INNER), 0.3),
        "conv_b": nrm((1, D_INNER), 0.02),
        # dt_proj folded into x_proj (no nonlinearity in between)
        "w_dt": jnp.dot(w_xproj[:, :DT_RANK], w_dtp),                     # (D_INNER, D_INNER)
        "b_dt": jnp.full((1, D_INNER), -1.0, jnp.float32) + nrm((1, D_INNER), 0.1),
        # B/C projection pre-transposed -> kernel gets d_state-major columns
        "w_bct": jnp.transpose(w_xproj[:, DT_RANK:]),                     # (2*D_STATE, D_INNER)
        # A = -exp(A_log), A_log[c, s] = log(s+1)  ->  A^T
        "a_t": -jnp.broadcast_to(
            jnp.arange(1, D_STATE + 1, dtype=jnp.float32)[:, None], (D_STATE, D_INNER)),
        "d_vec": jnp.ones((1, D_INNER), jnp.float32),
        "w_out": nrm((D_INNER, D_MODEL), 1.0 / math.sqrt(D_INNER)),
        "g_m": 1.0 + nrm((1, D_MODEL), 0.02),
        "b_m": nrm((1, D_MODEL), 0.02),
        "fw1": nrm((D_MODEL, D_MODEL), 1.0 / math.sqrt(D_MODEL)),
        "fb1": nrm((1, D_MODEL), 0.02),
        "fw2": nrm((D_MODEL, D_MODEL), 1.0 / math.sqrt(D_MODEL)),
        "fb2": nrm((1, D_MODEL), 0.02),
        "g_n1": 1.0 + nrm((1, D_MODEL), 0.02),
        "b_n1": nrm((1, D_MODEL), 0.02),
    }

    # --- TSTEncoderLayer params (QKV fused into one weight) ---
    wq = nrm((D_MODEL, N_HEADS * D_K), 1.0 / math.sqrt(D_MODEL))
    wk = nrm((D_MODEL, N_HEADS * D_K), 1.0 / math.sqrt(D_MODEL))
    wv = nrm((D_MODEL, N_HEADS * D_V), 1.0 / math.sqrt(D_MODEL))
    bq = nrm((1, N_HEADS * D_K), 0.02)
    bk = nrm((1, N_HEADS * D_K), 0.02)
    bv = nrm((1, N_HEADS * D_V), 0.02)
    tf = {
        "wqkv": jnp.concatenate([wq, wk, wv], axis=1),
        "bqkv": jnp.concatenate([bq, bk, bv], axis=1),
        "wo": nrm((N_HEADS * D_V, D_MODEL), 1.0 / math.sqrt(N_HEADS * D_V)),
        "bo": nrm((1, D_MODEL), 0.02),
        "g_attn": 1.0 + nrm((1, D_MODEL), 0.02),
        "b_attn": nrm((1, D_MODEL), 0.02),
        "w1": nrm((D_MODEL, D_FF), 1.0 / math.sqrt(D_MODEL)),
        "b1": nrm((1, D_FF), 0.02),
        "w2": nrm((D_FF, D_MODEL), 1.0 / math.sqrt(D_FF)),
        "b2": nrm((1, D_MODEL), 0.02),
        "g_ffn": 1.0 + nrm((1, D_MODEL), 0.02),
        "b_ffn": nrm((1, D_MODEL), 0.02),
    }
    return {"blocks": [{"mamba_ffn": mamba_ffn, "tf": tf} for _ in range(N_LAYERS)]}


# ----------------------------------- main ------------------------------------
if __name__ == "__main__":
    key = jax.random.PRNGKey(0)
    pkey, xkey = jax.random.split(key)
    params = init_params(pkey)
    x = jax.random.normal(xkey, (B, L, D_MODEL), jnp.float32)

    fwd = jax.jit(lambda xx: encoder_mfa(xx, params))
    out = fwd(x)
    jax.block_until_ready(out)

    assert out.shape == (B, L, D_MODEL), out.shape
    assert bool(jnp.all(jnp.isfinite(out)))
    print("KERNEL_OK")
</pallas_src>

<mosaic_0001>
module attributes {stable_mosaic.version = 11 : i64} {
  func.func @_tst_kernel(%arg0: memref<32x32xf32, #tpu.memory_space<vmem>>, %arg1: memref<32x96xf32, #tpu.memory_space<vmem>>, %arg2: memref<1x96xf32, #tpu.memory_space<vmem>>, %arg3: memref<32x32xf32, #tpu.memory_space<vmem>>, %arg4: memref<1x32xf32, #tpu.memory_space<vmem>>, %arg5: memref<1x32xf32, #tpu.memory_space<vmem>>, %arg6: memref<1x32xf32, #tpu.memory_space<vmem>>, %arg7: memref<32x64xf32, #tpu.memory_space<vmem>>, %arg8: memref<1x64xf32, #tpu.memory_space<vmem>>, %arg9: memref<64x32xf32, #tpu.memory_space<vmem>>, %arg10: memref<1x32xf32, #tpu.memory_space<vmem>>, %arg11: memref<1x32xf32, #tpu.memory_space<vmem>>, %arg12: memref<1x32xf32, #tpu.memory_space<vmem>>, %arg13: memref<32x32xf32, #tpu.memory_space<vmem>>, %arg14: memref<32x32xf32, #tpu.memory_space<vmem>>) attributes {dimension_semantics = [], scalar_prefetch = 0 : i64, scratch_operands = 1 : i64, tpu.core_type = #tpu.core_type<tc>} {
    %c0 = arith.constant 0 : index
    %c0_0 = arith.constant 0 : index
    %0 = vector.load %arg0[%c0, %c0_0] : memref<32x32xf32, #tpu.memory_space<vmem>>, vector<32x32xf32>
    %c0_1 = arith.constant 0 : index
    %c0_2 = arith.constant 0 : index
    %1 = vector.load %arg1[%c0_1, %c0_2] : memref<32x96xf32, #tpu.memory_space<vmem>>, vector<32x96xf32>
    %cst = arith.constant dense<0.000000e+00> : vector<32x96xf32>
    %2 = tpu.matmul %0, %1, %cst {dimension_numbers = #tpu.dot_dimension_numbers<[1], [0], [0], [1], [0, 0, 1, 1], [], []>} : vector<32x32xf32>, vector<32x96xf32>, vector<32x96xf32> -> vector<32x96xf32>
    %c0_3 = arith.constant 0 : index
    %c0_4 = arith.constant 0 : index
    %3 = vector.load %arg2[%c0_3, %c0_4] : memref<1x96xf32, #tpu.memory_space<vmem>>, vector<1x96xf32>
    %4 = vector.broadcast %3 : vector<1x96xf32> to vector<32x96xf32>
    %5 = arith.addf %2, %4 : vector<32x96xf32>
    %c0_5 = arith.constant 0 : index
    %c0_6 = arith.constant 0 : index
    %6 = vector.load %arg3[%c0_5, %c0_6] : memref<32x32xf32, #tpu.memory_space<vmem>>, vector<32x32xf32>
    %cst_7 = arith.constant 0.000000e+00 : f32
    %7 = vector.broadcast %cst_7 : f32 to vector<16x32xf32>
    %8 = vector.extract_strided_slice %5 {offsets = [0, 0], sizes = [16, 8], strides = [1, 1]} : vector<32x96xf32> to vector<16x8xf32>
    %9 = vector.extract_strided_slice %5 {offsets = [0, 32], sizes = [16, 8], strides = [1, 1]} : vector<32x96xf32> to vector<16x8xf32>
    %10 = vector.extract_strided_slice %5 {offsets = [0, 64], sizes = [16, 8], strides = [1, 1]} : vector<32x96xf32> to vector<16x8xf32>
    %cst_8 = arith.constant dense<0.000000e+00> : vector<16x16xf32>
    %11 = tpu.matmul %8, %9, %cst_8 {dimension_numbers = #tpu.dot_dimension_numbers<[1], [1], [0], [0], [0, 0, 1, 0], [], []>} : vector<16x8xf32>, vector<16x8xf32>, vector<16x16xf32> -> vector<16x16xf32>
    %cst_9 = arith.constant 0.353553385 : f32
    %12 = vector.broadcast %cst_9 : f32 to vector<16x16xf32>
    %13 = arith.mulf %11, %12 : vector<16x16xf32>
    %cst_10 = arith.constant dense<0xFF800000> : vector<16xf32>
    %14 = vector.multi_reduction <maximumf>, %13, %cst_10 [1] : vector<16x16xf32> to vector<16xf32>
    %15 = vector.shape_cast %14 : vector<16xf32> to vector<16x1xf32>
    %16 = vector.broadcast %15 : vector<16x1xf32> to vector<16x16xf32>
    %17 = arith.subf %13, %16 : vector<16x16xf32>
    %18 = math.exp %17 : vector<16x16xf32>
    %cst_11 = arith.constant dense<0.000000e+00> : vector<16xf32>
    %19 = vector.multi_reduction <add>, %18, %cst_11 [1] : vector<16x16xf32> to vector<16xf32>
    %20 = vector.shape_cast %19 : vector<16xf32> to vector<16x1xf32>
    %21 = tpu.reciprocal %20 {approx = true} : vector<16x1xf32> -> vector<16x1xf32>
    %22 = vector.broadcast %21 : vector<16x1xf32> to vector<16x16xf32>
    %23 = arith.mulf %18, %22 : vector<16x16xf32>
    %cst_12 = arith.constant dense<0.000000e+00> : vector<16x8xf32>
    %24 = tpu.matmul %23, %10, %cst_12 {dimension_numbers = #tpu.dot_dimension_numbers<[1], [0], [0], [1], [0, 0, 1, 1], [], []>} : vector<16x16xf32>, vector<16x8xf32>, vector<16x8xf32> -> vector<16x8xf32>
    %25 = vector.extract_strided_slice %6 {offsets = [0, 0], sizes = [8, 32], strides = [1, 1]} : vector<32x32xf32> to vector<8x32xf32>
    %cst_13 = arith.constant dense<0.000000e+00> : vector<16x32xf32>
    %26 = tpu.matmul %24, %25, %cst_13 {dimension_numbers = #tpu.dot_dimension_numbers<[1], [0], [0], [1], [0, 0, 1, 1], [], []>} : vector<16x8xf32>, vector<8x32xf32>, vector<16x32xf32> -> vector<16x32xf32>
    %27 = arith.addf %7, %26 : vector<16x32xf32>
    %28 = vector.extract_strided_slice %5 {offsets = [0, 8], sizes = [16, 8], strides = [1, 1]} : vector<32x96xf32> to vector<16x8xf32>
    %29 = vector.extract_strided_slice %5 {offsets = [0, 40], sizes = [16, 8], strides = [1, 1]} : vector<32x96xf32> to vector<16x8xf32>
    %30 = vector.extract_strided_slice %5 {offsets = [0, 72], sizes = [16, 8], strides = [1, 1]} : vector<32x96xf32> to vector<16x8xf32>
    %cst_14 = arith.constant dense<0.000000e+00> : vector<16x16xf32>
    %31 = tpu.matmul %28, %29, %cst_14 {dimension_numbers = #tpu.dot_dimension_numbers<[1], [1], [0], [0], [0, 0, 1, 0], [], []>} : vector<16x8xf32>, vector<16x8xf32>, vector<16x16xf32> -> vector<16x16xf32>
    %cst_15 = arith.constant 0.353553385 : f32
    %32 = vector.broadcast %cst_15 : f32 to vector<16x16xf32>
    %33 = arith.mulf %31, %32 : vector<16x16xf32>
    %cst_16 = arith.constant dense<0xFF800000> : vector<16xf32>
    %34 = vector.multi_reduction <maximumf>, %33, %cst_16 [1] : vector<16x16xf32> to vector<16xf32>
    %35 = vector.shape_cast %34 : vector<16xf32> to vector<16x1xf32>
    %36 = vector.broadcast %35 : vector<16x1xf32> to vector<16x16xf32>
    %37 = arith.subf %33, %36 : vector<16x16xf32>
    %38 = math.exp %37 : vector<16x16xf32>
    %cst_17 = arith.constant dense<0.000000e+00> : vector<16xf32>
    %39 = vector.multi_reduction <add>, %38, %cst_17 [1] : vector<16x16xf32> to vector<16xf32>
    %40 = vector.shape_cast %39 : vector<16xf32> to vector<16x1xf32>
    %41 = tpu.reciprocal %40 {approx = true} : vector<16x1xf32> -> vector<16x1xf32>
    %42 = vector.broadcast %41 : vector<16x1xf32> to vector<16x16xf32>
    %43 = arith.mulf %38, %42 : vector<16x16xf32>
    %cst_18 = arith.constant dense<0.000000e+00> : vector<16x8xf32>
    %44 = tpu.matmul %43, %30, %cst_18 {dimension_numbers = #tpu.dot_dimension_numbers<[1], [0], [0], [1], [0, 0, 1, 1], [], []>} : vector<16x16xf32>, vector<16x8xf32>, vector<16x8xf32> -> vector<16x8xf32>
    %45 = vector.extract_strided_slice %6 {offsets = [8, 0], sizes = [8, 32], strides = [1, 1]} : vector<32x32xf32> to vector<8x32xf32>
    %cst_19 = arith.constant dense<0.000000e+00> : vector<16x32xf32>
    %46 = tpu.matmul %44, %45, %cst_19 {dimension_numbers = #tpu.dot_dimension_numbers<[1], [0], [0], [1], [0, 0, 1, 1], [], []>} : vector<16x8xf32>, vector<8x32xf32>, vector<16x32xf32> -> vector<16x32xf32>
    %47 = arith.addf %27, %46 : vector<16x32xf32>
    %48 = vector.extract_strided_slice %5 {offsets = [0, 16], sizes = [16, 8], strides = [1, 1]} : vector<32x96xf32> to vector<16x8xf32>
    %49 = vector.extract_strided_slice %5 {offsets = [0, 48], sizes = [16, 8], strides = [1, 1]} : vector<32x96xf32> to vector<16x8xf32>
    %50 = vector.extract_strided_slice %5 {offsets = [0, 80], sizes = [16, 8], strides = [1, 1]} : vector<32x96xf32> to vector<16x8xf32>
    %cst_20 = arith.constant dense<0.000000e+00> : vector<16x16xf32>
    %51 = tpu.matmul %48, %49, %cst_20 {dimension_numbers = #tpu.dot_dimension_numbers<[1], [1], [0], [0], [0, 0, 1, 0], [], []>} : vector<16x8xf32>, vector<16x8xf32>, vector<16x16xf32> -> vector<16x16xf32>
    %cst_21 = arith.constant 0.353553385 : f32
    %52 = vector.broadcast %cst_21 : f32 to vector<16x16xf32>
    %53 = arith.mulf %51, %52 : vector<16x16xf32>
    %cst_22 = arith.constant dense<0xFF800000> : vector<16xf32>
    %54 = vector.multi_reduction <maximumf>, %53, %cst_22 [1] : vector<16x16xf32> to vector<16xf32>
    %55 = vector.shape_cast %54 : vector<16xf32> to vector<16x1xf32>
    %56 = vector.broadcast %55 : vector<16x1xf32> to vector<16x16xf32>
    %57 = arith.subf %53, %56 : vector<16x16xf32>
    %58 = math.exp %57 : vector<16x16xf32>
    %cst_23 = arith.constant dense<0.000000e+00> : vector<16xf32>
    %59 = vector.multi_reduction <add>, %58, %cst_23 [1] : vector<16x16xf32> to vector<16xf32>
    %60 = vector.shape_cast %59 : vector<16xf32> to vector<16x1xf32>
    %61 = tpu.reciprocal %60 {approx = true} : vector<16x1xf32> -> vector<16x1xf32>
    %62 = vector.broadcast %61 : vector<16x1xf32> to vector<16x16xf32>
    %63 = arith.mulf %58, %62 : vector<16x16xf32>
    %cst_24 = arith.constant dense<0.000000e+00> : vector<16x8xf32>
    %64 = tpu.matmul %63, %50, %cst_24 {dimension_numbers = #tpu.dot_dimension_numbers<[1], [0], [0], [1], [0, 0, 1, 1], [], []>} : vector<16x16xf32>, vector<16x8xf32>, vector<16x8xf32> -> vector<16x8xf32>
    %65 = vector.extract_strided_slice %6 {offsets = [16, 0], sizes = [8, 32], strides = [1, 1]} : vector<32x32xf32> to vector<8x32xf32>
    %cst_25 = arith.constant dense<0.000000e+00> : vector<16x32xf32>
    %66 = tpu.matmul %64, %65, %cst_25 {dimension_numbers = #tpu.dot_dimension_numbers<[1], [0], [0], [1], [0, 0, 1, 1], [], []>} : vector<16x8xf32>, vector<8x32xf32>, vector<16x32xf32> -> vector<16x32xf32>
    %67 = arith.addf %47, %66 : vector<16x32xf32>
    %68 = vector.extract_strided_slice %5 {offsets = [0, 24], sizes = [16, 8], strides = [1, 1]} : vector<32x96xf32> to vector<16x8xf32>
    %69 = vector.extract_strided_slice %5 {offsets = [0, 56], sizes = [16, 8], strides = [1, 1]} : vector<32x96xf32> to vector<16x8xf32>
    %70 = vector.extract_strided_slice %5 {offsets = [0, 88], sizes = [16, 8], strides = [1, 1]} : vector<32x96xf32> to vector<16x8xf32>
    %cst_26 = arith.constant dense<0.000000e+00> : vector<16x16xf32>
    %71 = tpu.matmul %68, %69, %cst_26 {dimension_numbers = #tpu.dot_dimension_numbers<[1], [1], [0], [0], [0, 0, 1, 0], [], []>} : vector<16x8xf32>, vector<16x8xf32>, vector<16x16xf32> -> vector<16x16xf32>
    %cst_27 = arith.constant 0.353553385 : f32
    %72 = vector.broadcast %cst_27 : f32 to vector<16x16xf32>
    %73 = arith.mulf %71, %72 : vector<16x16xf32>
    %cst_28 = arith.constant dense<0xFF800000> : vector<16xf32>
    %74 = vector.multi_reduction <maximumf>, %73, %cst_28 [1] : vector<16x16xf32> to vector<16xf32>
    %75 = vector.shape_cast %74 : vector<16xf32> to vector<16x1xf32>
    %76 = vector.broadcast %75 : vector<16x1xf32> to vector<16x16xf32>
    %77 = arith.subf %73, %76 : vector<16x16xf32>
    %78 = math.exp %77 : vector<16x16xf32>
    %cst_29 = arith.constant dense<0.000000e+00> : vector<16xf32>
    %79 = vector.multi_reduction <add>, %78, %cst_29 [1] : vector<16x16xf32> to vector<16xf32>
    %80 = vector.shape_cast %79 : vector<16xf32> to vector<16x1xf32>
    %81 = tpu.reciprocal %80 {approx = true} : vector<16x1xf32> -> vector<16x1xf32>
    %82 = vector.broadcast %81 : vector<16x1xf32> to vector<16x16xf32>
    %83 = arith.mulf %78, %82 : vector<16x16xf32>
    %cst_30 = arith.constant dense<0.000000e+00> : vector<16x8xf32>
    %84 = tpu.matmul %83, %70, %cst_30 {dimension_numbers = #tpu.dot_dimension_numbers<[1], [0], [0], [1], [0, 0, 1, 1], [], []>} : vector<16x16xf32>, vector<16x8xf32>, vector<16x8xf32> -> vector<16x8xf32>
    %85 = vector.extract_strided_slice %6 {offsets = [24, 0], sizes = [8, 32], strides = [1, 1]} : vector<32x32xf32> to vector<8x32xf32>
    %cst_31 = arith.constant dense<0.000000e+00> : vector<16x32xf32>
    %86 = tpu.matmul %84, %85, %cst_31 {dimension_numbers = #tpu.dot_dimension_numbers<[1], [0], [0], [1], [0, 0, 1, 1], [], []>} : vector<16x8xf32>, vector<8x32xf32>, vector<16x32xf32> -> vector<16x32xf32>
    %87 = arith.addf %67, %86 : vector<16x32xf32>
    %c0_32 = arith.constant 0 : index
    %c0_33 = arith.constant 0 : index
    %88 = vector.load %arg14[%c0_32, %c0_33] : memref<32x32xf32, #tpu.memory_space<vmem>>, vector<16x32xf32>
    tpu.vector_store %arg14[%c0_32, %c0_33], %87 {strides = array<i32>} : memref<32x32xf32, #tpu.memory_space<vmem>>, vector<16x32xf32>,
    %cst_34 = arith.constant 0.000000e+00 : f32
    %89 = vector.broadcast %cst_34 : f32 to vector<16x32xf32>
    %90 = vector.extract_strided_slice %5 {offsets = [16, 0], sizes = [16, 8], strides = [1, 1]} : vector<32x96xf32> to vector<16x8xf32>
    %91 = vector.extract_strided_slice %5 {offsets = [16, 32], sizes = [16, 8], strides = [1, 1]} : vector<32x96xf32> to vector<16x8xf32>
    %92 = vector.extract_strided_slice %5 {offsets = [16, 64], sizes = [16, 8], strides = [1, 1]} : vector<32x96xf32> to vector<16x8xf32>
    %cst_35 = arith.constant dense<0.000000e+00> : vector<16x16xf32>
    %93 = tpu.matmul %90, %91, %cst_35 {dimension_numbers = #tpu.dot_dimension_numbers<[1], [1], [0], [0], [0, 0, 1, 0], [], []>} : vector<16x8xf32>, vector<16x8xf32>, vector<16x16xf32> -> vector<16x16xf32>
    %cst_36 = arith.constant 0.353553385 : f32
    %94 = vector.broadcast %cst_36 : f32 to vector<16x16xf32>
    %95 = arith.mulf %93, %94 : vector<16x16xf32>
    %cst_37 = arith.constant dense<0xFF800000> : vector<16xf32>
    %96 = vector.multi_reduction <maximumf>, %95, %cst_37 [1] : vector<16x16xf32> to vector<16xf32>
    %97 = vector.shape_cast %96 : vector<16xf32> to vector<16x1xf32>
    %98 = vector.broadcast %97 : vector<16x1xf32> to vector<16x16xf32>
    %99 = arith.subf %95, %98 : vector<16x16xf32>
    %100 = math.exp %99 : vector<16x16xf32>
    %cst_38 = arith.constant dense<0.000000e+00> : vector<16xf32>
    %101 = vector.multi_reduction <add>, %100, %cst_38 [1] : vector<16x16xf32> to vector<16xf32>
    %102 = vector.shape_cast %101 : vector<16xf32> to vector<16x1xf32>
    %103 = tpu.reciprocal %102 {approx = true} : vector<16x1xf32> -> vector<16x1xf32>
    %104 = vector.broadcast %103 : vector<16x1xf32> to vector<16x16xf32>
    %105 = arith.mulf %100, %104 : vector<16x16xf32>
    %cst_39 = arith.constant dense<0.000000e+00> : vector<16x8xf32>
    %106 = tpu.matmul %105, %92, %cst_39 {dimension_numbers = #tpu.dot_dimension_numbers<[1], [0], [0], [1], [0, 0, 1, 1], [], []>} : vector<16x16xf32>, vector<16x8xf32>, vector<16x8xf32> -> vector<16x8xf32>
    %107 = vector.extract_strided_slice %6 {offsets = [0, 0], sizes = [8, 32], strides = [1, 1]} : vector<32x32xf32> to vector<8x32xf32>
    %cst_40 = arith.constant dense<0.000000e+00> : vector<16x32xf32>
    %108 = tpu.matmul %106, %107, %cst_40 {dimension_numbers = #tpu.dot_dimension_numbers<[1], [0], [0], [1], [0, 0, 1, 1], [], []>} : vector<16x8xf32>, vector<8x32xf32>, vector<16x32xf32> -> vector<16x32xf32>
    %109 = arith.addf %89, %108 : vector<16x32xf32>
    %110 = vector.extract_strided_slice %5 {offsets = [16, 8], sizes = [16, 8], strides = [1, 1]} : vector<32x96xf32> to vector<16x8xf32>
    %111 = vector.extract_strided_slice %5 {offsets = [16, 40], sizes = [16, 8], strides = [1, 1]} : vector<32x96xf32> to vector<16x8xf32>
    %112 = vector.extract_strided_slice %5 {offsets = [16, 72], sizes = [16, 8], strides = [1, 1]} : vector<32x96xf32> to vector<16x8xf32>
    %cst_41 = arith.constant dense<0.000000e+00> : vector<16x16xf32>
    %113 = tpu.matmul %110, %111, %cst_41 {dimension_numbers = #tpu.dot_dimension_numbers<[1], [1], [0], [0], [0, 0, 1, 0], [], []>} : vector<16x8xf32>, vector<16x8xf32>, vector<16x16xf32> -> vector<16x16xf32>
    %cst_42 = arith.constant 0.353553385 : f32
    %114 = vector.broadcast %cst_42 : f32 to vector<16x16xf32>
    %115 = arith.mulf %113, %114 : vector<16x16xf32>
    %cst_43 = arith.constant dense<0xFF800000> : vector<16xf32>
    %116 = vector.multi_reduction <maximumf>, %115, %cst_43 [1] : vector<16x16xf32> to vector<16xf32>
    %117 = vector.shape_cast %116 : vector<16xf32> to vector<16x1xf32>
    %118 = vector.broadcast %117 : vector<16x1xf32> to vector<16x16xf32>
    %119 = arith.subf %115, %118 : vector<16x16xf32>
    %120 = math.exp %119 : vector<16x16xf32>
    %cst_44 = arith.constant dense<0.000000e+00> : vector<16xf32>
    %121 = vector.multi_reduction <add>, %120, %cst_44 [1] : vector<16x16xf32> to vector<16xf32>
    %122 = vector.shape_cast %121 : vector<16xf32> to vector<16x1xf32>
    %123 = tpu.reciprocal %122 {approx = true} : vector<16x1xf32> -> vector<16x1xf32>
    %124 = vector.broadcast %123 : vector<16x1xf32> to vector<16x16xf32>
    %125 = arith.mulf %120, %124 : vector<16x16xf32>
    %cst_45 = arith.constant dense<0.000000e+00> : vector<16x8xf32>
    %126 = tpu.matmul %125, %112, %cst_45 {dimension_numbers = #tpu.dot_dimension_numbers<[1], [0], [0], [1], [0, 0, 1, 1], [], []>} : vector<16x16xf32>, vector<16x8xf32>, vector<16x8xf32> -> vector<16x8xf32>
    %127 = vector.extract_strided_slice %6 {offsets = [8, 0], sizes = [8, 32], strides = [1, 1]} : vector<32x32xf32> to vector<8x32xf32>
    %cst_46 = arith.constant dense<0.000000e+00> : vector<16x32xf32>
    %128 = tpu.matmul %126, %127, %cst_46 {dimension_numbers = #tpu.dot_dimension_numbers<[1], [0], [0], [1], [0, 0, 1, 1], [], []>} : vector<16x8xf32>, vector<8x32xf32>, vector<16x32xf32> -> vector<16x32xf32>
    %129 = arith.addf %109, %128 : vector<16x32xf32>
    %130 = vector.extract_strided_slice %5 {offsets = [16, 16], sizes = [16, 8], strides = [1, 1]} : vector<32x96xf32> to vector<16x8xf32>
    %131 = vector.extract_strided_slice %5 {offsets = [16, 48], sizes = [16, 8], strides = [1, 1]} : vector<32x96xf32> to vector<16x8xf32>
    %132 = vector.extract_strided_slice %5 {offsets = [16, 80], sizes = [16, 8], strides = [1, 1]} : vector<32x96xf32> to vector<16x8xf32>
    %cst_47 = arith.constant dense<0.000000e+00> : vector<16x16xf32>
    %133 = tpu.matmul %130, %131, %cst_47 {dimension_numbers = #tpu.dot_dimension_numbers<[1], [1], [0], [0], [0, 0, 1, 0], [], []>} : vector<16x8xf32>, vector<16x8xf32>, vector<16x16xf32> -> vector<16x16xf32>
    %cst_48 = arith.constant 0.353553385 : f32
    %134 = vector.broadcast %cst_48 : f32 to vector<16x16xf32>
    %135 = arith.mulf %133, %134 : vector<16x16xf32>
    %cst_49 = arith.constant dense<0xFF800000> : vector<16xf32>
    %136 = vector.multi_reduction <maximumf>, %135, %cst_49 [1] : vector<16x16xf32> to vector<16xf32>
    %137 = vector.shape_cast %136 : vector<16xf32> to vector<16x1xf32>
    %138 = vector.broadcast %137 : vector<16x1xf32> to vector<16x16xf32>
    %139 = arith.subf %135, %138 : vector<16x16xf32>
    %140 = math.exp %139 : vector<16x16xf32>
    %cst_50 = arith.constant dense<0.000000e+00> : vector<16xf32>
    %141 = vector.multi_reduction <add>, %140, %cst_50 [1] : vector<16x16xf32> to vector<16xf32>
    %142 = vector.shape_cast %141 : vector<16xf32> to vector<16x1xf32>
    %143 = tpu.reciprocal %142 {approx = true} : vector<16x1xf32> -> vector<16x1xf32>
    %144 = vector.broadcast %143 : vector<16x1xf32> to vector<16x16xf32>
    %145 = arith.mulf %140, %144 : vector<16x16xf32>
    %cst_51 = arith.constant dense<0.000000e+00> : vector<16x8xf32>
    %146 = tpu.matmul %145, %132, %cst_51 {dimension_numbers = #tpu.dot_dimension_numbers<[1], [0], [0], [1], [0, 0, 1, 1], [], []>} : vector<16x16xf32>, vector<16x8xf32>, vector<16x8xf32> -> vector<16x8xf32>
    %147 = vector.extract_strided_slice %6 {offsets = [16, 0], sizes = [8, 32], strides = [1, 1]} : vector<32x32xf32> to vector<8x32xf32>
    %cst_52 = arith.constant dense<0.000000e+00> : vector<16x32xf32>
    %148 = tpu.matmul %146, %147, %cst_52 {dimension_numbers = #tpu.dot_dimension_numbers<[1], [0], [0], [1], [0, 0, 1, 1], [], []>} : vector<16x8xf32>, vector<8x32xf32>, vector<16x32xf32> -> vector<16x32xf32>
    %149 = arith.addf %129, %148 : vector<16x32xf32>
    %150 = vector.extract_strided_slice %5 {offsets = [16, 24], sizes = [16, 8], strides = [1, 1]} : vector<32x96xf32> to vector<16x8xf32>
    %151 = vector.extract_strided_slice %5 {offsets = [16, 56], sizes = [16, 8], strides = [1, 1]} : vector<32x96xf32> to vector<16x8xf32>
    %152 = vector.extract_strided_slice %5 {offsets = [16, 88], sizes = [16, 8], strides = [1, 1]} : vector<32x96xf32> to vector<16x8xf32>
    %cst_53 = arith.constant dense<0.000000e+00> : vector<16x16xf32>
    %153 = tpu.matmul %150, %151, %cst_53 {dimension_numbers = #tpu.dot_dimension_numbers<[1], [1], [0], [0], [0, 0, 1, 0], [], []>} : vector<16x8xf32>, vector<16x8xf32>, vector<16x16xf32> -> vector<16x16xf32>
    %cst_54 = arith.constant 0.353553385 : f32
    %154 = vector.broadcast %cst_54 : f32 to vector<16x16xf32>
    %155 = arith.mulf %153, %154 : vector<16x16xf32>
    %cst_55 = arith.constant dense<0xFF800000> : vector<16xf32>
    %156 = vector.multi_reduction <maximumf>, %155, %cst_55 [1] : vector<16x16xf32> to vector<16xf32>
    %157 = vector.shape_cast %156 : vector<16xf32> to vector<16x1xf32>
    %158 = vector.broadcast %157 : vector<16x1xf32> to vector<16x16xf32>
    %159 = arith.subf %155, %158 : vector<16x16xf32>
    %160 = math.exp %159 : vector<16x16xf32>
    %cst_56 = arith.constant dense<0.000000e+00> : vector<16xf32>
    %161 = vector.multi_reduction <add>, %160, %cst_56 [1] : vector<16x16xf32> to vector<16xf32>
    %162 = vector.shape_cast %161 : vector<16xf32> to vector<16x1xf32>
    %163 = tpu.reciprocal %162 {approx = true} : vector<16x1xf32> -> vector<16x1xf32>
    %164 = vector.broadcast %163 : vector<16x1xf32> to vector<16x16xf32>
    %165 = arith.mulf %160, %164 : vector<16x16xf32>
    %cst_57 = arith.constant dense<0.000000e+00> : vector<16x8xf32>
    %166 = tpu.matmul %165, %152, %cst_57 {dimension_numbers = #tpu.dot_dimension_numbers<[1], [0], [0], [1], [0, 0, 1, 1], [], []>} : vector<16x16xf32>, vector<16x8xf32>, vector<16x8xf32> -> vector<16x8xf32>
    %167 = vector.extract_strided_slice %6 {offsets = [24, 0], sizes = [8, 32], strides = [1, 1]} : vector<32x32xf32> to vector<8x32xf32>
    %cst_58 = arith.constant dense<0.000000e+00> : vector<16x32xf32>
    %168 = tpu.matmul %166, %167, %cst_58 {dimension_numbers = #tpu.dot_dimension_numbers<[1], [0], [0], [1], [0, 0, 1, 1], [], []>} : vector<16x8xf32>, vector<8x32xf32>, vector<16x32xf32> -> vector<16x32xf32>
    %169 = arith.addf %149, %168 : vector<16x32xf32>
    %c16 = arith.constant 16 : index
    %c0_59 = arith.constant 0 : index
    %170 = vector.load %arg14[%c16, %c0_59] : memref<32x32xf32, #tpu.memory_space<vmem>>, vector<16x32xf32>
    tpu.vector_store %arg14[%c16, %c0_59], %169 {strides = array<i32>} : memref<32x32xf32, #tpu.memory_space<vmem>>, vector<16x32xf32>,
    %c0_60 = arith.constant 0 : index
    %c0_61 = arith.constant 0 : index
    %171 = vector.load %arg14[%c0_60, %c0_61] : memref<32x32xf32, #tpu.memory_space<vmem>>, vector<32x32xf32>
    %c0_62 = arith.constant 0 : index
    %c0_63 = arith.constant 0 : index
    %172 = vector.load %arg4[%c0_62, %c0_63] : memref<1x32xf32, #tpu.memory_space<vmem>>, vector<1x32xf32>
    %173 = vector.broadcast %172 : vector<1x32xf32> to vector<32x32xf32>
    %174 = arith.addf %171, %173 : vector<32x32xf32>
    %175 = arith.addf %0, %174 : vector<32x32xf32>
    %c0_64 = arith.constant 0 : index
    %c0_65 = arith.constant 0 : index
    %176 = vector.load %arg5[%c0_64, %c0_65] : memref<1x32xf32, #tpu.memory_space<vmem>>, vector<1x32xf32>
    %c0_66 = arith.constant 0 : index
    %c0_67 = arith.constant 0 : index
    %177 = vector.load %arg6[%c0_66, %c0_67] : memref<1x32xf32, #tpu.memory_space<vmem>>, vector<1x32xf32>
    %cst_68 = arith.constant dense<0.000000e+00> : vector<32xf32>
    %178 = vector.multi_reduction <add>, %175, %cst_68 [0] : vector<32x32xf32> to vector<32xf32>
    %179 = vector.shape_cast %178 : vector<32xf32> to vector<1x32xf32>
    %cst_69 = arith.constant 3.200000e+01 : f32
    %180 = vector.broadcast %cst_69 : f32 to vector<1x32xf32>
    %181 = arith.divf %179, %180 : vector<1x32xf32>
    %182 = vector.broadcast %181 : vector<1x32xf32> to vector<32x32xf32>
    %183 = arith.subf %175, %182 : vector<32x32xf32>
    %184 = arith.mulf %183, %183 : vector<32x32xf32>
    %cst_70 = arith.constant dense<0.000000e+00> : vector<32xf32>
    %185 = vector.multi_reduction <add>, %184, %cst_70 [0] : vector<32x32xf32> to vector<32xf32>
    %186 = vector.shape_cast %185 : vector<32xf32> to vector<1x32xf32>
    %cst_71 = arith.constant 3.200000e+01 : f32
    %187 = vector.broadcast %cst_71 : f32 to vector<1x32xf32>
    %188 = arith.divf %186, %187 : vector<1x32xf32>
    %189 = vector.broadcast %181 : vector<1x32xf32> to vector<32x32xf32>
    %190 = arith.subf %175, %189 : vector<32x32xf32>
    %cst_72 = arith.constant 9.99999974E-6 : f32
    %191 = vector.broadcast %cst_72 : f32 to vector<1x32xf32>
    %192 = arith.addf %188, %191 : vector<1x32xf32>
    %193 = math.rsqrt %192 : vector<1x32xf32>
    %194 = vector.broadcast %193 : vector<1x32xf32> to vector<32x32xf32>
    %195 = arith.mulf %190, %194 : vector<32x32xf32>
    %196 = vector.broadcast %176 : vector<1x32xf32> to vector<32x32xf32>
    %197 = arith.mulf %195, %196 : vector<32x32xf32>
    %198 = vector.broadcast %177 : vector<1x32xf32> to vector<32x32xf32>
    %199 = arith.addf %197, %198 : vector<32x32xf32>
    %c0_73 = arith.constant 0 : index
    %c0_74 = arith.constant 0 : index
    %200 = vector.load %arg7[%c0_73, %c0_74] : memref<32x64xf32, #tpu.memory_space<vmem>>, vector<32x64xf32>
    %cst_75 = arith.constant dense<0.000000e+00> : vector<32x64xf32>
    %201 = tpu.matmul %199, %200, %cst_75 {dimension_numbers = #tpu.dot_dimension_numbers<[1], [0], [0], [1], [0, 0, 1, 1], [], []>} : vector<32x32xf32>, vector<32x64xf32>, vector<32x64xf32> -> vector<32x64xf32>
    %c0_76 = arith.constant 0 : index
    %c0_77 = arith.constant 0 : index
    %202 = vector.load %arg8[%c0_76, %c0_77] : memref<1x64xf32, #tpu.memory_space<vmem>>, vector<1x64xf32>
    %203 = vector.broadcast %202 : vector<1x64xf32> to vector<32x64xf32>
    %204 = arith.addf %201, %203 : vector<32x64xf32>
    %cst_78 = arith.constant 5.000000e-01 : f32
    %205 = vector.broadcast %cst_78 : f32 to vector<32x64xf32>
    %206 = arith.mulf %205, %204 : vector<32x64xf32>
    %cst_79 = arith.constant 4.471500e-02 : f32
    %207 = vector.broadcast %cst_79 : f32 to vector<32x64xf32>
    %208 = arith.mulf %207, %204 : vector<32x64xf32>
    %209 = arith.mulf %208, %204 : vector<32x64xf32>
    %210 = arith.mulf %209, %204 : vector<32x64xf32>
    %211 = arith.addf %204, %210 : vector<32x64xf32>
    %cst_80 = arith.constant 0.797884583 : f32
    %212 = vector.broadcast %cst_80 : f32 to vector<32x64xf32>
    %213 = arith.mulf %212, %211 : vector<32x64xf32>
    %214 = math.tanh %213 : vector<32x64xf32>
    %cst_81 = arith.constant 1.000000e+00 : f32
    %215 = vector.broadcast %cst_81 : f32 to vector<32x64xf32>
    %216 = arith.addf %215, %214 : vector<32x64xf32>
    %217 = arith.mulf %206, %216 : vector<32x64xf32>
    %c0_82 = arith.constant 0 : index
    %c0_83 = arith.constant 0 : index
    %218 = vector.load %arg9[%c0_82, %c0_83] : memref<64x32xf32, #tpu.memory_space<vmem>>, vector<64x32xf32>
    %cst_84 = arith.constant dense<0.000000e+00> : vector<32x32xf32>
    %219 = tpu.matmul %217, %218, %cst_84 {dimension_numbers = #tpu.dot_dimension_numbers<[1], [0], [0], [1], [0, 0, 1, 1], [], []>} : vector<32x64xf32>, vector<64x32xf32>, vector<32x32xf32> -> vector<32x32xf32>
    %c0_85 = arith.constant 0 : index
    %c0_86 = arith.constant 0 : index
    %220 = vector.load %arg10[%c0_85, %c0_86] : memref<1x32xf32, #tpu.memory_space<vmem>>, vector<1x32xf32>
    %221 = vector.broadcast %220 : vector<1x32xf32> to vector<32x32xf32>
    %222 = arith.addf %219, %221 : vector<32x32xf32>
    %223 = arith.addf %199, %222 : vector<32x32xf32>
    %c0_87 = arith.constant 0 : index
    %c0_88 = arith.constant 0 : index
    %224 = vector.load %arg11[%c0_87, %c0_88] : memref<1x32xf32, #tpu.memory_space<vmem>>, vector<1x32xf32>
    %c0_89 = arith.constant 0 : index
    %c0_90 = arith.constant 0 : index
    %225 = vector.load %arg12[%c0_89, %c0_90] : memref<1x32xf32, #tpu.memory_space<vmem>>, vector<1x32xf32>
    %cst_91 = arith.constant dense<0.000000e+00> : vector<32xf32>
    %226 = vector.multi_reduction <add>, %223, %cst_91 [0] : vector<32x32xf32> to vector<32xf32>
    %227 = vector.shape_cast %226 : vector<32xf32> to vector<1x32xf32>
    %cst_92 = arith.constant 3.200000e+01 : f32
    %228 = vector.broadcast %cst_92 : f32 to vector<1x32xf32>
    %229 = arith.divf %227, %228 : vector<1x32xf32>
    %230 = vector.broadcast %229 : vector<1x32xf32> to vector<32x32xf32>
    %231 = arith.subf %223, %230 : vector<32x32xf32>
    %232 = arith.mulf %231, %231 : vector<32x32xf32>
    %cst_93 = arith.constant dense<0.000000e+00> : vector<32xf32>
    %233 = vector.multi_reduction <add>, %232, %cst_93 [0] : vector<32x32xf32> to vector<32xf32>
    %234 = vector.shape_cast %233 : vector<32xf32> to vector<1x32xf32>
    %cst_94 = arith.constant 3.200000e+01 : f32
    %235 = vector.broadcast %cst_94 : f32 to vector<1x32xf32>
    %236 = arith.divf %234, %235 : vector<1x32xf32>
    %237 = vector.broadcast %229 : vector<1x32xf32> to vector<32x32xf32>
    %238 = arith.subf %223, %237 : vector<32x32xf32>
    %cst_95 = arith.constant 9.99999974E-6 : f32
    %239 = vector.broadcast %cst_95 : f32 to vector<1x32xf32>
    %240 = arith.addf %236, %239 : vector<1x32xf32>
    %241 = math.rsqrt %240 : vector<1x32xf32>
    %242 = vector.broadcast %241 : vector<1x32xf32> to vector<32x32xf32>
    %243 = arith.mulf %238, %242 : vector<32x32xf32>
    %244 = vector.broadcast %224 : vector<1x32xf32> to vector<32x32xf32>
    %245 = arith.mulf %243, %244 : vector<32x32xf32>
    %246 = vector.broadcast %225 : vector<1x32xf32> to vector<32x32xf32>
    %247 = arith.addf %245, %246 : vector<32x32xf32>
    %c0_96 = arith.constant 0 : index
    %c0_97 = arith.constant 0 : index
    %248 = vector.load %arg13[%c0_96, %c0_97] : memref<32x32xf32, #tpu.memory_space<vmem>>, vector<32x32xf32>
    tpu.vector_store %arg13[%c0_96, %c0_97], %247 {strides = array<i32>} : memref<32x32xf32, #tpu.memory_space<vmem>>, vector<32x32xf32>,
    return
  }
}

module attributes {stable_mosaic.version = 11 : i64} {
  func.func @_mamba_ffn_kernel(%arg0: memref<32x32xf32, #tpu.memory_space<vmem>>, %arg1: memref<32x1xf32, #tpu.memory_space<vmem>>, %arg2: memref<32x128xf32, #tpu.memory_space<vmem>>, %arg3: memref<4x64xf32, #tpu.memory_space<vmem>>, %arg4: memref<1x64xf32, #tpu.memory_space<vmem>>, %arg5: memref<64x64xf32, #tpu.memory_space<vmem>>, %arg6: memref<1x64xf32, #tpu.memory_space<vmem>>, %arg7: memref<42x64xf32, #tpu.memory_space<vmem>>, %arg8: memref<21x64xf32, #tpu.memory_space<vmem>>, %arg9: memref<1x64xf32, #tpu.memory_space<vmem>>, %arg10: memref<64x32xf32, #tpu.memory_space<vmem>>, %arg11: memref<1x32xf32, #tpu.memory_space<vmem>>, %arg12: memref<1x32xf32, #tpu.memory_space<vmem>>, %arg13: memref<32x32xf32, #tpu.memory_space<vmem>>, %arg14: memref<1x32xf32, #tpu.memory_space<vmem>>, %arg15: memref<32x32xf32, #tpu.memory_space<vmem>>, %arg16: memref<1x32xf32, #tpu.memory_space<vmem>>, %arg17: memref<1x32xf32, #tpu.memory_space<vmem>>, %arg18: memref<1x32xf32, #tpu.memory_space<vmem>>, %arg19: memref<32x32xf32, #tpu.memory_space<vmem>>, %arg20: memref<40x64xf32, #tpu.memory_space<vmem>>, %arg21: memref<32x64xf32, #tpu.memory_space<vmem>>) attributes {dimension_semantics = [], scalar_prefetch = 0 : i64, scratch_operands = 2 : i64, tpu.core_type = #tpu.core_type<tc>} {
    %c0 = arith.constant 0 : index
    %c0_0 = arith.constant 0 : index
    %0 = vector.load %arg0[%c0, %c0_0] : memref<32x32xf32, #tpu.memory_space<vmem>>, vector<32x32xf32>
    %c0_1 = arith.constant 0 : index
    %c0_2 = arith.constant 0 : index
    %1 = vector.load %arg1[%c0_1, %c0_2] : memref<32x1xf32, #tpu.memory_space<vmem>>, vector<32x1xf32>
    %c0_3 = arith.constant 0 : index
    %c0_4 = arith.constant 0 : index
    %2 = vector.load %arg2[%c0_3, %c0_4] : memref<32x128xf32, #tpu.memory_space<vmem>>, vector<32x128xf32>
    %cst = arith.constant dense<0.000000e+00> : vector<32x128xf32>
    %3 = tpu.matmul %0, %2, %cst {dimension_numbers = #tpu.dot_dimension_numbers<[1], [0], [0], [1], [0, 0, 1, 1], [], []>} : vector<32x32xf32>, vector<32x128xf32>, vector<32x128xf32> -> vector<32x128xf32>
    %4 = vector.extract_strided_slice %3 {offsets = [0, 0], sizes = [32, 64], strides = [1, 1]} : vector<32x128xf32> to vector<32x64xf32>
    %5 = vector.extract_strided_slice %3 {offsets = [0, 64], sizes = [32, 64], strides = [1, 1]} : vector<32x128xf32> to vector<32x64xf32>
    %c0_5 = arith.constant 0 : index
    %c0_6 = arith.constant 0 : index
    %6 = vector.load %arg3[%c0_5, %c0_6] : memref<4x64xf32, #tpu.memory_space<vmem>>, vector<4x64xf32>
    %cst_7 = arith.constant 0.000000e+00 : f32
    %7 = vector.broadcast %cst_7 : f32 to vector<8x64xf32>
    %c0_8 = arith.constant 0 : index
    %c0_9 = arith.constant 0 : index
    %8 = vector.load %arg20[%c0_8, %c0_9] : memref<40x64xf32, #tpu.memory_space<vmem>>, vector<8x64xf32>
    tpu.vector_store %arg20[%c0_8, %c0_9], %7 {strides = array<i32>} : memref<40x64xf32, #tpu.memory_space<vmem>>, vector<8x64xf32>,
    %c8 = arith.constant 8 : index
    %c0_10 = arith.constant 0 : index
    %9 = vector.load %arg20[%c8, %c0_10] : memref<40x64xf32, #tpu.memory_space<vmem>>, vector<32x64xf32>
    tpu.vector_store %arg20[%c8, %c0_10], %4 {strides = array<i32>} : memref<40x64xf32, #tpu.memory_space<vmem>>, vector<32x64xf32>,
    %c0_11 = arith.constant 0 : index
    %c0_12 = arith.constant 0 : index
    %10 = vector.load %arg4[%c0_11, %c0_12] : memref<1x64xf32, #tpu.memory_space<vmem>>, vector<1x64xf32>
    %11 = vector.extract_strided_slice %6 {offsets = [3, 0], sizes = [1, 64], strides = [1, 1]} : vector<4x64xf32> to vector<1x64xf32>
    %12 = vector.broadcast %11 : vector<1x64xf32> to vector<32x64xf32>
    %13 = arith.mulf %4, %12 : vector<32x64xf32>
    %14 = vector.broadcast %10 : vector<1x64xf32> to vector<32x64xf32>
    %15 = arith.addf %14, %13 : vector<32x64xf32>
    %c7 = arith.constant 7 : index
    %c0_13 = arith.constant 0 : index
    %16 = vector.load %arg20[%c7, %c0_13] : memref<40x64xf32, #tpu.memory_space<vmem>>, vector<32x64xf32>
    %cst_14 = arith.constant 1.000000e+00 : f32
    %17 = vector.broadcast %cst_14 : f32 to vector<32x1xf32>
    %18 = arith.cmpf oge, %1, %17 : vector<32x1xf32>
    %cst_15 = arith.constant 0.000000e+00 : f32
    %19 = vector.shape_cast %18 : vector<32x1xi1> to vector<32x1xi1>
    %20 = vector.broadcast %19 : vector<32x1xi1> to vector<32x64xi1>
    %21 = vector.broadcast %cst_15 : f32 to vector<32x64xf32>
    %22 = arith.select %20, %16, %21 : vector<32x64xi1>, vector<32x64xf32>
    %23 = vector.extract_strided_slice %6 {offsets = [2, 0], sizes = [1, 64], strides = [1, 1]} : vector<4x64xf32> to vector<1x64xf32>
    %24 = vector.broadcast %23 : vector<1x64xf32> to vector<32x64xf32>
    %25 = arith.mulf %22, %24 : vector<32x64xf32>
    %26 = arith.addf %15, %25 : vector<32x64xf32>
    %c6 = arith.constant 6 : index
    %c0_16 = arith.constant 0 : index
    %27 = vector.load %arg20[%c6, %c0_16] : memref<40x64xf32, #tpu.memory_space<vmem>>, vector<32x64xf32>
    %cst_17 = arith.constant 2.000000e+00 : f32
    %28 = vector.broadcast %cst_17 : f32 to vector<32x1xf32>
    %29 = arith.cmpf oge, %1, %28 : vector<32x1xf32>
    %cst_18 = arith.constant 0.000000e+00 : f32
    %30 = vector.shape_cast %29 : vector<32x1xi1> to vector<32x1xi1>
    %31 = vector.broadcast %30 : vector<32x1xi1> to vector<32x64xi1>
    %32 = vector.broadcast %cst_18 : f32 to vector<32x64xf32>
    %33 = arith.select %31, %27, %32 : vector<32x64xi1>, vector<32x64xf32>
    %34 = vector.extract_strided_slice %6 {offsets = [1, 0], sizes = [1, 64], strides = [1, 1]} : vector<4x64xf32> to vector<1x64xf32>
    %35 = vector.broadcast %34 : vector<1x64xf32> to vector<32x64xf32>
    %36 = arith.mulf %33, %35 : vector<32x64xf32>
    %37 = arith.addf %26, %36 : vector<32x64xf32>
    %c5 = arith.constant 5 : index
    %c0_19 = arith.constant 0 : index
    %38 = vector.load %arg20[%c5, %c0_19] : memref<40x64xf32, #tpu.memory_space<vmem>>, vector<32x64xf32>
    %cst_20 = arith.constant 3.000000e+00 : f32
    %39 = vector.broadcast %cst_20 : f32 to vector<32x1xf32>
    %40 = arith.cmpf oge, %1, %39 : vector<32x1xf32>
    %cst_21 = arith.constant 0.000000e+00 : f32
    %41 = vector.shape_cast %40 : vector<32x1xi1> to vector<32x1xi1>
    %42 = vector.broadcast %41 : vector<32x1xi1> to vector<32x64xi1>
    %43 = vector.broadcast %cst_21 : f32 to vector<32x64xf32>
    %44 = arith.select %42, %38, %43 : vector<32x64xi1>, vector<32x64xf32>
    %45 = vector.extract_strided_slice %6 {offsets = [0, 0], sizes = [1, 64], strides = [1, 1]} : vector<4x64xf32> to vector<1x64xf32>
    %46 = vector.broadcast %45 : vector<1x64xf32> to vector<32x64xf32>
    %47 = arith.mulf %44, %46 : vector<32x64xf32>
    %48 = arith.addf %37, %47 : vector<32x64xf32>
    %cst_22 = arith.constant 0.000000e+00 : f32
    %49 = vector.broadcast %cst_22 : f32 to vector<32x64xf32>
    %50 = arith.subf %49, %48 : vector<32x64xf32>
    %51 = math.exp %50 : vector<32x64xf32>
    %cst_23 = arith.constant 1.000000e+00 : f32
    %52 = vector.broadcast %cst_23 : f32 to vector<32x64xf32>
    %53 = arith.addf %52, %51 : vector<32x64xf32>
    %54 = tpu.reciprocal %53 {approx = true} : vector<32x64xf32> -> vector<32x64xf32>
    %55 = arith.mulf %48, %54 : vector<32x64xf32>
    %c0_24 = arith.constant 0 : index
    %c0_25 = arith.constant 0 : index
    %56 = vector.load %arg5[%c0_24, %c0_25] : memref<64x64xf32, #tpu.memory_space<vmem>>, vector<64x64xf32>
    %cst_26 = arith.constant dense<0.000000e+00> : vector<32x64xf32>
    %57 = tpu.matmul %55, %56, %cst_26 {dimension_numbers = #tpu.dot_dimension_numbers<[1], [0], [0], [1], [0, 0, 1, 1], [], []>} : vector<32x64xf32>, vector<64x64xf32>, vector<32x64xf32> -> vector<32x64xf32>
    %c0_27 = arith.constant 0 : index
    %c0_28 = arith.constant 0 : index
    %58 = vector.load %arg6[%c0_27, %c0_28] : memref<1x64xf32, #tpu.memory_space<vmem>>, vector<1x64xf32>
    %59 = vector.broadcast %58 : vector<1x64xf32> to vector<32x64xf32>
    %60 = arith.addf %57, %59 : vector<32x64xf32>
    %cst_29 = arith.constant 0.000000e+00 : f32
    %61 = vector.broadcast %cst_29 : f32 to vector<32x64xf32>
    %62 = arith.maximumf %60, %61 : vector<32x64xf32>
    %63 = math.absf %60 : vector<32x64xf32>
    %cst_30 = arith.constant 0.000000e+00 : f32
    %64 = vector.broadcast %cst_30 : f32 to vector<32x64xf32>
    %65 = arith.subf %64, %63 : vector<32x64xf32>
    %66 = math.exp %65 : vector<32x64xf32>
    %cst_31 = arith.constant 1.000000e+00 : f32
    %67 = vector.broadcast %cst_31 : f32 to vector<32x64xf32>
    %68 = arith.addf %67, %66 : vector<32x64xf32>
    %69 = math.log %68 : vector<32x64xf32>
    %70 = arith.addf %62, %69 : vector<32x64xf32>
    %c0_32 = arith.constant 0 : index
    %c0_33 = arith.constant 0 : index
    %71 = vector.load %arg7[%c0_32, %c0_33] : memref<42x64xf32, #tpu.memory_space<vmem>>, vector<42x64xf32>
    %cst_34 = arith.constant dense<0.000000e+00> : vector<42x32xf32>
    %72 = tpu.matmul %71, %55, %cst_34 {dimension_numbers = #tpu.dot_dimension_numbers<[1], [1], [0], [0], [0, 0, 1, 0], [], []>} : vector<42x64xf32>, vector<32x64xf32>, vector<42x32xf32> -> vector<42x32xf32>
    %c0_35 = arith.constant 0 : index
    %c0_36 = arith.constant 0 : index
    %73 = vector.load %arg8[%c0_35, %c0_36] : memref<21x64xf32, #tpu.memory_space<vmem>>, vector<21x64xf32>
    %cst_37 = arith.constant 0.000000e+00 : f32
    %74 = vector.broadcast %cst_37 : f32 to vector<21x64xf32>
    %75 = vector.extract_strided_slice %70 {offsets = [0, 0], sizes = [1, 64], strides = [1, 1]} : vector<32x64xf32> to vector<1x64xf32>
    %76 = vector.extract_strided_slice %55 {offsets = [0, 0], sizes = [1, 64], strides = [1, 1]} : vector<32x64xf32> to vector<1x64xf32>
    %77 = vector.extract_strided_slice %72 {offsets = [0, 0], sizes = [21, 1], strides = [1, 1]} : vector<42x32xf32> to vector<21x1xf32>
    %78 = vector.extract_strided_slice %72 {offsets = [21, 0], sizes = [21, 1], strides = [1, 1]} : vector<42x32xf32> to vector<21x1xf32>
    %79 = vector.broadcast %75 : vector<1x64xf32> to vector<21x64xf32>
    %80 = arith.mulf %79, %73 : vector<21x64xf32>
    %81 = math.exp %80 : vector<21x64xf32>
    %82 = arith.mulf %81, %74 : vector<21x64xf32>
    %83 = arith.mulf %75, %76 : vector<1x64xf32>
    %84 = vector.broadcast %77 : vector<21x1xf32> to vector<21x64xf32>
    %85 = vector.broadcast %83 : vector<1x64xf32> to vector<21x64xf32>
    %86 = arith.mulf %84, %85 : vector<21x64xf32>
    %87 = arith.addf %82, %86 : vector<21x64xf32>
    %88 = vector.broadcast %78 : vector<21x1xf32> to vector<21x64xf32>
    %89 = arith.mulf %88, %87 : vector<21x64xf32>
    %cst_38 = arith.constant dense<0.000000e+00> : vector<64xf32>
    %90 = vector.multi_reduction <add>, %89, %cst_38 [0] : vector<21x64xf32> to vector<64xf32>
    %91 = vector.shape_cast %90 : vector<64xf32> to vector<1x64xf32>
    %c0_39 = arith.constant 0 : index
    %c0_40 = arith.constant 0 : index
    %92 = vector.load %arg21[%c0_39, %c0_40] : memref<32x64xf32, #tpu.memory_space<vmem>>, vector<1x64xf32>
    tpu.vector_store %arg21[%c0_39, %c0_40], %91 {strides = array<i32>} : memref<32x64xf32, #tpu.memory_space<vmem>>, vector<1x64xf32>,
    %93 = vector.extract_strided_slice %70 {offsets = [1, 0], sizes = [1, 64], strides = [1, 1]} : vector<32x64xf32> to vector<1x64xf32>
    %94 = vector.extract_strided_slice %55 {offsets = [1, 0], sizes = [1, 64], strides = [1, 1]} : vector<32x64xf32> to vector<1x64xf32>
    %95 = vector.extract_strided_slice %72 {offsets = [0, 1], sizes = [21, 1], strides = [1, 1]} : vector<42x32xf32> to vector<21x1xf32>
    %96 = vector.extract_strided_slice %72 {offsets = [21, 1], sizes = [21, 1], strides = [1, 1]} : vector<42x32xf32> to vector<21x1xf32>
    %97 = vector.broadcast %93 : vector<1x64xf32> to vector<21x64xf32>
    %98 = arith.mulf %97, %73 : vector<21x64xf32>
    %99 = math.exp %98 : vector<21x64xf32>
    %100 = arith.mulf %99, %87 : vector<21x64xf32>
    %101 = arith.mulf %93, %94 : vector<1x64xf32>
    %102 = vector.broadcast %95 : vector<21x1xf32> to vector<21x64xf32>
    %103 = vector.broadcast %101 : vector<1x64xf32> to vector<21x64xf32>
    %104 = arith.mulf %102, %103 : vector<21x64xf32>
    %105 = arith.addf %100, %104 : vector<21x64xf32>
    %106 = vector.broadcast %96 : vector<21x1xf32> to vector<21x64xf32>
    %107 = arith.mulf %106, %105 : vector<21x64xf32>
    %cst_41 = arith.constant dense<0.000000e+00> : vector<64xf32>
    %108 = vector.multi_reduction <add>, %107, %cst_41 [0] : vector<21x64xf32> to vector<64xf32>
    %109 = vector.shape_cast %108 : vector<64xf32> to vector<1x64xf32>
    %c1 = arith.constant 1 : index
    %c0_42 = arith.constant 0 : index
    %110 = vector.load %arg21[%c1, %c0_42] : memref<32x64xf32, #tpu.memory_space<vmem>>, vector<1x64xf32>
    tpu.vector_store %arg21[%c1, %c0_42], %109 {strides = array<i32>} : memref<32x64xf32, #tpu.memory_space<vmem>>, vector<1x64xf32>,
    %111 = vector.extract_strided_slice %70 {offsets = [2, 0], sizes = [1, 64], strides = [1, 1]} : vector<32x64xf32> to vector<1x64xf32>
    %112 = vector.extract_strided_slice %55 {offsets = [2, 0], sizes = [1, 64], strides = [1, 1]} : vector<32x64xf32> to vector<1x64xf32>
    %113 = vector.extract_strided_slice %72 {offsets = [0, 2], sizes = [21, 1], strides = [1, 1]} : vector<42x32xf32> to vector<21x1xf32>
    %114 = vector.extract_strided_slice %72 {offsets = [21, 2], sizes = [21, 1], strides = [1, 1]} : vector<42x32xf32> to vector<21x1xf32>
    %115 = vector.broadcast %111 : vector<1x64xf32> to vector<21x64xf32>
    %116 = arith.mulf %115, %73 : vector<21x64xf32>
    %117 = math.exp %116 : vector<21x64xf32>
    %118 = arith.mulf %117, %105 : vector<21x64xf32>
    %119 = arith.mulf %111, %112 : vector<1x64xf32>
    %120 = vector.broadcast %113 : vector<21x1xf32> to vector<21x64xf32>
    %121 = vector.broadcast %119 : vector<1x64xf32> to vector<21x64xf32>
    %122 = arith.mulf %120, %121 : vector<21x64xf32>
    %123 = arith.addf %118, %122 : vector<21x64xf32>
    %124 = vector.broadcast %114 : vector<21x1xf32> to vector<21x64xf32>
    %125 = arith.mulf %124, %123 : vector<21x64xf32>
    %cst_43 = arith.constant dense<0.000000e+00> : vector<64xf32>
    %126 = vector.multi_reduction <add>, %125, %cst_43 [0] : vector<21x64xf32> to vector<64xf32>
    %127 = vector.shape_cast %126 : vector<64xf32> to vector<1x64xf32>
    %c2 = arith.constant 2 : index
    %c0_44 = arith.constant 0 : index
    %128 = vector.load %arg21[%c2, %c0_44] : memref<32x64xf32, #tpu.memory_space<vmem>>, vector<1x64xf32>
    tpu.vector_store %arg21[%c2, %c0_44], %127 {strides = array<i32>} : memref<32x64xf32, #tpu.memory_space<vmem>>, vector<1x64xf32>,
    %129 = vector.extract_strided_slice %70 {offsets = [3, 0], sizes = [1, 64], strides = [1, 1]} : vector<32x64xf32> to vector<1x64xf32>
    %130 = vector.extract_strided_slice %55 {offsets = [3, 0], sizes = [1, 64], strides = [1, 1]} : vector<32x64xf32> to vector<1x64xf32>
    %131 = vector.extract_strided_slice %72 {offsets = [0, 3], sizes = [21, 1], strides = [1, 1]} : vector<42x32xf32> to vector<21x1xf32>
    %132 = vector.extract_strided_slice %72 {offsets = [21, 3], sizes = [21, 1], strides = [1, 1]} : vector<42x32xf32> to vector<21x1xf32>
    %133 = vector.broadcast %129 : vector<1x64xf32> to vector<21x64xf32>
    %134 = arith.mulf %133, %73 : vector<21x64xf32>
    %135 = math.exp %134 : vector<21x64xf32>
    %136 = arith.mulf %135, %123 : vector<21x64xf32>
    %137 = arith.mulf %129, %130 : vector<1x64xf32>
    %138 = vector.broadcast %131 : vector<21x1xf32> to vector<21x64xf32>
    %139 = vector.broadcast %137 : vector<1x64xf32> to vector<21x64xf32>
    %140 = arith.mulf %138, %139 : vector<21x64xf32>
    %141 = arith.addf %136, %140 : vector<21x64xf32>
    %142 = vector.broadcast %132 : vector<21x1xf32> to vector<21x64xf32>
    %143 = arith.mulf %142, %141 : vector<21x64xf32>
    %cst_45 = arith.constant dense<0.000000e+00> : vector<64xf32>
    %144 = vector.multi_reduction <add>, %143, %cst_45 [0] : vector<21x64xf32> to vector<64xf32>
    %145 = vector.shape_cast %144 : vector<64xf32> to vector<1x64xf32>
    %c3 = arith.constant 3 : index
    %c0_46 = arith.constant 0 : index
    %146 = vector.load %arg21[%c3, %c0_46] : memref<32x64xf32, #tpu.memory_space<vmem>>, vector<1x64xf32>
    tpu.vector_store %arg21[%c3, %c0_46], %145 {strides = array<i32>} : memref<32x64xf32, #tpu.memory_space<vmem>>, vector<1x64xf32>,
    %147 = vector.extract_strided_slice %70 {offsets = [4, 0], sizes = [1, 64], strides = [1, 1]} : vector<32x64xf32> to vector<1x64xf32>
    %148 = vector.extract_strided_slice %55 {offsets = [4, 0], sizes = [1, 64], strides = [1, 1]} : vector<32x64xf32> to vector<1x64xf32>
    %149 = vector.extract_strided_slice %72 {offsets = [0, 4], sizes = [21, 1], strides = [1, 1]} : vector<42x32xf32> to vector<21x1xf32>
    %150 = vector.extract_strided_slice %72 {offsets = [21, 4], sizes = [21, 1], strides = [1, 1]} : vector<42x32xf32> to vector<21x1xf32>
    %151 = vector.broadcast %147 : vector<1x64xf32> to vector<21x64xf32>
    %152 = arith.mulf %151, %73 : vector<21x64xf32>
    %153 = math.exp %152 : vector<21x64xf32>
    %154 = arith.mulf %153, %141 : vector<21x64xf32>
    %155 = arith.mulf %147, %148 : vector<1x64xf32>
    %156 = vector.broadcast %149 : vector<21x1xf32> to vector<21x64xf32>
    %157 = vector.broadcast %155 : vector<1x64xf32> to vector<21x64xf32>
    %158 = arith.mulf %156, %157 : vector<21x64xf32>
    %159 = arith.addf %154, %158 : vector<21x64xf32>
    %160 = vector.broadcast %150 : vector<21x1xf32> to vector<21x64xf32>
    %161 = arith.mulf %160, %159 : vector<21x64xf32>
    %cst_47 = arith.constant dense<0.000000e+00> : vector<64xf32>
    %162 = vector.multi_reduction <add>, %161, %cst_47 [0] : vector<21x64xf32> to vector<64xf32>
    %163 = vector.shape_cast %162 : vector<64xf32> to vector<1x64xf32>
    %c4 = arith.constant 4 : index
    %c0_48 = arith.constant 0 : index
    %164 = vector.load %arg21[%c4, %c0_48] : memref<32x64xf32, #tpu.memory_space<vmem>>, vector<1x64xf32>
    tpu.vector_store %arg21[%c4, %c0_48], %163 {strides = array<i32>} : memref<32x64xf32, #tpu.memory_space<vmem>>, vector<1x64xf32>,
    %165 = vector.extract_strided_slice %70 {offsets = [5, 0], sizes = [1, 64], strides = [1, 1]} : vector<32x64xf32> to vector<1x64xf32>
    %166 = vector.extract_strided_slice %55 {offsets = [5, 0], sizes = [1, 64], strides = [1, 1]} : vector<32x64xf32> to vector<1x64xf32>
    %167 = vector.extract_strided_slice %72 {offsets = [0, 5], sizes = [21, 1], strides = [1, 1]} : vector<42x32xf32> to vector<21x1xf32>
    %168 = vector.extract_strided_slice %72 {offsets = [21, 5], sizes = [21, 1], strides = [1, 1]} : vector<42x32xf32> to vector<21x1xf32>
    %169 = vector.broadcast %165 : vector<1x64xf32> to vector<21x64xf32>
    %170 = arith.mulf %169, %73 : vector<21x64xf32>
    %171 = math.exp %170 : vector<21x64xf32>
    %172 = arith.mulf %171, %159 : vector<21x64xf32>
    %173 = arith.mulf %165, %166 : vector<1x64xf32>
    %174 = vector.broadcast %167 : vector<21x1xf32> to vector<21x64xf32>
    %175 = vector.broadcast %173 : vector<1x64xf32> to vector<21x64xf32>
    %176 = arith.mulf %174, %175 : vector<21x64xf32>
    %177 = arith.addf %172, %176 : vector<21x64xf32>
    %178 = vector.broadcast %168 : vector<21x1xf32> to vector<21x64xf32>
    %179 = arith.mulf %178, %177 : vector<21x64xf32>
    %cst_49 = arith.constant dense<0.000000e+00> : vector<64xf32>
    %180 = vector.multi_reduction <add>, %179, %cst_49 [0] : vector<21x64xf32> to vector<64xf32>
    %181 = vector.shape_cast %180 : vector<64xf32> to vector<1x64xf32>
    %c5_50 = arith.constant 5 : index
    %c0_51 = arith.constant 0 : index
    %182 = vector.load %arg21[%c5_50, %c0_51] : memref<32x64xf32, #tpu.memory_space<vmem>>, vector<1x64xf32>
    tpu.vector_store %arg21[%c5_50, %c0_51], %181 {strides = array<i32>} : memref<32x64xf32, #tpu.memory_space<vmem>>, vector<1x64xf32>,
    %183 = vector.extract_strided_slice %70 {offsets = [6, 0], sizes = [1, 64], strides = [1, 1]} : vector<32x64xf32> to vector<1x64xf32>
    %184 = vector.extract_strided_slice %55 {offsets = [6, 0], sizes = [1, 64], strides = [1, 1]} : vector<32x64xf32> to vector<1x64xf32>
    %185 = vector.extract_strided_slice %72 {offsets = [0, 6], sizes = [21, 1], strides = [1, 1]} : vector<42x32xf32> to vector<21x1xf32>
    %186 = vector.extract_strided_slice %72 {offsets = [21, 6], sizes = [21, 1], strides = [1, 1]} : vector<42x32xf32> to vector<21x1xf32>
    %187 = vector.broadcast %183 : vector<1x64xf32> to vector<21x64xf32>
    %188 = arith.mulf %187, %73 : vector<21x64xf32>
    %189 = math.exp %188 : vector<21x64xf32>
    %190 = arith.mulf %189, %177 : vector<21x64xf32>
    %191 = arith.mulf %183, %184 : vector<1x64xf32>
    %192 = vector.broadcast %185 : vector<21x1xf32> to vector<21x64xf32>
    %193 = vector.broadcast %191 : vector<1x64xf32> to vector<21x64xf32>
    %194 = arith.mulf %192, %193 : vector<21x64xf32>
    %195 = arith.addf %190, %194 : vector<21x64xf32>
    %196 = vector.broadcast %186 : vector<21x1xf32> to vector<21x64xf32>
    %197 = arith.mulf %196, %195 : vector<21x64xf32>
    %cst_52 = arith.constant dense<0.000000e+00> : vector<64xf32>
    %198 = vector.multi_reduction <add>, %197, %cst_52 [0] : vector<21x64xf32> to vector<64xf32>
    %199 = vector.shape_cast %198 : vector<64xf32> to vector<1x64xf32>
    %c6_53 = arith.constant 6 : index
    %c0_54 = arith.constant 0 : index
    %200 = vector.load %arg21[%c6_53, %c0_54] : memref<32x64xf32, #tpu.memory_space<vmem>>, vector<1x64xf32>
    tpu.vector_store %arg21[%c6_53, %c0_54], %199 {strides = array<i32>} : memref<32x64xf32, #tpu.memory_space<vmem>>, vector<1x64xf32>,
    %201 = vector.extract_strided_slice %70 {offsets = [7, 0], sizes = [1, 64], strides = [1, 1]} : vector<32x64xf32> to vector<1x64xf32>
    %202 = vector.extract_strided_slice %55 {offsets = [7, 0], sizes = [1, 64], strides = [1, 1]} : vector<32x64xf32> to vector<1x64xf32>
    %203 = vector.extract_strided_slice %72 {offsets = [0, 7], sizes = [21, 1], strides = [1, 1]} : vector<42x32xf32> to vector<21x1xf32>
    %204 = vector.extract_strided_slice %72 {offsets = [21, 7], sizes = [21, 1], strides = [1, 1]} : vector<42x32xf32> to vector<21x1xf32>
    %205 = vector.broadcast %201 : vector<1x64xf32> to vector<21x64xf32>
    %206 = arith.mulf %205, %73 : vector<21x64xf32>
    %207 = math.exp %206 : vector<21x64xf32>
    %208 = arith.mulf %207, %195 : vector<21x64xf32>
    %209 = arith.mulf %201, %202 : vector<1x64xf32>
    %210 = vector.broadcast %203 : vector<21x1xf32> to vector<21x64xf32>
    %211 = vector.broadcast %209 : vector<1x64xf32> to vector<21x64xf32>
    %212 = arith.mulf %210, %211 : vector<21x64xf32>
    %213 = arith.addf %208, %212 : vector<21x64xf32>
    %214 = vector.broadcast %204 : vector<21x1xf32> to vector<21x64xf32>
    %215 = arith.mulf %214, %213 : vector<21x64xf32>
    %cst_55 = arith.constant dense<0.000000e+00> : vector<64xf32>
    %216 = vector.multi_reduction <add>, %215, %cst_55 [0] : vector<21x64xf32> to vector<64xf32>
    %217 = vector.shape_cast %216 : vector<64xf32> to vector<1x64xf32>
    %c7_56 = arith.constant 7 : index
    %c0_57 = arith.constant 0 : index
    %218 = vector.load %arg21[%c7_56, %c0_57] : memref<32x64xf32, #tpu.memory_space<vmem>>, vector<1x64xf32>
    tpu.vector_store %arg21[%c7_56, %c0_57], %217 {strides = array<i32>} : memref<32x64xf32, #tpu.memory_space<vmem>>, vector<1x64xf32>,
    %219 = vector.extract_strided_slice %70 {offsets = [8, 0], sizes = [1, 64], strides = [1, 1]} : vector<32x64xf32> to vector<1x64xf32>
    %220 = vector.extract_strided_slice %55 {offsets = [8, 0], sizes = [1, 64], strides = [1, 1]} : vector<32x64xf32> to vector<1x64xf32>
    %221 = vector.extract_strided_slice %72 {offsets = [0, 8], sizes = [21, 1], strides = [1, 1]} : vector<42x32xf32> to vector<21x1xf32>
    %222 = vector.extract_strided_slice %72 {offsets = [21, 8], sizes = [21, 1], strides = [1, 1]} : vector<42x32xf32> to vector<21x1xf32>
    %223 = vector.broadcast %219 : vector<1x64xf32> to vector<21x64xf32>
    %224 = arith.mulf %223, %73 : vector<21x64xf32>
    %225 = math.exp %224 : vector<21x64xf32>
    %226 = arith.mulf %225, %213 : vector<21x64xf32>
    %227 = arith.mulf %219, %220 : vector<1x64xf32>
    %228 = vector.broadcast %221 : vector<21x1xf32> to vector<21x64xf32>
    %229 = vector.broadcast %227 : vector<1x64xf32> to vector<21x64xf32>
    %230 = arith.mulf %228, %229 : vector<21x64xf32>
    %231 = arith.addf %226, %230 : vector<21x64xf32>
    %232 = vector.broadcast %222 : vector<21x1xf32> to vector<21x64xf32>
    %233 = arith.mulf %232, %231 : vector<21x64xf32>
    %cst_58 = arith.constant dense<0.000000e+00> : vector<64xf32>
    %234 = vector.multi_reduction <add>, %233, %cst_58 [0] : vector<21x64xf32> to vector<64xf32>
    %235 = vector.shape_cast %234 : vector<64xf32> to vector<1x64xf32>
    %c8_59 = arith.constant 8 : index
    %c0_60 = arith.constant 0 : index
    %236 = vector.load %arg21[%c8_59, %c0_60] : memref<32x64xf32, #tpu.memory_space<vmem>>, vector<1x64xf32>
    tpu.vector_store %arg21[%c8_59, %c0_60], %235 {strides = array<i32>} : memref<32x64xf32, #tpu.memory_space<vmem>>, vector<1x64xf32>,
    %237 = vector.extract_strided_slice %70 {offsets = [9, 0], sizes = [1, 64], strides = [1, 1]} : vector<32x64xf32> to vector<1x64xf32>
    %238 = vector.extract_strided_slice %55 {offsets = [9, 0], sizes = [1, 64], strides = [1, 1]} : vector<32x64xf32> to vector<1x64xf32>
    %239 = vector.extract_strided_slice %72 {offsets = [0, 9], sizes = [21, 1], strides = [1, 1]} : vector<42x32xf32> to vector<21x1xf32>
    %240 = vector.extract_strided_slice %72 {offsets = [21, 9], sizes = [21, 1], strides = [1, 1]} : vector<42x32xf32> to vector<21x1xf32>
    %241 = vector.broadcast %237 : vector<1x64xf32> to vector<21x64xf32>
    %242 = arith.mulf %241, %73 : vector<21x64xf32>
    %243 = math.exp %242 : vector<21x64xf32>
    %244 = arith.mulf %243, %231 : vector<21x64xf32>
    %245 = arith.mulf %237, %238 : vector<1x64xf32>
    %246 = vector.broadcast %239 : vector<21x1xf32> to vector<21x64xf32>
    %247 = vector.broadcast %245 : vector<1x64xf32> to vector<21x64xf32>
    %248 = arith.mulf %246, %247 : vector<21x64xf32>
    %249 = arith.addf %244, %248 : vector<21x64xf32>
    %250 = vector.broadcast %240 : vector<21x1xf32> to vector<21x64xf32>
    %251 = arith.mulf %250, %249 : vector<21x64xf32>
    %cst_61 = arith.constant dense<0.000000e+00> : vector<64xf32>
    %252 = vector.multi_reduction <add>, %251, %cst_61 [0] : vector<21x64xf32> to vector<64xf32>
    %253 = vector.shape_cast %252 : vector<64xf32> to vector<1x64xf32>
    %c9 = arith.constant 9 : index
    %c0_62 = arith.constant 0 : index
    %254 = vector.load %arg21[%c9, %c0_62] : memref<32x64xf32, #tpu.memory_space<vmem>>, vector<1x64xf32>
    tpu.vector_store %arg21[%c9, %c0_62], %253 {strides = array<i32>} : memref<32x64xf32, #tpu.memory_space<vmem>>, vector<1x64xf32>,
    %255 = vector.extract_strided_slice %70 {offsets = [10, 0], sizes = [1, 64], strides = [1, 1]} : vector<32x64xf32> to vector<1x64xf32>
    %256 = vector.extract_strided_slice %55 {offsets = [10, 0], sizes = [1, 64], strides = [1, 1]} : vector<32x64xf32> to vector<1x64xf32>
    %257 = vector.extract_strided_slice %72 {offsets = [0, 10], sizes = [21, 1], strides = [1, 1]} : vector<42x32xf32> to vector<21x1xf32>
    %258 = vector.extract_strided_slice %72 {offsets = [21, 10], sizes = [21, 1], strides = [1, 1]} : vector<42x32xf32> to vector<21x1xf32>
    %259 = vector.broadcast %255 : vector<1x64xf32> to vector<21x64xf32>
    %260 = arith.mulf %259, %73 : vector<21x64xf32>
    %261 = math.exp %260 : vector<21x64xf32>
    %262 = arith.mulf %261, %249 : vector<21x64xf32>
    %263 = arith.mulf %255, %256 : vector<1x64xf32>
    %264 = vector.broadcast %257 : vector<21x1xf32> to vector<21x64xf32>
    %265 = vector.broadcast %263 : vector<1x64xf32> to vector<21x64xf32>
    %266 = arith.mulf %264, %265 : vector<21x64xf32>
    %267 = arith.addf %262, %266 : vector<21x64xf32>
    %268 = vector.broadcast %258 : vector<21x1xf32> to vector<21x64xf32>
    %269 = arith.mulf %268, %267 : vector<21x64xf32>
    %cst_63 = arith.constant dense<0.000000e+00> : vector<64xf32>
    %270 = vector.multi_reduction <add>, %269, %cst_63 [0] : vector<21x64xf32> to vector<64xf32>
    %271 = vector.shape_cast %270 : vector<64xf32> to vector<1x64xf32>
    %c10 = arith.constant 10 : index
    %c0_64 = arith.constant 0 : index
    %272 = vector.load %arg21[%c10, %c0_64] : memref<32x64xf32, #tpu.memory_space<vmem>>, vector<1x64xf32>
    tpu.vector_store %arg21[%c10, %c0_64], %271 {strides = array<i32>} : memref<32x64xf32, #tpu.memory_space<vmem>>, vector<1x64xf32>,
    %273 = vector.extract_strided_slice %70 {offsets = [11, 0], sizes = [1, 64], strides = [1, 1]} : vector<32x64xf32> to vector<1x64xf32>
    %274 = vector.extract_strided_slice %55 {offsets = [11, 0], sizes = [1, 64], strides = [1, 1]} : vector<32x64xf32> to vector<1x64xf32>
    %275 = vector.extract_strided_slice %72 {offsets = [0, 11], sizes = [21, 1], strides = [1, 1]} : vector<42x32xf32> to vector<21x1xf32>
    %276 = vector.extract_strided_slice %72 {offsets = [21, 11], sizes = [21, 1], strides = [1, 1]} : vector<42x32xf32> to vector<21x1xf32>
    %277 = vector.broadcast %273 : vector<1x64xf32> to vector<21x64xf32>
    %278 = arith.mulf %277, %73 : vector<21x64xf32>
    %279 = math.exp %278 : vector<21x64xf32>
    %280 = arith.mulf %279, %267 : vector<21x64xf32>
    %281 = arith.mulf %273, %274 : vector<1x64xf32>
    %282 = vector.broadcast %275 : vector<21x1xf32> to vector<21x64xf32>
    %283 = vector.broadcast %281 : vector<1x64xf32> to vector<21x64xf32>
    %284 = arith.mulf %282, %283 : vector<21x64xf32>
    %285 = arith.addf %280, %284 : vector<21x64xf32>
    %286 = vector.broadcast %276 : vector<21x1xf32> to vector<21x64xf32>
    %287 = arith.mulf %286, %285 : vector<21x64xf32>
    %cst_65 = arith.constant dense<0.000000e+00> : vector<64xf32>
    %288 = vector.multi_reduction <add>, %287, %cst_65 [0] : vector<21x64xf32> to vector<64xf32>
    %289 = vector.shape_cast %288 : vector<64xf32> to vector<1x64xf32>
    %c11 = arith.constant 11 : index
    %c0_66 = arith.constant 0 : index
    %290 = vector.load %arg21[%c11, %c0_66] : memref<32x64xf32, #tpu.memory_space<vmem>>, vector<1x64xf32>
    tpu.vector_store %arg21[%c11, %c0_66], %289 {strides = array<i32>} : memref<32x64xf32, #tpu.memory_space<vmem>>, vector<1x64xf32>,
    %291 = vector.extract_strided_slice %70 {offsets = [12, 0], sizes = [1, 64], strides = [1, 1]} : vector<32x64xf32> to vector<1x64xf32>
    %292 = vector.extract_strided_slice %55 {offsets = [12, 0], sizes = [1, 64], strides = [1, 1]} : vector<32x64xf32> to vector<1x64xf32>
    %293 = vector.extract_strided_slice %72 {offsets = [0, 12], sizes = [21, 1], strides = [1, 1]} : vector<42x32xf32> to vector<21x1xf32>
    %294 = vector.extract_strided_slice %72 {offsets = [21, 12], sizes = [21, 1], strides = [1, 1]} : vector<42x32xf32> to vector<21x1xf32>
    %295 = vector.broadcast %291 : vector<1x64xf32> to vector<21x64xf32>
    %296 = arith.mulf %295, %73 : vector<21x64xf32>
    %297 = math.exp %296 : vector<21x64xf32>
    %298 = arith.mulf %297, %285 : vector<21x64xf32>
    %299 = arith.mulf %291, %292 : vector<1x64xf32>
    %300 = vector.broadcast %293 : vector<21x1xf32> to vector<21x64xf32>
    %301 = vector.broadcast %299 : vector<1x64xf32> to vector<21x64xf32>
    %302 = arith.mulf %300, %301 : vector<21x64xf32>
    %303 = arith.addf %298, %302 : vector<21x64xf32>
    %304 = vector.broadcast %294 : vector<21x1xf32> to vector<21x64xf32>
    %305 = arith.mulf %304, %303 : vector<21x64xf32>
    %cst_67 = arith.constant dense<0.000000e+00> : vector<64xf32>
    %306 = vector.multi_reduction <add>, %305, %cst_67 [0] : vector<21x64xf32> to vector<64xf32>
    %307 = vector.shape_cast %306 : vector<64xf32> to vector<1x64xf32>
    %c12 = arith.constant 12 : index
    %c0_68 = arith.constant 0 : index
    %308 = vector.load %arg21[%c12, %c0_68] : memref<32x64xf32, #tpu.memory_space<vmem>>, vector<1x64xf32>
    tpu.vector_store %arg21[%c12, %c0_68], %307 {strides = array<i32>} : memref<32x64xf32, #tpu.memory_space<vmem>>, vector<1x64xf32>,
    %309 = vector.extract_strided_slice %70 {offsets = [13, 0], sizes = [1, 64], strides = [1, 1]} : vector<32x64xf32> to vector<1x64xf32>
    %310 = vector.extract_strided_slice %55 {offsets = [13, 0], sizes = [1, 64], strides = [1, 1]} : vector<32x64xf32> to vector<1x64xf32>
    %311 = vector.extract_strided_slice %72 {offsets = [0, 13], sizes = [21, 1], strides = [1, 1]} : vector<42x32xf32> to vector<21x1xf32>
    %312 = vector.extract_strided_slice %72 {offsets = [21, 13], sizes = [21, 1], strides = [1, 1]} : vector<42x32xf32> to vector<21x1xf32>
    %313 = vector.broadcast %309 : vector<1x64xf32> to vector<21x64xf32>
    %314 = arith.mulf %313, %73 : vector<21x64xf32>
    %315 = math.exp %314 : vector<21x64xf32>
    %316 = arith.mulf %315, %303 : vector<21x64xf32>
    %317 = arith.mulf %309, %310 : vector<1x64xf32>
    %318 = vector.broadcast %311 : vector<21x1xf32> to vector<21x64xf32>
    %319 = vector.broadcast %317 : vector<1x64xf32> to vector<21x64xf32>
    %320 = arith.mulf %318, %319 : vector<21x64xf32>
    %321 = arith.addf %316, %320 : vector<21x64xf32>
    %322 = vector.broadcast %312 : vector<21x1xf32> to vector<21x64xf32>
    %323 = arith.mulf %322, %321 : vector<21x64xf32>
    %cst_69 = arith.constant dense<0.000000e+00> : vector<64xf32>
    %324 = vector.multi_reduction <add>, %323, %cst_69 [0] : vector<21x64xf32> to vector<64xf32>
    %325 = vector.shape_cast %324 : vector<64xf32> to vector<1x64xf32>
    %c13 = arith.constant 13 : index
    %c0_70 = arith.constant 0 : index
    %326 = vector.load %arg21[%c13, %c0_70] : memref<32x64xf32, #tpu.memory_space<vmem>>, vector<1x64xf32>
    tpu.vector_store %arg21[%c13, %c0_70], %325 {strides = array<i32>} : memref<32x64xf32, #tpu.memory_space<vmem>>, vector<1x64xf32>,
    %327 = vector.extract_strided_slice %70 {offsets = [14, 0], sizes = [1, 64], strides = [1, 1]} : vector<32x64xf32> to vector<1x64xf32>
    %328 = vector.extract_strided_slice %55 {offsets = [14, 0], sizes = [1, 64], strides = [1, 1]} : vector<32x64xf32> to vector<1x64xf32>
    %329 = vector.extract_strided_slice %72 {offsets = [0, 14], sizes = [21, 1], strides = [1, 1]} : vector<42x32xf32> to vector<21x1xf32>
    %330 = vector.extract_strided_slice %72 {offsets = [21, 14], sizes = [21, 1], strides = [1, 1]} : vector<42x32xf32> to vector<21x1xf32>
    %331 = vector.broadcast %327 : vector<1x64xf32> to vector<21x64xf32>
    %332 = arith.mulf %331, %73 : vector<21x64xf32>
    %333 = math.exp %332 : vector<21x64xf32>
    %334 = arith.mulf %333, %321 : vector<21x64xf32>
    %335 = arith.mulf %327, %328 : vector<1x64xf32>
    %336 = vector.broadcast %329 : vector<21x1xf32> to vector<21x64xf32>
    %337 = vector.broadcast %335 : vector<1x64xf32> to vector<21x64xf32>
    %338 = arith.mulf %336, %337 : vector<21x64xf32>
    %339 = arith.addf %334, %338 : vector<21x64xf32>
    %340 = vector.broadcast %330 : vector<21x1xf32> to vector<21x64xf32>
    %341 = arith.mulf %340, %339 : vector<21x64xf32>
    %cst_71 = arith.constant dense<0.000000e+00> : vector<64xf32>
    %342 = vector.multi_reduction <add>, %341, %cst_71 [0] : vector<21x64xf32> to vector<64xf32>
    %343 = vector.shape_cast %342 : vector<64xf32> to vector<1x64xf32>
    %c14 = arith.constant 14 : index
    %c0_72 = arith.constant 0 : index
    %344 = vector.load %arg21[%c14, %c0_72] : memref<32x64xf32, #tpu.memory_space<vmem>>, vector<1x64xf32>
    tpu.vector_store %arg21[%c14, %c0_72], %343 {strides = array<i32>} : memref<32x64xf32, #tpu.memory_space<vmem>>, vector<1x64xf32>,
    %345 = vector.extract_strided_slice %70 {offsets = [15, 0], sizes = [1, 64], strides = [1, 1]} : vector<32x64xf32> to vector<1x64xf32>
    %346 = vector.extract_strided_slice %55 {offsets = [15, 0], sizes = [1, 64], strides = [1, 1]} : vector<32x64xf32> to vector<1x64xf32>
    %347 = vector.extract_strided_slice %72 {offsets = [0, 15], sizes = [21, 1], strides = [1, 1]} : vector<42x32xf32> to vector<21x1xf32>
    %348 = vector.extract_strided_slice %72 {offsets = [21, 15], sizes = [21, 1], strides = [1, 1]} : vector<42x32xf32> to vector<21x1xf32>
    %349 = vector.broadcast %345 : vector<1x64xf32> to vector<21x64xf32>
    %350 = arith.mulf %349, %73 : vector<21x64xf32>
    %351 = math.exp %350 : vector<21x64xf32>
    %352 = arith.mulf %351, %339 : vector<21x64xf32>
    %353 = arith.mulf %345, %346 : vector<1x64xf32>
    %354 = vector.broadcast %347 : vector<21x1xf32> to vector<21x64xf32>
    %355 = vector.broadcast %353 : vector<1x64xf32> to vector<21x64xf32>
    %356 = arith.mulf %354, %355 : vector<21x64xf32>
    %357 = arith.addf %352, %356 : vector<21x64xf32>
    %358 = vector.broadcast %348 : vector<21x1xf32> to vector<21x64xf32>
    %359 = arith.mulf %358, %357 : vector<21x64xf32>
    %cst_73 = arith.constant dense<0.000000e+00> : vector<64xf32>
    %360 = vector.multi_reduction <add>, %359, %cst_73 [0] : vector<21x64xf32> to vector<64xf32>
    %361 = vector.shape_cast %360 : vector<64xf32> to vector<1x64xf32>
    %c15 = arith.constant 15 : index
    %c0_74 = arith.constant 0 : index
    %362 = vector.load %arg21[%c15, %c0_74] : memref<32x64xf32, #tpu.memory_space<vmem>>, vector<1x64xf32>
    tpu.vector_store %arg21[%c15, %c0_74], %361 {strides = array<i32>} : memref<32x64xf32, #tpu.memory_space<vmem>>, vector<1x64xf32>,
    %cst_75 = arith.constant 0.000000e+00 : f32
    %363 = vector.broadcast %cst_75 : f32 to vector<21x64xf32>
    %364 = vector.extract_strided_slice %70 {offsets = [16, 0], sizes = [1, 64], strides = [1, 1]} : vector<32x64xf32> to vector<1x64xf32>
    %365 = vector.extract_strided_slice %55 {offsets = [16, 0], sizes = [1, 64], strides = [1, 1]} : vector<32x64xf32> to vector<1x64xf32>
    %366 = vector.extract_strided_slice %72 {offsets = [0, 16], sizes = [21, 1], strides = [1, 1]} : vector<42x32xf32> to vector<21x1xf32>
    %367 = vector.extract_strided_slice %72 {offsets = [21, 16], sizes = [21, 1], strides = [1, 1]} : vector<42x32xf32> to vector<21x1xf32>
    %368 = vector.broadcast %364 : vector<1x64xf32> to vector<21x64xf32>
    %369 = arith.mulf %368, %73 : vector<21x64xf32>
    %370 = math.exp %369 : vector<21x64xf32>
    %371 = arith.mulf %370, %363 : vector<21x64xf32>
    %372 = arith.mulf %364, %365 : vector<1x64xf32>
    %373 = vector.broadcast %366 : vector<21x1xf32> to vector<21x64xf32>
    %374 = vector.broadcast %372 : vector<1x64xf32> to vector<21x64xf32>
    %375 = arith.mulf %373, %374 : vector<21x64xf32>
    %376 = arith.addf %371, %375 : vector<21x64xf32>
    %377 = vector.broadcast %367 : vector<21x1xf32> to vector<21x64xf32>
    %378 = arith.mulf %377, %376 : vector<21x64xf32>
    %cst_76 = arith.constant dense<0.000000e+00> : vector<64xf32>
    %379 = vector.multi_reduction <add>, %378, %cst_76 [0] : vector<21x64xf32> to vector<64xf32>
    %380 = vector.shape_cast %379 : vector<64xf32> to vector<1x64xf32>
    %c16 = arith.constant 16 : index
    %c0_77 = arith.constant 0 : index
    %381 = vector.load %arg21[%c16, %c0_77] : memref<32x64xf32, #tpu.memory_space<vmem>>, vector<1x64xf32>
    tpu.vector_store %arg21[%c16, %c0_77], %380 {strides = array<i32>} : memref<32x64xf32, #tpu.memory_space<vmem>>, vector<1x64xf32>,
    %382 = vector.extract_strided_slice %70 {offsets = [17, 0], sizes = [1, 64], strides = [1, 1]} : vector<32x64xf32> to vector<1x64xf32>
    %383 = vector.extract_strided_slice %55 {offsets = [17, 0], sizes = [1, 64], strides = [1, 1]} : vector<32x64xf32> to vector<1x64xf32>
    %384 = vector.extract_strided_slice %72 {offsets = [0, 17], sizes = [21, 1], strides = [1, 1]} : vector<42x32xf32> to vector<21x1xf32>
    %385 = vector.extract_strided_slice %72 {offsets = [21, 17], sizes = [21, 1], strides = [1, 1]} : vector<42x32xf32> to vector<21x1xf32>
    %386 = vector.broadcast %382 : vector<1x64xf32> to vector<21x64xf32>
    %387 = arith.mulf %386, %73 : vector<21x64xf32>
    %388 = math.exp %387 : vector<21x64xf32>
    %389 = arith.mulf %388, %376 : vector<21x64xf32>
    %390 = arith.mulf %382, %383 : vector<1x64xf32>
    %391 = vector.broadcast %384 : vector<21x1xf32> to vector<21x64xf32>
    %392 = vector.broadcast %390 : vector<1x64xf32> to vector<21x64xf32>
    %393 = arith.mulf %391, %392 : vector<21x64xf32>
    %394 = arith.addf %389, %393 : vector<21x64xf32>
    %395 = vector.broadcast %385 : vector<21x1xf32> to vector<21x64xf32>
    %396 = arith.mulf %395, %394 : vector<21x64xf32>
    %cst_78 = arith.constant dense<0.000000e+00> : vector<64xf32>
    %397 = vector.multi_reduction <add>, %396, %cst_78 [0] : vector<21x64xf32> to vector<64xf32>
    %398 = vector.shape_cast %397 : vector<64xf32> to vector<1x64xf32>
    %c17 = arith.constant 17 : index
    %c0_79 = arith.constant 0 : index
    %399 = vector.load %arg21[%c17, %c0_79] : memref<32x64xf32, #tpu.memory_space<vmem>>, vector<1x64xf32>
    tpu.vector_store %arg21[%c17, %c0_79], %398 {strides = array<i32>} : memref<32x64xf32, #tpu.memory_space<vmem>>, vector<1x64xf32>,
    %400 = vector.extract_strided_slice %70 {offsets = [18, 0], sizes = [1, 64], strides = [1, 1]} : vector<32x64xf32> to vector<1x64xf32>
    %401 = vector.extract_strided_slice %55 {offsets = [18, 0], sizes = [1, 64], strides = [1, 1]} : vector<32x64xf32> to vector<1x64xf32>
    %402 = vector.extract_strided_slice %72 {offsets = [0, 18], sizes = [21, 1], strides = [1, 1]} : vector<42x32xf32> to vector<21x1xf32>
    %403 = vector.extract_strided_slice %72 {offsets = [21, 18], sizes = [21, 1], strides = [1, 1]} : vector<42x32xf32> to vector<21x1xf32>
    %404 = vector.broadcast %400 : vector<1x64xf32> to vector<21x64xf32>
    %405 = arith.mulf %404, %73 : vector<21x64xf32>
    %406 = math.exp %405 : vector<21x64xf32>
    %407 = arith.mulf %406, %394 : vector<21x64xf32>
    %408 = arith.mulf %400, %401 : vector<1x64xf32>
    %409 = vector.broadcast %402 : vector<21x1xf32> to vector<21x64xf32>
    %410 = vector.broadcast %408 : vector<1x64xf32> to vector<21x64xf32>
    %411 = arith.mulf %409, %410 : vector<21x64xf32>
    %412 = arith.addf %407, %411 : vector<21x64xf32>
    %413 = vector.broadcast %403 : vector<21x1xf32> to vector<21x64xf32>
    %414 = arith.mulf %413, %412 : vector<21x64xf32>
    %cst_80 = arith.constant dense<0.000000e+00> : vector<64xf32>
    %415 = vector.multi_reduction <add>, %414, %cst_80 [0] : vector<21x64xf32> to vector<64xf32>
    %416 = vector.shape_cast %415 : vector<64xf32> to vector<1x64xf32>
    %c18 = arith.constant 18 : index
    %c0_81 = arith.constant 0 : index
    %417 = vector.load %arg21[%c18, %c0_81] : memref<32x64xf32, #tpu.memory_space<vmem>>, vector<1x64xf32>
    tpu.vector_store %arg21[%c18, %c0_81], %416 {strides = array<i32>} : memref<32x64xf32, #tpu.memory_space<vmem>>, vector<1x64xf32>,
    %418 = vector.extract_strided_slice %70 {offsets = [19, 0], sizes = [1, 64], strides = [1, 1]} : vector<32x64xf32> to vector<1x64xf32>
    %419 = vector.extract_strided_slice %55 {offsets = [19, 0], sizes = [1, 64], strides = [1, 1]} : vector<32x64xf32> to vector<1x64xf32>
    %420 = vector.extract_strided_slice %72 {offsets = [0, 19], sizes = [21, 1], strides = [1, 1]} : vector<42x32xf32> to vector<21x1xf32>
    %421 = vector.extract_strided_slice %72 {offsets = [21, 19], sizes = [21, 1], strides = [1, 1]} : vector<42x32xf32> to vector<21x1xf32>
    %422 = vector.broadcast %418 : vector<1x64xf32> to vector<21x64xf32>
    %423 = arith.mulf %422, %73 : vector<21x64xf32>
    %424 = math.exp %423 : vector<21x64xf32>
    %425 = arith.mulf %424, %412 : vector<21x64xf32>
    %426 = arith.mulf %418, %419 : vector<1x64xf32>
    %427 = vector.broadcast %420 : vector<21x1xf32> to vector<21x64xf32>
    %428 = vector.broadcast %426 : vector<1x64xf32> to vector<21x64xf32>
    %429 = arith.mulf %427, %428 : vector<21x64xf32>
    %430 = arith.addf %425, %429 : vector<21x64xf32>
    %431 = vector.broadcast %421 : vector<21x1xf32> to vector<21x64xf32>
    %432 = arith.mulf %431, %430 : vector<21x64xf32>
    %cst_82 = arith.constant dense<0.000000e+00> : vector<64xf32>
    %433 = vector.multi_reduction <add>, %432, %cst_82 [0] : vector<21x64xf32> to vector<64xf32>
    %434 = vector.shape_cast %433 : vector<64xf32> to vector<1x64xf32>
    %c19 = arith.constant 19 : index
    %c0_83 = arith.constant 0 : index
    %435 = vector.load %arg21[%c19, %c0_83] : memref<32x64xf32, #tpu.memory_space<vmem>>, vector<1x64xf32>
    tpu.vector_store %arg21[%c19, %c0_83], %434 {strides = array<i32>} : memref<32x64xf32, #tpu.memory_space<vmem>>, vector<1x64xf32>,
    %436 = vector.extract_strided_slice %70 {offsets = [20, 0], sizes = [1, 64], strides = [1, 1]} : vector<32x64xf32> to vector<1x64xf32>
    %437 = vector.extract_strided_slice %55 {offsets = [20, 0], sizes = [1, 64], strides = [1, 1]} : vector<32x64xf32> to vector<1x64xf32>
    %438 = vector.extract_strided_slice %72 {offsets = [0, 20], sizes = [21, 1], strides = [1, 1]} : vector<42x32xf32> to vector<21x1xf32>
    %439 = vector.extract_strided_slice %72 {offsets = [21, 20], sizes = [21, 1], strides = [1, 1]} : vector<42x32xf32> to vector<21x1xf32>
    %440 = vector.broadcast %436 : vector<1x64xf32> to vector<21x64xf32>
    %441 = arith.mulf %440, %73 : vector<21x64xf32>
    %442 = math.exp %441 : vector<21x64xf32>
    %443 = arith.mulf %442, %430 : vector<21x64xf32>
    %444 = arith.mulf %436, %437 : vector<1x64xf32>
    %445 = vector.broadcast %438 : vector<21x1xf32> to vector<21x64xf32>
    %446 = vector.broadcast %444 : vector<1x64xf32> to vector<21x64xf32>
    %447 = arith.mulf %445, %446 : vector<21x64xf32>
    %448 = arith.addf %443, %447 : vector<21x64xf32>
    %449 = vector.broadcast %439 : vector<21x1xf32> to vector<21x64xf32>
    %450 = arith.mulf %449, %448 : vector<21x64xf32>
    %cst_84 = arith.constant dense<0.000000e+00> : vector<64xf32>
    %451 = vector.multi_reduction <add>, %450, %cst_84 [0] : vector<21x64xf32> to vector<64xf32>
    %452 = vector.shape_cast %451 : vector<64xf32> to vector<1x64xf32>
    %c20 = arith.constant 20 : index
    %c0_85 = arith.constant 0 : index
    %453 = vector.load %arg21[%c20, %c0_85] : memref<32x64xf32, #tpu.memory_space<vmem>>, vector<1x64xf32>
    tpu.vector_store %arg21[%c20, %c0_85], %452 {strides = array<i32>} : memref<32x64xf32, #tpu.memory_space<vmem>>, vector<1x64xf32>,
    %454 = vector.extract_strided_slice %70 {offsets = [21, 0], sizes = [1, 64], strides = [1, 1]} : vector<32x64xf32> to vector<1x64xf32>
    %455 = vector.extract_strided_slice %55 {offsets = [21, 0], sizes = [1, 64], strides = [1, 1]} : vector<32x64xf32> to vector<1x64xf32>
    %456 = vector.extract_strided_slice %72 {offsets = [0, 21], sizes = [21, 1], strides = [1, 1]} : vector<42x32xf32> to vector<21x1xf32>
    %457 = vector.extract_strided_slice %72 {offsets = [21, 21], sizes = [21, 1], strides = [1, 1]} : vector<42x32xf32> to vector<21x1xf32>
    %458 = vector.broadcast %454 : vector<1x64xf32> to vector<21x64xf32>
    %459 = arith.mulf %458, %73 : vector<21x64xf32>
    %460 = math.exp %459 : vector<21x64xf32>
    %461 = arith.mulf %460, %448 : vector<21x64xf32>
    %462 = arith.mulf %454, %455 : vector<1x64xf32>
    %463 = vector.broadcast %456 : vector<21x1xf32> to vector<21x64xf32>
    %464 = vector.broadcast %462 : vector<1x64xf32> to vector<21x64xf32>
    %465 = arith.mulf %463, %464 : vector<21x64xf32>
    %466 = arith.addf %461, %465 : vector<21x64xf32>
    %467 = vector.broadcast %457 : vector<21x1xf32> to vector<21x64xf32>
    %468 = arith.mulf %467, %466 : vector<21x64xf32>
    %cst_86 = arith.constant dense<0.000000e+00> : vector<64xf32>
    %469 = vector.multi_reduction <add>, %468, %cst_86 [0] : vector<21x64xf32> to vector<64xf32>
    %470 = vector.shape_cast %469 : vector<64xf32> to vector<1x64xf32>
    %c21 = arith.constant 21 : index
    %c0_87 = arith.constant 0 : index
    %471 = vector.load %arg21[%c21, %c0_87] : memref<32x64xf32, #tpu.memory_space<vmem>>, vector<1x64xf32>
    tpu.vector_store %arg21[%c21, %c0_87], %470 {strides = array<i32>} : memref<32x64xf32, #tpu.memory_space<vmem>>, vector<1x64xf32>,
    %472 = vector.extract_strided_slice %70 {offsets = [22, 0], sizes = [1, 64], strides = [1, 1]} : vector<32x64xf32> to vector<1x64xf32>
    %473 = vector.extract_strided_slice %55 {offsets = [22, 0], sizes = [1, 64], strides = [1, 1]} : vector<32x64xf32> to vector<1x64xf32>
    %474 = vector.extract_strided_slice %72 {offsets = [0, 22], sizes = [21, 1], strides = [1, 1]} : vector<42x32xf32> to vector<21x1xf32>
    %475 = vector.extract_strided_slice %72 {offsets = [21, 22], sizes = [21, 1], strides = [1, 1]} : vector<42x32xf32> to vector<21x1xf32>
    %476 = vector.broadcast %472 : vector<1x64xf32> to vector<21x64xf32>
    %477 = arith.mulf %476, %73 : vector<21x64xf32>
    %478 = math.exp %477 : vector<21x64xf32>
    %479 = arith.mulf %478, %466 : vector<21x64xf32>
    %480 = arith.mulf %472, %473 : vector<1x64xf32>
    %481 = vector.broadcast %474 : vector<21x1xf32> to vector<21x64xf32>
    %482 = vector.broadcast %480 : vector<1x64xf32> to vector<21x64xf32>
    %483 = arith.mulf %481, %482 : vector<21x64xf32>
    %484 = arith.addf %479, %483 : vector<21x64xf32>
    %485 = vector.broadcast %475 : vector<21x1xf32> to vector<21x64xf32>
    %486 = arith.mulf %485, %484 : vector<21x64xf32>
    %cst_88 = arith.constant dense<0.000000e+00> : vector<64xf32>
    %487 = vector.multi_reduction <add>, %486, %cst_88 [0] : vector<21x64xf32> to vector<64xf32>
    %488 = vector.shape_cast %487 : vector<64xf32> to vector<1x64xf32>
    %c22 = arith.constant 22 : index
    %c0_89 = arith.constant 0 : index
    %489 = vector.load %arg21[%c22, %c0_89] : memref<32x64xf32, #tpu.memory_space<vmem>>, vector<1x64xf32>
    tpu.vector_store %arg21[%c22, %c0_89], %488 {strides = array<i32>} : memref<32x64xf32, #tpu.memory_space<vmem>>, vector<1x64xf32>,
    %490 = vector.extract_strided_slice %70 {offsets = [23, 0], sizes = [1, 64], strides = [1, 1]} : vector<32x64xf32> to vector<1x64xf32>
    %491 = vector.extract_strided_slice %55 {offsets = [23, 0], sizes = [1, 64], strides = [1, 1]} : vector<32x64xf32> to vector<1x64xf32>
    %492 = vector.extract_strided_slice %72 {offsets = [0, 23], sizes = [21, 1], strides = [1, 1]} : vector<42x32xf32> to vector<21x1xf32>
    %493 = vector.extract_strided_slice %72 {offsets = [21, 23], sizes = [21, 1], strides = [1, 1]} : vector<42x32xf32> to vector<21x1xf32>
    %494 = vector.broadcast %490 : vector<1x64xf32> to vector<21x64xf32>
    %495 = arith.mulf %494, %73 : vector<21x64xf32>
    %496 = math.exp %495 : vector<21x64xf32>
    %497 = arith.mulf %496, %484 : vector<21x64xf32>
    %498 = arith.mulf %490, %491 : vector<1x64xf32>
    %499 = vector.broadcast %492 : vector<21x1xf32> to vector<21x64xf32>
    %500 = vector.broadcast %498 : vector<1x64xf32> to vector<21x64xf32>
    %501 = arith.mulf %499, %500 : vector<21x64xf32>
    %502 = arith.addf %497, %501 : vector<21x64xf32>
    %503 = vector.broadcast %493 : vector<21x1xf32> to vector<21x64xf32>
    %504 = arith.mulf %503, %502 : vector<21x64xf32>
    %cst_90 = arith.constant dense<0.000000e+00> : vector<64xf32>
    %505 = vector.multi_reduction <add>, %504, %cst_90 [0] : vector<21x64xf32> to vector<64xf32>
    %506 = vector.shape_cast %505 : vector<64xf32> to vector<1x64xf32>
    %c23 = arith.constant 23 : index
    %c0_91 = arith.constant 0 : index
    %507 = vector.load %arg21[%c23, %c0_91] : memref<32x64xf32, #tpu.memory_space<vmem>>, vector<1x64xf32>
    tpu.vector_store %arg21[%c23, %c0_91], %506 {strides = array<i32>} : memref<32x64xf32, #tpu.memory_space<vmem>>, vector<1x64xf32>,
    %508 = vector.extract_strided_slice %70 {offsets = [24, 0], sizes = [1, 64], strides = [1, 1]} : vector<32x64xf32> to vector<1x64xf32>
    %509 = vector.extract_strided_slice %55 {offsets = [24, 0], sizes = [1, 64], strides = [1, 1]} : vector<32x64xf32> to vector<1x64xf32>
    %510 = vector.extract_strided_slice %72 {offsets = [0, 24], sizes = [21, 1], strides = [1, 1]} : vector<42x32xf32> to vector<21x1xf32>
    %511 = vector.extract_strided_slice %72 {offsets = [21, 24], sizes = [21, 1], strides = [1, 1]} : vector<42x32xf32> to vector<21x1xf32>
    %512 = vector.broadcast %508 : vector<1x64xf32> to vector<21x64xf32>
    %513 = arith.mulf %512, %73 : vector<21x64xf32>
    %514 = math.exp %513 : vector<21x64xf32>
    %515 = arith.mulf %514, %502 : vector<21x64xf32>
    %516 = arith.mulf %508, %509 : vector<1x64xf32>
    %517 = vector.broadcast %510 : vector<21x1xf32> to vector<21x64xf32>
    %518 = vector.broadcast %516 : vector<1x64xf32> to vector<21x64xf32>
    %519 = arith.mulf %517, %518 : vector<21x64xf32>
    %520 = arith.addf %515, %519 : vector<21x64xf32>
    %521 = vector.broadcast %511 : vector<21x1xf32> to vector<21x64xf32>
    %522 = arith.mulf %521, %520 : vector<21x64xf32>
    %cst_92 = arith.constant dense<0.000000e+00> : vector<64xf32>
    %523 = vector.multi_reduction <add>, %522, %cst_92 [0] : vector<21x64xf32> to vector<64xf32>
    %524 = vector.shape_cast %523 : vector<64xf32> to vector<1x64xf32>
    %c24 = arith.constant 24 : index
    %c0_93 = arith.constant 0 : index
    %525 = vector.load %arg21[%c24, %c0_93] : memref<32x64xf32, #tpu.memory_space<vmem>>, vector<1x64xf32>
    tpu.vector_store %arg21[%c24, %c0_93], %524 {strides = array<i32>} : memref<32x64xf32, #tpu.memory_space<vmem>>, vector<1x64xf32>,
    %526 = vector.extract_strided_slice %70 {offsets = [25, 0], sizes = [1, 64], strides = [1, 1]} : vector<32x64xf32> to vector<1x64xf32>
    %527 = vector.extract_strided_slice %55 {offsets = [25, 0], sizes = [1, 64], strides = [1, 1]} : vector<32x64xf32> to vector<1x64xf32>
    %528 = vector.extract_strided_slice %72 {offsets = [0, 25], sizes = [21, 1], strides = [1, 1]} : vector<42x32xf32> to vector<21x1xf32>
    %529 = vector.extract_strided_slice %72 {offsets = [21, 25], sizes = [21, 1], strides = [1, 1]} : vector<42x32xf32> to vector<21x1xf32>
    %530 = vector.broadcast %526 : vector<1x64xf32> to vector<21x64xf32>
    %531 = arith.mulf %530, %73 : vector<21x64xf32>
    %532 = math.exp %531 : vector<21x64xf32>
    %533 = arith.mulf %532, %520 : vector<21x64xf32>
    %534 = arith.mulf %526, %527 : vector<1x64xf32>
    %535 = vector.broadcast %528 : vector<21x1xf32> to vector<21x64xf32>
    %536 = vector.broadcast %534 : vector<1x64xf32> to vector<21x64xf32>
    %537 = arith.mulf %535, %536 : vector<21x64xf32>
    %538 = arith.addf %533, %537 : vector<21x64xf32>
    %539 = vector.broadcast %529 : vector<21x1xf32> to vector<21x64xf32>
    %540 = arith.mulf %539, %538 : vector<21x64xf32>
    %cst_94 = arith.constant dense<0.000000e+00> : vector<64xf32>
    %541 = vector.multi_reduction <add>, %540, %cst_94 [0] : vector<21x64xf32> to vector<64xf32>
    %542 = vector.shape_cast %541 : vector<64xf32> to vector<1x64xf32>
    %c25 = arith.constant 25 : index
    %c0_95 = arith.constant 0 : index
    %543 = vector.load %arg21[%c25, %c0_95] : memref<32x64xf32, #tpu.memory_space<vmem>>, vector<1x64xf32>
    tpu.vector_store %arg21[%c25, %c0_95], %542 {strides = array<i32>} : memref<32x64xf32, #tpu.memory_space<vmem>>, vector<1x64xf32>,
    %544 = vector.extract_strided_slice %70 {offsets = [26, 0], sizes = [1, 64], strides = [1, 1]} : vector<32x64xf32> to vector<1x64xf32>
    %545 = vector.extract_strided_slice %55 {offsets = [26, 0], sizes = [1, 64], strides = [1, 1]} : vector<32x64xf32> to vector<1x64xf32>
    %546 = vector.extract_strided_slice %72 {offsets = [0, 26], sizes = [21, 1], strides = [1, 1]} : vector<42x32xf32> to vector<21x1xf32>
    %547 = vector.extract_strided_slice %72 {offsets = [21, 26], sizes = [21, 1], strides = [1, 1]} : vector<42x32xf32> to vector<21x1xf32>
    %548 = vector.broadcast %544 : vector<1x64xf32> to vector<21x64xf32>
    %549 = arith.mulf %548, %73 : vector<21x64xf32>
    %550 = math.exp %549 : vector<21x64xf32>
    %551 = arith.mulf %550, %538 : vector<21x64xf32>
    %552 = arith.mulf %544, %545 : vector<1x64xf32>
    %553 = vector.broadcast %546 : vector<21x1xf32> to vector<21x64xf32>
    %554 = vector.broadcast %552 : vector<1x64xf32> to vector<21x64xf32>
    %555 = arith.mulf %553, %554 : vector<21x64xf32>
    %556 = arith.addf %551, %555 : vector<21x64xf32>
    %557 = vector.broadcast %547 : vector<21x1xf32> to vector<21x64xf32>
    %558 = arith.mulf %557, %556 : vector<21x64xf32>
    %cst_96 = arith.constant dense<0.000000e+00> : vector<64xf32>
    %559 = vector.multi_reduction <add>, %558, %cst_96 [0] : vector<21x64xf32> to vector<64xf32>
    %560 = vector.shape_cast %559 : vector<64xf32> to vector<1x64xf32>
    %c26 = arith.constant 26 : index
    %c0_97 = arith.constant 0 : index
    %561 = vector.load %arg21[%c26, %c0_97] : memref<32x64xf32, #tpu.memory_space<vmem>>, vector<1x64xf32>
    tpu.vector_store %arg21[%c26, %c0_97], %560 {strides = array<i32>} : memref<32x64xf32, #tpu.memory_space<vmem>>, vector<1x64xf32>,
    %562 = vector.extract_strided_slice %70 {offsets = [27, 0], sizes = [1, 64], strides = [1, 1]} : vector<32x64xf32> to vector<1x64xf32>
    %563 = vector.extract_strided_slice %55 {offsets = [27, 0], sizes = [1, 64], strides = [1, 1]} : vector<32x64xf32> to vector<1x64xf32>
    %564 = vector.extract_strided_slice %72 {offsets = [0, 27], sizes = [21, 1], strides = [1, 1]} : vector<42x32xf32> to vector<21x1xf32>
    %565 = vector.extract_strided_slice %72 {offsets = [21, 27], sizes = [21, 1], strides = [1, 1]} : vector<42x32xf32> to vector<21x1xf32>
    %566 = vector.broadcast %562 : vector<1x64xf32> to vector<21x64xf32>
    %567 = arith.mulf %566, %73 : vector<21x64xf32>
    %568 = math.exp %567 : vector<21x64xf32>
    %569 = arith.mulf %568, %556 : vector<21x64xf32>
    %570 = arith.mulf %562, %563 : vector<1x64xf32>
    %571 = vector.broadcast %564 : vector<21x1xf32> to vector<21x64xf32>
    %572 = vector.broadcast %570 : vector<1x64xf32> to vector<21x64xf32>
    %573 = arith.mulf %571, %572 : vector<21x64xf32>
    %574 = arith.addf %569, %573 : vector<21x64xf32>
    %575 = vector.broadcast %565 : vector<21x1xf32> to vector<21x64xf32>
    %576 = arith.mulf %575, %574 : vector<21x64xf32>
    %cst_98 = arith.constant dense<0.000000e+00> : vector<64xf32>
    %577 = vector.multi_reduction <add>, %576, %cst_98 [0] : vector<21x64xf32> to vector<64xf32>
    %578 = vector.shape_cast %577 : vector<64xf32> to vector<1x64xf32>
    %c27 = arith.constant 27 : index
    %c0_99 = arith.constant 0 : index
    %579 = vector.load %arg21[%c27, %c0_99] : memref<32x64xf32, #tpu.memory_space<vmem>>, vector<1x64xf32>
    tpu.vector_store %arg21[%c27, %c0_99], %578 {strides = array<i32>} : memref<32x64xf32, #tpu.memory_space<vmem>>, vector<1x64xf32>,
    %580 = vector.extract_strided_slice %70 {offsets = [28, 0], sizes = [1, 64], strides = [1, 1]} : vector<32x64xf32> to vector<1x64xf32>
    %581 = vector.extract_strided_slice %55 {offsets = [28, 0], sizes = [1, 64], strides = [1, 1]} : vector<32x64xf32> to vector<1x64xf32>
    %582 = vector.extract_strided_slice %72 {offsets = [0, 28], sizes = [21, 1], strides = [1, 1]} : vector<42x32xf32> to vector<21x1xf32>
    %583 = vector.extract_strided_slice %72 {offsets = [21, 28], sizes = [21, 1], strides = [1, 1]} : vector<42x32xf32> to vector<21x1xf32>
    %584 = vector.broadcast %580 : vector<1x64xf32> to vector<21x64xf32>
    %585 = arith.mulf %584, %73 : vector<21x64xf32>
    %586 = math.exp %585 : vector<21x64xf32>
    %587 = arith.mulf %586, %574 : vector<21x64xf32>
    %588 = arith.mulf %580, %581 : vector<1x64xf32>
    %589 = vector.broadcast %582 : vector<21x1xf32> to vector<21x64xf32>
    %590 = vector.broadcast %588 : vector<1x64xf32> to vector<21x64xf32>
    %591 = arith.mulf %589, %590 : vector<21x64xf32>
    %592 = arith.addf %587, %591 : vector<21x64xf32>
    %593 = vector.broadcast %583 : vector<21x1xf32> to vector<21x64xf32>
    %594 = arith.mulf %593, %592 : vector<21x64xf32>
    %cst_100 = arith.constant dense<0.000000e+00> : vector<64xf32>
    %595 = vector.multi_reduction <add>, %594, %cst_100 [0] : vector<21x64xf32> to vector<64xf32>
    %596 = vector.shape_cast %595 : vector<64xf32> to vector<1x64xf32>
    %c28 = arith.constant 28 : index
    %c0_101 = arith.constant 0 : index
    %597 = vector.load %arg21[%c28, %c0_101] : memref<32x64xf32, #tpu.memory_space<vmem>>, vector<1x64xf32>
    tpu.vector_store %arg21[%c28, %c0_101], %596 {strides = array<i32>} : memref<32x64xf32, #tpu.memory_space<vmem>>, vector<1x64xf32>,
    %598 = vector.extract_strided_slice %70 {offsets = [29, 0], sizes = [1, 64], strides = [1, 1]} : vector<32x64xf32> to vector<1x64xf32>
    %599 = vector.extract_strided_slice %55 {offsets = [29, 0], sizes = [1, 64], strides = [1, 1]} : vector<32x64xf32> to vector<1x64xf32>
    %600 = vector.extract_strided_slice %72 {offsets = [0, 29], sizes = [21, 1], strides = [1, 1]} : vector<42x32xf32> to vector<21x1xf32>
    %601 = vector.extract_strided_slice %72 {offsets = [21, 29], sizes = [21, 1], strides = [1, 1]} : vector<42x32xf32> to vector<21x1xf32>
    %602 = vector.broadcast %598 : vector<1x64xf32> to vector<21x64xf32>
    %603 = arith.mulf %602, %73 : vector<21x64xf32>
    %604 = math.exp %603 : vector<21x64xf32>
    %605 = arith.mulf %604, %592 : vector<21x64xf32>
    %606 = arith.mulf %598, %599 : vector<1x64xf32>
    %607 = vector.broadcast %600 : vector<21x1xf32> to vector<21x64xf32>
    %608 = vector.broadcast %606 : vector<1x64xf32> to vector<21x64xf32>
    %609 = arith.mulf %607, %608 : vector<21x64xf32>
    %610 = arith.addf %605, %609 : vector<21x64xf32>
    %611 = vector.broadcast %601 : vector<21x1xf32> to vector<21x64xf32>
    %612 = arith.mulf %611, %610 : vector<21x64xf32>
    %cst_102 = arith.constant dense<0.000000e+00> : vector<64xf32>
    %613 = vector.multi_reduction <add>, %612, %cst_102 [0] : vector<21x64xf32> to vector<64xf32>
    %614 = vector.shape_cast %613 : vector<64xf32> to vector<1x64xf32>
    %c29 = arith.constant 29 : index
    %c0_103 = arith.constant 0 : index
    %615 = vector.load %arg21[%c29, %c0_103] : memref<32x64xf32, #tpu.memory_space<vmem>>, vector<1x64xf32>
    tpu.vector_store %arg21[%c29, %c0_103], %614 {strides = array<i32>} : memref<32x64xf32, #tpu.memory_space<vmem>>, vector<1x64xf32>,
    %616 = vector.extract_strided_slice %70 {offsets = [30, 0], sizes = [1, 64], strides = [1, 1]} : vector<32x64xf32> to vector<1x64xf32>
    %617 = vector.extract_strided_slice %55 {offsets = [30, 0], sizes = [1, 64], strides = [1, 1]} : vector<32x64xf32> to vector<1x64xf32>
    %618 = vector.extract_strided_slice %72 {offsets = [0, 30], sizes = [21, 1], strides = [1, 1]} : vector<42x32xf32> to vector<21x1xf32>
    %619 = vector.extract_strided_slice %72 {offsets = [21, 30], sizes = [21, 1], strides = [1, 1]} : vector<42x32xf32> to vector<21x1xf32>
    %620 = vector.broadcast %616 : vector<1x64xf32> to vector<21x64xf32>
    %621 = arith.mulf %620, %73 : vector<21x64xf32>
    %622 = math.exp %621 : vector<21x64xf32>
    %623 = arith.mulf %622, %610 : vector<21x64xf32>
    %624 = arith.mulf %616, %617 : vector<1x64xf32>
    %625 = vector.broadcast %618 : vector<21x1xf32> to vector<21x64xf32>
    %626 = vector.broadcast %624 : vector<1x64xf32> to vector<21x64xf32>
    %627 = arith.mulf %625, %626 : vector<21x64xf32>
    %628 = arith.addf %623, %627 : vector<21x64xf32>
    %629 = vector.broadcast %619 : vector<21x1xf32> to vector<21x64xf32>
    %630 = arith.mulf %629, %628 : vector<21x64xf32>
    %cst_104 = arith.constant dense<0.000000e+00> : vector<64xf32>
    %631 = vector.multi_reduction <add>, %630, %cst_104 [0] : vector<21x64xf32> to vector<64xf32>
    %632 = vector.shape_cast %631 : vector<64xf32> to vector<1x64xf32>
    %c30 = arith.constant 30 : index
    %c0_105 = arith.constant 0 : index
    %633 = vector.load %arg21[%c30, %c0_105] : memref<32x64xf32, #tpu.memory_space<vmem>>, vector<1x64xf32>
    tpu.vector_store %arg21[%c30, %c0_105], %632 {strides = array<i32>} : memref<32x64xf32, #tpu.memory_space<vmem>>, vector<1x64xf32>,
    %634 = vector.extract_strided_slice %70 {offsets = [31, 0], sizes = [1, 64], strides = [1, 1]} : vector<32x64xf32> to vector<1x64xf32>
    %635 = vector.extract_strided_slice %55 {offsets = [31, 0], sizes = [1, 64], strides = [1, 1]} : vector<32x64xf32> to vector<1x64xf32>
    %636 = vector.extract_strided_slice %72 {offsets = [0, 31], sizes = [21, 1], strides = [1, 1]} : vector<42x32xf32> to vector<21x1xf32>
    %637 = vector.extract_strided_slice %72 {offsets = [21, 31], sizes = [21, 1], strides = [1, 1]} : vector<42x32xf32> to vector<21x1xf32>
    %638 = vector.broadcast %634 : vector<1x64xf32> to vector<21x64xf32>
    %639 = arith.mulf %638, %73 : vector<21x64xf32>
    %640 = math.exp %639 : vector<21x64xf32>
    %641 = arith.mulf %640, %628 : vector<21x64xf32>
    %642 = arith.mulf %634, %635 : vector<1x64xf32>
    %643 = vector.broadcast %636 : vector<21x1xf32> to vector<21x64xf32>
    %644 = vector.broadcast %642 : vector<1x64xf32> to vector<21x64xf32>
    %645 = arith.mulf %643, %644 : vector<21x64xf32>
    %646 = arith.addf %641, %645 : vector<21x64xf32>
    %647 = vector.broadcast %637 : vector<21x1xf32> to vector<21x64xf32>
    %648 = arith.mulf %647, %646 : vector<21x64xf32>
    %cst_106 = arith.constant dense<0.000000e+00> : vector<64xf32>
    %649 = vector.multi_reduction <add>, %648, %cst_106 [0] : vector<21x64xf32> to vector<64xf32>
    %650 = vector.shape_cast %649 : vector<64xf32> to vector<1x64xf32>
    %c31 = arith.constant 31 : index
    %c0_107 = arith.constant 0 : index
    %651 = vector.load %arg21[%c31, %c0_107] : memref<32x64xf32, #tpu.memory_space<vmem>>, vector<1x64xf32>
    tpu.vector_store %arg21[%c31, %c0_107], %650 {strides = array<i32>} : memref<32x64xf32, #tpu.memory_space<vmem>>, vector<1x64xf32>,
    %c0_108 = arith.constant 0 : index
    %c0_109 = arith.constant 0 : index
    %652 = vector.load %arg21[%c0_108, %c0_109] : memref<32x64xf32, #tpu.memory_space<vmem>>, vector<32x64xf32>
    %c0_110 = arith.constant 0 : index
    %c0_111 = arith.constant 0 : index
    %653 = vector.load %arg9[%c0_110, %c0_111] : memref<1x64xf32, #tpu.memory_space<vmem>>, vector<1x64xf32>
    %654 = vector.broadcast %653 : vector<1x64xf32> to vector<32x64xf32>
    %655 = arith.mulf %55, %654 : vector<32x64xf32>
    %656 = arith.addf %652, %655 : vector<32x64xf32>
    %cst_112 = arith.constant 0.000000e+00 : f32
    %657 = vector.broadcast %cst_112 : f32 to vector<32x64xf32>
    %658 = arith.subf %657, %5 : vector<32x64xf32>
    %659 = math.exp %658 : vector<32x64xf32>
    %cst_113 = arith.constant 1.000000e+00 : f32
    %660 = vector.broadcast %cst_113 : f32 to vector<32x64xf32>
    %661 = arith.addf %660, %659 : vector<32x64xf32>
    %662 = tpu.reciprocal %661 {approx = true} : vector<32x64xf32> -> vector<32x64xf32>
    %663 = arith.mulf %5, %662 : vector<32x64xf32>
    %664 = arith.mulf %656, %663 : vector<32x64xf32>
    %c0_114 = arith.constant 0 : index
    %c0_115 = arith.constant 0 : index
    %665 = vector.load %arg10[%c0_114, %c0_115] : memref<64x32xf32, #tpu.memory_space<vmem>>, vector<64x32xf32>
    %cst_116 = arith.constant dense<0.000000e+00> : vector<32x32xf32>
    %666 = tpu.matmul %664, %665, %cst_116 {dimension_numbers = #tpu.dot_dimension_numbers<[1], [0], [0], [1], [0, 0, 1, 1], [], []>} : vector<32x64xf32>, vector<64x32xf32>, vector<32x32xf32> -> vector<32x32xf32>
    %667 = arith.addf %0, %666 : vector<32x32xf32>
    %c0_117 = arith.constant 0 : index
    %c0_118 = arith.constant 0 : index
    %668 = vector.load %arg11[%c0_117, %c0_118] : memref<1x32xf32, #tpu.memory_space<vmem>>, vector<1x32xf32>
    %c0_119 = arith.constant 0 : index
    %c0_120 = arith.constant 0 : index
    %669 = vector.load %arg12[%c0_119, %c0_120] : memref<1x32xf32, #tpu.memory_space<vmem>>, vector<1x32xf32>
    %cst_121 = arith.constant dense<0.000000e+00> : vector<32xf32>
    %670 = vector.multi_reduction <add>, %667, %cst_121 [0] : vector<32x32xf32> to vector<32xf32>
    %671 = vector.shape_cast %670 : vector<32xf32> to vector<1x32xf32>
    %cst_122 = arith.constant 3.200000e+01 : f32
    %672 = vector.broadcast %cst_122 : f32 to vector<1x32xf32>
    %673 = arith.divf %671, %672 : vector<1x32xf32>
    %674 = vector.broadcast %673 : vector<1x32xf32> to vector<32x32xf32>
    %675 = arith.subf %667, %674 : vector<32x32xf32>
    %676 = arith.mulf %675, %675 : vector<32x32xf32>
    %cst_123 = arith.constant dense<0.000000e+00> : vector<32xf32>
    %677 = vector.multi_reduction <add>, %676, %cst_123 [0] : vector<32x32xf32> to vector<32xf32>
    %678 = vector.shape_cast %677 : vector<32xf32> to vector<1x32xf32>
    %cst_124 = arith.constant 3.200000e+01 : f32
    %679 = vector.broadcast %cst_124 : f32 to vector<1x32xf32>
    %680 = arith.divf %678, %679 : vector<1x32xf32>
    %681 = vector.broadcast %673 : vector<1x32xf32> to vector<32x32xf32>
    %682 = arith.subf %667, %681 : vector<32x32xf32>
    %cst_125 = arith.constant 9.99999974E-6 : f32
    %683 = vector.broadcast %cst_125 : f32 to vector<1x32xf32>
    %684 = arith.addf %680, %683 : vector<1x32xf32>
    %685 = math.rsqrt %684 : vector<1x32xf32>
    %686 = vector.broadcast %685 : vector<1x32xf32> to vector<32x32xf32>
    %687 = arith.mulf %682, %686 : vector<32x32xf32>
    %688 = vector.broadcast %668 : vector<1x32xf32> to vector<32x32xf32>
    %689 = arith.mulf %687, %688 : vector<32x32xf32>
    %690 = vector.broadcast %669 : vector<1x32xf32> to vector<32x32xf32>
    %691 = arith.addf %689, %690 : vector<32x32xf32>
    %c0_126 = arith.constant 0 : index
    %c0_127 = arith.constant 0 : index
    %692 = vector.load %arg13[%c0_126, %c0_127] : memref<32x32xf32, #tpu.memory_space<vmem>>, vector<32x32xf32>
    %cst_128 = arith.constant dense<0.000000e+00> : vector<32x32xf32>
    %693 = tpu.matmul %691, %692, %cst_128 {dimension_numbers = #tpu.dot_dimension_numbers<[1], [0], [0], [1], [0, 0, 1, 1], [], []>} : vector<32x32xf32>, vector<32x32xf32>, vector<32x32xf32> -> vector<32x32xf32>
    %c0_129 = arith.constant 0 : index
    %c0_130 = arith.constant 0 : index
    %694 = vector.load %arg14[%c0_129, %c0_130] : memref<1x32xf32, #tpu.memory_space<vmem>>, vector<1x32xf32>
    %695 = vector.broadcast %694 : vector<1x32xf32> to vector<32x32xf32>
    %696 = arith.addf %693, %695 : vector<32x32xf32>
    %cst_131 = arith.constant 5.000000e-01 : f32
    %697 = vector.broadcast %cst_131 : f32 to vector<32x32xf32>
    %698 = arith.mulf %697, %696 : vector<32x32xf32>
    %cst_132 = arith.constant 4.471500e-02 : f32
    %699 = vector.broadcast %cst_132 : f32 to vector<32x32xf32>
    %700 = arith.mulf %699, %696 : vector<32x32xf32>
    %701 = arith.mulf %700, %696 : vector<32x32xf32>
    %702 = arith.mulf %701, %696 : vector<32x32xf32>
    %703 = arith.addf %696, %702 : vector<32x32xf32>
    %cst_133 = arith.constant 0.797884583 : f32
    %704 = vector.broadcast %cst_133 : f32 to vector<32x32xf32>
    %705 = arith.mulf %704, %703 : vector<32x32xf32>
    %706 = math.tanh %705 : vector<32x32xf32>
    %cst_134 = arith.constant 1.000000e+00 : f32
    %707 = vector.broadcast %cst_134 : f32 to vector<32x32xf32>
    %708 = arith.addf %707, %706 : vector<32x32xf32>
    %709 = arith.mulf %698, %708 : vector<32x32xf32>
    %c0_135 = arith.constant 0 : index
    %c0_136 = arith.constant 0 : index
    %710 = vector.load %arg15[%c0_135, %c0_136] : memref<32x32xf32, #tpu.memory_space<vmem>>, vector<32x32xf32>
    %cst_137 = arith.constant dense<0.000000e+00> : vector<32x32xf32>
    %711 = tpu.matmul %709, %710, %cst_137 {dimension_numbers = #tpu.dot_dimension_numbers<[1], [0], [0], [1], [0, 0, 1, 1], [], []>} : vector<32x32xf32>, vector<32x32xf32>, vector<32x32xf32> -> vector<32x32xf32>
    %c0_138 = arith.constant 0 : index
    %c0_139 = arith.constant 0 : index
    %712 = vector.load %arg16[%c0_138, %c0_139] : memref<1x32xf32, #tpu.memory_space<vmem>>, vector<1x32xf32>
    %713 = vector.broadcast %712 : vector<1x32xf32> to vector<32x32xf32>
    %714 = arith.addf %711, %713 : vector<32x32xf32>
    %715 = arith.addf %691, %714 : vector<32x32xf32>
    %c0_140 = arith.constant 0 : index
    %c0_141 = arith.constant 0 : index
    %716 = vector.load %arg17[%c0_140, %c0_141] : memref<1x32xf32, #tpu.memory_space<vmem>>, vector<1x32xf32>
    %c0_142 = arith.constant 0 : index
    %c0_143 = arith.constant 0 : index
    %717 = vector.load %arg18[%c0_142, %c0_143] : memref<1x32xf32, #tpu.memory_space<vmem>>, vector<1x32xf32>
    %cst_144 = arith.constant dense<0.000000e+00> : vector<32xf32>
    %718 = vector.multi_reduction <add>, %715, %cst_144 [0] : vector<32x32xf32> to vector<32xf32>
    %719 = vector.shape_cast %718 : vector<32xf32> to vector<1x32xf32>
    %cst_145 = arith.constant 3.200000e+01 : f32
    %720 = vector.broadcast %cst_145 : f32 to vector<1x32xf32>
    %721 = arith.divf %719, %720 : vector<1x32xf32>
    %722 = vector.broadcast %721 : vector<1x32xf32> to vector<32x32xf32>
    %723 = arith.subf %715, %722 : vector<32x32xf32>
    %724 = arith.mulf %723, %723 : vector<32x32xf32>
    %cst_146 = arith.constant dense<0.000000e+00> : vector<32xf32>
    %725 = vector.multi_reduction <add>, %724, %cst_146 [0] : vector<32x32xf32> to vector<32xf32>
    %726 = vector.shape_cast %725 : vector<32xf32> to vector<1x32xf32>
    %cst_147 = arith.constant 3.200000e+01 : f32
    %727 = vector.broadcast %cst_147 : f32 to vector<1x32xf32>
    %728 = arith.divf %726, %727 : vector<1x32xf32>
    %729 = vector.broadcast %721 : vector<1x32xf32> to vector<32x32xf32>
    %730 = arith.subf %715, %729 : vector<32x32xf32>
    %cst_148 = arith.constant 9.99999974E-6 : f32
    %731 = vector.broadcast %cst_148 : f32 to vector<1x32xf32>
    %732 = arith.addf %728, %731 : vector<1x32xf32>
    %733 = math.rsqrt %732 : vector<1x32xf32>
    %734 = vector.broadcast %733 : vector<1x32xf32> to vector<32x32xf32>
    %735 = arith.mulf %730, %734 : vector<32x32xf32>
    %736 = vector.broadcast %716 : vector<1x32xf32> to vector<32x32xf32>
    %737 = arith.mulf %735, %736 : vector<32x32xf32>
    %738 = vector.broadcast %717 : vector<1x32xf32> to vector<32x32xf32>
    %739 = arith.addf %737, %738 : vector<32x32xf32>
    %c0_149 = arith.constant 0 : index
    %c0_150 = arith.constant 0 : index
    %740 = vector.load %arg19[%c0_149, %c0_150] : memref<32x32xf32, #tpu.memory_space<vmem>>, vector<32x32xf32>
    tpu.vector_store %arg19[%c0_149, %c0_150], %739 {strides = array<i32>} : memref<32x32xf32, #tpu.memory_space<vmem>>, vector<32x32xf32>,
    return
  }
}

</mosaic_0001>

<llo_original>
// kernel: _lambda_.3
$region0: #{_lambda_.3}
  #allocation0 [shape = 'u32[]', space=smem, size = 0x4, offset = 0x4, fixed_abs, tag = 'smem constant byte address 0x4 - core index']
  #allocation1 [shape = 'u32[144,128]{1,0:T(1,128)}', space=vmem, size = 0x12000, scoped, tag = 'internal scratch']
  #allocation2 [shape = 'f32[32,32]{1,0:T(8,128)}', space=vmem, size = 0x4000, scoped, tag = 'scratch operand']
  %s0 = inlined_call_operand.vmem [shape: f32[32,32], index: 0, kind: input, shape index: {}]
  %s1 = inlined_call_operand.vmem [shape: f32[32,96], index: 1, kind: input, shape index: {}]
  %s2 = inlined_call_operand.vmem [shape: f32[1,96], index: 2, kind: input, shape index: {}]
  %s3 = inlined_call_operand.vmem [shape: f32[32,32], index: 3, kind: input, shape index: {}]
  %s4 = inlined_call_operand.vmem [shape: f32[1,32], index: 4, kind: input, shape index: {}]
  %s5 = inlined_call_operand.vmem [shape: f32[1,32], index: 5, kind: input, shape index: {}]
  %s6 = inlined_call_operand.vmem [shape: f32[1,32], index: 6, kind: input, shape index: {}]
  %s7 = inlined_call_operand.vmem [shape: f32[32,64], index: 7, kind: input, shape index: {}]
  %s8 = inlined_call_operand.vmem [shape: f32[1,64], index: 8, kind: input, shape index: {}]
  %s9 = inlined_call_operand.vmem [shape: f32[64,32], index: 9, kind: input, shape index: {}]
  %s10 = inlined_call_operand.vmem [shape: f32[1,32], index: 10, kind: input, shape index: {}]
  %s11 = inlined_call_operand.vmem [shape: f32[1,32], index: 11, kind: input, shape index: {}]
  %s12 = inlined_call_operand.vmem [shape: f32[1,32], index: 12, kind: input, shape index: {}]
  %s13 = inlined_call_operand.hbm [shape: f32[32,32], index: 13, kind: output, shape index: {}]
  %s14 = sld [smem:[#allocation0]]
  $region62: #{_lambda_.3} parent=0
    _
  %s16 = ssub.s32 1, %s14
  %s17 = scalar_select 0, %s16, %s14
  $region1: #{_lambda_.3} parent=0
    #allocation3 [shape = 'u8[16384]{0}', space=vmem, size = 0x4000, scoped, tag = 'output window, operand 0, single buffered']
    #allocation4 [shape = 's32[1]{0}', space=sflag, size = 0x4, scoped, tag = 'scoped memory for _lambda_.3']
    %18 = vsyncpa [#allocation4], 0
    // Predicated region
    $region2: #{_lambda_.3} parent=1 // pred_check
      _
    $region3: #{_lambda_.3} parent=1 // pred_check_branch
      %20 = sbr.rel (0) target = $region5
    $region4: #{_lambda_.3} parent=1 // pred_region
      _
    $region5: #{_lambda_.3} parent=1 // pred_fallthru
      _
    // Predicated region
    $region6: #{_lambda_.3} parent=1 // pred_check
      _
    $region7: #{_lambda_.3} parent=1 // pred_check_branch
      %22 = sbr.rel (0) target = $region9
    $region8: #{_lambda_.3} parent=1 // pred_region
      _
    $region9: #{_lambda_.3} parent=1 // pred_fallthru
      _
    // Predicated region
    $region10: #{_lambda_.3} parent=1 // pred_check
      _
    $region11: #{_lambda_.3} parent=1 // pred_check_branch
      %24 = sbr.rel (0) target = $region13
    $region12: #{_lambda_.3} parent=1 // pred_region
      _
    $region13: #{_lambda_.3} parent=1 // pred_fallthru
      _
    // Predicated region
    $region14: #{_lambda_.3} parent=1 // pred_check
      _
    $region15: #{_lambda_.3} parent=1 // pred_check_branch
      %26 = sbr.rel (0) target = $region17
    $region16: #{_lambda_.3} parent=1 // pred_region
      _
    $region17: #{_lambda_.3} parent=1 // pred_fallthru
      _
    // Predicated region
    $region18: #{_lambda_.3} parent=1 // pred_check
      _
    $region19: #{_lambda_.3} parent=1 // pred_check_branch
      %28 = sbr.rel (0) target = $region21
    $region20: #{_lambda_.3} parent=1 // pred_region
      _
    $region21: #{_lambda_.3} parent=1 // pred_fallthru
      _
    // Predicated region
    $region22: #{_lambda_.3} parent=1 // pred_check
      _
    $region23: #{_lambda_.3} parent=1 // pred_check_branch
      %30 = sbr.rel (0) target = $region25
    $region24: #{_lambda_.3} parent=1 // pred_region
      _
    $region25: #{_lambda_.3} parent=1 // pred_fallthru
      _
    // Predicated region
    $region26: #{_lambda_.3} parent=1 // pred_check
      _
    $region27: #{_lambda_.3} parent=1 // pred_check_branch
      %32 = sbr.rel (0) target = $region29
    $region28: #{_lambda_.3} parent=1 // pred_region
      _
    $region29: #{_lambda_.3} parent=1 // pred_fallthru
      _
    // Predicated region
    $region30: #{_lambda_.3} parent=1 // pred_check
      _
    $region31: #{_lambda_.3} parent=1 // pred_check_branch
      %34 = sbr.rel (0) target = $region33
    $region32: #{_lambda_.3} parent=1 // pred_region
      _
    $region33: #{_lambda_.3} parent=1 // pred_fallthru
      _
    // Predicated region
    $region34: #{_lambda_.3} parent=1 // pred_check
      _
    $region35: #{_lambda_.3} parent=1 // pred_check_branch
      %36 = sbr.rel (0) target = $region37
    $region36: #{_lambda_.3} parent=1 // pred_region
      _
    $region37: #{_lambda_.3} parent=1 // pred_fallthru
      _
    // Predicated region
    $region38: #{_lambda_.3} parent=1 // pred_check
      _
    $region39: #{_lambda_.3} parent=1 // pred_check_branch
      %38 = sbr.rel (0) target = $region41
    $region40: #{_lambda_.3} parent=1 // pred_region
      _
    $region41: #{_lambda_.3} parent=1 // pred_fallthru
      _
    // Predicated region
    $region42: #{_lambda_.3} parent=1 // pred_check
      _
    $region43: #{_lambda_.3} parent=1 // pred_check_branch
      %40 = sbr.rel (0) target = $region45
    $region44: #{_lambda_.3} parent=1 // pred_region
      _
    $region45: #{_lambda_.3} parent=1 // pred_fallthru
      _
    // Predicated region
    $region46: #{_lambda_.3} parent=1 // pred_check
      _
    $region47: #{_lambda_.3} parent=1 // pred_check_branch
      %42 = sbr.rel (0) target = $region49
    $region48: #{_lambda_.3} parent=1 // pred_region
      _
    $region49: #{_lambda_.3} parent=1 // pred_fallthru
      _
    // Predicated region
    $region50: #{_lambda_.3} parent=1 // pred_check
      _
    $region51: #{_lambda_.3} parent=1 // pred_check_branch
      %44 = sbr.rel (0) target = $region53
    $region52: #{_lambda_.3} parent=1 // pred_region
      _
    $region53: #{_lambda_.3} parent=1 // pred_fallthru
      _
    %v45 = vld [vmem:[%s0] sm:$0xff]
    %v46 = vld [vmem:[%s0 + $0x8] sm:$0xff]
    %v47 = vld [vmem:[%s0 + $0x10] sm:$0xff]
    %v48 = vld [vmem:[%s0 + $0x18] sm:$0xff]
    %v49 = vld [vmem:[%s1] sm:$0xff]
    %v50 = vld [vmem:[%s1 + $0x8] sm:$0xff]
    %v51 = vld [vmem:[%s1 + $0x10] sm:$0xff]
    %v52 = vld [vmem:[%s1 + $0x18] sm:$0xff]
    %v53 = vld [vmem:[%s2] sm:$0x1]
    %v55 = vlaneseq
    %v56 = vshrl.u32 %v55, 7
    %v57 = vsub.s32 0, %v56
    %v58 = vrot.slane %v53, %v57
    %vm60 = vcmask 261120
    %v62 = vsel %vm60, %v45, 0
    %v65 = vsel %vm60, %v46, 0
    %v68 = vsel %vm60, %v47, 0
    %v71 = vsel %vm60, %v48, 0
    %73 = vmatprep.subr.mxu0 0.0
    %74 = vmatpush1.msra.mxu0 %v49
    %75 = vmatprep.subr.mxu0 0.0
    %76 = vmatpush1.msra.mxu0 %v50
    %77 = vmatprep.subr.mxu0 0.0
    %78 = vmatpush1.msra.mxu0 %v51
    %79 = vmatprep.subr.mxu0 0.0
    %80 = vmatpush1.msra.mxu0 %v52
    %81 = vmatprep.subr.mxu0 0.0
    %82 = vmatpush1.msra.mxu0 0.0
    %83 = vmatprep.subr.mxu0 0.0
    %84 = vmatpush1.msra.mxu0 0.0
    %85 = vmatprep.subr.mxu0 0.0
    %86 = vmatpush1.msra.mxu0 0.0
    %87 = vmatprep.subr.mxu0 0.0
    %88 = vmatpush1.msra.mxu0 0.0
    %89 = vmatprep.subr.mxu0 0.0
    %90 = vmatpush1.msra.mxu0 0.0
    %91 = vmatprep.subr.mxu0 0.0
    %92 = vmatpush1.msra.mxu0 0.0
    %93 = vmatprep.subr.mxu0 0.0
    %94 = vmatpush1.msra.mxu0 0.0
    %95 = vmatprep.subr.mxu0 0.0
    %96 = vmatpush1.msra.mxu0 0.0
    %97 = vmatprep.subr.mxu0 0.0
    %98 = vmatpush1.msra.mxu0 0.0
    %99 = vmatprep.subr.mxu0 0.0
    %100 = vmatpush1.msra.mxu0 0.0
    %101 = vmatprep.subr.mxu0 0.0
    %102 = vmatpush1.msra.mxu0 0.0
    %103 = vmatprep.subr.mxu0 0.0
    %104 = vmatpush1.msra.mxu0 0.0
    %105 = vmatprep.subr.mxu0 0.0
    %106 = vmatpush1.msra.mxu0 0.0
    %107 = vmatprep.subr.mxu0 0.0
    %108 = vmatpush1.msra.mxu0 0.0
    %109 = vmatprep.subr.mxu0 0.0
    %110 = vmatpush1.msra.mxu0 0.0
    %111 = vmatprep.subr.mxu0 0.0
    %112 = vmatpush1.msra.mxu0 0.0
    %113 = vmatprep.subr.mxu0 0.0
    %114 = vmatpush1.msra.mxu0 0.0
    %115 = vmatprep.subr.mxu0 0.0
    %116 = vmatpush1.msra.mxu0 0.0
    %117 = vmatprep.subr.mxu0 0.0
    %118 = vmatpush1.msra.mxu0 0.0
    %119 = vmatprep.subr.mxu0 0.0
    %120 = vmatpush1.msra.mxu0 0.0
    %121 = vmatprep.subr.mxu0 0.0
    %122 = vmatpush1.msra.mxu0 0.0
    %123 = vmatprep.subr.mxu0 0.0
    %124 = vmatpush1.msra.mxu0 0.0
    %125 = vmatprep.subr.mxu0 0.0
    %126 = vmatpush1.msra.mxu0 0.0
    %127 = vmatprep.subr.mxu0 0.0
    %128 = vmatpush1.msra.mxu0 0.0
    %129 = vmatprep.subr.mxu0 0.0
    %130 = vmatpush1.msra.mxu0 0.0
    %131 = vmatprep.subr.mxu0 0.0
    %132 = vmatpush1.msra.mxu0 0.0
    %133 = vmatprep.subr.mxu0 0.0
    %134 = vmatpush1.msra.mxu0 0.0
    %135 = vmatprep.subr.mxu0 0.0
    %136 = vmatpush1.msra.mxu0 0.0
    %137 = vmatprep.mubr.f32.mxu0 0.0
    %138 = vmatmul.mubr.f32.gmra.mrb[0].mxu0 %v62
    %v139 = vpop.f32.mrb[0].mxu0
    %v140 = vadd.f32 %v58, %v139
    %v141 = vpop.f32.mrb[0].mxu0
    %142 = vmatprep.mubr.f32.mxu0 0.0
    %143 = vmatmul.mubr.f32.gmra.mrb[0].mxu0 %v65
    %v144 = vpop.f32.mrb[0].mxu0
    %v145 = vadd.f32 %v58, %v144
    %v146 = vpop.f32.mrb[0].mxu0
    %147 = vmatprep.mubr.f32.mxu0 0.0
    %148 = vmatmul.mubr.f32.gmra.mrb[0].mxu0 %v68
    %v149 = vpop.f32.mrb[0].mxu0
    %v150 = vadd.f32 %v58, %v149
    %v151 = vpop.f32.mrb[0].mxu0
    %152 = vmatprep.mubr.f32.mxu0 0.0
    %153 = vmatmul.mubr.f32.gmra.mrb[0].mxu0 %v71
    %v154 = vpop.f32.mrb[0].mxu0
    %v155 = vadd.f32 %v58, %v154
    %v156 = vpop.f32.mrb[0].mxu0
    %157 = vdwg.mxu0
    %v158 = vld [vmem:[%s3] sm:$0xff]
    %v159 = vld [vmem:[%s3 + $0x8] sm:$0xff]
    %v160 = vld [vmem:[%s3 + $0x10] sm:$0xff]
    %v161 = vld [vmem:[%s3 + $0x18] sm:$0xff]
    %164 = vrot.lane.b32.xlu0 %v140, 96
    %v165 = vpop.permute.xlu0 %164
    %166 = vrot.lane.b32.xlu0 %v145, 96
    %v167 = vpop.permute.xlu0 %166
    %vm168 = vcmask 64512
    %v169 = vsel %vm168, %v140, 0
    %v171 = vsel %vm168, %v145, 0
    %v173 = vsel %vm168, %v165, 0
    %v175 = vsel %vm168, %v167, 0
    %177 = vmatprep.subr.mxu0 0.0
    %178 = vmatpush1.xpose.msra.mxu0 %v173
    %179 = vmatprep.subr.mxu0 0.0
    %180 = vmatpush1.xpose.msra.mxu0 %v175
    %181 = vmatprep.subr.mxu0 0.0
    %182 = vmatpush1.xpose.msra.mxu0 0.0
    %183 = vmatprep.subr.mxu0 0.0
    %184 = vmatpush1.xpose.msra.mxu0 0.0
    %185 = vmatprep.subr.mxu0 0.0
    %186 = vmatpush1.xpose.msra.mxu0 0.0
    %187 = vmatprep.subr.mxu0 0.0
    %188 = vmatpush1.xpose.msra.mxu0 0.0
    %189 = vmatprep.subr.mxu0 0.0
    %190 = vmatpush1.xpose.msra.mxu0 0.0
    %191 = vmatprep.subr.mxu0 0.0
    %192 = vmatpush1.xpose.msra.mxu0 0.0
    %193 = vmatprep.subr.mxu0 0.0
    %194 = vmatpush1.xpose.msra.mxu0 0.0
    %195 = vmatprep.subr.mxu0 0.0
    %196 = vmatpush1.xpose.msra.mxu0 0.0
    %197 = vmatprep.subr.mxu0 0.0
    %198 = vmatpush1.xpose.msra.mxu0 0.0
    %199 = vmatprep.subr.mxu0 0.0
    %200 = vmatpush1.xpose.msra.mxu0 0.0
    %201 = vmatprep.subr.mxu0 0.0
    %202 = vmatpush1.xpose.msra.mxu0 0.0
    %203 = vmatprep.subr.mxu0 0.0
    %204 = vmatpush1.xpose.msra.mxu0 0.0
    %205 = vmatprep.subr.mxu0 0.0
    %206 = vmatpush1.xpose.msra.mxu0 0.0
    %207 = vmatprep.subr.mxu0 0.0
    %208 = vmatpush1.xpose.msra.mxu0 0.0
    %209 = vmatprep.subr.mxu0 0.0
    %210 = vmatpush1.xpose.msra.mxu0 0.0
    %211 = vmatprep.subr.mxu0 0.0
    %212 = vmatpush1.xpose.msra.mxu0 0.0
    %213 = vmatprep.subr.mxu0 0.0
    %214 = vmatpush1.xpose.msra.mxu0 0.0
    %215 = vmatprep.subr.mxu0 0.0
    %216 = vmatpush1.xpose.msra.mxu0 0.0
    %217 = vmatprep.subr.mxu0 0.0
    %218 = vmatpush1.xpose.msra.mxu0 0.0
    %219 = vmatprep.subr.mxu0 0.0
    %220 = vmatpush1.xpose.msra.mxu0 0.0
    %221 = vmatprep.subr.mxu0 0.0
    %222 = vmatpush1.xpose.msra.mxu0 0.0
    %223 = vmatprep.subr.mxu0 0.0
    %224 = vmatpush1.xpose.msra.mxu0 0.0
    %225 = vmatprep.subr.mxu0 0.0
    %226 = vmatpush1.xpose.msra.mxu0 0.0
    %227 = vmatprep.subr.mxu0 0.0
    %228 = vmatpush1.xpose.msra.mxu0 0.0
    %229 = vmatprep.subr.mxu0 0.0
    %230 = vmatpush1.xpose.msra.mxu0 0.0
    %231 = vmatprep.subr.mxu0 0.0
    %232 = vmatpush1.xpose.msra.mxu0 0.0
    %233 = vmatprep.subr.mxu0 0.0
    %234 = vmatpush1.xpose.msra.mxu0 0.0
    %235 = vmatprep.subr.mxu0 0.0
    %236 = vmatpush1.xpose.msra.mxu0 0.0
    %237 = vmatprep.subr.mxu0 0.0
    %238 = vmatpush1.xpose.msra.mxu0 0.0
    %239 = vmatprep.subr.mxu0 0.0
    %240 = vmatpush1.xpose.msra.mxu0 0.0
    %241 = vmatprep.mubr.f32.mxu0 0.0
    %242 = vmatmul.mubr.f32.gmra.mrb[0].mxu0 %v169
    %v243 = vpop.f32.mrb[0].mxu0
    %v244 = vadd.f32 0.0, %v243
    %v245 = vpop.f32.mrb[0].mxu0
    %246 = vmatprep.mubr.f32.mxu0 0.0
    %247 = vmatmul.mubr.f32.gmra.mrb[0].mxu0 %v171
    %v248 = vpop.f32.mrb[0].mxu0
    %v249 = vadd.f32 0.0, %v248
    %v250 = vpop.f32.mrb[0].mxu0
    %251 = vdwg.mxu0
    %v252 = vmul.f32 %v244, 0.35355338
    %v253 = vmul.f32 %v249, 0.35355338
    %vm254 = vcmask 130048
    %v255 = vsel %vm254, %v252, -inf
    %256 = vmax.xlane.f32.xlu0 %v255
    %v257 = vpop.xlane.xlu0 %256
    %v258 = vsel %vm254, %v253, -inf
    %259 = vmax.xlane.f32.xlu0 %v258
    %v260 = vpop.xlane.xlu0 %259
    %v261 = vsub.f32 %v252, %v257
    %v262 = vsub.f32 %v253, %v260
    %v263 = vmul.f32 %v261, 1.442695
    %v264 = vpow.pop %v263
    %v265 = vmul.f32 %v262, 1.442695
    %v266 = vpow.pop %v265
    %v267 = vsel %vm254, %v264, 0.0
    %268 = vadd.xlane.f32.xlu0 %v267
    %v269 = vpop.xlane.xlu0 %268
    %v270 = vsel %vm254, %v266, 0.0
    %271 = vadd.xlane.f32.xlu0 %v270
    %v272 = vpop.xlane.xlu0 %271
    %v273 = vrcp.pop %v269
    %v274 = vrcp.pop %v272
    %v275 = vmul.f32 %v264, %v273
    %v276 = vmul.f32 %v266, %v274
    %277 = vrot.lane.b32.xlu0 %v140, 64
    %v278 = vpop.permute.xlu0 %277
    %279 = vrot.lane.b32.xlu0 %v145, 64
    %v280 = vpop.permute.xlu0 %279
    %v284 = vsel %vm254, %v275, 0
    %v287 = vsel %vm254, %v276, 0
    %289 = vmatprep.subr.mxu0 0.0
    %290 = vmatpush1.msra.mxu0 %v278
    %291 = vmatprep.subr.mxu0 0.0
    %292 = vmatpush1.msra.mxu0 %v280
    %293 = vmatprep.subr.mxu0 0.0
    %294 = vmatpush1.msra.mxu0 0.0
    %295 = vmatprep.subr.mxu0 0.0
    %296 = vmatpush1.msra.mxu0 0.0
    %297 = vmatprep.subr.mxu0 0.0
    %298 = vmatpush1.msra.mxu0 0.0
    %299 = vmatprep.subr.mxu0 0.0
    %300 = vmatpush1.msra.mxu0 0.0
    %301 = vmatprep.subr.mxu0 0.0
    %302 = vmatpush1.msra.mxu0 0.0
    %303 = vmatprep.subr.mxu0 0.0
    %304 = vmatpush1.msra.mxu0 0.0
    %305 = vmatprep.subr.mxu0 0.0
    %306 = vmatpush1.msra.mxu0 0.0
    %307 = vmatprep.subr.mxu0 0.0
    %308 = vmatpush1.msra.mxu0 0.0
    %309 = vmatprep.subr.mxu0 0.0
    %310 = vmatpush1.msra.mxu0 0.0
    %311 = vmatprep.subr.mxu0 0.0
    %312 = vmatpush1.msra.mxu0 0.0
    %313 = vmatprep.subr.mxu0 0.0
    %314 = vmatpush1.msra.mxu0 0.0
    %315 = vmatprep.subr.mxu0 0.0
    %316 = vmatpush1.msra.mxu0 0.0
    %317 = vmatprep.subr.mxu0 0.0
    %318 = vmatpush1.msra.mxu0 0.0
    %319 = vmatprep.subr.mxu0 0.0
    %320 = vmatpush1.msra.mxu0 0.0
    %321 = vmatprep.subr.mxu0 0.0
    %322 = vmatpush1.msra.mxu0 0.0
    %323 = vmatprep.subr.mxu0 0.0
    %324 = vmatpush1.msra.mxu0 0.0
    %325 = vmatprep.subr.mxu0 0.0
    %326 = vmatpush1.msra.mxu0 0.0
    %327 = vmatprep.subr.mxu0 0.0
    %328 = vmatpush1.msra.mxu0 0.0
    %329 = vmatprep.subr.mxu0 0.0
    %330 = vmatpush1.msra.mxu0 0.0
    %331 = vmatprep.subr.mxu0 0.0
    %332 = vmatpush1.msra.mxu0 0.0
    %333 = vmatprep.subr.mxu0 0.0
    %334 = vmatpush1.msra.mxu0 0.0
    %335 = vmatprep.subr.mxu0 0.0
    %336 = vmatpush1.msra.mxu0 0.0
    %337 = vmatprep.subr.mxu0 0.0
    %338 = vmatpush1.msra.mxu0 0.0
    %339 = vmatprep.subr.mxu0 0.0
    %340 = vmatpush1.msra.mxu0 0.0
    %341 = vmatprep.subr.mxu0 0.0
    %342 = vmatpush1.msra.mxu0 0.0
    %343 = vmatprep.subr.mxu0 0.0
    %344 = vmatpush1.msra.mxu0 0.0
    %345 = vmatprep.subr.mxu0 0.0
    %346 = vmatpush1.msra.mxu0 0.0
    %347 = vmatprep.subr.mxu0 0.0
    %348 = vmatpush1.msra.mxu0 0.0
    %349 = vmatprep.subr.mxu0 0.0
    %350 = vmatpush1.msra.mxu0 0.0
    %351 = vmatprep.subr.mxu0 0.0
    %352 = vmatpush1.msra.mxu0 0.0
    %353 = vmatprep.mubr.f32.mxu0 0.0
    %354 = vmatmul.mubr.f32.gmra.mrb[0].mxu0 %v284
    %v355 = vpop.f32.mrb[0].mxu0
    %v356 = vadd.f32 0.0, %v355
    %v357 = vpop.f32.mrb[0].mxu0
    %358 = vmatprep.mubr.f32.mxu0 0.0
    %359 = vmatmul.mubr.f32.gmra.mrb[0].mxu0 %v287
    %v360 = vpop.f32.mrb[0].mxu0
    %v361 = vadd.f32 0.0, %v360
    %v362 = vpop.f32.mrb[0].mxu0
    %363 = vdwg.mxu0
    %364 = vrot.lane.b32.xlu0 %v140, 120
    %v365 = vpop.permute.xlu0 %364
    %366 = vrot.lane.b32.xlu0 %v145, 120
    %v367 = vpop.permute.xlu0 %366
    %368 = vrot.lane.b32.xlu0 %v140, 88
    %v369 = vpop.permute.xlu0 %368
    %370 = vrot.lane.b32.xlu0 %v145, 88
    %v371 = vpop.permute.xlu0 %370
    %v372 = vsel %vm168, %v365, 0
    %v374 = vsel %vm168, %v367, 0
    %v376 = vsel %vm168, %v369, 0
    %v378 = vsel %vm168, %v371, 0
    %380 = vmatprep.subr.mxu0 0.0
    %381 = vmatpush1.xpose.msra.mxu0 %v376
    %382 = vmatprep.subr.mxu0 0.0
    %383 = vmatpush1.xpose.msra.mxu0 %v378
    %384 = vmatprep.subr.mxu0 0.0
    %385 = vmatpush1.xpose.msra.mxu0 0.0
    %386 = vmatprep.subr.mxu0 0.0
    %387 = vmatpush1.xpose.msra.mxu0 0.0
    %388 = vmatprep.subr.mxu0 0.0
    %389 = vmatpush1.xpose.msra.mxu0 0.0
    %390 = vmatprep.subr.mxu0 0.0
    %391 = vmatpush1.xpose.msra.mxu0 0.0
    %392 = vmatprep.subr.mxu0 0.0
    %393 = vmatpush1.xpose.msra.mxu0 0.0
    %394 = vmatprep.subr.mxu0 0.0
    %395 = vmatpush1.xpose.msra.mxu0 0.0
    %396 = vmatprep.subr.mxu0 0.0
    %397 = vmatpush1.xpose.msra.mxu0 0.0
    %398 = vmatprep.subr.mxu0 0.0
    %399 = vmatpush1.xpose.msra.mxu0 0.0
    %400 = vmatprep.subr.mxu0 0.0
    %401 = vmatpush1.xpose.msra.mxu0 0.0
    %402 = vmatprep.subr.mxu0 0.0
    %403 = vmatpush1.xpose.msra.mxu0 0.0
    %404 = vmatprep.subr.mxu0 0.0
    %405 = vmatpush1.xpose.msra.mxu0 0.0
    %406 = vmatprep.subr.mxu0 0.0
    %407 = vmatpush1.xpose.msra.mxu0 0.0
    %408 = vmatprep.subr.mxu0 0.0
    %409 = vmatpush1.xpose.msra.mxu0 0.0
    %410 = vmatprep.subr.mxu0 0.0
    %411 = vmatpush1.xpose.msra.mxu0 0.0
    %412 = vmatprep.subr.mxu0 0.0
    %413 = vmatpush1.xpose.msra.mxu0 0.0
    %414 = vmatprep.subr.mxu0 0.0
    %415 = vmatpush1.xpose.msra.mxu0 0.0
    %416 = vmatprep.subr.mxu0 0.0
    %417 = vmatpush1.xpose.msra.mxu0 0.0
    %418 = vmatprep.subr.mxu0 0.0
    %419 = vmatpush1.xpose.msra.mxu0 0.0
    %420 = vmatprep.subr.mxu0 0.0
    %421 = vmatpush1.xpose.msra.mxu0 0.0
    %422 = vmatprep.subr.mxu0 0.0
    %423 = vmatpush1.xpose.msra.mxu0 0.0
    %424 = vmatprep.subr.mxu0 0.0
    %425 = vmatpush1.xpose.msra.mxu0 0.0
    %426 = vmatprep.subr.mxu0 0.0
    %427 = vmatpush1.xpose.msra.mxu0 0.0
    %428 = vmatprep.subr.mxu0 0.0
    %429 = vmatpush1.xpose.msra.mxu0 0.0
    %430 = vmatprep.subr.mxu0 0.0
    %431 = vmatpush1.xpose.msra.mxu0 0.0
    %432 = vmatprep.subr.mxu0 0.0
    %433 = vmatpush1.xpose.msra.mxu0 0.0
    %434 = vmatprep.subr.mxu0 0.0
    %435 = vmatpush1.xpose.msra.mxu0 0.0
    %436 = vmatprep.subr.mxu0 0.0
    %437 = vmatpush1.xpose.msra.mxu0 0.0
    %438 = vmatprep.subr.mxu0 0.0
    %439 = vmatpush1.xpose.msra.mxu0 0.0
    %440 = vmatprep.subr.mxu0 0.0
    %441 = vmatpush1.xpose.msra.mxu0 0.0
    %442 = vmatprep.subr.mxu0 0.0
    %443 = vmatpush1.xpose.msra.mxu0 0.0
    %444 = vmatprep.mubr.f32.mxu0 0.0
    %445 = vmatmul.mubr.f32.gmra.mrb[0].mxu0 %v372
    %v446 = vpop.f32.mrb[0].mxu0
    %v447 = vadd.f32 0.0, %v446
    %v448 = vpop.f32.mrb[0].mxu0
    %449 = vmatprep.mubr.f32.mxu0 0.0
    %450 = vmatmul.mubr.f32.gmra.mrb[0].mxu0 %v374
    %v451 = vpop.f32.mrb[0].mxu0
    %v452 = vadd.f32 0.0, %v451
    %v453 = vpop.f32.mrb[0].mxu0
    %454 = vdwg.mxu0
    %v455 = vmul.f32 %v447, 0.35355338
    %v456 = vmul.f32 %v452, 0.35355338
    %v457 = vsel %vm254, %v455, -inf
    %458 = vmax.xlane.f32.xlu0 %v457
    %v459 = vpop.xlane.xlu0 %458
    %v460 = vsel %vm254, %v456, -inf
    %461 = vmax.xlane.f32.xlu0 %v460
    %v462 = vpop.xlane.xlu0 %461
    %v463 = vsub.f32 %v455, %v459
    %v464 = vsub.f32 %v456, %v462
    %v465 = vmul.f32 %v463, 1.442695
    %v466 = vpow.pop %v465
    %v467 = vmul.f32 %v464, 1.442695
    %v468 = vpow.pop %v467
    %v469 = vsel %vm254, %v466, 0.0
    %470 = vadd.xlane.f32.xlu0 %v469
    %v471 = vpop.xlane.xlu0 %470
    %v472 = vsel %vm254, %v468, 0.0
    %473 = vadd.xlane.f32.xlu0 %v472
    %v474 = vpop.xlane.xlu0 %473
    %v475 = vrcp.pop %v471
    %v476 = vrcp.pop %v474
    %v477 = vmul.f32 %v466, %v475
    %v478 = vmul.f32 %v468, %v476
    %479 = vrot.lane.b32.xlu0 %v140, 56
    %v480 = vpop.permute.xlu0 %479
    %481 = vrot.lane.b32.xlu0 %v145, 56
    %v482 = vpop.permute.xlu0 %481
    %v486 = vsel %vm254, %v477, 0
    %v489 = vsel %vm254, %v478, 0
    %491 = vmatprep.subr.mxu0 0.0
    %492 = vmatpush1.msra.mxu0 %v480
    %493 = vmatprep.subr.mxu0 0.0
    %494 = vmatpush1.msra.mxu0 %v482
    %495 = vmatprep.subr.mxu0 0.0
    %496 = vmatpush1.msra.mxu0 0.0
    %497 = vmatprep.subr.mxu0 0.0
    %498 = vmatpush1.msra.mxu0 0.0
    %499 = vmatprep.subr.mxu0 0.0
    %500 = vmatpush1.msra.mxu0 0.0
    %501 = vmatprep.subr.mxu0 0.0
    %502 = vmatpush1.msra.mxu0 0.0
    %503 = vmatprep.subr.mxu0 0.0
    %504 = vmatpush1.msra.mxu0 0.0
    %505 = vmatprep.subr.mxu0 0.0
    %506 = vmatpush1.msra.mxu0 0.0
    %507 = vmatprep.subr.mxu0 0.0
    %508 = vmatpush1.msra.mxu0 0.0
    %509 = vmatprep.subr.mxu0 0.0
    %510 = vmatpush1.msra.mxu0 0.0
    %511 = vmatprep.subr.mxu0 0.0
    %512 = vmatpush1.msra.mxu0 0.0
    %513 = vmatprep.subr.mxu0 0.0
    %514 = vmatpush1.msra.mxu0 0.0
    %515 = vmatprep.subr.mxu0 0.0
    %516 = vmatpush1.msra.mxu0 0.0
    %517 = vmatprep.subr.mxu0 0.0
    %518 = vmatpush1.msra.mxu0 0.0
    %519 = vmatprep.subr.mxu0 0.0
    %520 = vmatpush1.msra.mxu0 0.0
    %521 = vmatprep.subr.mxu0 0.0
    %522 = vmatpush1.msra.mxu0 0.0
    %523 = vmatprep.subr.mxu0 0.0
    %524 = vmatpush1.msra.mxu0 0.0
    %525 = vmatprep.subr.mxu0 0.0
    %526 = vmatpush1.msra.mxu0 0.0
    %527 = vmatprep.subr.mxu0 0.0
    %528 = vmatpush1.msra.mxu0 0.0
    %529 = vmatprep.subr.mxu0 0.0
    %530 = vmatpush1.msra.mxu0 0.0
    %531 = vmatprep.subr.mxu0 0.0
    %532 = vmatpush1.msra.mxu0 0.0
    %533 = vmatprep.subr.mxu0 0.0
    %534 = vmatpush1.msra.mxu0 0.0
    %535 = vmatprep.subr.mxu0 0.0
    %536 = vmatpush1.msra.mxu0 0.0
    %537 = vmatprep.subr.mxu0 0.0
    %538 = vmatpush1.msra.mxu0 0.0
    %539 = vmatprep.subr.mxu0 0.0
    %540 = vmatpush1.msra.mxu0 0.0
    %541 = vmatprep.subr.mxu0 0.0
    %542 = vmatpush1.msra.mxu0 0.0
    %543 = vmatprep.subr.mxu0 0.0
    %544 = vmatpush1.msra.mxu0 0.0
    %545 = vmatprep.subr.mxu0 0.0
    %546 = vmatpush1.msra.mxu0 0.0
    %547 = vmatprep.subr.mxu0 0.0
    %548 = vmatpush1.msra.mxu0 0.0
    %549 = vmatprep.subr.mxu0 0.0
    %550 = vmatpush1.msra.mxu0 0.0
    %551 = vmatprep.subr.mxu0 0.0
    %552 = vmatpush1.msra.mxu0 0.0
    %553 = vmatprep.subr.mxu0 0.0
    %554 = vmatpush1.msra.mxu0 0.0
    %555 = vmatprep.mubr.f32.mxu0 0.0
    %556 = vmatmul.mubr.f32.gmra.mrb[0].mxu0 %v486
    %v557 = vpop.f32.mrb[0].mxu0
    %v558 = vadd.f32 0.0, %v557
    %v559 = vpop.f32.mrb[0].mxu0
    %560 = vmatprep.mubr.f32.mxu0 0.0
    %561 = vmatmul.mubr.f32.gmra.mrb[0].mxu0 %v489
    %v562 = vpop.f32.mrb[0].mxu0
    %v563 = vadd.f32 0.0, %v562
    %v564 = vpop.f32.mrb[0].mxu0
    %565 = vdwg.mxu0
    %v567 = vsel %vm168, %v558, 0
    %v570 = vsel %vm168, %v563, 0
    %572 = vmatprep.subr.mxu0 0.0
    %573 = vmatpush1.msra.mxu0 %v159
    %574 = vmatprep.subr.mxu0 0.0
    %575 = vmatpush1.msra.mxu0 0.0
    %576 = vmatprep.subr.mxu0 0.0
    %577 = vmatpush1.msra.mxu0 0.0
    %578 = vmatprep.subr.mxu0 0.0
    %579 = vmatpush1.msra.mxu0 0.0
    %580 = vmatprep.subr.mxu0 0.0
    %581 = vmatpush1.msra.mxu0 0.0
    %582 = vmatprep.subr.mxu0 0.0
    %583 = vmatpush1.msra.mxu0 0.0
    %584 = vmatprep.subr.mxu0 0.0
    %585 = vmatpush1.msra.mxu0 0.0
    %586 = vmatprep.subr.mxu0 0.0
    %587 = vmatpush1.msra.mxu0 0.0
    %588 = vmatprep.subr.mxu0 0.0
    %589 = vmatpush1.msra.mxu0 0.0
    %590 = vmatprep.subr.mxu0 0.0
    %591 = vmatpush1.msra.mxu0 0.0
    %592 = vmatprep.subr.mxu0 0.0
    %593 = vmatpush1.msra.mxu0 0.0
    %594 = vmatprep.subr.mxu0 0.0
    %595 = vmatpush1.msra.mxu0 0.0
    %596 = vmatprep.subr.mxu0 0.0
    %597 = vmatpush1.msra.mxu0 0.0
    %598 = vmatprep.subr.mxu0 0.0
    %599 = vmatpush1.msra.mxu0 0.0
    %600 = vmatprep.subr.mxu0 0.0
    %601 = vmatpush1.msra.mxu0 0.0
    %602 = vmatprep.subr.mxu0 0.0
    %603 = vmatpush1.msra.mxu0 0.0
    %604 = vmatprep.subr.mxu0 0.0
    %605 = vmatpush1.msra.mxu0 0.0
    %606 = vmatprep.subr.mxu0 0.0
    %607 = vmatpush1.msra.mxu0 0.0
    %608 = vmatprep.subr.mxu0 0.0
    %609 = vmatpush1.msra.mxu0 0.0
    %610 = vmatprep.subr.mxu0 0.0
    %611 = vmatpush1.msra.mxu0 0.0
    %612 = vmatprep.subr.mxu0 0.0
    %613 = vmatpush1.msra.mxu0 0.0
    %614 = vmatprep.subr.mxu0 0.0
    %615 = vmatpush1.msra.mxu0 0.0
    %616 = vmatprep.subr.mxu0 0.0
    %617 = vmatpush1.msra.mxu0 0.0
    %618 = vmatprep.subr.mxu0 0.0
    %619 = vmatpush1.msra.mxu0 0.0
    %620 = vmatprep.subr.mxu0 0.0
    %621 = vmatpush1.msra.mxu0 0.0
    %622 = vmatprep.subr.mxu0 0.0
    %623 = vmatpush1.msra.mxu0 0.0
    %624 = vmatprep.subr.mxu0 0.0
    %625 = vmatpush1.msra.mxu0 0.0
    %626 = vmatprep.subr.mxu0 0.0
    %627 = vmatpush1.msra.mxu0 0.0
    %628 = vmatprep.subr.mxu0 0.0
    %629 = vmatpush1.msra.mxu0 0.0
    %630 = vmatprep.subr.mxu0 0.0
    %631 = vmatpush1.msra.mxu0 0.0
    %632 = vmatprep.subr.mxu0 0.0
    %633 = vmatpush1.msra.mxu0 0.0
    %634 = vmatprep.subr.mxu0 0.0
    %635 = vmatpush1.msra.mxu0 0.0
    %636 = vmatprep.mubr.f32.mxu0 0.0
    %637 = vmatmul.mubr.f32.gmra.mrb[0].mxu0 %v567
    %v638 = vpop.f32.mrb[0].mxu0
    %v639 = vadd.f32 0.0, %v638
    %v640 = vpop.f32.mrb[0].mxu0
    %641 = vmatprep.mubr.f32.mxu0 0.0
    %642 = vmatmul.mubr.f32.gmra.mrb[0].mxu0 %v570
    %v643 = vpop.f32.mrb[0].mxu0
    %v644 = vadd.f32 0.0, %v643
    %v645 = vpop.f32.mrb[0].mxu0
    %646 = vdwg.mxu0
    %v648 = vsel %vm168, %v356, 0
    %v651 = vsel %vm168, %v361, 0
    %653 = vmatprep.subr.mxu0 0.0
    %654 = vmatpush1.msra.mxu0 %v158
    %655 = vmatprep.subr.mxu0 0.0
    %656 = vmatpush1.msra.mxu0 0.0
    %657 = vmatprep.subr.mxu0 0.0
    %658 = vmatpush1.msra.mxu0 0.0
    %659 = vmatprep.subr.mxu0 0.0
    %660 = vmatpush1.msra.mxu0 0.0
    %661 = vmatprep.subr.mxu0 0.0
    %662 = vmatpush1.msra.mxu0 0.0
    %663 = vmatprep.subr.mxu0 0.0
    %664 = vmatpush1.msra.mxu0 0.0
    %665 = vmatprep.subr.mxu0 0.0
    %666 = vmatpush1.msra.mxu0 0.0
    %667 = vmatprep.subr.mxu0 0.0
    %668 = vmatpush1.msra.mxu0 0.0
    %669 = vmatprep.subr.mxu0 0.0
    %670 = vmatpush1.msra.mxu0 0.0
    %671 = vmatprep.subr.mxu0 0.0
    %672 = vmatpush1.msra.mxu0 0.0
    %673 = vmatprep.subr.mxu0 0.0
    %674 = vmatpush1.msra.mxu0 0.0
    %675 = vmatprep.subr.mxu0 0.0
    %676 = vmatpush1.msra.mxu0 0.0
    %677 = vmatprep.subr.mxu0 0.0
    %678 = vmatpush1.msra.mxu0 0.0
    %679 = vmatprep.subr.mxu0 0.0
    %680 = vmatpush1.msra.mxu0 0.0
    %681 = vmatprep.subr.mxu0 0.0
    %682 = vmatpush1.msra.mxu0 0.0
    %683 = vmatprep.subr.mxu0 0.0
    %684 = vmatpush1.msra.mxu0 0.0
    %685 = vmatprep.subr.mxu0 0.0
    %686 = vmatpush1.msra.mxu0 0.0
    %687 = vmatprep.subr.mxu0 0.0
    %688 = vmatpush1.msra.mxu0 0.0
    %689 = vmatprep.subr.mxu0 0.0
    %690 = vmatpush1.msra.mxu0 0.0
    %691 = vmatprep.subr.mxu0 0.0
    %692 = vmatpush1.msra.mxu0 0.0
    %693 = vmatprep.subr.mxu0 0.0
    %694 = vmatpush1.msra.mxu0 0.0
    %695 = vmatprep.subr.mxu0 0.0
    %696 = vmatpush1.msra.mxu0 0.0
    %697 = vmatprep.subr.mxu0 0.0
    %698 = vmatpush1.msra.mxu0 0.0
    %699 = vmatprep.subr.mxu0 0.0
    %700 = vmatpush1.msra.mxu0 0.0
    %701 = vmatprep.subr.mxu0 0.0
    %702 = vmatpush1.msra.mxu0 0.0
    %703 = vmatprep.subr.mxu0 0.0
    %704 = vmatpush1.msra.mxu0 0.0
    %705 = vmatprep.subr.mxu0 0.0
    %706 = vmatpush1.msra.mxu0 0.0
    %707 = vmatprep.subr.mxu0 0.0
    %708 = vmatpush1.msra.mxu0 0.0
    %709 = vmatprep.subr.mxu0 0.0
    %710 = vmatpush1.msra.mxu0 0.0
    %711 = vmatprep.subr.mxu0 0.0
    %712 = vmatpush1.msra.mxu0 0.0
    %713 = vmatprep.subr.mxu0 0.0
    %714 = vmatpush1.msra.mxu0 0.0
    %715 = vmatprep.subr.mxu0 0.0
    %716 = vmatpush1.msra.mxu0 0.0
    %717 = vmatprep.mubr.f32.mxu0 0.0
    %718 = vmatmul.mubr.f32.gmra.mrb[0].mxu0 %v648
    %v719 = vpop.f32.mrb[0].mxu0
    %v720 = vadd.f32 %v639, %v719
    %v721 = vpop.f32.mrb[0].mxu0
    %722 = vmatprep.mubr.f32.mxu0 0.0
    %723 = vmatmul.mubr.f32.gmra.mrb[0].mxu0 %v651
    %v724 = vpop.f32.mrb[0].mxu0
    %v725 = vadd.f32 %v644, %v724
    %v726 = vpop.f32.mrb[0].mxu0
    %727 = vdwg.mxu0
    %728 = vrot.lane.b32.xlu0 %v140, 112
    %v729 = vpop.permute.xlu0 %728
    %730 = vrot.lane.b32.xlu0 %v145, 112
    %v731 = vpop.permute.xlu0 %730
    %732 = vrot.lane.b32.xlu0 %v140, 80
    %v733 = vpop.permute.xlu0 %732
    %734 = vrot.lane.b32.xlu0 %v145, 80
    %v735 = vpop.permute.xlu0 %734
    %v736 = vsel %vm168, %v729, 0
    %v738 = vsel %vm168, %v731, 0
    %v740 = vsel %vm168, %v733, 0
    %v742 = vsel %vm168, %v735, 0
    %744 = vmatprep.subr.mxu0 0.0
    %745 = vmatpush1.xpose.msra.mxu0 %v740
    %746 = vmatprep.subr.mxu0 0.0
    %747 = vmatpush1.xpose.msra.mxu0 %v742
    %748 = vmatprep.subr.mxu0 0.0
    %749 = vmatpush1.xpose.msra.mxu0 0.0
    %750 = vmatprep.subr.mxu0 0.0
    %751 = vmatpush1.xpose.msra.mxu0 0.0
    %752 = vmatprep.subr.mxu0 0.0
    %753 = vmatpush1.xpose.msra.mxu0 0.0
    %754 = vmatprep.subr.mxu0 0.0
    %755 = vmatpush1.xpose.msra.mxu0 0.0
    %756 = vmatprep.subr.mxu0 0.0
    %757 = vmatpush1.xpose.msra.mxu0 0.0
    %758 = vmatprep.subr.mxu0 0.0
    %759 = vmatpush1.xpose.msra.mxu0 0.0
    %760 = vmatprep.subr.mxu0 0.0
    %761 = vmatpush1.xpose.msra.mxu0 0.0
    %762 = vmatprep.subr.mxu0 0.0
    %763 = vmatpush1.xpose.msra.mxu0 0.0
    %764 = vmatprep.subr.mxu0 0.0
    %765 = vmatpush1.xpose.msra.mxu0 0.0
    %766 = vmatprep.subr.mxu0 0.0
    %767 = vmatpush1.xpose.msra.mxu0 0.0
    %768 = vmatprep.subr.mxu0 0.0
    %769 = vmatpush1.xpose.msra.mxu0 0.0
    %770 = vmatprep.subr.mxu0 0.0
    %771 = vmatpush1.xpose.msra.mxu0 0.0
    %772 = vmatprep.subr.mxu0 0.0
    %773 = vmatpush1.xpose.msra.mxu0 0.0
    %774 = vmatprep.subr.mxu0 0.0
    %775 = vmatpush1.xpose.msra.mxu0 0.0
    %776 = vmatprep.subr.mxu0 0.0
    %777 = vmatpush1.xpose.msra.mxu0 0.0
    %778 = vmatprep.subr.mxu0 0.0
    %779 = vmatpush1.xpose.msra.mxu0 0.0
    %780 = vmatprep.subr.mxu0 0.0
    %781 = vmatpush1.xpose.msra.mxu0 0.0
    %782 = vmatprep.subr.mxu0 0.0
    %783 = vmatpush1.xpose.msra.mxu0 0.0
    %784 = vmatprep.subr.mxu0 0.0
    %785 = vmatpush1.xpose.msra.mxu0 0.0
    %786 = vmatprep.subr.mxu0 0.0
    %787 = vmatpush1.xpose.msra.mxu0 0.0
    %788 = vmatprep.subr.mxu0 0.0
    %789 = vmatpush1.xpose.msra.mxu0 0.0
    %790 = vmatprep.subr.mxu0 0.0
    %791 = vmatpush1.xpose.msra.mxu0 0.0
    %792 = vmatprep.subr.mxu0 0.0
    %793 = vmatpush1.xpose.msra.mxu0 0.0
    %794 = vmatprep.subr.mxu0 0.0
    %795 = vmatpush1.xpose.msra.mxu0 0.0
    %796 = vmatprep.subr.mxu0 0.0
    %797 = vmatpush1.xpose.msra.mxu0 0.0
    %798 = vmatprep.subr.mxu0 0.0
    %799 = vmatpush1.xpose.msra.mxu0 0.0
    %800 = vmatprep.subr.mxu0 0.0
    %801 = vmatpush1.xpose.msra.mxu0 0.0
    %802 = vmatprep.subr.mxu0 0.0
    %803 = vmatpush1.xpose.msra.mxu0 0.0
    %804 = vmatprep.subr.mxu0 0.0
    %805 = vmatpush1.xpose.msra.mxu0 0.0
    %806 = vmatprep.subr.mxu0 0.0
    %807 = vmatpush1.xpose.msra.mxu0 0.0
    %808 = vmatprep.mubr.f32.mxu0 0.0
    %809 = vmatmul.mubr.f32.gmra.mrb[0].mxu0 %v736
    %v810 = vpop.f32.mrb[0].mxu0
    %v811 = vadd.f32 0.0, %v810
    %v812 = vpop.f32.mrb[0].mxu0
    %813 = vmatprep.mubr.f32.mxu0 0.0
    %814 = vmatmul.mubr.f32.gmra.mrb[0].mxu0 %v738
    %v815 = vpop.f32.mrb[0].mxu0
    %v816 = vadd.f32 0.0, %v815
    %v817 = vpop.f32.mrb[0].mxu0
    %818 = vdwg.mxu0
    %v819 = vmul.f32 %v811, 0.35355338
    %v820 = vmul.f32 %v816, 0.35355338
    %v821 = vsel %vm254, %v819, -inf
    %822 = vmax.xlane.f32.xlu0 %v821
    %v823 = vpop.xlane.xlu0 %822
    %v824 = vsel %vm254, %v820, -inf
    %825 = vmax.xlane.f32.xlu0 %v824
    %v826 = vpop.xlane.xlu0 %825
    %v827 = vsub.f32 %v819, %v823
    %v828 = vsub.f32 %v820, %v826
    %v829 = vmul.f32 %v827, 1.442695
    %v830 = vpow.pop %v829
    %v831 = vmul.f32 %v828, 1.442695
    %v832 = vpow.pop %v831
    %v833 = vsel %vm254, %v830, 0.0
    %834 = vadd.xlane.f32.xlu0 %v833
    %v835 = vpop.xlane.xlu0 %834
    %v836 = vsel %vm254, %v832, 0.0
    %837 = vadd.xlane.f32.xlu0 %v836
    %v838 = vpop.xlane.xlu0 %837
    %v839 = vrcp.pop %v835
    %v840 = vrcp.pop %v838
    %v841 = vmul.f32 %v830, %v839
    %v842 = vmul.f32 %v832, %v840
    %843 = vrot.lane.b32.xlu0 %v140, 48
    %v844 = vpop.permute.xlu0 %843
    %845 = vrot.lane.b32.xlu0 %v145, 48
    %v846 = vpop.permute.xlu0 %845
    %v850 = vsel %vm254, %v841, 0
    %v853 = vsel %vm254, %v842, 0
    %855 = vmatprep.subr.mxu0 0.0
    %856 = vmatpush1.msra.mxu0 %v844
    %857 = vmatprep.subr.mxu0 0.0
    %858 = vmatpush1.msra.mxu0 %v846
    %859 = vmatprep.subr.mxu0 0.0
    %860 = vmatpush1.msra.mxu0 0.0
    %861 = vmatprep.subr.mxu0 0.0
    %862 = vmatpush1.msra.mxu0 0.0
    %863 = vmatprep.subr.mxu0 0.0
    %864 = vmatpush1.msra.mxu0 0.0
    %865 = vmatprep.subr.mxu0 0.0
    %866 = vmatpush1.msra.mxu0 0.0
    %867 = vmatprep.subr.mxu0 0.0
    %868 = vmatpush1.msra.mxu0 0.0
    %869 = vmatprep.subr.mxu0 0.0
    %870 = vmatpush1.msra.mxu0 0.0
    %871 = vmatprep.subr.mxu0 0.0
    %872 = vmatpush1.msra.mxu0 0.0
    %873 = vmatprep.subr.mxu0 0.0
    %874 = vmatpush1.msra.mxu0 0.0
    %875 = vmatprep.subr.mxu0 0.0
    %876 = vmatpush1.msra.mxu0 0.0
    %877 = vmatprep.subr.mxu0 0.0
    %878 = vmatpush1.msra.mxu0 0.0
    %879 = vmatprep.subr.mxu0 0.0
    %880 = vmatpush1.msra.mxu0 0.0
    %881 = vmatprep.subr.mxu0 0.0
    %882 = vmatpush1.msra.mxu0 0.0
    %883 = vmatprep.subr.mxu0 0.0
    %884 = vmatpush1.msra.mxu0 0.0
    %885 = vmatprep.subr.mxu0 0.0
    %886 = vmatpush1.msra.mxu0 0.0
    %887 = vmatprep.subr.mxu0 0.0
    %888 = vmatpush1.msra.mxu0 0.0
    %889 = vmatprep.subr.mxu0 0.0
    %890 = vmatpush1.msra.mxu0 0.0
    %891 = vmatprep.subr.mxu0 0.0
    %892 = vmatpush1.msra.mxu0 0.0
    %893 = vmatprep.subr.mxu0 0.0
    %894 = vmatpush1.msra.mxu0 0.0
    %895 = vmatprep.subr.mxu0 0.0
    %896 = vmatpush1.msra.mxu0 0.0
    %897 = vmatprep.subr.mxu0 0.0
    %898 = vmatpush1.msra.mxu0 0.0
    %899 = vmatprep.subr.mxu0 0.0
    %900 = vmatpush1.msra.mxu0 0.0
    %901 = vmatprep.subr.mxu0 0.0
    %902 = vmatpush1.msra.mxu0 0.0
    %903 = vmatprep.subr.mxu0 0.0
    %904 = vmatpush1.msra.mxu0 0.0
    %905 = vmatprep.subr.mxu0 0.0
    %906 = vmatpush1.msra.mxu0 0.0
    %907 = vmatprep.subr.mxu0 0.0
    %908 = vmatpush1.msra.mxu0 0.0
    %909 = vmatprep.subr.mxu0 0.0
    %910 = vmatpush1.msra.mxu0 0.0
    %911 = vmatprep.subr.mxu0 0.0
    %912 = vmatpush1.msra.mxu0 0.0
    %913 = vmatprep.subr.mxu0 0.0
    %914 = vmatpush1.msra.mxu0 0.0
    %915 = vmatprep.subr.mxu0 0.0
    %916 = vmatpush1.msra.mxu0 0.0
    %917 = vmatprep.subr.mxu0 0.0
    %918 = vmatpush1.msra.mxu0 0.0
    %919 = vmatprep.mubr.f32.mxu0 0.0
    %920 = vmatmul.mubr.f32.gmra.mrb[0].mxu0 %v850
    %v921 = vpop.f32.mrb[0].mxu0
    %v922 = vadd.f32 0.0, %v921
    %v923 = vpop.f32.mrb[0].mxu0
    %924 = vmatprep.mubr.f32.mxu0 0.0
    %925 = vmatmul.mubr.f32.gmra.mrb[0].mxu0 %v853
    %v926 = vpop.f32.mrb[0].mxu0
    %v927 = vadd.f32 0.0, %v926
    %v928 = vpop.f32.mrb[0].mxu0
    %929 = vdwg.mxu0
    %v931 = vsel %vm168, %v922, 0
    %v934 = vsel %vm168, %v927, 0
    %936 = vmatprep.subr.mxu0 0.0
    %937 = vmatpush1.msra.mxu0 %v160
    %938 = vmatprep.subr.mxu0 0.0
    %939 = vmatpush1.msra.mxu0 0.0
    %940 = vmatprep.subr.mxu0 0.0
    %941 = vmatpush1.msra.mxu0 0.0
    %942 = vmatprep.subr.mxu0 0.0
    %943 = vmatpush1.msra.mxu0 0.0
    %944 = vmatprep.subr.mxu0 0.0
    %945 = vmatpush1.msra.mxu0 0.0
    %946 = vmatprep.subr.mxu0 0.0
    %947 = vmatpush1.msra.mxu0 0.0
    %948 = vmatprep.subr.mxu0 0.0
    %949 = vmatpush1.msra.mxu0 0.0
    %950 = vmatprep.subr.mxu0 0.0
    %951 = vmatpush1.msra.mxu0 0.0
    %952 = vmatprep.subr.mxu0 0.0
    %953 = vmatpush1.msra.mxu0 0.0
    %954 = vmatprep.subr.mxu0 0.0
    %955 = vmatpush1.msra.mxu0 0.0
    %956 = vmatprep.subr.mxu0 0.0
    %957 = vmatpush1.msra.mxu0 0.0
    %958 = vmatprep.subr.mxu0 0.0
    %959 = vmatpush1.msra.mxu0 0.0
    %960 = vmatprep.subr.mxu0 0.0
    %961 = vmatpush1.msra.mxu0 0.0
    %962 = vmatprep.subr.mxu0 0.0
    %963 = vmatpush1.msra.mxu0 0.0
    %964 = vmatprep.subr.mxu0 0.0
    %965 = vmatpush1.msra.mxu0 0.0
    %966 = vmatprep.subr.mxu0 0.0
    %967 = vmatpush1.msra.mxu0 0.0
    %968 = vmatprep.subr.mxu0 0.0
    %969 = vmatpush1.msra.mxu0 0.0
    %970 = vmatprep.subr.mxu0 0.0
    %971 = vmatpush1.msra.mxu0 0.0
    %972 = vmatprep.subr.mxu0 0.0
    %973 = vmatpush1.msra.mxu0 0.0
    %974 = vmatprep.subr.mxu0 0.0
    %975 = vmatpush1.msra.mxu0 0.0
    %976 = vmatprep.subr.mxu0 0.0
    %977 = vmatpush1.msra.mxu0 0.0
    %978 = vmatprep.subr.mxu0 0.0
    %979 = vmatpush1.msra.mxu0 0.0
    %980 = vmatprep.subr.mxu0 0.0
    %981 = vmatpush1.msra.mxu0 0.0
    %982 = vmatprep.subr.mxu0 0.0
    %983 = vmatpush1.msra.mxu0 0.0
    %984 = vmatprep.subr.mxu0 0.0
    %985 = vmatpush1.msra.mxu0 0.0
    %986 = vmatprep.subr.mxu0 0.0
    %987 = vmatpush1.msra.mxu0 0.0
    %988 = vmatprep.subr.mxu0 0.0
    %989 = vmatpush1.msra.mxu0 0.0
    %990 = vmatprep.subr.mxu0 0.0
    %991 = vmatpush1.msra.mxu0 0.0
    %992 = vmatprep.subr.mxu0 0.0
    %993 = vmatpush1.msra.mxu0 0.0
    %994 = vmatprep.subr.mxu0 0.0
    %995 = vmatpush1.msra.mxu0 0.0
    %996 = vmatprep.subr.mxu0 0.0
    %997 = vmatpush1.msra.mxu0 0.0
    %998 = vmatprep.subr.mxu0 0.0
    %999 = vmatpush1.msra.mxu0 0.0
    %1000 = vmatprep.mubr.f32.mxu0 0.0
    %1001 = vmatmul.mubr.f32.gmra.mrb[0].mxu0 %v931
    %v1002 = vpop.f32.mrb[0].mxu0
    %v1003 = vadd.f32 0.0, %v1002
    %v1004 = vpop.f32.mrb[0].mxu0
    %1005 = vmatprep.mubr.f32.mxu0 0.0
    %1006 = vmatmul.mubr.f32.gmra.mrb[0].mxu0 %v934
    %v1007 = vpop.f32.mrb[0].mxu0
    %v1008 = vadd.f32 0.0, %v1007
    %v1009 = vpop.f32.mrb[0].mxu0
    %1010 = vdwg.mxu0
    %v1011 = vadd.f32 %v720, %v1003
    %v1012 = vadd.f32 %v725, %v1008
    %1013 = vrot.lane.b32.xlu0 %v140, 104
    %v1014 = vpop.permute.xlu0 %1013
    %1015 = vrot.lane.b32.xlu0 %v145, 104
    %v1016 = vpop.permute.xlu0 %1015
    %1017 = vrot.lane.b32.xlu0 %v140, 72
    %v1018 = vpop.permute.xlu0 %1017
    %1019 = vrot.lane.b32.xlu0 %v145, 72
    %v1020 = vpop.permute.xlu0 %1019
    %v1021 = vsel %vm168, %v1014, 0
    %v1023 = vsel %vm168, %v1016, 0
    %v1025 = vsel %vm168, %v1018, 0
    %v1027 = vsel %vm168, %v1020, 0
    %1029 = vmatprep.subr.mxu0 0.0
    %1030 = vmatpush1.xpose.msra.mxu0 %v1025
    %1031 = vmatprep.subr.mxu0 0.0
    %1032 = vmatpush1.xpose.msra.mxu0 %v1027
    %1033 = vmatprep.subr.mxu0 0.0
    %1034 = vmatpush1.xpose.msra.mxu0 0.0
    %1035 = vmatprep.subr.mxu0 0.0
    %1036 = vmatpush1.xpose.msra.mxu0 0.0
    %1037 = vmatprep.subr.mxu0 0.0
    %1038 = vmatpush1.xpose.msra.mxu0 0.0
    %1039 = vmatprep.subr.mxu0 0.0
    %1040 = vmatpush1.xpose.msra.mxu0 0.0
    %1041 = vmatprep.subr.mxu0 0.0
    %1042 = vmatpush1.xpose.msra.mxu0 0.0
    %1043 = vmatprep.subr.mxu0 0.0
    %1044 = vmatpush1.xpose.msra.mxu0 0.0
    %1045 = vmatprep.subr.mxu0 0.0
    %1046 = vmatpush1.xpose.msra.mxu0 0.0
    %1047 = vmatprep.subr.mxu0 0.0
    %1048 = vmatpush1.xpose.msra.mxu0 0.0
    %1049 = vmatprep.subr.mxu0 0.0
    %1050 = vmatpush1.xpose.msra.mxu0 0.0
    %1051 = vmatprep.subr.mxu0 0.0
    %1052 = vmatpush1.xpose.msra.mxu0 0.0
    %1053 = vmatprep.subr.mxu0 0.0
    %1054 = vmatpush1.xpose.msra.mxu0 0.0
    %1055 = vmatprep.subr.mxu0 0.0
    %1056 = vmatpush1.xpose.msra.mxu0 0.0
    %1057 = vmatprep.subr.mxu0 0.0
    %1058 = vmatpush1.xpose.msra.mxu0 0.0
    %1059 = vmatprep.subr.mxu0 0.0
    %1060 = vmatpush1.xpose.msra.mxu0 0.0
    %1061 = vmatprep.subr.mxu0 0.0
    %1062 = vmatpush1.xpose.msra.mxu0 0.0
    %1063 = vmatprep.subr.mxu0 0.0
    %1064 = vmatpush1.xpose.msra.mxu0 0.0
    %1065 = vmatprep.subr.mxu0 0.0
    %1066 = vmatpush1.xpose.msra.mxu0 0.0
    %1067 = vmatprep.subr.mxu0 0.0
    %1068 = vmatpush1.xpose.msra.mxu0 0.0
    %1069 = vmatprep.subr.mxu0 0.0
    %1070 = vmatpush1.xpose.msra.mxu0 0.0
    %1071 = vmatprep.subr.mxu0 0.0
    %1072 = vmatpush1.xpose.msra.mxu0 0.0
    %1073 = vmatprep.subr.mxu0 0.0
    %1074 = vmatpush1.xpose.msra.mxu0 0.0
    %1075 = vmatprep.subr.mxu0 0.0
    %1076 = vmatpush1.xpose.msra.mxu0 0.0
    %1077 = vmatprep.subr.mxu0 0.0
    %1078 = vmatpush1.xpose.msra.mxu0 0.0
    %1079 = vmatprep.subr.mxu0 0.0
    %1080 = vmatpush1.xpose.msra.mxu0 0.0
    %1081 = vmatprep.subr.mxu0 0.0
    %1082 = vmatpush1.xpose.msra.mxu0 0.0
    %1083 = vmatprep.subr.mxu0 0.0
    %1084 = vmatpush1.xpose.msra.mxu0 0.0
    %1085 = vmatprep.subr.mxu0 0.0
    %1086 = vmatpush1.xpose.msra.mxu0 0.0
    %1087 = vmatprep.subr.mxu0 0.0
    %1088 = vmatpush1.xpose.msra.mxu0 0.0
    %1089 = vmatprep.subr.mxu0 0.0
    %1090 = vmatpush1.xpose.msra.mxu0 0.0
    %1091 = vmatprep.subr.mxu0 0.0
    %1092 = vmatpush1.xpose.msra.mxu0 0.0
    %1093 = vmatprep.mubr.f32.mxu0 0.0
    %1094 = vmatmul.mubr.f32.gmra.mrb[0].mxu0 %v1021
    %v1095 = vpop.f32.mrb[0].mxu0
    %v1096 = vadd.f32 0.0, %v1095
    %v1097 = vpop.f32.mrb[0].mxu0
    %1098 = vmatprep.mubr.f32.mxu0 0.0
    %1099 = vmatmul.mubr.f32.gmra.mrb[0].mxu0 %v1023
    %v1100 = vpop.f32.mrb[0].mxu0
    %v1101 = vadd.f32 0.0, %v1100
    %v1102 = vpop.f32.mrb[0].mxu0
    %1103 = vdwg.mxu0
    %v1104 = vmul.f32 %v1096, 0.35355338
    %v1105 = vmul.f32 %v1101, 0.35355338
    %v1106 = vsel %vm254, %v1104, -inf
    %1107 = vmax.xlane.f32.xlu0 %v1106
    %v1108 = vpop.xlane.xlu0 %1107
    %v1109 = vsel %vm254, %v1105, -inf
    %1110 = vmax.xlane.f32.xlu0 %v1109
    %v1111 = vpop.xlane.xlu0 %1110
    %v1112 = vsub.f32 %v1104, %v1108
    %v1113 = vsub.f32 %v1105, %v1111
    %v1114 = vmul.f32 %v1112, 1.442695
    %v1115 = vpow.pop %v1114
    %v1116 = vmul.f32 %v1113, 1.442695
    %v1117 = vpow.pop %v1116
    %v1118 = vsel %vm254, %v1115, 0.0
    %1119 = vadd.xlane.f32.xlu0 %v1118
    %v1120 = vpop.xlane.xlu0 %1119
    %v1121 = vsel %vm254, %v1117, 0.0
    %1122 = vadd.xlane.f32.xlu0 %v1121
    %v1123 = vpop.xlane.xlu0 %1122
    %v1124 = vrcp.pop %v1120
    %v1125 = vrcp.pop %v1123
    %v1126 = vmul.f32 %v1115, %v1124
    %v1127 = vmul.f32 %v1117, %v1125
    %1128 = vrot.lane.b32.xlu0 %v140, 40
    %v1129 = vpop.permute.xlu0 %1128
    %1130 = vrot.lane.b32.xlu0 %v145, 40
    %v1131 = vpop.permute.xlu0 %1130
    %v1135 = vsel %vm254, %v1126, 0
    %v1138 = vsel %vm254, %v1127, 0
    %1140 = vmatprep.subr.mxu0 0.0
    %1141 = vmatpush1.msra.mxu0 %v1129
    %1142 = vmatprep.subr.mxu0 0.0
    %1143 = vmatpush1.msra.mxu0 %v1131
    %1144 = vmatprep.subr.mxu0 0.0
    %1145 = vmatpush1.msra.mxu0 0.0
    %1146 = vmatprep.subr.mxu0 0.0
    %1147 = vmatpush1.msra.mxu0 0.0
    %1148 = vmatprep.subr.mxu0 0.0
    %1149 = vmatpush1.msra.mxu0 0.0
    %1150 = vmatprep.subr.mxu0 0.0
    %1151 = vmatpush1.msra.mxu0 0.0
    %1152 = vmatprep.subr.mxu0 0.0
    %1153 = vmatpush1.msra.mxu0 0.0
    %1154 = vmatprep.subr.mxu0 0.0
    %1155 = vmatpush1.msra.mxu0 0.0
    %1156 = vmatprep.subr.mxu0 0.0
    %1157 = vmatpush1.msra.mxu0 0.0
    %1158 = vmatprep.subr.mxu0 0.0
    %1159 = vmatpush1.msra.mxu0 0.0
    %1160 = vmatprep.subr.mxu0 0.0
    %1161 = vmatpush1.msra.mxu0 0.0
    %1162 = vmatprep.subr.mxu0 0.0
    %1163 = vmatpush1.msra.mxu0 0.0
    %1164 = vmatprep.subr.mxu0 0.0
    %1165 = vmatpush1.msra.mxu0 0.0
    %1166 = vmatprep.subr.mxu0 0.0
    %1167 = vmatpush1.msra.mxu0 0.0
    %1168 = vmatprep.subr.mxu0 0.0
    %1169 = vmatpush1.msra.mxu0 0.0
    %1170 = vmatprep.subr.mxu0 0.0
    %1171 = vmatpush1.msra.mxu0 0.0
    %1172 = vmatprep.subr.mxu0 0.0
    %1173 = vmatpush1.msra.mxu0 0.0
    %1174 = vmatprep.subr.mxu0 0.0
    %1175 = vmatpush1.msra.mxu0 0.0
    %1176 = vmatprep.subr.mxu0 0.0
    %1177 = vmatpush1.msra.mxu0 0.0
    %1178 = vmatprep.subr.mxu0 0.0
    %1179 = vmatpush1.msra.mxu0 0.0
    %1180 = vmatprep.subr.mxu0 0.0
    %1181 = vmatpush1.msra.mxu0 0.0
    %1182 = vmatprep.subr.mxu0 0.0
    %1183 = vmatpush1.msra.mxu0 0.0
    %1184 = vmatprep.subr.mxu0 0.0
    %1185 = vmatpush1.msra.mxu0 0.0
    %1186 = vmatprep.subr.mxu0 0.0
    %1187 = vmatpush1.msra.mxu0 0.0
    %1188 = vmatprep.subr.mxu0 0.0
    %1189 = vmatpush1.msra.mxu0 0.0
    %1190 = vmatprep.subr.mxu0 0.0
    %1191 = vmatpush1.msra.mxu0 0.0
    %1192 = vmatprep.subr.mxu0 0.0
    %1193 = vmatpush1.msra.mxu0 0.0
    %1194 = vmatprep.subr.mxu0 0.0
    %1195 = vmatpush1.msra.mxu0 0.0
    %1196 = vmatprep.subr.mxu0 0.0
    %1197 = vmatpush1.msra.mxu0 0.0
    %1198 = vmatprep.subr.mxu0 0.0
    %1199 = vmatpush1.msra.mxu0 0.0
    %1200 = vmatprep.subr.mxu0 0.0
    %1201 = vmatpush1.msra.mxu0 0.0
    %1202 = vmatprep.subr.mxu0 0.0
    %1203 = vmatpush1.msra.mxu0 0.0
    %1204 = vmatprep.mubr.f32.mxu0 0.0
    %1205 = vmatmul.mubr.f32.gmra.mrb[0].mxu0 %v1135
    %v1206 = vpop.f32.mrb[0].mxu0
    %v1207 = vadd.f32 0.0, %v1206
    %v1208 = vpop.f32.mrb[0].mxu0
    %1209 = vmatprep.mubr.f32.mxu0 0.0
    %1210 = vmatmul.mubr.f32.gmra.mrb[0].mxu0 %v1138
    %v1211 = vpop.f32.mrb[0].mxu0
    %v1212 = vadd.f32 0.0, %v1211
    %v1213 = vpop.f32.mrb[0].mxu0
    %1214 = vdwg.mxu0
    %v1216 = vsel %vm168, %v1207, 0
    %v1219 = vsel %vm168, %v1212, 0
    %1221 = vmatprep.subr.mxu0 0.0
    %1222 = vmatpush1.msra.mxu0 %v161
    %1223 = vmatprep.subr.mxu0 0.0
    %1224 = vmatpush1.msra.mxu0 0.0
    %1225 = vmatprep.subr.mxu0 0.0
    %1226 = vmatpush1.msra.mxu0 0.0
    %1227 = vmatprep.subr.mxu0 0.0
    %1228 = vmatpush1.msra.mxu0 0.0
    %1229 = vmatprep.subr.mxu0 0.0
    %1230 = vmatpush1.msra.mxu0 0.0
    %1231 = vmatprep.subr.mxu0 0.0
    %1232 = vmatpush1.msra.mxu0 0.0
    %1233 = vmatprep.subr.mxu0 0.0
    %1234 = vmatpush1.msra.mxu0 0.0
    %1235 = vmatprep.subr.mxu0 0.0
    %1236 = vmatpush1.msra.mxu0 0.0
    %1237 = vmatprep.subr.mxu0 0.0
    %1238 = vmatpush1.msra.mxu0 0.0
    %1239 = vmatprep.subr.mxu0 0.0
    %1240 = vmatpush1.msra.mxu0 0.0
    %1241 = vmatprep.subr.mxu0 0.0
    %1242 = vmatpush1.msra.mxu0 0.0
    %1243 = vmatprep.subr.mxu0 0.0
    %1244 = vmatpush1.msra.mxu0 0.0
    %1245 = vmatprep.subr.mxu0 0.0
    %1246 = vmatpush1.msra.mxu0 0.0
    %1247 = vmatprep.subr.mxu0 0.0
    %1248 = vmatpush1.msra.mxu0 0.0
    %1249 = vmatprep.subr.mxu0 0.0
    %1250 = vmatpush1.msra.mxu0 0.0
    %1251 = vmatprep.subr.mxu0 0.0
    %1252 = vmatpush1.msra.mxu0 0.0
    %1253 = vmatprep.subr.mxu0 0.0
    %1254 = vmatpush1.msra.mxu0 0.0
    %1255 = vmatprep.subr.mxu0 0.0
    %1256 = vmatpush1.msra.mxu0 0.0
    %1257 = vmatprep.subr.mxu0 0.0
    %1258 = vmatpush1.msra.mxu0 0.0
    %1259 = vmatprep.subr.mxu0 0.0
    %1260 = vmatpush1.msra.mxu0 0.0
    %1261 = vmatprep.subr.mxu0 0.0
    %1262 = vmatpush1.msra.mxu0 0.0
    %1263 = vmatprep.subr.mxu0 0.0
    %1264 = vmatpush1.msra.mxu0 0.0
    %1265 = vmatprep.subr.mxu0 0.0
    %1266 = vmatpush1.msra.mxu0 0.0
    %1267 = vmatprep.subr.mxu0 0.0
    %1268 = vmatpush1.msra.mxu0 0.0
    %1269 = vmatprep.subr.mxu0 0.0
    %1270 = vmatpush1.msra.mxu0 0.0
    %1271 = vmatprep.subr.mxu0 0.0
    %1272 = vmatpush1.msra.mxu0 0.0
    %1273 = vmatprep.subr.mxu0 0.0
    %1274 = vmatpush1.msra.mxu0 0.0
    %1275 = vmatprep.subr.mxu0 0.0
    %1276 = vmatpush1.msra.mxu0 0.0
    %1277 = vmatprep.subr.mxu0 0.0
    %1278 = vmatpush1.msra.mxu0 0.0
    %1279 = vmatprep.subr.mxu0 0.0
    %1280 = vmatpush1.msra.mxu0 0.0
    %1281 = vmatprep.subr.mxu0 0.0
    %1282 = vmatpush1.msra.mxu0 0.0
    %1283 = vmatprep.subr.mxu0 0.0
    %1284 = vmatpush1.msra.mxu0 0.0
    %1285 = vmatprep.mubr.f32.mxu0 0.0
    %1286 = vmatmul.mubr.f32.gmra.mrb[0].mxu0 %v1216
    %v1287 = vpop.f32.mrb[0].mxu0
    %v1288 = vadd.f32 0.0, %v1287
    %v1289 = vpop.f32.mrb[0].mxu0
    %1290 = vmatprep.mubr.f32.mxu0 0.0
    %1291 = vmatmul.mubr.f32.gmra.mrb[0].mxu0 %v1219
    %v1292 = vpop.f32.mrb[0].mxu0
    %v1293 = vadd.f32 0.0, %v1292
    %v1294 = vpop.f32.mrb[0].mxu0
    %1295 = vdwg.mxu0
    %v1296 = vadd.f32 %v1011, %v1288
    %v1297 = vadd.f32 %v1012, %v1293
    %1298 = vst.msk [vmem:[#allocation2] sm:$0xff] %vm60, %v1296
    %1299 = vst.msk [vmem:[#allocation2 + $0x8] sm:$0xff] %vm60, %v1297
    %1302 = vrot.lane.b32.xlu0 %v150, 96
    %v1303 = vpop.permute.xlu0 %1302
    %1304 = vrot.lane.b32.xlu0 %v155, 96
    %v1305 = vpop.permute.xlu0 %1304
    %v1306 = vsel %vm168, %v150, 0
    %v1308 = vsel %vm168, %v155, 0
    %v1310 = vsel %vm168, %v1303, 0
    %v1312 = vsel %vm168, %v1305, 0
    %1314 = vmatprep.subr.mxu0 0.0
    %1315 = vmatpush1.xpose.msra.mxu0 %v1310
    %1316 = vmatprep.subr.mxu0 0.0
    %1317 = vmatpush1.xpose.msra.mxu0 %v1312
    %1318 = vmatprep.subr.mxu0 0.0
    %1319 = vmatpush1.xpose.msra.mxu0 0.0
    %1320 = vmatprep.subr.mxu0 0.0
    %1321 = vmatpush1.xpose.msra.mxu0 0.0
    %1322 = vmatprep.subr.mxu0 0.0
    %1323 = vmatpush1.xpose.msra.mxu0 0.0
    %1324 = vmatprep.subr.mxu0 0.0
    %1325 = vmatpush1.xpose.msra.mxu0 0.0
    %1326 = vmatprep.subr.mxu0 0.0
    %1327 = vmatpush1.xpose.msra.mxu0 0.0
    %1328 = vmatprep.subr.mxu0 0.0
    %1329 = vmatpush1.xpose.msra.mxu0 0.0
    %1330 = vmatprep.subr.mxu0 0.0
    %1331 = vmatpush1.xpose.msra.mxu0 0.0
    %1332 = vmatprep.subr.mxu0 0.0
    %1333 = vmatpush1.xpose.msra.mxu0 0.0
    %1334 = vmatprep.subr.mxu0 0.0
    %1335 = vmatpush1.xpose.msra.mxu0 0.0
    %1336 = vmatprep.subr.mxu0 0.0
    %1337 = vmatpush1.xpose.msra.mxu0 0.0
    %1338 = vmatprep.subr.mxu0 0.0
    %1339 = vmatpush1.xpose.msra.mxu0 0.0
    %1340 = vmatprep.subr.mxu0 0.0
    %1341 = vmatpush1.xpose.msra.mxu0 0.0
    %1342 = vmatprep.subr.mxu0 0.0
    %1343 = vmatpush1.xpose.msra.mxu0 0.0
    %1344 = vmatprep.subr.mxu0 0.0
    %1345 = vmatpush1.xpose.msra.mxu0 0.0
    %1346 = vmatprep.subr.mxu0 0.0
    %1347 = vmatpush1.xpose.msra.mxu0 0.0
    %1348 = vmatprep.subr.mxu0 0.0
    %1349 = vmatpush1.xpose.msra.mxu0 0.0
    %1350 = vmatprep.subr.mxu0 0.0
    %1351 = vmatpush1.xpose.msra.mxu0 0.0
    %1352 = vmatprep.subr.mxu0 0.0
    %1353 = vmatpush1.xpose.msra.mxu0 0.0
    %1354 = vmatprep.subr.mxu0 0.0
    %1355 = vmatpush1.xpose.msra.mxu0 0.0
    %1356 = vmatprep.subr.mxu0 0.0
    %1357 = vmatpush1.xpose.msra.mxu0 0.0
    %1358 = vmatprep.subr.mxu0 0.0
    %1359 = vmatpush1.xpose.msra.mxu0 0.0
    %1360 = vmatprep.subr.mxu0 0.0
    %1361 = vmatpush1.xpose.msra.mxu0 0.0
    %1362 = vmatprep.subr.mxu0 0.0
    %1363 = vmatpush1.xpose.msra.mxu0 0.0
    %1364 = vmatprep.subr.mxu0 0.0
    %1365 = vmatpush1.xpose.msra.mxu0 0.0
    %1366 = vmatprep.subr.mxu0 0.0
    %1367 = vmatpush1.xpose.msra.mxu0 0.0
    %1368 = vmatprep.subr.mxu0 0.0
    %1369 = vmatpush1.xpose.msra.mxu0 0.0
    %1370 = vmatprep.subr.mxu0 0.0
    %1371 = vmatpush1.xpose.msra.mxu0 0.0
    %1372 = vmatprep.subr.mxu0 0.0
    %1373 = vmatpush1.xpose.msra.mxu0 0.0
    %1374 = vmatprep.subr.mxu0 0.0
    %1375 = vmatpush1.xpose.msra.mxu0 0.0
    %1376 = vmatprep.subr.mxu0 0.0
    %1377 = vmatpush1.xpose.msra.mxu0 0.0
    %1378 = vmatprep.mubr.f32.mxu0 0.0
    %1379 = vmatmul.mubr.f32.gmra.mrb[0].mxu0 %v1306
    %v1380 = vpop.f32.mrb[0].mxu0
    %v1381 = vadd.f32 0.0, %v1380
    %v1382 = vpop.f32.mrb[0].mxu0
    %1383 = vmatprep.mubr.f32.mxu0 0.0
    %1384 = vmatmul.mubr.f32.gmra.mrb[0].mxu0 %v1308
    %v1385 = vpop.f32.mrb[0].mxu0
    %v1386 = vadd.f32 0.0, %v1385
    %v1387 = vpop.f32.mrb[0].mxu0
    %1388 = vdwg.mxu0
    %v1389 = vmul.f32 %v1381, 0.35355338
    %v1390 = vmul.f32 %v1386, 0.35355338
    %v1391 = vsel %vm254, %v1389, -inf
    %1392 = vmax.xlane.f32.xlu0 %v1391
    %v1393 = vpop.xlane.xlu0 %1392
    %v1394 = vsel %vm254, %v1390, -inf
    %1395 = vmax.xlane.f32.xlu0 %v1394
    %v1396 = vpop.xlane.xlu0 %1395
    %v1397 = vsub.f32 %v1389, %v1393
    %v1398 = vsub.f32 %v1390, %v1396
    %v1399 = vmul.f32 %v1397, 1.442695
    %v1400 = vpow.pop %v1399
    %v1401 = vmul.f32 %v1398, 1.442695
    %v1402 = vpow.pop %v1401
    %v1403 = vsel %vm254, %v1400, 0.0
    %1404 = vadd.xlane.f32.xlu0 %v1403
    %v1405 = vpop.xlane.xlu0 %1404
    %v1406 = vsel %vm254, %v1402, 0.0
    %1407 = vadd.xlane.f32.xlu0 %v1406
    %v1408 = vpop.xlane.xlu0 %1407
    %v1409 = vrcp.pop %v1405
    %v1410 = vrcp.pop %v1408
    %v1411 = vmul.f32 %v1400, %v1409
    %v1412 = vmul.f32 %v1402, %v1410
    %1413 = vrot.lane.b32.xlu0 %v150, 64
    %v1414 = vpop.permute.xlu0 %1413
    %1415 = vrot.lane.b32.xlu0 %v155, 64
    %v1416 = vpop.permute.xlu0 %1415
    %v1420 = vsel %vm254, %v1411, 0
    %v1423 = vsel %vm254, %v1412, 0
    %1425 = vmatprep.subr.mxu0 0.0
    %1426 = vmatpush1.msra.mxu0 %v1414
    %1427 = vmatprep.subr.mxu0 0.0
    %1428 = vmatpush1.msra.mxu0 %v1416
    %1429 = vmatprep.subr.mxu0 0.0
    %1430 = vmatpush1.msra.mxu0 0.0
    %1431 = vmatprep.subr.mxu0 0.0
    %1432 = vmatpush1.msra.mxu0 0.0
    %1433 = vmatprep.subr.mxu0 0.0
    %1434 = vmatpush1.msra.mxu0 0.0
    %1435 = vmatprep.subr.mxu0 0.0
    %1436 = vmatpush1.msra.mxu0 0.0
    %1437 = vmatprep.subr.mxu0 0.0
    %1438 = vmatpush1.msra.mxu0 0.0
    %1439 = vmatprep.subr.mxu0 0.0
    %1440 = vmatpush1.msra.mxu0 0.0
    %1441 = vmatprep.subr.mxu0 0.0
    %1442 = vmatpush1.msra.mxu0 0.0
    %1443 = vmatprep.subr.mxu0 0.0
    %1444 = vmatpush1.msra.mxu0 0.0
    %1445 = vmatprep.subr.mxu0 0.0
    %1446 = vmatpush1.msra.mxu0 0.0
    %1447 = vmatprep.subr.mxu0 0.0
    %1448 = vmatpush1.msra.mxu0 0.0
    %1449 = vmatprep.subr.mxu0 0.0
    %1450 = vmatpush1.msra.mxu0 0.0
    %1451 = vmatprep.subr.mxu0 0.0
    %1452 = vmatpush1.msra.mxu0 0.0
    %1453 = vmatprep.subr.mxu0 0.0
    %1454 = vmatpush1.msra.mxu0 0.0
    %1455 = vmatprep.subr.mxu0 0.0
    %1456 = vmatpush1.msra.mxu0 0.0
    %1457 = vmatprep.subr.mxu0 0.0
    %1458 = vmatpush1.msra.mxu0 0.0
    %1459 = vmatprep.subr.mxu0 0.0
    %1460 = vmatpush1.msra.mxu0 0.0
    %1461 = vmatprep.subr.mxu0 0.0
    %1462 = vmatpush1.msra.mxu0 0.0
    %1463 = vmatprep.subr.mxu0 0.0
    %1464 = vmatpush1.msra.mxu0 0.0
    %1465 = vmatprep.subr.mxu0 0.0
    %1466 = vmatpush1.msra.mxu0 0.0
    %1467 = vmatprep.subr.mxu0 0.0
    %1468 = vmatpush1.msra.mxu0 0.0
    %1469 = vmatprep.subr.mxu0 0.0
    %1470 = vmatpush1.msra.mxu0 0.0
    %1471 = vmatprep.subr.mxu0 0.0
    %1472 = vmatpush1.msra.mxu0 0.0
    %1473 = vmatprep.subr.mxu0 0.0
    %1474 = vmatpush1.msra.mxu0 0.0
    %1475 = vmatprep.subr.mxu0 0.0
    %1476 = vmatpush1.msra.mxu0 0.0
    %1477 = vmatprep.subr.mxu0 0.0
    %1478 = vmatpush1.msra.mxu0 0.0
    %1479 = vmatprep.subr.mxu0 0.0
    %1480 = vmatpush1.msra.mxu0 0.0
    %1481 = vmatprep.subr.mxu0 0.0
    %1482 = vmatpush1.msra.mxu0 0.0
    %1483 = vmatprep.subr.mxu0 0.0
    %1484 = vmatpush1.msra.mxu0 0.0
    %1485 = vmatprep.subr.mxu0 0.0
    %1486 = vmatpush1.msra.mxu0 0.0
    %1487 = vmatprep.subr.mxu0 0.0
    %1488 = vmatpush1.msra.mxu0 0.0
    %1489 = vmatprep.mubr.f32.mxu0 0.0
    %1490 = vmatmul.mubr.f32.gmra.mrb[0].mxu0 %v1420
    %v1491 = vpop.f32.mrb[0].mxu0
    %v1492 = vadd.f32 0.0, %v1491
    %v1493 = vpop.f32.mrb[0].mxu0
    %1494 = vmatprep.mubr.f32.mxu0 0.0
    %1495 = vmatmul.mubr.f32.gmra.mrb[0].mxu0 %v1423
    %v1496 = vpop.f32.mrb[0].mxu0
    %v1497 = vadd.f32 0.0, %v1496
    %v1498 = vpop.f32.mrb[0].mxu0
    %1499 = vdwg.mxu0
    %1500 = vrot.lane.b32.xlu0 %v150, 120
    %v1501 = vpop.permute.xlu0 %1500
    %1502 = vrot.lane.b32.xlu0 %v155, 120
    %v1503 = vpop.permute.xlu0 %1502
    %1504 = vrot.lane.b32.xlu0 %v150, 88
    %v1505 = vpop.permute.xlu0 %1504
    %1506 = vrot.lane.b32.xlu0 %v155, 88
    %v1507 = vpop.permute.xlu0 %1506
    %v1508 = vsel %vm168, %v1501, 0
    %v1510 = vsel %vm168, %v1503, 0
    %v1512 = vsel %vm168, %v1505, 0
    %v1514 = vsel %vm168, %v1507, 0
    %1516 = vmatprep.subr.mxu0 0.0
    %1517 = vmatpush1.xpose.msra.mxu0 %v1512
    %1518 = vmatprep.subr.mxu0 0.0
    %1519 = vmatpush1.xpose.msra.mxu0 %v1514
    %1520 = vmatprep.subr.mxu0 0.0
    %1521 = vmatpush1.xpose.msra.mxu0 0.0
    %1522 = vmatprep.subr.mxu0 0.0
    %1523 = vmatpush1.xpose.msra.mxu0 0.0
    %1524 = vmatprep.subr.mxu0 0.0
    %1525 = vmatpush1.xpose.msra.mxu0 0.0
    %1526 = vmatprep.subr.mxu0 0.0
    %1527 = vmatpush1.xpose.msra.mxu0 0.0
    %1528 = vmatprep.subr.mxu0 0.0
    %1529 = vmatpush1.xpose.msra.mxu0 0.0
    %1530 = vmatprep.subr.mxu0 0.0
    %1531 = vmatpush1.xpose.msra.mxu0 0.0
    %1532 = vmatprep.subr.mxu0 0.0
    %1533 = vmatpush1.xpose.msra.mxu0 0.0
    %1534 = vmatprep.subr.mxu0 0.0
    %1535 = vmatpush1.xpose.msra.mxu0 0.0
    %1536 = vmatprep.subr.mxu0 0.0
    %1537 = vmatpush1.xpose.msra.mxu0 0.0
    %1538 = vmatprep.subr.mxu0 0.0
    %1539 = vmatpush1.xpose.msra.mxu0 0.0
    %1540 = vmatprep.subr.mxu0 0.0
    %1541 = vmatpush1.xpose.msra.mxu0 0.0
    %1542 = vmatprep.subr.mxu0 0.0
    %1543 = vmatpush1.xpose.msra.mxu0 0.0
    %1544 = vmatprep.subr.mxu0 0.0
    %1545 = vmatpush1.xpose.msra.mxu0 0.0
    %1546 = vmatprep.subr.mxu0 0.0
    %1547 = vmatpush1.xpose.msra.mxu0 0.0
    %1548 = vmatprep.subr.mxu0 0.0
    %1549 = vmatpush1.xpose.msra.mxu0 0.0
    %1550 = vmatprep.subr.mxu0 0.0
    %1551 = vmatpush1.xpose.msra.mxu0 0.0
    %1552 = vmatprep.subr.mxu0 0.0
    %1553 = vmatpush1.xpose.msra.mxu0 0.0
    %1554 = vmatprep.subr.mxu0 0.0
    %1555 = vmatpush1.xpose.msra.mxu0 0.0
    %1556 = vmatprep.subr.mxu0 0.0
    %1557 = vmatpush1.xpose.msra.mxu0 0.0
    %1558 = vmatprep.subr.mxu0 0.0
    %1559 = vmatpush1.xpose.msra.mxu0 0.0
    %1560 = vmatprep.subr.mxu0 0.0
    %1561 = vmatpush1.xpose.msra.mxu0 0.0
    %1562 = vmatprep.subr.mxu0 0.0
    %1563 = vmatpush1.xpose.msra.mxu0 0.0
    %1564 = vmatprep.subr.mxu0 0.0
    %1565 = vmatpush1.xpose.msra.mxu0 0.0
    %1566 = vmatprep.subr.mxu0 0.0
    %1567 = vmatpush1.xpose.msra.mxu0 0.0
    %1568 = vmatprep.subr.mxu0 0.0
    %1569 = vmatpush1.xpose.msra.mxu0 0.0
    %1570 = vmatprep.subr.mxu0 0.0
    %1571 = vmatpush1.xpose.msra.mxu0 0.0
    %1572 = vmatprep.subr.mxu0 0.0
    %1573 = vmatpush1.xpose.msra.mxu0 0.0
    %1574 = vmatprep.subr.mxu0 0.0
    %1575 = vmatpush1.xpose.msra.mxu0 0.0
    %1576 = vmatprep.subr.mxu0 0.0
    %1577 = vmatpush1.xpose.msra.mxu0 0.0
    %1578 = vmatprep.subr.mxu0 0.0
    %1579 = vmatpush1.xpose.msra.mxu0 0.0
    %1580 = vmatprep.mubr.f32.mxu0 0.0
    %1581 = vmatmul.mubr.f32.gmra.mrb[0].mxu0 %v1508
    %v1582 = vpop.f32.mrb[0].mxu0
    %v1583 = vadd.f32 0.0, %v1582
    %v1584 = vpop.f32.mrb[0].mxu0
    %1585 = vmatprep.mubr.f32.mxu0 0.0
    %1586 = vmatmul.mubr.f32.gmra.mrb[0].mxu0 %v1510
    %v1587 = vpop.f32.mrb[0].mxu0
    %v1588 = vadd.f32 0.0, %v1587
    %v1589 = vpop.f32.mrb[0].mxu0
    %1590 = vdwg.mxu0
    %v1591 = vmul.f32 %v1583, 0.35355338
    %v1592 = vmul.f32 %v1588, 0.35355338
    %v1593 = vsel %vm254, %v1591, -inf
    %1594 = vmax.xlane.f32.xlu0 %v1593
    %v1595 = vpop.xlane.xlu0 %1594
    %v1596 = vsel %vm254, %v1592, -inf
    %1597 = vmax.xlane.f32.xlu0 %v1596
    %v1598 = vpop.xlane.xlu0 %1597
    %v1599 = vsub.f32 %v1591, %v1595
    %v1600 = vsub.f32 %v1592, %v1598
    %v1601 = vmul.f32 %v1599, 1.442695
    %v1602 = vpow.pop %v1601
    %v1603 = vmul.f32 %v1600, 1.442695
    %v1604 = vpow.pop %v1603
    %v1605 = vsel %vm254, %v1602, 0.0
    %1606 = vadd.xlane.f32.xlu0 %v1605
    %v1607 = vpop.xlane.xlu0 %1606
    %v1608 = vsel %vm254, %v1604, 0.0
    %1609 = vadd.xlane.f32.xlu0 %v1608
    %v1610 = vpop.xlane.xlu0 %1609
    %v1611 = vrcp.pop %v1607
    %v1612 = vrcp.pop %v1610
    %v1613 = vmul.f32 %v1602, %v1611
    %v1614 = vmul.f32 %v1604, %v1612
    %1615 = vrot.lane.b32.xlu0 %v150, 56
    %v1616 = vpop.permute.xlu0 %1615
    %1617 = vrot.lane.b32.xlu0 %v155, 56
    %v1618 = vpop.permute.xlu0 %1617
    %v1622 = vsel %vm254, %v1613, 0
    %v1625 = vsel %vm254, %v1614, 0
    %1627 = vmatprep.subr.mxu0 0.0
    %1628 = vmatpush1.msra.mxu0 %v1616
    %1629 = vmatprep.subr.mxu0 0.0
    %1630 = vmatpush1.msra.mxu0 %v1618
    %1631 = vmatprep.subr.mxu0 0.0
    %1632 = vmatpush1.msra.mxu0 0.0
    %1633 = vmatprep.subr.mxu0 0.0
    %1634 = vmatpush1.msra.mxu0 0.0
    %1635 = vmatprep.subr.mxu0 0.0
    %1636 = vmatpush1.msra.mxu0 0.0
    %1637 = vmatprep.subr.mxu0 0.0
    %1638 = vmatpush1.msra.mxu0 0.0
    %1639 = vmatprep.subr.mxu0 0.0
    %1640 = vmatpush1.msra.mxu0 0.0
    %1641 = vmatprep.subr.mxu0 0.0
    %1642 = vmatpush1.msra.mxu0 0.0
    %1643 = vmatprep.subr.mxu0 0.0
    %1644 = vmatpush1.msra.mxu0 0.0
    %1645 = vmatprep.subr.mxu0 0.0
    %1646 = vmatpush1.msra.mxu0 0.0
    %1647 = vmatprep.subr.mxu0 0.0
    %1648 = vmatpush1.msra.mxu0 0.0
    %1649 = vmatprep.subr.mxu0 0.0
    %1650 = vmatpush1.msra.mxu0 0.0
    %1651 = vmatprep.subr.mxu0 0.0
    %1652 = vmatpush1.msra.mxu0 0.0
    %1653 = vmatprep.subr.mxu0 0.0
    %1654 = vmatpush1.msra.mxu0 0.0
    %1655 = vmatprep.subr.mxu0 0.0
    %1656 = vmatpush1.msra.mxu0 0.0
    %1657 = vmatprep.subr.mxu0 0.0
    %1658 = vmatpush1.msra.mxu0 0.0
    %1659 = vmatprep.subr.mxu0 0.0
    %1660 = vmatpush1.msra.mxu0 0.0
    %1661 = vmatprep.subr.mxu0 0.0
    %1662 = vmatpush1.msra.mxu0 0.0
    %1663 = vmatprep.subr.mxu0 0.0
    %1664 = vmatpush1.msra.mxu0 0.0
    %1665 = vmatprep.subr.mxu0 0.0
    %1666 = vmatpush1.msra.mxu0 0.0
    %1667 = vmatprep.subr.mxu0 0.0
    %1668 = vmatpush1.msra.mxu0 0.0
    %1669 = vmatprep.subr.mxu0 0.0
    %1670 = vmatpush1.msra.mxu0 0.0
    %1671 = vmatprep.subr.mxu0 0.0
    %1672 = vmatpush1.msra.mxu0 0.0
    %1673 = vmatprep.subr.mxu0 0.0
    %1674 = vmatpush1.msra.mxu0 0.0
    %1675 = vmatprep.subr.mxu0 0.0
    %1676 = vmatpush1.msra.mxu0 0.0
    %1677 = vmatprep.subr.mxu0 0.0
    %1678 = vmatpush1.msra.mxu0 0.0
    %1679 = vmatprep.subr.mxu0 0.0
    %1680 = vmatpush1.msra.mxu0 0.0
    %1681 = vmatprep.subr.mxu0 0.0
    %1682 = vmatpush1.msra.mxu0 0.0
    %1683 = vmatprep.subr.mxu0 0.0
    %1684 = vmatpush1.msra.mxu0 0.0
    %1685 = vmatprep.subr.mxu0 0.0
    %1686 = vmatpush1.msra.mxu0 0.0
    %1687 = vmatprep.subr.mxu0 0.0
    %1688 = vmatpush1.msra.mxu0 0.0
    %1689 = vmatprep.subr.mxu0 0.0
    %1690 = vmatpush1.msra.mxu0 0.0
    %1691 = vmatprep.mubr.f32.mxu0 0.0
    %1692 = vmatmul.mubr.f32.gmra.mrb[0].mxu0 %v1622
    %v1693 = vpop.f32.mrb[0].mxu0
    %v1694 = vadd.f32 0.0, %v1693
    %v1695 = vpop.f32.mrb[0].mxu0
    %1696 = vmatprep.mubr.f32.mxu0 0.0
    %1697 = vmatmul.mubr.f32.gmra.mrb[0].mxu0 %v1625
    %v1698 = vpop.f32.mrb[0].mxu0
    %v1699 = vadd.f32 0.0, %v1698
    %v1700 = vpop.f32.mrb[0].mxu0
    %1701 = vdwg.mxu0
    %v1703 = vsel %vm168, %v1694, 0
    %v1706 = vsel %vm168, %v1699, 0
    %1708 = vmatprep.subr.mxu0 0.0
    %1709 = vmatpush1.msra.mxu0 %v159
    %1710 = vmatprep.subr.mxu0 0.0
    %1711 = vmatpush1.msra.mxu0 0.0
    %1712 = vmatprep.subr.mxu0 0.0
    %1713 = vmatpush1.msra.mxu0 0.0
    %1714 = vmatprep.subr.mxu0 0.0
    %1715 = vmatpush1.msra.mxu0 0.0
    %1716 = vmatprep.subr.mxu0 0.0
    %1717 = vmatpush1.msra.mxu0 0.0
    %1718 = vmatprep.subr.mxu0 0.0
    %1719 = vmatpush1.msra.mxu0 0.0
    %1720 = vmatprep.subr.mxu0 0.0
    %1721 = vmatpush1.msra.mxu0 0.0
    %1722 = vmatprep.subr.mxu0 0.0
    %1723 = vmatpush1.msra.mxu0 0.0
    %1724 = vmatprep.subr.mxu0 0.0
    %1725 = vmatpush1.msra.mxu0 0.0
    %1726 = vmatprep.subr.mxu0 0.0
    %1727 = vmatpush1.msra.mxu0 0.0
    %1728 = vmatprep.subr.mxu0 0.0
    %1729 = vmatpush1.msra.mxu0 0.0
    %1730 = vmatprep.subr.mxu0 0.0
    %1731 = vmatpush1.msra.mxu0 0.0
    %1732 = vmatprep.subr.mxu0 0.0
    %1733 = vmatpush1.msra.mxu0 0.0
    %1734 = vmatprep.subr.mxu0 0.0
    %1735 = vmatpush1.msra.mxu0 0.0
    %1736 = vmatprep.subr.mxu0 0.0
    %1737 = vmatpush1.msra.mxu0 0.0
    %1738 = vmatprep.subr.mxu0 0.0
    %1739 = vmatpush1.msra.mxu0 0.0
    %1740 = vmatprep.subr.mxu0 0.0
    %1741 = vmatpush1.msra.mxu0 0.0
    %1742 = vmatprep.subr.mxu0 0.0
    %1743 = vmatpush1.msra.mxu0 0.0
    %1744 = vmatprep.subr.mxu0 0.0
    %1745 = vmatpush1.msra.mxu0 0.0
    %1746 = vmatprep.subr.mxu0 0.0
    %1747 = vmatpush1.msra.mxu0 0.0
    %1748 = vmatprep.subr.mxu0 0.0
    %1749 = vmatpush1.msra.mxu0 0.0
    %1750 = vmatprep.subr.mxu0 0.0
    %1751 = vmatpush1.msra.mxu0 0.0
    %1752 = vmatprep.subr.mxu0 0.0
    %1753 = vmatpush1.msra.mxu0 0.0
    %1754 = vmatprep.subr.mxu0 0.0
    %1755 = vmatpush1.msra.mxu0 0.0
    %1756 = vmatprep.subr.mxu0 0.0
    %1757 = vmatpush1.msra.mxu0 0.0
    %1758 = vmatprep.subr.mxu0 0.0
    %1759 = vmatpush1.msra.mxu0 0.0
    %1760 = vmatprep.subr.mxu0 0.0
    %1761 = vmatpush1.msra.mxu0 0.0
    %1762 = vmatprep.subr.mxu0 0.0
    %1763 = vmatpush1.msra.mxu0 0.0
    %1764 = vmatprep.subr.mxu0 0.0
    %1765 = vmatpush1.msra.mxu0 0.0
    %1766 = vmatprep.subr.mxu0 0.0
    %1767 = vmatpush1.msra.mxu0 0.0
    %1768 = vmatprep.subr.mxu0 0.0
    %1769 = vmatpush1.msra.mxu0 0.0
    %1770 = vmatprep.subr.mxu0 0.0
    %1771 = vmatpush1.msra.mxu0 0.0
    %1772 = vmatprep.mubr.f32.mxu0 0.0
    %1773 = vmatmul.mubr.f32.gmra.mrb[0].mxu0 %v1703
    %v1774 = vpop.f32.mrb[0].mxu0
    %v1775 = vadd.f32 0.0, %v1774
    %v1776 = vpop.f32.mrb[0].mxu0
    %1777 = vmatprep.mubr.f32.mxu0 0.0
    %1778 = vmatmul.mubr.f32.gmra.mrb[0].mxu0 %v1706
    %v1779 = vpop.f32.mrb[0].mxu0
    %v1780 = vadd.f32 0.0, %v1779
    %v1781 = vpop.f32.mrb[0].mxu0
    %1782 = vdwg.mxu0
    %v1784 = vsel %vm168, %v1492, 0
    %v1787 = vsel %vm168, %v1497, 0
    %1789 = vmatprep.subr.mxu0 0.0
    %1790 = vmatpush1.msra.mxu0 %v158
    %1791 = vmatprep.subr.mxu0 0.0
    %1792 = vmatpush1.msra.mxu0 0.0
    %1793 = vmatprep.subr.mxu0 0.0
    %1794 = vmatpush1.msra.mxu0 0.0
    %1795 = vmatprep.subr.mxu0 0.0
    %1796 = vmatpush1.msra.mxu0 0.0
    %1797 = vmatprep.subr.mxu0 0.0
    %1798 = vmatpush1.msra.mxu0 0.0
    %1799 = vmatprep.subr.mxu0 0.0
    %1800 = vmatpush1.msra.mxu0 0.0
    %1801 = vmatprep.subr.mxu0 0.0
    %1802 = vmatpush1.msra.mxu0 0.0
    %1803 = vmatprep.subr.mxu0 0.0
    %1804 = vmatpush1.msra.mxu0 0.0
    %1805 = vmatprep.subr.mxu0 0.0
    %1806 = vmatpush1.msra.mxu0 0.0
    %1807 = vmatprep.subr.mxu0 0.0
    %1808 = vmatpush1.msra.mxu0 0.0
    %1809 = vmatprep.subr.mxu0 0.0
    %1810 = vmatpush1.msra.mxu0 0.0
    %1811 = vmatprep.subr.mxu0 0.0
    %1812 = vmatpush1.msra.mxu0 0.0
    %1813 = vmatprep.subr.mxu0 0.0
    %1814 = vmatpush1.msra.mxu0 0.0
    %1815 = vmatprep.subr.mxu0 0.0
    %1816 = vmatpush1.msra.mxu0 0.0
    %1817 = vmatprep.subr.mxu0 0.0
    %1818 = vmatpush1.msra.mxu0 0.0
    %1819 = vmatprep.subr.mxu0 0.0
    %1820 = vmatpush1.msra.mxu0 0.0
    %1821 = vmatprep.subr.mxu0 0.0
    %1822 = vmatpush1.msra.mxu0 0.0
    %1823 = vmatprep.subr.mxu0 0.0
    %1824 = vmatpush1.msra.mxu0 0.0
    %1825 = vmatprep.subr.mxu0 0.0
    %1826 = vmatpush1.msra.mxu0 0.0
    %1827 = vmatprep.subr.mxu0 0.0
    %1828 = vmatpush1.msra.mxu0 0.0
    %1829 = vmatprep.subr.mxu0 0.0
    %1830 = vmatpush1.msra.mxu0 0.0
    %1831 = vmatprep.subr.mxu0 0.0
    %1832 = vmatpush1.msra.mxu0 0.0
    %1833 = vmatprep.subr.mxu0 0.0
    %1834 = vmatpush1.msra.mxu0 0.0
    %1835 = vmatprep.subr.mxu0 0.0
    %1836 = vmatpush1.msra.mxu0 0.0
    %1837 = vmatprep.subr.mxu0 0.0
    %1838 = vmatpush1.msra.mxu0 0.0
    %1839 = vmatprep.subr.mxu0 0.0
    %1840 = vmatpush1.msra.mxu0 0.0
    %1841 = vmatprep.subr.mxu0 0.0
    %1842 = vmatpush1.msra.mxu0 0.0
    %1843 = vmatprep.subr.mxu0 0.0
    %1844 = vmatpush1.msra.mxu0 0.0
    %1845 = vmatprep.subr.mxu0 0.0
    %1846 = vmatpush1.msra.mxu0 0.0
    %1847 = vmatprep.subr.mxu0 0.0
    %1848 = vmatpush1.msra.mxu0 0.0
    %1849 = vmatprep.subr.mxu0 0.0
    %1850 = vmatpush1.msra.mxu0 0.0
    %1851 = vmatprep.subr.mxu0 0.0
    %1852 = vmatpush1.msra.mxu0 0.0
    %1853 = vmatprep.mubr.f32.mxu0 0.0
    %1854 = vmatmul.mubr.f32.gmra.mrb[0].mxu0 %v1784
    %v1855 = vpop.f32.mrb[0].mxu0
    %v1856 = vadd.f32 %v1775, %v1855
    %v1857 = vpop.f32.mrb[0].mxu0
    %1858 = vmatprep.mubr.f32.mxu0 0.0
    %1859 = vmatmul.mubr.f32.gmra.mrb[0].mxu0 %v1787
    %v1860 = vpop.f32.mrb[0].mxu0
    %v1861 = vadd.f32 %v1780, %v1860
    %v1862 = vpop.f32.mrb[0].mxu0
    %1863 = vdwg.mxu0
    %1864 = vrot.lane.b32.xlu0 %v150, 112
    %v1865 = vpop.permute.xlu0 %1864
    %1866 = vrot.lane.b32.xlu0 %v155, 112
    %v1867 = vpop.permute.xlu0 %1866
    %1868 = vrot.lane.b32.xlu0 %v150, 80
    %v1869 = vpop.permute.xlu0 %1868
    %1870 = vrot.lane.b32.xlu0 %v155, 80
    %v1871 = vpop.permute.xlu0 %1870
    %v1872 = vsel %vm168, %v1865, 0
    %v1874 = vsel %vm168, %v1867, 0
    %v1876 = vsel %vm168, %v1869, 0
    %v1878 = vsel %vm168, %v1871, 0
    %1880 = vmatprep.subr.mxu0 0.0
    %1881 = vmatpush1.xpose.msra.mxu0 %v1876
    %1882 = vmatprep.subr.mxu0 0.0
    %1883 = vmatpush1.xpose.msra.mxu0 %v1878
    %1884 = vmatprep.subr.mxu0 0.0
    %1885 = vmatpush1.xpose.msra.mxu0 0.0
    %1886 = vmatprep.subr.mxu0 0.0
    %1887 = vmatpush1.xpose.msra.mxu0 0.0
    %1888 = vmatprep.subr.mxu0 0.0
    %1889 = vmatpush1.xpose.msra.mxu0 0.0
    %1890 = vmatprep.subr.mxu0 0.0
    %1891 = vmatpush1.xpose.msra.mxu0 0.0
    %1892 = vmatprep.subr.mxu0 0.0
    %1893 = vmatpush1.xpose.msra.mxu0 0.0
    %1894 = vmatprep.subr.mxu0 0.0
    %1895 = vmatpush1.xpose.msra.mxu0 0.0
    %1896 = vmatprep.subr.mxu0 0.0
    %1897 = vmatpush1.xpose.msra.mxu0 0.0
    %1898 = vmatprep.subr.mxu0 0.0
    %1899 = vmatpush1.xpose.msra.mxu0 0.0
    %1900 = vmatprep.subr.mxu0 0.0
    %1901 = vmatpush1.xpose.msra.mxu0 0.0
    %1902 = vmatprep.subr.mxu0 0.0
    %1903 = vmatpush1.xpose.msra.mxu0 0.0
    %1904 = vmatprep.subr.mxu0 0.0
    %1905 = vmatpush1.xpose.msra.mxu0 0.0
    %1906 = vmatprep.subr.mxu0 0.0
    %1907 = vmatpush1.xpose.msra.mxu0 0.0
    %1908 = vmatprep.subr.mxu0 0.0
    %1909 = vmatpush1.xpose.msra.mxu0 0.0
    %1910 = vmatprep.subr.mxu0 0.0
    %1911 = vmatpush1.xpose.msra.mxu0 0.0
    %1912 = vmatprep.subr.mxu0 0.0
    %1913 = vmatpush1.xpose.msra.mxu0 0.0
    %1914 = vmatprep.subr.mxu0 0.0
    %1915 = vmatpush1.xpose.msra.mxu0 0.0
    %1916 = vmatprep.subr.mxu0 0.0
    %1917 = vmatpush1.xpose.msra.mxu0 0.0
    %1918 = vmatprep.subr.mxu0 0.0
    %1919 = vmatpush1.xpose.msra.mxu0 0.0
    %1920 = vmatprep.subr.mxu0 0.0
    %1921 = vmatpush1.xpose.msra.mxu0 0.0
    %1922 = vmatprep.subr.mxu0 0.0
    %1923 = vmatpush1.xpose.msra.mxu0 0.0
    %1924 = vmatprep.subr.mxu0 0.0
    %1925 = vmatpush1.xpose.msra.mxu0 0.0
    %1926 = vmatprep.subr.mxu0 0.0
    %1927 = vmatpush1.xpose.msra.mxu0 0.0
    %1928 = vmatprep.subr.mxu0 0.0
    %1929 = vmatpush1.xpose.msra.mxu0 0.0
    %1930 = vmatprep.subr.mxu0 0.0
    %1931 = vmatpush1.xpose.msra.mxu0 0.0
    %1932 = vmatprep.subr.mxu0 0.0
    %1933 = vmatpush1.xpose.msra.mxu0 0.0
    %1934 = vmatprep.subr.mxu0 0.0
    %1935 = vmatpush1.xpose.msra.mxu0 0.0
    %1936 = vmatprep.subr.mxu0 0.0
    %1937 = vmatpush1.xpose.msra.mxu0 0.0
    %1938 = vmatprep.subr.mxu0 0.0
    %1939 = vmatpush1.xpose.msra.mxu0 0.0
    %1940 = vmatprep.subr.mxu0 0.0
    %1941 = vmatpush1.xpose.msra.mxu0 0.0
    %1942 = vmatprep.subr.mxu0 0.0
    %1943 = vmatpush1.xpose.msra.mxu0 0.0
    %1944 = vmatprep.mubr.f32.mxu0 0.0
    %1945 = vmatmul.mubr.f32.gmra.mrb[0].mxu0 %v1872
    %v1946 = vpop.f32.mrb[0].mxu0
    %v1947 = vadd.f32 0.0, %v1946
    %v1948 = vpop.f32.mrb[0].mxu0
    %1949 = vmatprep.mubr.f32.mxu0 0.0
    %1950 = vmatmul.mubr.f32.gmra.mrb[0].mxu0 %v1874
    %v1951 = vpop.f32.mrb[0].mxu0
    %v1952 = vadd.f32 0.0, %v1951
    %v1953 = vpop.f32.mrb[0].mxu0
    %1954 = vdwg.mxu0
    %v1955 = vmul.f32 %v1947, 0.35355338
    %v1956 = vmul.f32 %v1952, 0.35355338
    %v1957 = vsel %vm254, %v1955, -inf
    %1958 = vmax.xlane.f32.xlu0 %v1957
    %v1959 = vpop.xlane.xlu0 %1958
    %v1960 = vsel %vm254, %v1956, -inf
    %1961 = vmax.xlane.f32.xlu0 %v1960
    %v1962 = vpop.xlane.xlu0 %1961
    %v1963 = vsub.f32 %v1955, %v1959
    %v1964 = vsub.f32 %v1956, %v1962
    %v1965 = vmul.f32 %v1963, 1.442695
    %v1966 = vpow.pop %v1965
    %v1967 = vmul.f32 %v1964, 1.442695
    %v1968 = vpow.pop %v1967
    %v1969 = vsel %vm254, %v1966, 0.0
    %1970 = vadd.xlane.f32.xlu0 %v1969
    %v1971 = vpop.xlane.xlu0 %1970
    %v1972 = vsel %vm254, %v1968, 0.0
    %1973 = vadd.xlane.f32.xlu0 %v1972
    %v1974 = vpop.xlane.xlu0 %1973
    %v1975 = vrcp.pop %v1971
    %v1976 = vrcp.pop %v1974
    %v1977 = vmul.f32 %v1966, %v1975
    %v1978 = vmul.f32 %v1968, %v1976
    %1979 = vrot.lane.b32.xlu0 %v150, 48
    %v1980 = vpop.permute.xlu0 %1979
    %1981 = vrot.lane.b32.xlu0 %v155, 48
    %v1982 = vpop.permute.xlu0 %1981
    %v1986 = vsel %vm254, %v1977, 0
    %v1989 = vsel %vm254, %v1978, 0
    %1991 = vmatprep.subr.mxu0 0.0
    %1992 = vmatpush1.msra.mxu0 %v1980
    %1993 = vmatprep.subr.mxu0 0.0
    %1994 = vmatpush1.msra.mxu0 %v1982
    %1995 = vmatprep.subr.mxu0 0.0
    %1996 = vmatpush1.msra.mxu0 0.0
    %1997 = vmatprep.subr.mxu0 0.0
    %1998 = vmatpush1.msra.mxu0 0.0
    %1999 = vmatprep.subr.mxu0 0.0
    %2000 = vmatpush1.msra.mxu0 0.0
    %2001 = vmatprep.subr.mxu0 0.0
    %2002 = vmatpush1.msra.mxu0 0.0
    %2003 = vmatprep.subr.mxu0 0.0
    %2004 = vmatpush1.msra.mxu0 0.0
    %2005 = vmatprep.subr.mxu0 0.0
    %2006 = vmatpush1.msra.mxu0 0.0
    %2007 = vmatprep.subr.mxu0 0.0
    %2008 = vmatpush1.msra.mxu0 0.0
    %2009 = vmatprep.subr.mxu0 0.0
    %2010 = vmatpush1.msra.mxu0 0.0
    %2011 = vmatprep.subr.mxu0 0.0
    %2012 = vmatpush1.msra.mxu0 0.0
    %2013 = vmatprep.subr.mxu0 0.0
    %2014 = vmatpush1.msra.mxu0 0.0
    %2015 = vmatprep.subr.mxu0 0.0
    %2016 = vmatpush1.msra.mxu0 0.0
    %2017 = vmatprep.subr.mxu0 0.0
    %2018 = vmatpush1.msra.mxu0 0.0
    %2019 = vmatprep.subr.mxu0 0.0
    %2020 = vmatpush1.msra.mxu0 0.0
    %2021 = vmatprep.subr.mxu0 0.0
    %2022 = vmatpush1.msra.mxu0 0.0
    %2023 = vmatprep.subr.mxu0 0.0
    %2024 = vmatpush1.msra.mxu0 0.0
    %2025 = vmatprep.subr.mxu0 0.0
    %2026 = vmatpush1.msra.mxu0 0.0
    %2027 = vmatprep.subr.mxu0 0.0
    %2028 = vmatpush1.msra.mxu0 0.0
    %2029 = vmatprep.subr.mxu0 0.0
    %2030 = vmatpush1.msra.mxu0 0.0
    %2031 = vmatprep.subr.mxu0 0.0
    %2032 = vmatpush1.msra.mxu0 0.0
    %2033 = vmatprep.subr.mxu0 0.0
    %2034 = vmatpush1.msra.mxu0 0.0
    %2035 = vmatprep.subr.mxu0 0.0
    %2036 = vmatpush1.msra.mxu0 0.0
    %2037 = vmatprep.subr.mxu0 0.0
    %2038 = vmatpush1.msra.mxu0 0.0
    %2039 = vmatprep.subr.mxu0 0.0
    %2040 = vmatpush1.msra.mxu0 0.0
    %2041 = vmatprep.subr.mxu0 0.0
    %2042 = vmatpush1.msra.mxu0 0.0
    %2043 = vmatprep.subr.mxu0 0.0
    %2044 = vmatpush1.msra.mxu0 0.0
    %2045 = vmatprep.subr.mxu0 0.0
    %2046 = vmatpush1.msra.mxu0 0.0
    %2047 = vmatprep.subr.mxu0 0.0
    %2048 = vmatpush1.msra.mxu0 0.0
    %2049 = vmatprep.subr.mxu0 0.0
    %2050 = vmatpush1.msra.mxu0 0.0
    %2051 = vmatprep.subr.mxu0 0.0
    %2052 = vmatpush1.msra.mxu0 0.0
    %2053 = vmatprep.subr.mxu0 0.0
    %2054 = vmatpush1.msra.mxu0 0.0
    %2055 = vmatprep.mubr.f32.mxu0 0.0
    %2056 = vmatmul.mubr.f32.gmra.mrb[0].mxu0 %v1986
    %v2057 = vpop.f32.mrb[0].mxu0
    %v2058 = vadd.f32 0.0, %v2057
    %v2059 = vpop.f32.mrb[0].mxu0
    %2060 = vmatprep.mubr.f32.mxu0 0.0
    %2061 = vmatmul.mubr.f32.gmra.mrb[0].mxu0 %v1989
    %v2062 = vpop.f32.mrb[0].mxu0
    %v2063 = vadd.f32 0.0, %v2062
    %v2064 = vpop.f32.mrb[0].mxu0
    %2065 = vdwg.mxu0
    %v2067 = vsel %vm168, %v2058, 0
    %v2070 = vsel %vm168, %v2063, 0
    %2072 = vmatprep.subr.mxu0 0.0
    %2073 = vmatpush1.msra.mxu0 %v160
    %2074 = vmatprep.subr.mxu0 0.0
    %2075 = vmatpush1.msra.mxu0 0.0
    %2076 = vmatprep.subr.mxu0 0.0
    %2077 = vmatpush1.msra.mxu0 0.0
    %2078 = vmatprep.subr.mxu0 0.0
    %2079 = vmatpush1.msra.mxu0 0.0
    %2080 = vmatprep.subr.mxu0 0.0
    %2081 = vmatpush1.msra.mxu0 0.0
    %2082 = vmatprep.subr.mxu0 0.0
    %2083 = vmatpush1.msra.mxu0 0.0
    %2084 = vmatprep.subr.mxu0 0.0
    %2085 = vmatpush1.msra.mxu0 0.0
    %2086 = vmatprep.subr.mxu0 0.0
    %2087 = vmatpush1.msra.mxu0 0.0
    %2088 = vmatprep.subr.mxu0 0.0
    %2089 = vmatpush1.msra.mxu0 0.0
    %2090 = vmatprep.subr.mxu0 0.0
    %2091 = vmatpush1.msra.mxu0 0.0
    %2092 = vmatprep.subr.mxu0 0.0
    %2093 = vmatpush1.msra.mxu0 0.0
    %2094 = vmatprep.subr.mxu0 0.0
    %2095 = vmatpush1.msra.mxu0 0.0
    %2096 = vmatprep.subr.mxu0 0.0
    %2097 = vmatpush1.msra.mxu0 0.0
    %2098 = vmatprep.subr.mxu0 0.0
    %2099 = vmatpush1.msra.mxu0 0.0
    %2100 = vmatprep.subr.mxu0 0.0
    %2101 = vmatpush1.msra.mxu0 0.0
    %2102 = vmatprep.subr.mxu0 0.0
    %2103 = vmatpush1.msra.mxu0 0.0
    %2104 = vmatprep.subr.mxu0 0.0
    %2105 = vmatpush1.msra.mxu0 0.0
    %2106 = vmatprep.subr.mxu0 0.0
    %2107 = vmatpush1.msra.mxu0 0.0
    %2108 = vmatprep.subr.mxu0 0.0
    %2109 = vmatpush1.msra.mxu0 0.0
    %2110 = vmatprep.subr.mxu0 0.0
    %2111 = vmatpush1.msra.mxu0 0.0
    %2112 = vmatprep.subr.mxu0 0.0
    %2113 = vmatpush1.msra.mxu0 0.0
    %2114 = vmatprep.subr.mxu0 0.0
    %2115 = vmatpush1.msra.mxu0 0.0
    %2116 = vmatprep.subr.mxu0 0.0
    %2117 = vmatpush1.msra.mxu0 0.0
    %2118 = vmatprep.subr.mxu0 0.0
    %2119 = vmatpush1.msra.mxu0 0.0
    %2120 = vmatprep.subr.mxu0 0.0
    %2121 = vmatpush1.msra.mxu0 0.0
    %2122 = vmatprep.subr.mxu0 0.0
    %2123 = vmatpush1.msra.mxu0 0.0
    %2124 = vmatprep.subr.mxu0 0.0
    %2125 = vmatpush1.msra.mxu0 0.0
    %2126 = vmatprep.subr.mxu0 0.0
    %2127 = vmatpush1.msra.mxu0 0.0
    %2128 = vmatprep.subr.mxu0 0.0
    %2129 = vmatpush1.msra.mxu0 0.0
    %2130 = vmatprep.subr.mxu0 0.0
    %2131 = vmatpush1.msra.mxu0 0.0
    %2132 = vmatprep.subr.mxu0 0.0
    %2133 = vmatpush1.msra.mxu0 0.0
    %2134 = vmatprep.subr.mxu0 0.0
    %2135 = vmatpush1.msra.mxu0 0.0
    %2136 = vmatprep.mubr.f32.mxu0 0.0
    %2137 = vmatmul.mubr.f32.gmra.mrb[0].mxu0 %v2067
    %v2138 = vpop.f32.mrb[0].mxu0
    %v2139 = vadd.f32 0.0, %v2138
    %v2140 = vpop.f32.mrb[0].mxu0
    %2141 = vmatprep.mubr.f32.mxu0 0.0
    %2142 = vmatmul.mubr.f32.gmra.mrb[0].mxu0 %v2070
    %v2143 = vpop.f32.mrb[0].mxu0
    %v2144 = vadd.f32 0.0, %v2143
    %v2145 = vpop.f32.mrb[0].mxu0
    %2146 = vdwg.mxu0
    %v2147 = vadd.f32 %v1856, %v2139
    %v2148 = vadd.f32 %v1861, %v2144
    %2149 = vrot.lane.b32.xlu0 %v150, 104
    %v2150 = vpop.permute.xlu0 %2149
    %2151 = vrot.lane.b32.xlu0 %v155, 104
    %v2152 = vpop.permute.xlu0 %2151
    %2153 = vrot.lane.b32.xlu0 %v150, 72
    %v2154 = vpop.permute.xlu0 %2153
    %2155 = vrot.lane.b32.xlu0 %v155, 72
    %v2156 = vpop.permute.xlu0 %2155
    %v2157 = vsel %vm168, %v2150, 0
    %v2159 = vsel %vm168, %v2152, 0
    %v2161 = vsel %vm168, %v2154, 0
    %v2163 = vsel %vm168, %v2156, 0
    %2165 = vmatprep.subr.mxu0 0.0
    %2166 = vmatpush1.xpose.msra.mxu0 %v2161
    %2167 = vmatprep.subr.mxu0 0.0
    %2168 = vmatpush1.xpose.msra.mxu0 %v2163
    %2169 = vmatprep.subr.mxu0 0.0
    %2170 = vmatpush1.xpose.msra.mxu0 0.0
    %2171 = vmatprep.subr.mxu0 0.0
    %2172 = vmatpush1.xpose.msra.mxu0 0.0
    %2173 = vmatprep.subr.mxu0 0.0
    %2174 = vmatpush1.xpose.msra.mxu0 0.0
    %2175 = vmatprep.subr.mxu0 0.0
    %2176 = vmatpush1.xpose.msra.mxu0 0.0
    %2177 = vmatprep.subr.mxu0 0.0
    %2178 = vmatpush1.xpose.msra.mxu0 0.0
    %2179 = vmatprep.subr.mxu0 0.0
    %2180 = vmatpush1.xpose.msra.mxu0 0.0
    %2181 = vmatprep.subr.mxu0 0.0
    %2182 = vmatpush1.xpose.msra.mxu0 0.0
    %2183 = vmatprep.subr.mxu0 0.0
    %2184 = vmatpush1.xpose.msra.mxu0 0.0
    %2185 = vmatprep.subr.mxu0 0.0
    %2186 = vmatpush1.xpose.msra.mxu0 0.0
    %2187 = vmatprep.subr.mxu0 0.0
    %2188 = vmatpush1.xpose.msra.mxu0 0.0
    %2189 = vmatprep.subr.mxu0 0.0
    %2190 = vmatpush1.xpose.msra.mxu0 0.0
    %2191 = vmatprep.subr.mxu0 0.0
    %2192 = vmatpush1.xpose.msra.mxu0 0.0
    %2193 = vmatprep.subr.mxu0 0.0
    %2194 = vmatpush1.xpose.msra.mxu0 0.0
    %2195 = vmatprep.subr.mxu0 0.0
    %2196 = vmatpush1.xpose.msra.mxu0 0.0
    %2197 = vmatprep.subr.mxu0 0.0
    %2198 = vmatpush1.xpose.msra.mxu0 0.0
    %2199 = vmatprep.subr.mxu0 0.0
    %2200 = vmatpush1.xpose.msra.mxu0 0.0
    %2201 = vmatprep.subr.mxu0 0.0
    %2202 = vmatpush1.xpose.msra.mxu0 0.0
    %2203 = vmatprep.subr.mxu0 0.0
    %2204 = vmatpush1.xpose.msra.mxu0 0.0
    %2205 = vmatprep.subr.mxu0 0.0
    %2206 = vmatpush1.xpose.msra.mxu0 0.0
    %2207 = vmatprep.subr.mxu0 0.0
    %2208 = vmatpush1.xpose.msra.mxu0 0.0
    %2209 = vmatprep.subr.mxu0 0.0
    %2210 = vmatpush1.xpose.msra.mxu0 0.0
    %2211 = vmatprep.subr.mxu0 0.0
    %2212 = vmatpush1.xpose.msra.mxu0 0.0
    %2213 = vmatprep.subr.mxu0 0.0
    %2214 = vmatpush1.xpose.msra.mxu0 0.0
    %2215 = vmatprep.subr.mxu0 0.0
    %2216 = vmatpush1.xpose.msra.mxu0 0.0
    %2217 = vmatprep.subr.mxu0 0.0
    %2218 = vmatpush1.xpose.msra.mxu0 0.0
    %2219 = vmatprep.subr.mxu0 0.0
    %2220 = vmatpush1.xpose.msra.mxu0 0.0
    %2221 = vmatprep.subr.mxu0 0.0
    %2222 = vmatpush1.xpose.msra.mxu0 0.0
    %2223 = vmatprep.subr.mxu0 0.0
    %2224 = vmatpush1.xpose.msra.mxu0 0.0
    %2225 = vmatprep.subr.mxu0 0.0
    %2226 = vmatpush1.xpose.msra.mxu0 0.0
    %2227 = vmatprep.subr.mxu0 0.0
    %2228 = vmatpush1.xpose.msra.mxu0 0.0
    %2229 = vmatprep.mubr.f32.mxu0 0.0
    %2230 = vmatmul.mubr.f32.gmra.mrb[0].mxu0 %v2157
    %v2231 = vpop.f32.mrb[0].mxu0
    %v2232 = vadd.f32 0.0, %v2231
    %v2233 = vpop.f32.mrb[0].mxu0
    %2234 = vmatprep.mubr.f32.mxu0 0.0
    %2235 = vmatmul.mubr.f32.gmra.mrb[0].mxu0 %v2159
    %v2236 = vpop.f32.mrb[0].mxu0
    %v2237 = vadd.f32 0.0, %v2236
    %v2238 = vpop.f32.mrb[0].mxu0
    %2239 = vdwg.mxu0
    %v2240 = vmul.f32 %v2232, 0.35355338
    %v2241 = vmul.f32 %v2237, 0.35355338
    %v2242 = vsel %vm254, %v2240, -inf
    %2243 = vmax.xlane.f32.xlu0 %v2242
    %v2244 = vpop.xlane.xlu0 %2243
    %v2245 = vsel %vm254, %v2241, -inf
    %2246 = vmax.xlane.f32.xlu0 %v2245
    %v2247 = vpop.xlane.xlu0 %2246
    %v2248 = vsub.f32 %v2240, %v2244
    %v2249 = vsub.f32 %v2241, %v2247
    %v2250 = vmul.f32 %v2248, 1.442695
    %v2251 = vpow.pop %v2250
    %v2252 = vmul.f32 %v2249, 1.442695
    %v2253 = vpow.pop %v2252
    %v2254 = vsel %vm254, %v2251, 0.0
    %2255 = vadd.xlane.f32.xlu0 %v2254
    %v2256 = vpop.xlane.xlu0 %2255
    %v2257 = vsel %vm254, %v2253, 0.0
    %2258 = vadd.xlane.f32.xlu0 %v2257
    %v2259 = vpop.xlane.xlu0 %2258
    %v2260 = vrcp.pop %v2256
    %v2261 = vrcp.pop %v2259
    %v2262 = vmul.f32 %v2251, %v2260
    %v2263 = vmul.f32 %v2253, %v2261
    %2264 = vrot.lane.b32.xlu0 %v150, 40
    %v2265 = vpop.permute.xlu0 %2264
    %2266 = vrot.lane.b32.xlu0 %v155, 40
    %v2267 = vpop.permute.xlu0 %2266
    %v2271 = vsel %vm254, %v2262, 0
    %v2274 = vsel %vm254, %v2263, 0
    %2276 = vmatprep.subr.mxu0 0.0
    %2277 = vmatpush1.msra.mxu0 %v2265
    %2278 = vmatprep.subr.mxu0 0.0
    %2279 = vmatpush1.msra.mxu0 %v2267
    %2280 = vmatprep.subr.mxu0 0.0
    %2281 = vmatpush1.msra.mxu0 0.0
    %2282 = vmatprep.subr.mxu0 0.0
    %2283 = vmatpush1.msra.mxu0 0.0
    %2284 = vmatprep.subr.mxu0 0.0
    %2285 = vmatpush1.msra.mxu0 0.0
    %2286 = vmatprep.subr.mxu0 0.0
    %2287 = vmatpush1.msra.mxu0 0.0
    %2288 = vmatprep.subr.mxu0 0.0
    %2289 = vmatpush1.msra.mxu0 0.0
    %2290 = vmatprep.subr.mxu0 0.0
    %2291 = vmatpush1.msra.mxu0 0.0
    %2292 = vmatprep.subr.mxu0 0.0
    %2293 = vmatpush1.msra.mxu0 0.0
    %2294 = vmatprep.subr.mxu0 0.0
    %2295 = vmatpush1.msra.mxu0 0.0
    %2296 = vmatprep.subr.mxu0 0.0
    %2297 = vmatpush1.msra.mxu0 0.0
    %2298 = vmatprep.subr.mxu0 0.0
    %2299 = vmatpush1.msra.mxu0 0.0
    %2300 = vmatprep.subr.mxu0 0.0
    %2301 = vmatpush1.msra.mxu0 0.0
    %2302 = vmatprep.subr.mxu0 0.0
    %2303 = vmatpush1.msra.mxu0 0.0
    %2304 = vmatprep.subr.mxu0 0.0
    %2305 = vmatpush1.msra.mxu0 0.0
    %2306 = vmatprep.subr.mxu0 0.0
    %2307 = vmatpush1.msra.mxu0 0.0
    %2308 = vmatprep.subr.mxu0 0.0
    %2309 = vmatpush1.msra.mxu0 0.0
    %2310 = vmatprep.subr.mxu0 0.0
    %2311 = vmatpush1.msra.mxu0 0.0
    %2312 = vmatprep.subr.mxu0 0.0
    %2313 = vmatpush1.msra.mxu0 0.0
    %2314 = vmatprep.subr.mxu0 0.0
    %2315 = vmatpush1.msra.mxu0 0.0
    %2316 = vmatprep.subr.mxu0 0.0
    %2317 = vmatpush1.msra.mxu0 0.0
    %2318 = vmatprep.subr.mxu0 0.0
    %2319 = vmatpush1.msra.mxu0 0.0
    %2320 = vmatprep.subr.mxu0 0.0
    %2321 = vmatpush1.msra.mxu0 0.0
    %2322 = vmatprep.subr.mxu0 0.0
    %2323 = vmatpush1.msra.mxu0 0.0
    %2324 = vmatprep.subr.mxu0 0.0
    %2325 = vmatpush1.msra.mxu0 0.0
    %2326 = vmatprep.subr.mxu0 0.0
    %2327 = vmatpush1.msra.mxu0 0.0
    %2328 = vmatprep.subr.mxu0 0.0
    %2329 = vmatpush1.msra.mxu0 0.0
    %2330 = vmatprep.subr.mxu0 0.0
    %2331 = vmatpush1.msra.mxu0 0.0
    %2332 = vmatprep.subr.mxu0 0.0
    %2333 = vmatpush1.msra.mxu0 0.0
    %2334 = vmatprep.subr.mxu0 0.0
    %2335 = vmatpush1.msra.mxu0 0.0
    %2336 = vmatprep.subr.mxu0 0.0
    %2337 = vmatpush1.msra.mxu0 0.0
    %2338 = vmatprep.subr.mxu0 0.0
    %2339 = vmatpush1.msra.mxu0 0.0
    %2340 = vmatprep.mubr.f32.mxu0 0.0
    %2341 = vmatmul.mubr.f32.gmra.mrb[0].mxu0 %v2271
    %v2342 = vpop.f32.mrb[0].mxu0
    %v2343 = vadd.f32 0.0, %v2342
    %v2344 = vpop.f32.mrb[0].mxu0
    %2345 = vmatprep.mubr.f32.mxu0 0.0
    %2346 = vmatmul.mubr.f32.gmra.mrb[0].mxu0 %v2274
    %v2347 = vpop.f32.mrb[0].mxu0
    %v2348 = vadd.f32 0.0, %v2347
    %v2349 = vpop.f32.mrb[0].mxu0
    %2350 = vdwg.mxu0
    %v2352 = vsel %vm168, %v2343, 0
    %v2355 = vsel %vm168, %v2348, 0
    %2357 = vmatprep.subr.mxu0 0.0
    %2358 = vmatpush1.msra.mxu0 %v161
    %2359 = vmatprep.subr.mxu0 0.0
    %2360 = vmatpush1.msra.mxu0 0.0
    %2361 = vmatprep.subr.mxu0 0.0
    %2362 = vmatpush1.msra.mxu0 0.0
    %2363 = vmatprep.subr.mxu0 0.0
    %2364 = vmatpush1.msra.mxu0 0.0
    %2365 = vmatprep.subr.mxu0 0.0
    %2366 = vmatpush1.msra.mxu0 0.0
    %2367 = vmatprep.subr.mxu0 0.0
    %2368 = vmatpush1.msra.mxu0 0.0
    %2369 = vmatprep.subr.mxu0 0.0
    %2370 = vmatpush1.msra.mxu0 0.0
    %2371 = vmatprep.subr.mxu0 0.0
    %2372 = vmatpush1.msra.mxu0 0.0
    %2373 = vmatprep.subr.mxu0 0.0
    %2374 = vmatpush1.msra.mxu0 0.0
    %2375 = vmatprep.subr.mxu0 0.0
    %2376 = vmatpush1.msra.mxu0 0.0
    %2377 = vmatprep.subr.mxu0 0.0
    %2378 = vmatpush1.msra.mxu0 0.0
    %2379 = vmatprep.subr.mxu0 0.0
    %2380 = vmatpush1.msra.mxu0 0.0
    %2381 = vmatprep.subr.mxu0 0.0
    %2382 = vmatpush1.msra.mxu0 0.0
    %2383 = vmatprep.subr.mxu0 0.0
    %2384 = vmatpush1.msra.mxu0 0.0
    %2385 = vmatprep.subr.mxu0 0.0
    %2386 = vmatpush1.msra.mxu0 0.0
    %2387 = vmatprep.subr.mxu0 0.0
    %2388 = vmatpush1.msra.mxu0 0.0
    %2389 = vmatprep.subr.mxu0 0.0
    %2390 = vmatpush1.msra.mxu0 0.0
    %2391 = vmatprep.subr.mxu0 0.0
    %2392 = vmatpush1.msra.mxu0 0.0
    %2393 = vmatprep.subr.mxu0 0.0
    %2394 = vmatpush1.msra.mxu0 0.0
    %2395 = vmatprep.subr.mxu0 0.0
    %2396 = vmatpush1.msra.mxu0 0.0
    %2397 = vmatprep.subr.mxu0 0.0
    %2398 = vmatpush1.msra.mxu0 0.0
    %2399 = vmatprep.subr.mxu0 0.0
    %2400 = vmatpush1.msra.mxu0 0.0
    %2401 = vmatprep.subr.mxu0 0.0
    %2402 = vmatpush1.msra.mxu0 0.0
    %2403 = vmatprep.subr.mxu0 0.0
    %2404 = vmatpush1.msra.mxu0 0.0
    %2405 = vmatprep.subr.mxu0 0.0
    %2406 = vmatpush1.msra.mxu0 0.0
    %2407 = vmatprep.subr.mxu0 0.0
    %2408 = vmatpush1.msra.mxu0 0.0
    %2409 = vmatprep.subr.mxu0 0.0
    %2410 = vmatpush1.msra.mxu0 0.0
    %2411 = vmatprep.subr.mxu0 0.0
    %2412 = vmatpush1.msra.mxu0 0.0
    %2413 = vmatprep.subr.mxu0 0.0
    %2414 = vmatpush1.msra.mxu0 0.0
    %2415 = vmatprep.subr.mxu0 0.0
    %2416 = vmatpush1.msra.mxu0 0.0
    %2417 = vmatprep.subr.mxu0 0.0
    %2418 = vmatpush1.msra.mxu0 0.0
    %2419 = vmatprep.subr.mxu0 0.0
    %2420 = vmatpush1.msra.mxu0 0.0
    %2421 = vmatprep.mubr.f32.mxu0 0.0
    %2422 = vmatmul.mubr.f32.gmra.mrb[0].mxu0 %v2352
    %v2423 = vpop.f32.mrb[0].mxu0
    %v2424 = vadd.f32 0.0, %v2423
    %v2425 = vpop.f32.mrb[0].mxu0
    %2426 = vmatprep.mubr.f32.mxu0 0.0
    %2427 = vmatmul.mubr.f32.gmra.mrb[0].mxu0 %v2355
    %v2428 = vpop.f32.mrb[0].mxu0
    %v2429 = vadd.f32 0.0, %v2428
    %v2430 = vpop.f32.mrb[0].mxu0
    %2431 = vdwg.mxu0
    %v2432 = vadd.f32 %v2147, %v2424
    %v2433 = vadd.f32 %v2148, %v2429
    %2434 = vst.msk [vmem:[#allocation2 + $0x10] sm:$0xff] %vm60, %v2432
    %2435 = vst.msk [vmem:[#allocation2 + $0x18] sm:$0xff] %vm60, %v2433
    %v2436 = vld [vmem:[#allocation2] sm:$0xff]
    %v2437 = vld [vmem:[#allocation2 + $0x8] sm:$0xff]
    %v2438 = vld [vmem:[#allocation2 + $0x10] sm:$0xff]
    %v2439 = vld [vmem:[#allocation2 + $0x18] sm:$0xff]
    %v2440 = vld [vmem:[%s4] sm:$0x1]
    %v2442 = vlaneseq
    %v2443 = vshrl.u32 %v2442, 7
    %v2444 = vsub.s32 0, %v2443
    %v2445 = vrot.slane %v2440, %v2444
    %v2447 = vadd.f32 %v2436, %v2445
    %v2448 = vadd.f32 %v2437, %v2445
    %v2449 = vadd.f32 %v2438, %v2445
    %v2450 = vadd.f32 %v2439, %v2445
    %v2451 = vadd.f32 %v45, %v2447
    %v2452 = vadd.f32 %v46, %v2448
    %v2453 = vadd.f32 %v47, %v2449
    %v2454 = vadd.f32 %v48, %v2450
    %v2455 = vld [vmem:[%s5] sm:$0x1]
    %v2456 = vld [vmem:[%s6] sm:$0x1]
    %v2457 = vsel %vm60, %v2451, 0.0
    %v2458 = vsel %vm60, %v2452, 0.0
    %v2459 = vadd.f32 %v2457, %v2458
    %v2460 = vsel %vm60, %v2453, 0.0
    %v2461 = vadd.f32 %v2459, %v2460
    %v2462 = vsel %vm60, %v2454, 0.0
    %v2463 = vadd.f32 %v2461, %v2462
    %v2464 = vrot.slane %v2463, 4
    %v2465 = vadd.f32 %v2463, %v2464
    %v2466 = vrot.slane %v2465, 2
    %v2467 = vadd.f32 %v2465, %v2466
    %v2468 = vrot.slane %v2467, 1
    %v2469 = vadd.f32 %v2467, %v2468
    %v2470 = vrcp.pop 32.0
    %v2471 = vmul.f32 %v2469, %v2470
    %v2472 = vsub.f32 %v2451, %v2471
    %v2473 = vsub.f32 %v2452, %v2471
    %v2474 = vsub.f32 %v2453, %v2471
    %v2475 = vsub.f32 %v2454, %v2471
    %v2476 = vmul.f32 %v2472, %v2472
    %v2477 = vmul.f32 %v2473, %v2473
    %v2478 = vmul.f32 %v2474, %v2474
    %v2479 = vmul.f32 %v2475, %v2475
    %v2480 = vsel %vm60, %v2476, 0.0
    %v2481 = vsel %vm60, %v2477, 0.0
    %v2482 = vadd.f32 %v2480, %v2481
    %v2483 = vsel %vm60, %v2478, 0.0
    %v2484 = vadd.f32 %v2482, %v2483
    %v2485 = vsel %vm60, %v2479, 0.0
    %v2486 = vadd.f32 %v2484, %v2485
    %v2487 = vrot.slane %v2486, 4
    %v2488 = vadd.f32 %v2486, %v2487
    %v2489 = vrot.slane %v2488, 2
    %v2490 = vadd.f32 %v2488, %v2489
    %v2491 = vrot.slane %v2490, 1
    %v2492 = vadd.f32 %v2490, %v2491
    %v2493 = vmul.f32 %v2492, %v2470
    %v2494 = vadd.f32 %v2493, 1e-05
    %v2495 = vrsqrt.pop %v2494
    %v2496 = vmul.f32 %v2472, %v2495
    %v2497 = vmul.f32 %v2473, %v2495
    %v2498 = vmul.f32 %v2474, %v2495
    %v2499 = vmul.f32 %v2475, %v2495
    %v2501 = vlaneseq
    %v2502 = vshrl.u32 %v2501, 7
    %v2503 = vsub.s32 0, %v2502
    %v2504 = vrot.slane %v2455, %v2503
    %v2506 = vmul.f32 %v2496, %v2504
    %v2507 = vmul.f32 %v2497, %v2504
    %v2508 = vmul.f32 %v2498, %v2504
    %v2509 = vmul.f32 %v2499, %v2504
    %v2511 = vlaneseq
    %v2512 = vshrl.u32 %v2511, 7
    %v2513 = vsub.s32 0, %v2512
    %v2514 = vrot.slane %v2456, %v2513
    %v2516 = vadd.f32 %v2506, %v2514
    %v2517 = vadd.f32 %v2507, %v2514
    %v2518 = vadd.f32 %v2508, %v2514
    %v2519 = vadd.f32 %v2509, %v2514
    %v2520 = vld [vmem:[%s7] sm:$0xff]
    %v2521 = vld [vmem:[%s7 + $0x8] sm:$0xff]
    %v2522 = vld [vmem:[%s7 + $0x10] sm:$0xff]
    %v2523 = vld [vmem:[%s7 + $0x18] sm:$0xff]
    %v2524 = vld [vmem:[%s8] sm:$0x1]
    %v2526 = vlaneseq
    %v2527 = vshrl.u32 %v2526, 7
    %v2528 = vsub.s32 0, %v2527
    %v2529 = vrot.slane %v2524, %v2528
    %v2532 = vsel %vm60, %v2516, 0
    %v2535 = vsel %vm60, %v2517, 0
    %v2538 = vsel %vm60, %v2518, 0
    %v2541 = vsel %vm60, %v2519, 0
    %2543 = vmatprep.subr.mxu0 0.0
    %2544 = vmatpush1.msra.mxu0 %v2520
    %2545 = vmatprep.subr.mxu0 0.0
    %2546 = vmatpush1.msra.mxu0 %v2521
    %2547 = vmatprep.subr.mxu0 0.0
    %2548 = vmatpush1.msra.mxu0 %v2522
    %2549 = vmatprep.subr.mxu0 0.0
    %2550 = vmatpush1.msra.mxu0 %v2523
    %2551 = vmatprep.subr.mxu0 0.0
    %2552 = vmatpush1.msra.mxu0 0.0
    %2553 = vmatprep.subr.mxu0 0.0
    %2554 = vmatpush1.msra.mxu0 0.0
    %2555 = vmatprep.subr.mxu0 0.0
    %2556 = vmatpush1.msra.mxu0 0.0
    %2557 = vmatprep.subr.mxu0 0.0
    %2558 = vmatpush1.msra.mxu0 0.0
    %2559 = vmatprep.subr.mxu0 0.0
    %2560 = vmatpush1.msra.mxu0 0.0
    %2561 = vmatprep.subr.mxu0 0.0
    %2562 = vmatpush1.msra.mxu0 0.0
    %2563 = vmatprep.subr.mxu0 0.0
    %2564 = vmatpush1.msra.mxu0 0.0
    %2565 = vmatprep.subr.mxu0 0.0
    %2566 = vmatpush1.msra.mxu0 0.0
    %2567 = vmatprep.subr.mxu0 0.0
    %2568 = vmatpush1.msra.mxu0 0.0
    %2569 = vmatprep.subr.mxu0 0.0
    %2570 = vmatpush1.msra.mxu0 0.0
    %2571 = vmatprep.subr.mxu0 0.0
    %2572 = vmatpush1.msra.mxu0 0.0
    %2573 = vmatprep.subr.mxu0 0.0
    %2574 = vmatpush1.msra.mxu0 0.0
    %2575 = vmatprep.subr.mxu0 0.0
    %2576 = vmatpush1.msra.mxu0 0.0
    %2577 = vmatprep.subr.mxu0 0.0
    %2578 = vmatpush1.msra.mxu0 0.0
    %2579 = vmatprep.subr.mxu0 0.0
    %2580 = vmatpush1.msra.mxu0 0.0
    %2581 = vmatprep.subr.mxu0 0.0
    %2582 = vmatpush1.msra.mxu0 0.0
    %2583 = vmatprep.subr.mxu0 0.0
    %2584 = vmatpush1.msra.mxu0 0.0
    %2585 = vmatprep.subr.mxu0 0.0
    %2586 = vmatpush1.msra.mxu0 0.0
    %2587 = vmatprep.subr.mxu0 0.0
    %2588 = vmatpush1.msra.mxu0 0.0
    %2589 = vmatprep.subr.mxu0 0.0
    %2590 = vmatpush1.msra.mxu0 0.0
    %2591 = vmatprep.subr.mxu0 0.0
    %2592 = vmatpush1.msra.mxu0 0.0
    %2593 = vmatprep.subr.mxu0 0.0
    %2594 = vmatpush1.msra.mxu0 0.0
    %2595 = vmatprep.subr.mxu0 0.0
    %2596 = vmatpush1.msra.mxu0 0.0
    %2597 = vmatprep.subr.mxu0 0.0
    %2598 = vmatpush1.msra.mxu0 0.0
    %2599 = vmatprep.subr.mxu0 0.0
    %2600 = vmatpush1.msra.mxu0 0.0
    %2601 = vmatprep.subr.mxu0 0.0
    %2602 = vmatpush1.msra.mxu0 0.0
    %2603 = vmatprep.subr.mxu0 0.0
    %2604 = vmatpush1.msra.mxu0 0.0
    %2605 = vmatprep.subr.mxu0 0.0
    %2606 = vmatpush1.msra.mxu0 0.0
    %2607 = vmatprep.mubr.f32.mxu0 0.0
    %2608 = vmatmul.mubr.f32.gmra.mrb[0].mxu0 %v2532
    %v2609 = vpop.f32.mrb[0].mxu0
    %v2610 = vadd.f32 %v2529, %v2609
    %v2611 = vpop.f32.mrb[0].mxu0
    %2612 = vmatprep.mubr.f32.mxu0 0.0
    %2613 = vmatmul.mubr.f32.gmra.mrb[0].mxu0 %v2535
    %v2614 = vpop.f32.mrb[0].mxu0
    %v2615 = vadd.f32 %v2529, %v2614
    %v2616 = vpop.f32.mrb[0].mxu0
    %2617 = vmatprep.mubr.f32.mxu0 0.0
    %2618 = vmatmul.mubr.f32.gmra.mrb[0].mxu0 %v2538
    %v2619 = vpop.f32.mrb[0].mxu0
    %v2620 = vadd.f32 %v2529, %v2619
    %v2621 = vpop.f32.mrb[0].mxu0
    %2622 = vmatprep.mubr.f32.mxu0 0.0
    %2623 = vmatmul.mubr.f32.gmra.mrb[0].mxu0 %v2541
    %v2624 = vpop.f32.mrb[0].mxu0
    %v2625 = vadd.f32 %v2529, %v2624
    %v2626 = vpop.f32.mrb[0].mxu0
    %2627 = vdwg.mxu0
    %v2628 = vmul.f32 %v2610, 0.5
    %v2629 = vmul.f32 %v2615, 0.5
    %v2630 = vmul.f32 %v2620, 0.5
    %v2631 = vmul.f32 %v2625, 0.5
    %v2632 = vmul.f32 %v2610, 0.044715
    %v2633 = vmul.f32 %v2615, 0.044715
    %v2634 = vmul.f32 %v2620, 0.044715
    %v2635 = vmul.f32 %v2625, 0.044715
    %v2636 = vmul.f32 %v2632, %v2610
    %v2637 = vmul.f32 %v2633, %v2615
    %v2638 = vmul.f32 %v2634, %v2620
    %v2639 = vmul.f32 %v2635, %v2625
    %v2640 = vmul.f32 %v2636, %v2610
    %v2641 = vmul.f32 %v2637, %v2615
    %v2642 = vmul.f32 %v2638, %v2620
    %v2643 = vmul.f32 %v2639, %v2625
    %v2644 = vadd.f32 %v2610, %v2640
    %v2645 = vadd.f32 %v2615, %v2641
    %v2646 = vadd.f32 %v2620, %v2642
    %v2647 = vadd.f32 %v2625, %v2643
    %v2648 = vmul.f32 %v2644, 0.7978846
    %v2649 = vmul.f32 %v2645, 0.7978846
    %v2650 = vmul.f32 %v2646, 0.7978846
    %v2651 = vmul.f32 %v2647, 0.7978846
    %v2652 = vtanh.pop %v2648
    %v2653 = vtanh.pop %v2649
    %v2654 = vtanh.pop %v2650
    %v2655 = vtanh.pop %v2651
    %v2656 = vadd.f32 %v2652, 1.0
    %v2657 = vadd.f32 %v2653, 1.0
    %v2658 = vadd.f32 %v2654, 1.0
    %v2659 = vadd.f32 %v2655, 1.0
    %v2660 = vmul.f32 %v2628, %v2656
    %v2661 = vmul.f32 %v2629, %v2657
    %v2662 = vmul.f32 %v2630, %v2658
    %v2663 = vmul.f32 %v2631, %v2659
    %v2664 = vld [vmem:[%s9] sm:$0xff]
    %v2665 = vld [vmem:[%s9 + $0x8] sm:$0xff]
    %v2666 = vld [vmem:[%s9 + $0x10] sm:$0xff]
    %v2667 = vld [vmem:[%s9 + $0x18] sm:$0xff]
    %v2668 = vld [vmem:[%s9 + $0x20] sm:$0xff]
    %v2669 = vld [vmem:[%s9 + $0x28] sm:$0xff]
    %v2670 = vld [vmem:[%s9 + $0x30] sm:$0xff]
    %v2671 = vld [vmem:[%s9 + $0x38] sm:$0xff]
    %v2672 = vld [vmem:[%s10] sm:$0x1]
    %v2674 = vlaneseq
    %v2675 = vshrl.u32 %v2674, 7
    %v2676 = vsub.s32 0, %v2675
    %v2677 = vrot.slane %v2672, %v2676
    %vm2679 = vcmask 523264
    %v2681 = vsel %vm2679, %v2660, 0
    %v2684 = vsel %vm2679, %v2661, 0
    %v2687 = vsel %vm2679, %v2662, 0
    %v2690 = vsel %vm2679, %v2663, 0
    %2692 = vmatprep.subr.mxu0 0.0
    %2693 = vmatpush1.msra.mxu0 %v2664
    %2694 = vmatprep.subr.mxu0 0.0
    %2695 = vmatpush1.msra.mxu0 %v2665
    %2696 = vmatprep.subr.mxu0 0.0
    %2697 = vmatpush1.msra.mxu0 %v2666
    %2698 = vmatprep.subr.mxu0 0.0
    %2699 = vmatpush1.msra.mxu0 %v2667
    %2700 = vmatprep.subr.mxu0 0.0
    %2701 = vmatpush1.msra.mxu0 %v2668
    %2702 = vmatprep.subr.mxu0 0.0
    %2703 = vmatpush1.msra.mxu0 %v2669
    %2704 = vmatprep.subr.mxu0 0.0
    %2705 = vmatpush1.msra.mxu0 %v2670
    %2706 = vmatprep.subr.mxu0 0.0
    %2707 = vmatpush1.msra.mxu0 %v2671
    %2708 = vmatprep.subr.mxu0 0.0
    %2709 = vmatpush1.msra.mxu0 0.0
    %2710 = vmatprep.subr.mxu0 0.0
    %2711 = vmatpush1.msra.mxu0 0.0
    %2712 = vmatprep.subr.mxu0 0.0
    %2713 = vmatpush1.msra.mxu0 0.0
    %2714 = vmatprep.subr.mxu0 0.0
    %2715 = vmatpush1.msra.mxu0 0.0
    %2716 = vmatprep.subr.mxu0 0.0
    %2717 = vmatpush1.msra.mxu0 0.0
    %2718 = vmatprep.subr.mxu0 0.0
    %2719 = vmatpush1.msra.mxu0 0.0
    %2720 = vmatprep.subr.mxu0 0.0
    %2721 = vmatpush1.msra.mxu0 0.0
    %2722 = vmatprep.subr.mxu0 0.0
    %2723 = vmatpush1.msra.mxu0 0.0
    %2724 = vmatprep.subr.mxu0 0.0
    %2725 = vmatpush1.msra.mxu0 0.0
    %2726 = vmatprep.subr.mxu0 0.0
    %2727 = vmatpush1.msra.mxu0 0.0
    %2728 = vmatprep.subr.mxu0 0.0
    %2729 = vmatpush1.msra.mxu0 0.0
    %2730 = vmatprep.subr.mxu0 0.0
    %2731 = vmatpush1.msra.mxu0 0.0
    %2732 = vmatprep.subr.mxu0 0.0
    %2733 = vmatpush1.msra.mxu0 0.0
    %2734 = vmatprep.subr.mxu0 0.0
    %2735 = vmatpush1.msra.mxu0 0.0
    %2736 = vmatprep.subr.mxu0 0.0
    %2737 = vmatpush1.msra.mxu0 0.0
    %2738 = vmatprep.subr.mxu0 0.0
    %2739 = vmatpush1.msra.mxu0 0.0
    %2740 = vmatprep.subr.mxu0 0.0
    %2741 = vmatpush1.msra.mxu0 0.0
    %2742 = vmatprep.subr.mxu0 0.0
    %2743 = vmatpush1.msra.mxu0 0.0
    %2744 = vmatprep.subr.mxu0 0.0
    %2745 = vmatpush1.msra.mxu0 0.0
    %2746 = vmatprep.subr.mxu0 0.0
    %2747 = vmatpush1.msra.mxu0 0.0
    %2748 = vmatprep.subr.mxu0 0.0
    %2749 = vmatpush1.msra.mxu0 0.0
    %2750 = vmatprep.subr.mxu0 0.0
    %2751 = vmatpush1.msra.mxu0 0.0
    %2752 = vmatprep.subr.mxu0 0.0
    %2753 = vmatpush1.msra.mxu0 0.0
    %2754 = vmatprep.subr.mxu0 0.0
    %2755 = vmatpush1.msra.mxu0 0.0
    %2756 = vmatprep.mubr.f32.mxu0 0.0
    %2757 = vmatmul.mubr.f32.gmra.mrb[0].mxu0 %v2681
    %v2758 = vpop.f32.mrb[0].mxu0
    %v2759 = vadd.f32 %v2677, %v2758
    %v2760 = vpop.f32.mrb[0].mxu0
    %2761 = vmatprep.mubr.f32.mxu0 0.0
    %2762 = vmatmul.mubr.f32.gmra.mrb[0].mxu0 %v2684
    %v2763 = vpop.f32.mrb[0].mxu0
    %v2764 = vadd.f32 %v2677, %v2763
    %v2765 = vpop.f32.mrb[0].mxu0
    %2766 = vmatprep.mubr.f32.mxu0 0.0
    %2767 = vmatmul.mubr.f32.gmra.mrb[0].mxu0 %v2687
    %v2768 = vpop.f32.mrb[0].mxu0
    %v2769 = vadd.f32 %v2677, %v2768
    %v2770 = vpop.f32.mrb[0].mxu0
    %2771 = vmatprep.mubr.f32.mxu0 0.0
    %2772 = vmatmul.mubr.f32.gmra.mrb[0].mxu0 %v2690
    %v2773 = vpop.f32.mrb[0].mxu0
    %v2774 = vadd.f32 %v2677, %v2773
    %v2775 = vpop.f32.mrb[0].mxu0
    %2776 = vdwg.mxu0
    %v2777 = vadd.f32 %v2516, %v2759
    %v2778 = vadd.f32 %v2517, %v2764
    %v2779 = vadd.f32 %v2518, %v2769
    %v2780 = vadd.f32 %v2519, %v2774
    %v2781 = vld [vmem:[%s11] sm:$0x1]
    %v2782 = vld [vmem:[%s12] sm:$0x1]
    %v2783 = vsel %vm60, %v2777, 0.0
    %v2784 = vsel %vm60, %v2778, 0.0
    %v2785 = vadd.f32 %v2783, %v2784
    %v2786 = vsel %vm60, %v2779, 0.0
    %v2787 = vadd.f32 %v2785, %v2786
    %v2788 = vsel %vm60, %v2780, 0.0
    %v2789 = vadd.f32 %v2787, %v2788
    %v2790 = vrot.slane %v2789, 4
    %v2791 = vadd.f32 %v2789, %v2790
    %v2792 = vrot.slane %v2791, 2
    %v2793 = vadd.f32 %v2791, %v2792
    %v2794 = vrot.slane %v2793, 1
    %v2795 = vadd.f32 %v2793, %v2794
    %v2796 = vmul.f32 %v2795, %v2470
    %v2797 = vsub.f32 %v2777, %v2796
    %v2798 = vsub.f32 %v2778, %v2796
    %v2799 = vsub.f32 %v2779, %v2796
    %v2800 = vsub.f32 %v2780, %v2796
    %v2801 = vmul.f32 %v2797, %v2797
    %v2802 = vmul.f32 %v2798, %v2798
    %v2803 = vmul.f32 %v2799, %v2799
    %v2804 = vmul.f32 %v2800, %v2800
    %v2805 = vsel %vm60, %v2801, 0.0
    %v2806 = vsel %vm60, %v2802, 0.0
    %v2807 = vadd.f32 %v2805, %v2806
    %v2808 = vsel %vm60, %v2803, 0.0
    %v2809 = vadd.f32 %v2807, %v2808
    %v2810 = vsel %vm60, %v2804, 0.0
    %v2811 = vadd.f32 %v2809, %v2810
    %v2812 = vrot.slane %v2811, 4
    %v2813 = vadd.f32 %v2811, %v2812
    %v2814 = vrot.slane %v2813, 2
    %v2815 = vadd.f32 %v2813, %v2814
    %v2816 = vrot.slane %v2815, 1
    %v2817 = vadd.f32 %v2815, %v2816
    %v2818 = vmul.f32 %v2817, %v2470
    %v2819 = vadd.f32 %v2818, 1e-05
    %v2820 = vrsqrt.pop %v2819
    %v2821 = vmul.f32 %v2797, %v2820
    %v2822 = vmul.f32 %v2798, %v2820
    %v2823 = vmul.f32 %v2799, %v2820
    %v2824 = vmul.f32 %v2800, %v2820
    %v2826 = vlaneseq
    %v2827 = vshrl.u32 %v2826, 7
    %v2828 = vsub.s32 0, %v2827
    %v2829 = vrot.slane %v2781, %v2828
    %v2831 = vmul.f32 %v2821, %v2829
    %v2832 = vmul.f32 %v2822, %v2829
    %v2833 = vmul.f32 %v2823, %v2829
    %v2834 = vmul.f32 %v2824, %v2829
    %v2836 = vlaneseq
    %v2837 = vshrl.u32 %v2836, 7
    %v2838 = vsub.s32 0, %v2837
    %v2839 = vrot.slane %v2782, %v2838
    %v2841 = vadd.f32 %v2831, %v2839
    %v2842 = vadd.f32 %v2832, %v2839
    %v2843 = vadd.f32 %v2833, %v2839
    %v2844 = vadd.f32 %v2834, %v2839
    %2845 = vst.msk [vmem:[#allocation3] sm:$0xff] %vm60, %v2841
    %2846 = vst.msk [vmem:[#allocation3 + $0x8] sm:$0xff] %vm60, %v2842
    %2847 = vst.msk [vmem:[#allocation3 + $0x10] sm:$0xff] %vm60, %v2843
    %2848 = vst.msk [vmem:[#allocation3 + $0x18] sm:$0xff] %vm60, %v2844
    // Predicated region
    $region54: #{_lambda_.3} parent=1 // pred_check
      _
    $region55: #{_lambda_.3} parent=1 // pred_check_branch
      %2850 = sbr.rel (0) target = $region57
    $region56: #{_lambda_.3} parent=1 // pred_region
      %s2852 = ssub.s32 512, 512
      %2853 = vsyncadd [#allocation4], %s2852
      %s2854 = sshll.u32 [#allocation3], 4
      %s2855 = int_to_ptr.vmem [resolvable:$true] %s2854
      %2860 = dma.vmem_to_hbm [thread:$0]  %s2855, 512, %s13, [#allocation4], 128, 128, 8
    $region57: #{_lambda_.3} parent=1 // pred_fallthru
      _
    // Predicated region
    $region58: #{_lambda_.3} parent=1 // pred_check
      _
    $region59: #{_lambda_.3} parent=1 // pred_check_branch
      %2862 = sbr.rel (0) target = $region61
    $region60: #{_lambda_.3} parent=1 // pred_region
      %2863 = dma.done [#allocation4], 512
    $region61: #{_lambda_.3} parent=1 // pred_fallthru
      _
    %2864 = vsyncpa [#allocation4], 1

// kernel: _lambda_.2
$region0: #{_lambda_.2}
  #allocation0 [shape = 'u32[]', space=smem, size = 0x4, offset = 0x4, fixed_abs, tag = 'smem constant byte address 0x4 - core index']
  #allocation1 [shape = 'u32[144,128]{1,0:T(1,128)}', space=vmem, size = 0x12000, scoped, tag = 'internal scratch']
  #allocation2 [shape = 'f32[40,64]{1,0:T(8,128)}', space=vmem, size = 0x5000, scoped, tag = 'scratch operand']
  #allocation3 [shape = 'f32[32,64]{1,0:T(8,128)}', space=vmem, size = 0x4000, scoped, tag = 'scratch operand']
  %s0 = inlined_call_operand.hbm [shape: f32[32,32], index: 0, kind: input, shape index: {}]
  %s1 = inlined_call_operand.hbm [shape: f32[32,1], index: 1, kind: input, shape index: {}]
  %s2 = inlined_call_operand.hbm [shape: f32[32,128], index: 2, kind: input, shape index: {}]
  %s3 = inlined_call_operand.hbm [shape: f32[4,64], index: 3, kind: input, shape index: {}]
  %s4 = inlined_call_operand.hbm [shape: f32[1,64], index: 4, kind: input, shape index: {}]
  %s5 = inlined_call_operand.hbm [shape: f32[64,64], index: 5, kind: input, shape index: {}]
  %s6 = inlined_call_operand.hbm [shape: f32[1,64], index: 6, kind: input, shape index: {}]
  %s7 = inlined_call_operand.hbm [shape: f32[42,64], index: 7, kind: input, shape index: {}]
  %s8 = inlined_call_operand.hbm [shape: f32[21,64], index: 8, kind: input, shape index: {}]
  %s9 = inlined_call_operand.vmem [shape: f32[1,64], index: 9, kind: input, shape index: {}]
  %s10 = inlined_call_operand.vmem [shape: f32[64,32], index: 10, kind: input, shape index: {}]
  %s11 = inlined_call_operand.hbm [shape: f32[1,32], index: 11, kind: input, shape index: {}]
  %s12 = inlined_call_operand.hbm [shape: f32[1,32], index: 12, kind: input, shape index: {}]
  %s13 = inlined_call_operand.hbm [shape: f32[32,32], index: 13, kind: input, shape index: {}]
  %s14 = inlined_call_operand.vmem [shape: f32[1,32], index: 14, kind: input, shape index: {}]
  %s15 = inlined_call_operand.vmem [shape: f32[32,32], index: 15, kind: input, shape index: {}]
  %s16 = inlined_call_operand.vmem [shape: f32[1,32], index: 16, kind: input, shape index: {}]
  %s17 = inlined_call_operand.vmem [shape: f32[1,32], index: 17, kind: input, shape index: {}]
  %s18 = inlined_call_operand.vmem [shape: f32[1,32], index: 18, kind: input, shape index: {}]
  %s19 = inlined_call_operand.vmem [shape: f32[32,32], index: 19, kind: output, shape index: {}]
  %s20 = sld [smem:[#allocation0]]
  $region134: #{_lambda_.2} parent=0
    _
  %s22 = ssub.s32 1, %s20
  %s23 = scalar_select 0, %s22, %s20
  $region1: #{_lambda_.2} parent=0
    #allocation4 [shape = 'u8[16384]{0}', space=vmem, size = 0x4000, scoped, tag = 'input window, operand 0, single buffered']
    #allocation5 [shape = 's32[1]{0}', space=sflag, size = 0x4, scoped, tag = 'scoped memory for _lambda_.2']
    #allocation6 [shape = 'u8[16384]{0}', space=vmem, size = 0x4000, scoped, tag = 'input window, operand 1, single buffered']
    #allocation7 [shape = 's32[1]{0}', space=sflag, size = 0x4, scoped, tag = 'scoped memory for _lambda_.2']
    #allocation8 [shape = 'u8[16384]{0}', space=vmem, size = 0x4000, scoped, tag = 'input window, operand 2, single buffered']
    #allocation9 [shape = 'u8[2048]{0}', space=vmem, size = 0x800, scoped, tag = 'input window, operand 3, single buffered']
    #allocation10 [shape = 's32[1]{0}', space=sflag, size = 0x4, scoped, tag = 'scoped memory for _lambda_.2']
    #allocation11 [shape = 'u8[512]{0}', space=vmem, size = 0x400, scoped, tag = 'input window, operand 4, single buffered']
    #allocation12 [shape = 'u8[32768]{0}', space=vmem, size = 0x8000, scoped, tag = 'input window, operand 5, single buffered']
    #allocation13 [shape = 's32[1]{0}', space=sflag, size = 0x4, scoped, tag = 'scoped memory for _lambda_.2']
    #allocation14 [shape = 'u8[512]{0}', space=vmem, size = 0x400, scoped, tag = 'input window, operand 6, single buffered']
    #allocation15 [shape = 'u8[24576]{0}', space=vmem, size = 0x6000, scoped, tag = 'input window, operand 7, single buffered']
    #allocation16 [shape = 's32[1]{0}', space=sflag, size = 0x4, scoped, tag = 'scoped memory for _lambda_.2']
    #allocation17 [shape = 'u8[12288]{0}', space=vmem, size = 0x3000, scoped, tag = 'input window, operand 8, single buffered']
    #allocation18 [shape = 'u8[512]{0}', space=vmem, size = 0x400, scoped, tag = 'input window, operand 11, single buffered']
    #allocation19 [shape = 's32[1]{0}', space=sflag, size = 0x4, scoped, tag = 'scoped memory for _lambda_.2']
    #allocation20 [shape = 'u8[512]{0}', space=vmem, size = 0x400, scoped, tag = 'input window, operand 12, single buffered']
    #allocation21 [shape = 'u8[16384]{0}', space=vmem, size = 0x4000, scoped, tag = 'input window, operand 13, single buffered']
    #allocation22 [shape = 's32[1]{0}', space=sflag, size = 0x4, scoped, tag = 'scoped memory for _lambda_.2']
    %24 = vsyncpa [#allocation5], 0
    %25 = vsyncpa [#allocation7], 0
    %26 = vsyncpa [#allocation10], 0
    %27 = vsyncpa [#allocation13], 0
    %28 = vsyncpa [#allocation16], 0
    %29 = vsyncpa [#allocation19], 0
    %30 = vsyncpa [#allocation22], 0
    // Predicated region
    $region2: #{_lambda_.2} parent=1 // pred_check
      _
    $region3: #{_lambda_.2} parent=1 // pred_check_branch
      %32 = sbr.rel (0) target = $region5
    $region4: #{_lambda_.2} parent=1 // pred_region
      %s34 = ssub.s32 512, 512
      %35 = vsyncadd [#allocation5], %s34
      %s36 = sshll.u32 [#allocation4], 4
      %s37 = int_to_ptr.vmem [resolvable:$true] %s36
      %42 = dma.hbm_to_vmem [thread:$0]  %s0, 512, %s37, [#allocation5], 128, 128, 8
    $region5: #{_lambda_.2} parent=1 // pred_fallthru
      _
    // Predicated region
    $region6: #{_lambda_.2} parent=1 // pred_check
      _
    $region7: #{_lambda_.2} parent=1 // pred_check_branch
      %44 = sbr.rel (0) target = $region9
    $region8: #{_lambda_.2} parent=1 // pred_region
      %s46 = ssub.s32 512, 512
      %47 = vsyncadd [#allocation7], %s46
      %s48 = sshll.u32 [#allocation6], 4
      %s49 = int_to_ptr.vmem [resolvable:$true] %s48
      %54 = dma.hbm_to_vmem [thread:$0]  %s1, 512, %s49, [#allocation7], 128, 128, 8
    $region9: #{_lambda_.2} parent=1 // pred_fallthru
      _
    // Predicated region
    $region10: #{_lambda_.2} parent=1 // pred_check
      _
    $region11: #{_lambda_.2} parent=1 // pred_check_branch
      %56 = sbr.rel (0) target = $region13
    $region12: #{_lambda_.2} parent=1 // pred_region
      %s58 = ssub.s32 512, 512
      %59 = vsyncadd [#allocation7], %s58
      %s60 = sshll.u32 [#allocation8], 4
      %s61 = int_to_ptr.vmem [resolvable:$true] %s60
      %66 = dma.hbm_to_vmem [thread:$0]  %s2, 512, %s61, [#allocation7], 128, 128, 8
    $region13: #{_lambda_.2} parent=1 // pred_fallthru
      _
    // Predicated region
    $region14: #{_lambda_.2} parent=1 // pred_check
      _
    $region15: #{_lambda_.2} parent=1 // pred_check_branch
      %68 = sbr.rel (0) target = $region17
    $region16: #{_lambda_.2} parent=1 // pred_region
      %s70 = ssub.s32 64, 64
      %71 = vsyncadd [#allocation10], %s70
      %s73 = sshll.u32 [#allocation9], 4
      %s74 = int_to_ptr.vmem [resolvable:$true] %s73
      %76 = dma.hbm_to_vmem [thread:$0]  %s3, 64, %s74, [#allocation10]
    $region17: #{_lambda_.2} parent=1 // pred_fallthru
      _
    // Predicated region
    $region18: #{_lambda_.2} parent=1 // pred_check
      _
    $region19: #{_lambda_.2} parent=1 // pred_check_branch
      %78 = sbr.rel (0) target = $region21
    $region20: #{_lambda_.2} parent=1 // pred_region
      %s80 = ssub.s32 16, 16
      %81 = vsyncadd [#allocation10], %s80
      %s83 = sshll.u32 [#allocation11], 4
      %s84 = int_to_ptr.vmem [resolvable:$true] %s83
      %86 = dma.hbm_to_vmem [thread:$0]  %s4, 16, %s84, [#allocation10]
    $region21: #{_lambda_.2} parent=1 // pred_fallthru
      _
    // Predicated region
    $region22: #{_lambda_.2} parent=1 // pred_check
      _
    $region23: #{_lambda_.2} parent=1 // pred_check_branch
      %88 = sbr.rel (0) target = $region25
    $region24: #{_lambda_.2} parent=1 // pred_region
      %s90 = ssub.s32 1024, 1024
      %91 = vsyncadd [#allocation13], %s90
      %s92 = sshll.u32 [#allocation12], 4
      %s93 = int_to_ptr.vmem [resolvable:$true] %s92
      %98 = dma.hbm_to_vmem [thread:$0]  %s5, 1024, %s93, [#allocation13], 128, 128, 8
    $region25: #{_lambda_.2} parent=1 // pred_fallthru
      _
    // Predicated region
    $region26: #{_lambda_.2} parent=1 // pred_check
      _
    $region27: #{_lambda_.2} parent=1 // pred_check_branch
      %100 = sbr.rel (0) target = $region29
    $region28: #{_lambda_.2} parent=1 // pred_region
      %s102 = ssub.s32 16, 16
      %103 = vsyncadd [#allocation13], %s102
      %s105 = sshll.u32 [#allocation14], 4
      %s106 = int_to_ptr.vmem [resolvable:$true] %s105
      %108 = dma.hbm_to_vmem [thread:$0]  %s6, 16, %s106, [#allocation13]
    $region29: #{_lambda_.2} parent=1 // pred_fallthru
      _
    // Predicated region
    $region30: #{_lambda_.2} parent=1 // pred_check
      _
    $region31: #{_lambda_.2} parent=1 // pred_check_branch
      %110 = sbr.rel (0) target = $region33
    $region32: #{_lambda_.2} parent=1 // pred_region
      %s112 = ssub.s32 768, 768
      %113 = vsyncadd [#allocation16], %s112
      %s114 = sshll.u32 [#allocation15], 4
      %s115 = int_to_ptr.vmem [resolvable:$true] %s114
      %120 = dma.hbm_to_vmem [thread:$0]  %s7, 768, %s115, [#allocation16], 128, 128, 8
    $region33: #{_lambda_.2} parent=1 // pred_fallthru
      _
    // Predicated region
    $region34: #{_lambda_.2} parent=1 // pred_check
      _
    $region35: #{_lambda_.2} parent=1 // pred_check_branch
      %122 = sbr.rel (0) target = $region37
    $region36: #{_lambda_.2} parent=1 // pred_region
      %s124 = ssub.s32 384, 384
      %125 = vsyncadd [#allocation16], %s124
      %s126 = sshll.u32 [#allocation17], 4
      %s127 = int_to_ptr.vmem [resolvable:$true] %s126
      %132 = dma.hbm_to_vmem [thread:$0]  %s8, 384, %s127, [#allocation16], 128, 128, 8
    $region37: #{_lambda_.2} parent=1 // pred_fallthru
      _
    // Predicated region
    $region38: #{_lambda_.2} parent=1 // pred_check
      _
    $region39: #{_lambda_.2} parent=1 // pred_check_branch
      %134 = sbr.rel (0) target = $region41
    $region40: #{_lambda_.2} parent=1 // pred_region
      _
    $region41: #{_lambda_.2} parent=1 // pred_fallthru
      _
    // Predicated region
    $region42: #{_lambda_.2} parent=1 // pred_check
      _
    $region43: #{_lambda_.2} parent=1 // pred_check_branch
      %136 = sbr.rel (0) target = $region45
    $region44: #{_lambda_.2} parent=1 // pred_region
      _
    $region45: #{_lambda_.2} parent=1 // pred_fallthru
      _
    // Predicated region
    $region46: #{_lambda_.2} parent=1 // pred_check
      _
    $region47: #{_lambda_.2} parent=1 // pred_check_branch
      %138 = sbr.rel (0) target = $region49
    $region48: #{_lambda_.2} parent=1 // pred_region
      %s140 = ssub.s32 16, 16
      %141 = vsyncadd [#allocation19], %s140
      %s143 = sshll.u32 [#allocation18], 4
      %s144 = int_to_ptr.vmem [resolvable:$true] %s143
      %146 = dma.hbm_to_vmem [thread:$0]  %s11, 16, %s144, [#allocation19]
    $region49: #{_lambda_.2} parent=1 // pred_fallthru
      _
    // Predicated region
    $region50: #{_lambda_.2} parent=1 // pred_check
      _
    $region51: #{_lambda_.2} parent=1 // pred_check_branch
      %148 = sbr.rel (0) target = $region53
    $region52: #{_lambda_.2} parent=1 // pred_region
      %s150 = ssub.s32 16, 16
      %151 = vsyncadd [#allocation19], %s150
      %s153 = sshll.u32 [#allocation20], 4
      %s154 = int_to_ptr.vmem [resolvable:$true] %s153
      %156 = dma.hbm_to_vmem [thread:$0]  %s12, 16, %s154, [#allocation19]
    $region53: #{_lambda_.2} parent=1 // pred_fallthru
      _
    // Predicated region
    $region54: #{_lambda_.2} parent=1 // pred_check
      _
    $region55: #{_lambda_.2} parent=1 // pred_check_branch
      %158 = sbr.rel (0) target = $region57
    $region56: #{_lambda_.2} parent=1 // pred_region
      %s160 = ssub.s32 512, 512
      %161 = vsyncadd [#allocation22], %s160
      %s162 = sshll.u32 [#allocation21], 4
      %s163 = int_to_ptr.vmem [resolvable:$true] %s162
      %168 = dma.hbm_to_vmem [thread:$0]  %s13, 512, %s163, [#allocation22], 128, 128, 8
    $region57: #{_lambda_.2} parent=1 // pred_fallthru
      _
    // Predicated region
    $region58: #{_lambda_.2} parent=1 // pred_check
      _
    $region59: #{_lambda_.2} parent=1 // pred_check_branch
      %170 = sbr.rel (0) target = $region61
    $region60: #{_lambda_.2} parent=1 // pred_region
      _
    $region61: #{_lambda_.2} parent=1 // pred_fallthru
      _
    // Predicated region
    $region62: #{_lambda_.2} parent=1 // pred_check
      _
    $region63: #{_lambda_.2} parent=1 // pred_check_branch
      %172 = sbr.rel (0) target = $region65
    $region64: #{_lambda_.2} parent=1 // pred_region
      _
    $region65: #{_lambda_.2} parent=1 // pred_fallthru
      _
    // Predicated region
    $region66: #{_lambda_.2} parent=1 // pred_check
      _
    $region67: #{_lambda_.2} parent=1 // pred_check_branch
      %174 = sbr.rel (0) target = $region69
    $region68: #{_lambda_.2} parent=1 // pred_region
      _
    $region69: #{_lambda_.2} parent=1 // pred_fallthru
      _
    // Predicated region
    $region70: #{_lambda_.2} parent=1 // pred_check
      _
    $region71: #{_lambda_.2} parent=1 // pred_check_branch
      %176 = sbr.rel (0) target = $region73
    $region72: #{_lambda_.2} parent=1 // pred_region
      _
    $region73: #{_lambda_.2} parent=1 // pred_fallthru
      _
    // Predicated region
    $region74: #{_lambda_.2} parent=1 // pred_check
      _
    $region75: #{_lambda_.2} parent=1 // pred_check_branch
      %178 = sbr.rel (0) target = $region77
    $region76: #{_lambda_.2} parent=1 // pred_region
      _
    $region77: #{_lambda_.2} parent=1 // pred_fallthru
      _
    // Predicated region
    $region78: #{_lambda_.2} parent=1 // pred_check
      _
    $region79: #{_lambda_.2} parent=1 // pred_check_branch
      %180 = sbr.rel (0) target = $region81
    $region80: #{_lambda_.2} parent=1 // pred_region
      %181 = dma.done [#allocation5], 512
    $region81: #{_lambda_.2} parent=1 // pred_fallthru
      _
    // Predicated region
    $region82: #{_lambda_.2} parent=1 // pred_check
      _
    $region83: #{_lambda_.2} parent=1 // pred_check_branch
      %183 = sbr.rel (0) target = $region85
    $region84: #{_lambda_.2} parent=1 // pred_region
      %184 = dma.done [#allocation7], 512
    $region85: #{_lambda_.2} parent=1 // pred_fallthru
      _
    // Predicated region
    $region86: #{_lambda_.2} parent=1 // pred_check
      _
    $region87: #{_lambda_.2} parent=1 // pred_check_branch
      %186 = sbr.rel (0) target = $region89
    $region88: #{_lambda_.2} parent=1 // pred_region
      %187 = dma.done [#allocation7], 512
    $region89: #{_lambda_.2} parent=1 // pred_fallthru
      _
    // Predicated region
    $region90: #{_lambda_.2} parent=1 // pred_check
      _
    $region91: #{_lambda_.2} parent=1 // pred_check_branch
      %189 = sbr.rel (0) target = $region93
    $region92: #{_lambda_.2} parent=1 // pred_region
      %190 = dma.done [#allocation10], 64
    $region93: #{_lambda_.2} parent=1 // pred_fallthru
      _
    // Predicated region
    $region94: #{_lambda_.2} parent=1 // pred_check
      _
    $region95: #{_lambda_.2} parent=1 // pred_check_branch
      %192 = sbr.rel (0) target = $region97
    $region96: #{_lambda_.2} parent=1 // pred_region
      %193 = dma.done [#allocation10], 16
    $region97: #{_lambda_.2} parent=1 // pred_fallthru
      _
    // Predicated region
    $region98: #{_lambda_.2} parent=1 // pred_check
      _
    $region99: #{_lambda_.2} parent=1 // pred_check_branch
      %195 = sbr.rel (0) target = $region101
    $region100: #{_lambda_.2} parent=1 // pred_region
      %196 = dma.done [#allocation13], 1024
    $region101: #{_lambda_.2} parent=1 // pred_fallthru
      _
    // Predicated region
    $region102: #{_lambda_.2} parent=1 // pred_check
      _
    $region103: #{_lambda_.2} parent=1 // pred_check_branch
      %198 = sbr.rel (0) target = $region105
    $region104: #{_lambda_.2} parent=1 // pred_region
      %199 = dma.done [#allocation13], 16
    $region105: #{_lambda_.2} parent=1 // pred_fallthru
      _
    // Predicated region
    $region106: #{_lambda_.2} parent=1 // pred_check
      _
    $region107: #{_lambda_.2} parent=1 // pred_check_branch
      %201 = sbr.rel (0) target = $region109
    $region108: #{_lambda_.2} parent=1 // pred_region
      %202 = dma.done [#allocation16], 768
    $region109: #{_lambda_.2} parent=1 // pred_fallthru
      _
    // Predicated region
    $region110: #{_lambda_.2} parent=1 // pred_check
      _
    $region111: #{_lambda_.2} parent=1 // pred_check_branch
      %204 = sbr.rel (0) target = $region113
    $region112: #{_lambda_.2} parent=1 // pred_region
      %205 = dma.done [#allocation16], 384
    $region113: #{_lambda_.2} parent=1 // pred_fallthru
      _
    // Predicated region
    $region114: #{_lambda_.2} parent=1 // pred_check
      _
    $region115: #{_lambda_.2} parent=1 // pred_check_branch
      %207 = sbr.rel (0) target = $region117
    $region116: #{_lambda_.2} parent=1 // pred_region
      %208 = dma.done [#allocation19], 16
    $region117: #{_lambda_.2} parent=1 // pred_fallthru
      _
    // Predicated region
    $region118: #{_lambda_.2} parent=1 // pred_check
      _
    $region119: #{_lambda_.2} parent=1 // pred_check_branch
      %210 = sbr.rel (0) target = $region121
    $region120: #{_lambda_.2} parent=1 // pred_region
      %211 = dma.done [#allocation19], 16
    $region121: #{_lambda_.2} parent=1 // pred_fallthru
      _
    // Predicated region
    $region122: #{_lambda_.2} parent=1 // pred_check
      _
    $region123: #{_lambda_.2} parent=1 // pred_check_branch
      %213 = sbr.rel (0) target = $region125
    $region124: #{_lambda_.2} parent=1 // pred_region
      %214 = dma.done [#allocation22], 512
    $region125: #{_lambda_.2} parent=1 // pred_fallthru
      _
    %v215 = vld [vmem:[#allocation4] sm:$0xff]
    %v216 = vld [vmem:[#allocation4 + $0x8] sm:$0xff]
    %v217 = vld [vmem:[#allocation4 + $0x10] sm:$0xff]
    %v218 = vld [vmem:[#allocation4 + $0x18] sm:$0xff]
    %v219 = vld [vmem:[#allocation6] sm:$0xff]
    %v220 = vld [vmem:[#allocation6 + $0x8] sm:$0xff]
    %v221 = vld [vmem:[#allocation6 + $0x10] sm:$0xff]
    %v222 = vld [vmem:[#allocation6 + $0x18] sm:$0xff]
    %v223 = vld [vmem:[#allocation8] sm:$0xff]
    %v224 = vld [vmem:[#allocation8 + $0x8] sm:$0xff]
    %v225 = vld [vmem:[#allocation8 + $0x10] sm:$0xff]
    %v226 = vld [vmem:[#allocation8 + $0x18] sm:$0xff]
    %vm227 = vcmask 261120
    %v229 = vsel %vm227, %v215, 0
    %v232 = vsel %vm227, %v216, 0
    %v235 = vsel %vm227, %v217, 0
    %v238 = vsel %vm227, %v218, 0
    %240 = vmatprep.subr.mxu0 0.0
    %241 = vmatpush1.msra.mxu0 %v223
    %242 = vmatprep.subr.mxu0 0.0
    %243 = vmatpush1.msra.mxu0 %v224
    %244 = vmatprep.subr.mxu0 0.0
    %245 = vmatpush1.msra.mxu0 %v225
    %246 = vmatprep.subr.mxu0 0.0
    %247 = vmatpush1.msra.mxu0 %v226
    %248 = vmatprep.subr.mxu0 0.0
    %249 = vmatpush1.msra.mxu0 0.0
    %250 = vmatprep.subr.mxu0 0.0
    %251 = vmatpush1.msra.mxu0 0.0
    %252 = vmatprep.subr.mxu0 0.0
    %253 = vmatpush1.msra.mxu0 0.0
    %254 = vmatprep.subr.mxu0 0.0
    %255 = vmatpush1.msra.mxu0 0.0
    %256 = vmatprep.subr.mxu0 0.0
    %257 = vmatpush1.msra.mxu0 0.0
    %258 = vmatprep.subr.mxu0 0.0
    %259 = vmatpush1.msra.mxu0 0.0
    %260 = vmatprep.subr.mxu0 0.0
    %261 = vmatpush1.msra.mxu0 0.0
    %262 = vmatprep.subr.mxu0 0.0
    %263 = vmatpush1.msra.mxu0 0.0
    %264 = vmatprep.subr.mxu0 0.0
    %265 = vmatpush1.msra.mxu0 0.0
    %266 = vmatprep.subr.mxu0 0.0
    %267 = vmatpush1.msra.mxu0 0.0
    %268 = vmatprep.subr.mxu0 0.0
    %269 = vmatpush1.msra.mxu0 0.0
    %270 = vmatprep.subr.mxu0 0.0
    %271 = vmatpush1.msra.mxu0 0.0
    %272 = vmatprep.subr.mxu0 0.0
    %273 = vmatpush1.msra.mxu0 0.0
    %274 = vmatprep.subr.mxu0 0.0
    %275 = vmatpush1.msra.mxu0 0.0
    %276 = vmatprep.subr.mxu0 0.0
    %277 = vmatpush1.msra.mxu0 0.0
    %278 = vmatprep.subr.mxu0 0.0
    %279 = vmatpush1.msra.mxu0 0.0
    %280 = vmatprep.subr.mxu0 0.0
    %281 = vmatpush1.msra.mxu0 0.0
    %282 = vmatprep.subr.mxu0 0.0
    %283 = vmatpush1.msra.mxu0 0.0
    %284 = vmatprep.subr.mxu0 0.0
    %285 = vmatpush1.msra.mxu0 0.0
    %286 = vmatprep.subr.mxu0 0.0
    %287 = vmatpush1.msra.mxu0 0.0
    %288 = vmatprep.subr.mxu0 0.0
    %289 = vmatpush1.msra.mxu0 0.0
    %290 = vmatprep.subr.mxu0 0.0
    %291 = vmatpush1.msra.mxu0 0.0
    %292 = vmatprep.subr.mxu0 0.0
    %293 = vmatpush1.msra.mxu0 0.0
    %294 = vmatprep.subr.mxu0 0.0
    %295 = vmatpush1.msra.mxu0 0.0
    %296 = vmatprep.subr.mxu0 0.0
    %297 = vmatpush1.msra.mxu0 0.0
    %298 = vmatprep.subr.mxu0 0.0
    %299 = vmatpush1.msra.mxu0 0.0
    %300 = vmatprep.subr.mxu0 0.0
    %301 = vmatpush1.msra.mxu0 0.0
    %302 = vmatprep.subr.mxu0 0.0
    %303 = vmatpush1.msra.mxu0 0.0
    %304 = vmatprep.mubr.f32.mxu0 0.0
    %305 = vmatmul.mubr.f32.gmra.mrb[0].mxu0 %v229
    %v306 = vpop.f32.mrb[0].mxu0
    %v307 = vadd.f32 0.0, %v306
    %v308 = vpop.f32.mrb[0].mxu0
    %309 = vmatprep.mubr.f32.mxu0 0.0
    %310 = vmatmul.mubr.f32.gmra.mrb[0].mxu0 %v232
    %v311 = vpop.f32.mrb[0].mxu0
    %v312 = vadd.f32 0.0, %v311
    %v313 = vpop.f32.mrb[0].mxu0
    %314 = vmatprep.mubr.f32.mxu0 0.0
    %315 = vmatmul.mubr.f32.gmra.mrb[0].mxu0 %v235
    %v316 = vpop.f32.mrb[0].mxu0
    %v317 = vadd.f32 0.0, %v316
    %v318 = vpop.f32.mrb[0].mxu0
    %319 = vmatprep.mubr.f32.mxu0 0.0
    %320 = vmatmul.mubr.f32.gmra.mrb[0].mxu0 %v238
    %v321 = vpop.f32.mrb[0].mxu0
    %v322 = vadd.f32 0.0, %v321
    %v323 = vpop.f32.mrb[0].mxu0
    %324 = vdwg.mxu0
    %v325 = vld [vmem:[#allocation9] sm:$0xf]
    %vm326 = vcmask 523264
    %327 = vst.msk [vmem:[#allocation2] sm:$0xff] %vm326, 0.0
    %328 = vst.msk [vmem:[#allocation2 + $0x8] sm:$0xff] %vm326, %v307
    %329 = vst.msk [vmem:[#allocation2 + $0x10] sm:$0xff] %vm326, %v312
    %330 = vst.msk [vmem:[#allocation2 + $0x18] sm:$0xff] %vm326, %v317
    %331 = vst.msk [vmem:[#allocation2 + $0x20] sm:$0xff] %vm326, %v322
    %v332 = vld [vmem:[#allocation11] sm:$0x1]
    %v333 = vlaneseq
    %v334 = vshrl.u32 %v333, 7
    %v335 = vsub.s32 3, %v334
    %v336 = vrot.slane %v325, %v335
    %v337 = vmul.f32 %v307, %v336
    %v338 = vmul.f32 %v312, %v336
    %v339 = vmul.f32 %v317, %v336
    %v340 = vmul.f32 %v322, %v336
    %v342 = vlaneseq
    %v343 = vshrl.u32 %v342, 7
    %v344 = vsub.s32 0, %v343
    %v345 = vrot.slane %v332, %v344
    %v347 = vadd.f32 %v345, %v337
    %v348 = vadd.f32 %v345, %v338
    %v349 = vadd.f32 %v345, %v339
    %v350 = vadd.f32 %v345, %v340
    %v351 = vld [vmem:[#allocation2 + $0x7] sm:$0xff]
    %v352 = vld [vmem:[#allocation2 + $0xf] sm:$0xff]
    %v353 = vld [vmem:[#allocation2 + $0x17] sm:$0xff]
    %v354 = vld [vmem:[#allocation2 + $0x1f] sm:$0xff]
    %vm355 = vcmp.ge.f32.partialorder %v219, 1.0
    %vm356 = vcmp.ge.f32.partialorder %v220, 1.0
    %vm357 = vcmp.ge.f32.partialorder %v221, 1.0
    %vm358 = vcmp.ge.f32.partialorder %v222, 1.0
    %v359 = vsel %vm355, 1, 0
    %v360 = vsel %vm356, 1, 0
    %v361 = vsel %vm357, 1, 0
    %v362 = vsel %vm358, 1, 0
    %363 = vset.pattern.permute.xlu0 0
    %364 = vperm.xlu0 %363, %v359
    %v365 = vpop.permute.xlu0 %364
    %366 = vset.pattern.permute.xlu0 0
    %367 = vperm.xlu0 %366, %v360
    %v368 = vpop.permute.xlu0 %367
    %369 = vset.pattern.permute.xlu0 0
    %370 = vperm.xlu0 %369, %v361
    %v371 = vpop.permute.xlu0 %370
    %372 = vset.pattern.permute.xlu0 0
    %373 = vperm.xlu0 %372, %v362
    %v374 = vpop.permute.xlu0 %373
    %vm375 = vcmp.eq.s32.totalorder %v365, 1
    %vm376 = vcmp.eq.s32.totalorder %v368, 1
    %vm377 = vcmp.eq.s32.totalorder %v371, 1
    %vm378 = vcmp.eq.s32.totalorder %v374, 1
    %v379 = vsel %vm375, %v351, 0.0
    %v380 = vsel %vm376, %v352, 0.0
    %v381 = vsel %vm377, %v353, 0.0
    %v382 = vsel %vm378, %v354, 0.0
    %v383 = vlaneseq
    %v384 = vshrl.u32 %v383, 7
    %v385 = vsub.s32 2, %v384
    %v386 = vrot.slane %v325, %v385
    %v387 = vmul.f32 %v379, %v386
    %v388 = vmul.f32 %v380, %v386
    %v389 = vmul.f32 %v381, %v386
    %v390 = vmul.f32 %v382, %v386
    %v391 = vadd.f32 %v347, %v387
    %v392 = vadd.f32 %v348, %v388
    %v393 = vadd.f32 %v349, %v389
    %v394 = vadd.f32 %v350, %v390
    %v395 = vld [vmem:[#allocation2 + $0x6] sm:$0xff]
    %v396 = vld [vmem:[#allocation2 + $0xe] sm:$0xff]
    %v397 = vld [vmem:[#allocation2 + $0x16] sm:$0xff]
    %v398 = vld [vmem:[#allocation2 + $0x1e] sm:$0xff]
    %vm399 = vcmp.ge.f32.partialorder %v219, 2.0
    %vm400 = vcmp.ge.f32.partialorder %v220, 2.0
    %vm401 = vcmp.ge.f32.partialorder %v221, 2.0
    %vm402 = vcmp.ge.f32.partialorder %v222, 2.0
    %v403 = vsel %vm399, 1, 0
    %v404 = vsel %vm400, 1, 0
    %v405 = vsel %vm401, 1, 0
    %v406 = vsel %vm402, 1, 0
    %407 = vset.pattern.permute.xlu0 0
    %408 = vperm.xlu0 %407, %v403
    %v409 = vpop.permute.xlu0 %408
    %410 = vset.pattern.permute.xlu0 0
    %411 = vperm.xlu0 %410, %v404
    %v412 = vpop.permute.xlu0 %411
    %413 = vset.pattern.permute.xlu0 0
    %414 = vperm.xlu0 %413, %v405
    %v415 = vpop.permute.xlu0 %414
    %416 = vset.pattern.permute.xlu0 0
    %417 = vperm.xlu0 %416, %v406
    %v418 = vpop.permute.xlu0 %417
    %vm419 = vcmp.eq.s32.totalorder %v409, 1
    %vm420 = vcmp.eq.s32.totalorder %v412, 1
    %vm421 = vcmp.eq.s32.totalorder %v415, 1
    %vm422 = vcmp.eq.s32.totalorder %v418, 1
    %v423 = vsel %vm419, %v395, 0.0
    %v424 = vsel %vm420, %v396, 0.0
    %v425 = vsel %vm421, %v397, 0.0
    %v426 = vsel %vm422, %v398, 0.0
    %v427 = vlaneseq
    %v428 = vshrl.u32 %v427, 7
    %v429 = vsub.s32 1, %v428
    %v430 = vrot.slane %v325, %v429
    %v431 = vmul.f32 %v423, %v430
    %v432 = vmul.f32 %v424, %v430
    %v433 = vmul.f32 %v425, %v430
    %v434 = vmul.f32 %v426, %v430
    %v435 = vadd.f32 %v391, %v431
    %v436 = vadd.f32 %v392, %v432
    %v437 = vadd.f32 %v393, %v433
    %v438 = vadd.f32 %v394, %v434
    %v439 = vld [vmem:[#allocation2 + $0x5] sm:$0xff]
    %v440 = vld [vmem:[#allocation2 + $0xd] sm:$0xff]
    %v441 = vld [vmem:[#allocation2 + $0x15] sm:$0xff]
    %v442 = vld [vmem:[#allocation2 + $0x1d] sm:$0xff]
    %vm443 = vcmp.ge.f32.partialorder %v219, 3.0
    %vm444 = vcmp.ge.f32.partialorder %v220, 3.0
    %vm445 = vcmp.ge.f32.partialorder %v221, 3.0
    %vm446 = vcmp.ge.f32.partialorder %v222, 3.0
    %v447 = vsel %vm443, 1, 0
    %v448 = vsel %vm444, 1, 0
    %v449 = vsel %vm445, 1, 0
    %v450 = vsel %vm446, 1, 0
    %451 = vset.pattern.permute.xlu0 0
    %452 = vperm.xlu0 %451, %v447
    %v453 = vpop.permute.xlu0 %452
    %454 = vset.pattern.permute.xlu0 0
    %455 = vperm.xlu0 %454, %v448
    %v456 = vpop.permute.xlu0 %455
    %457 = vset.pattern.permute.xlu0 0
    %458 = vperm.xlu0 %457, %v449
    %v459 = vpop.permute.xlu0 %458
    %460 = vset.pattern.permute.xlu0 0
    %461 = vperm.xlu0 %460, %v450
    %v462 = vpop.permute.xlu0 %461
    %vm463 = vcmp.eq.s32.totalorder %v453, 1
    %vm464 = vcmp.eq.s32.totalorder %v456, 1
    %vm465 = vcmp.eq.s32.totalorder %v459, 1
    %vm466 = vcmp.eq.s32.totalorder %v462, 1
    %v467 = vsel %vm463, %v439, 0.0
    %v468 = vsel %vm464, %v440, 0.0
    %v469 = vsel %vm465, %v441, 0.0
    %v470 = vsel %vm466, %v442, 0.0
    %v471 = vlaneseq
    %v472 = vshrl.u32 %v471, 7
    %v473 = vsub.s32 0, %v472
    %v474 = vrot.slane %v325, %v473
    %v475 = vmul.f32 %v467, %v474
    %v476 = vmul.f32 %v468, %v474
    %v477 = vmul.f32 %v469, %v474
    %v478 = vmul.f32 %v470, %v474
    %v479 = vadd.f32 %v435, %v475
    %v480 = vadd.f32 %v436, %v476
    %v481 = vadd.f32 %v437, %v477
    %v482 = vadd.f32 %v438, %v478
    %v483 = vsub.f32 0.0, %v479
    %v484 = vsub.f32 0.0, %v480
    %v485 = vsub.f32 0.0, %v481
    %v486 = vsub.f32 0.0, %v482
    %v487 = vmul.f32 %v483, 1.442695
    %v488 = vpow.pop %v487
    %v489 = vmul.f32 %v484, 1.442695
    %v490 = vpow.pop %v489
    %v491 = vmul.f32 %v485, 1.442695
    %v492 = vpow.pop %v491
    %v493 = vmul.f32 %v486, 1.442695
    %v494 = vpow.pop %v493
    %v495 = vadd.f32 %v488, 1.0
    %v496 = vadd.f32 %v490, 1.0
    %v497 = vadd.f32 %v492, 1.0
    %v498 = vadd.f32 %v494, 1.0
    %v499 = vrcp.pop %v495
    %v500 = vrcp.pop %v496
    %v501 = vrcp.pop %v497
    %v502 = vrcp.pop %v498
    %v503 = vmul.f32 %v479, %v499
    %v504 = vmul.f32 %v480, %v500
    %v505 = vmul.f32 %v481, %v501
    %v506 = vmul.f32 %v482, %v502
    %v507 = vld [vmem:[#allocation12] sm:$0xff]
    %v508 = vld [vmem:[#allocation12 + $0x8] sm:$0xff]
    %v509 = vld [vmem:[#allocation12 + $0x10] sm:$0xff]
    %v510 = vld [vmem:[#allocation12 + $0x18] sm:$0xff]
    %v511 = vld [vmem:[#allocation12 + $0x20] sm:$0xff]
    %v512 = vld [vmem:[#allocation12 + $0x28] sm:$0xff]
    %v513 = vld [vmem:[#allocation12 + $0x30] sm:$0xff]
    %v514 = vld [vmem:[#allocation12 + $0x38] sm:$0xff]
    %v515 = vld [vmem:[#allocation14] sm:$0x1]
    %v517 = vlaneseq
    %v518 = vshrl.u32 %v517, 7
    %v519 = vsub.s32 0, %v518
    %v520 = vrot.slane %v515, %v519
    %v523 = vsel %vm326, %v503, 0
    %v526 = vsel %vm326, %v504, 0
    %v529 = vsel %vm326, %v505, 0
    %v532 = vsel %vm326, %v506, 0
    %534 = vmatprep.subr.mxu0 0.0
    %535 = vmatpush1.msra.mxu0 %v507
    %536 = vmatprep.subr.mxu0 0.0
    %537 = vmatpush1.msra.mxu0 %v508
    %538 = vmatprep.subr.mxu0 0.0
    %539 = vmatpush1.msra.mxu0 %v509
    %540 = vmatprep.subr.mxu0 0.0
    %541 = vmatpush1.msra.mxu0 %v510
    %542 = vmatprep.subr.mxu0 0.0
    %543 = vmatpush1.msra.mxu0 %v511
    %544 = vmatprep.subr.mxu0 0.0
    %545 = vmatpush1.msra.mxu0 %v512
    %546 = vmatprep.subr.mxu0 0.0
    %547 = vmatpush1.msra.mxu0 %v513
    %548 = vmatprep.subr.mxu0 0.0
    %549 = vmatpush1.msra.mxu0 %v514
    %550 = vmatprep.subr.mxu0 0.0
    %551 = vmatpush1.msra.mxu0 0.0
    %552 = vmatprep.subr.mxu0 0.0
    %553 = vmatpush1.msra.mxu0 0.0
    %554 = vmatprep.subr.mxu0 0.0
    %555 = vmatpush1.msra.mxu0 0.0
    %556 = vmatprep.subr.mxu0 0.0
    %557 = vmatpush1.msra.mxu0 0.0
    %558 = vmatprep.subr.mxu0 0.0
    %559 = vmatpush1.msra.mxu0 0.0
    %560 = vmatprep.subr.mxu0 0.0
    %561 = vmatpush1.msra.mxu0 0.0
    %562 = vmatprep.subr.mxu0 0.0
    %563 = vmatpush1.msra.mxu0 0.0
    %564 = vmatprep.subr.mxu0 0.0
    %565 = vmatpush1.msra.mxu0 0.0
    %566 = vmatprep.subr.mxu0 0.0
    %567 = vmatpush1.msra.mxu0 0.0
    %568 = vmatprep.subr.mxu0 0.0
    %569 = vmatpush1.msra.mxu0 0.0
    %570 = vmatprep.subr.mxu0 0.0
    %571 = vmatpush1.msra.mxu0 0.0
    %572 = vmatprep.subr.mxu0 0.0
    %573 = vmatpush1.msra.mxu0 0.0
    %574 = vmatprep.subr.mxu0 0.0
    %575 = vmatpush1.msra.mxu0 0.0
    %576 = vmatprep.subr.mxu0 0.0
    %577 = vmatpush1.msra.mxu0 0.0
    %578 = vmatprep.subr.mxu0 0.0
    %579 = vmatpush1.msra.mxu0 0.0
    %580 = vmatprep.subr.mxu0 0.0
    %581 = vmatpush1.msra.mxu0 0.0
    %582 = vmatprep.subr.mxu0 0.0
    %583 = vmatpush1.msra.mxu0 0.0
    %584 = vmatprep.subr.mxu0 0.0
    %585 = vmatpush1.msra.mxu0 0.0
    %586 = vmatprep.subr.mxu0 0.0
    %587 = vmatpush1.msra.mxu0 0.0
    %588 = vmatprep.subr.mxu0 0.0
    %589 = vmatpush1.msra.mxu0 0.0
    %590 = vmatprep.subr.mxu0 0.0
    %591 = vmatpush1.msra.mxu0 0.0
    %592 = vmatprep.subr.mxu0 0.0
    %593 = vmatpush1.msra.mxu0 0.0
    %594 = vmatprep.subr.mxu0 0.0
    %595 = vmatpush1.msra.mxu0 0.0
    %596 = vmatprep.subr.mxu0 0.0
    %597 = vmatpush1.msra.mxu0 0.0
    %598 = vmatprep.mubr.f32.mxu0 0.0
    %599 = vmatmul.mubr.f32.gmra.mrb[0].mxu0 %v523
    %v600 = vpop.f32.mrb[0].mxu0
    %v601 = vadd.f32 %v520, %v600
    %v602 = vpop.f32.mrb[0].mxu0
    %603 = vmatprep.mubr.f32.mxu0 0.0
    %604 = vmatmul.mubr.f32.gmra.mrb[0].mxu0 %v526
    %v605 = vpop.f32.mrb[0].mxu0
    %v606 = vadd.f32 %v520, %v605
    %v607 = vpop.f32.mrb[0].mxu0
    %608 = vmatprep.mubr.f32.mxu0 0.0
    %609 = vmatmul.mubr.f32.gmra.mrb[0].mxu0 %v529
    %v610 = vpop.f32.mrb[0].mxu0
    %v611 = vadd.f32 %v520, %v610
    %v612 = vpop.f32.mrb[0].mxu0
    %613 = vmatprep.mubr.f32.mxu0 0.0
    %614 = vmatmul.mubr.f32.gmra.mrb[0].mxu0 %v532
    %v615 = vpop.f32.mrb[0].mxu0
    %v616 = vadd.f32 %v520, %v615
    %v617 = vpop.f32.mrb[0].mxu0
    %618 = vdwg.mxu0
    %v619 = vmax.f32 %v601, 0.0
    %v620 = vmax.f32 %v606, 0.0
    %v621 = vmax.f32 %v611, 0.0
    %v622 = vmax.f32 %v616, 0.0
    %v623 = vand.u32 2147483647, %v601
    %v624 = vand.u32 2147483647, %v606
    %v625 = vand.u32 2147483647, %v611
    %v626 = vand.u32 2147483647, %v616
    %v627 = vsub.f32 0.0, %v623
    %v628 = vsub.f32 0.0, %v624
    %v629 = vsub.f32 0.0, %v625
    %v630 = vsub.f32 0.0, %v626
    %v631 = vmul.f32 %v627, 1.442695
    %v632 = vpow.pop %v631
    %v633 = vmul.f32 %v628, 1.442695
    %v634 = vpow.pop %v633
    %v635 = vmul.f32 %v629, 1.442695
    %v636 = vpow.pop %v635
    %v637 = vmul.f32 %v630, 1.442695
    %v638 = vpow.pop %v637
    %v639 = vadd.f32 %v632, 1.0
    %v640 = vadd.f32 %v634, 1.0
    %v641 = vadd.f32 %v636, 1.0
    %v642 = vadd.f32 %v638, 1.0
    %v643 = vlog2.pop %v639
    %v644 = vmul.f32 %v643, 0.6931472
    %v645 = vlog2.pop %v640
    %v646 = vmul.f32 %v645, 0.6931472
    %v647 = vlog2.pop %v641
    %v648 = vmul.f32 %v647, 0.6931472
    %v649 = vlog2.pop %v642
    %v650 = vmul.f32 %v649, 0.6931472
    %v651 = vadd.f32 %v619, %v644
    %v652 = vadd.f32 %v620, %v646
    %v653 = vadd.f32 %v621, %v648
    %v654 = vadd.f32 %v622, %v650
    %v655 = vld [vmem:[#allocation15] sm:$0xff]
    %v656 = vld [vmem:[#allocation15 + $0x8] sm:$0xff]
    %v657 = vld [vmem:[#allocation15 + $0x10] sm:$0xff]
    %v658 = vld [vmem:[#allocation15 + $0x18] sm:$0xff]
    %v659 = vld [vmem:[#allocation15 + $0x20] sm:$0xff]
    %v660 = vld [vmem:[#allocation15 + $0x28] sm:$0x3]
    %v662 = vsel %vm326, %v655, 0
    %v665 = vsel %vm326, %v656, 0
    %v668 = vsel %vm326, %v657, 0
    %v671 = vsel %vm326, %v658, 0
    %v674 = vsel %vm326, %v659, 0
    %v677 = vsel %vm326, %v660, 0
    %679 = vmatprep.subr.mxu0 0.0
    %680 = vmatpush1.xpose.msra.mxu0 %v523
    %681 = vmatprep.subr.mxu0 0.0
    %682 = vmatpush1.xpose.msra.mxu0 %v526
    %683 = vmatprep.subr.mxu0 0.0
    %684 = vmatpush1.xpose.msra.mxu0 %v529
    %685 = vmatprep.subr.mxu0 0.0
    %686 = vmatpush1.xpose.msra.mxu0 %v532
    %687 = vmatprep.subr.mxu0 0.0
    %688 = vmatpush1.xpose.msra.mxu0 0.0
    %689 = vmatprep.subr.mxu0 0.0
    %690 = vmatpush1.xpose.msra.mxu0 0.0
    %691 = vmatprep.subr.mxu0 0.0
    %692 = vmatpush1.xpose.msra.mxu0 0.0
    %693 = vmatprep.subr.mxu0 0.0
    %694 = vmatpush1.xpose.msra.mxu0 0.0
    %695 = vmatprep.subr.mxu0 0.0
    %696 = vmatpush1.xpose.msra.mxu0 0.0
    %697 = vmatprep.subr.mxu0 0.0
    %698 = vmatpush1.xpose.msra.mxu0 0.0
    %699 = vmatprep.subr.mxu0 0.0
    %700 = vmatpush1.xpose.msra.mxu0 0.0
    %701 = vmatprep.subr.mxu0 0.0
    %702 = vmatpush1.xpose.msra.mxu0 0.0
    %703 = vmatprep.subr.mxu0 0.0
    %704 = vmatpush1.xpose.msra.mxu0 0.0
    %705 = vmatprep.subr.mxu0 0.0
    %706 = vmatpush1.xpose.msra.mxu0 0.0
    %707 = vmatprep.subr.mxu0 0.0
    %708 = vmatpush1.xpose.msra.mxu0 0.0
    %709 = vmatprep.subr.mxu0 0.0
    %710 = vmatpush1.xpose.msra.mxu0 0.0
    %711 = vmatprep.subr.mxu0 0.0
    %712 = vmatpush1.xpose.msra.mxu0 0.0
    %713 = vmatprep.subr.mxu0 0.0
    %714 = vmatpush1.xpose.msra.mxu0 0.0
    %715 = vmatprep.subr.mxu0 0.0
    %716 = vmatpush1.xpose.msra.mxu0 0.0
    %717 = vmatprep.subr.mxu0 0.0
    %718 = vmatpush1.xpose.msra.mxu0 0.0
    %719 = vmatprep.subr.mxu0 0.0
    %720 = vmatpush1.xpose.msra.mxu0 0.0
    %721 = vmatprep.subr.mxu0 0.0
    %722 = vmatpush1.xpose.msra.mxu0 0.0
    %723 = vmatprep.subr.mxu0 0.0
    %724 = vmatpush1.xpose.msra.mxu0 0.0
    %725 = vmatprep.subr.mxu0 0.0
    %726 = vmatpush1.xpose.msra.mxu0 0.0
    %727 = vmatprep.subr.mxu0 0.0
    %728 = vmatpush1.xpose.msra.mxu0 0.0
    %729 = vmatprep.subr.mxu0 0.0
    %730 = vmatpush1.xpose.msra.mxu0 0.0
    %731 = vmatprep.subr.mxu0 0.0
    %732 = vmatpush1.xpose.msra.mxu0 0.0
    %733 = vmatprep.subr.mxu0 0.0
    %734 = vmatpush1.xpose.msra.mxu0 0.0
    %735 = vmatprep.subr.mxu0 0.0
    %736 = vmatpush1.xpose.msra.mxu0 0.0
    %737 = vmatprep.subr.mxu0 0.0
    %738 = vmatpush1.xpose.msra.mxu0 0.0
    %739 = vmatprep.subr.mxu0 0.0
    %740 = vmatpush1.xpose.msra.mxu0 0.0
    %741 = vmatprep.subr.mxu0 0.0
    %742 = vmatpush1.xpose.msra.mxu0 0.0
    %743 = vmatprep.mubr.f32.mxu0 0.0
    %744 = vmatmul.mubr.f32.gmra.mrb[0].mxu0 %v662
    %v745 = vpop.f32.mrb[0].mxu0
    %v746 = vadd.f32 0.0, %v745
    %v747 = vpop.f32.mrb[0].mxu0
    %748 = vmatprep.mubr.f32.mxu0 0.0
    %749 = vmatmul.mubr.f32.gmra.mrb[0].mxu0 %v665
    %v750 = vpop.f32.mrb[0].mxu0
    %v751 = vadd.f32 0.0, %v750
    %v752 = vpop.f32.mrb[0].mxu0
    %753 = vmatprep.mubr.f32.mxu0 0.0
    %754 = vmatmul.mubr.f32.gmra.mrb[0].mxu0 %v668
    %v755 = vpop.f32.mrb[0].mxu0
    %v756 = vadd.f32 0.0, %v755
    %v757 = vpop.f32.mrb[0].mxu0
    %758 = vmatprep.mubr.f32.mxu0 0.0
    %759 = vmatmul.mubr.f32.gmra.mrb[0].mxu0 %v671
    %v760 = vpop.f32.mrb[0].mxu0
    %v761 = vadd.f32 0.0, %v760
    %v762 = vpop.f32.mrb[0].mxu0
    %763 = vmatprep.mubr.f32.mxu0 0.0
    %764 = vmatmul.mubr.f32.gmra.mrb[0].mxu0 %v674
    %v765 = vpop.f32.mrb[0].mxu0
    %v766 = vadd.f32 0.0, %v765
    %v767 = vpop.f32.mrb[0].mxu0
    %768 = vmatprep.mubr.f32.mxu0 0.0
    %769 = vmatmul.mubr.f32.gmra.mrb[0].mxu0 %v677
    %v770 = vpop.f32.mrb[0].mxu0
    %v771 = vadd.f32 0.0, %v770
    %v772 = vpop.f32.mrb[0].mxu0
    %773 = vdwg.mxu0
    %v774 = vld [vmem:[#allocation17] sm:$0xff]
    %v775 = vld [vmem:[#allocation17 + $0x8] sm:$0xff]
    %v776 = vld [vmem:[#allocation17 + $0x10] sm:$0x1f]
    %v777 = vlaneseq
    %v778 = vshrl.u32 %v777, 7
    %v779 = vsub.s32 0, %v778
    %v780 = vrot.slane %v651, %v779
    %v781 = vmul.f32 %v780, %v774
    %v782 = vmul.f32 %v780, %v775
    %v783 = vmul.f32 %v780, %v776
    %v784 = vmul.f32 %v781, 1.442695
    %v785 = vpow.pop %v784
    %v786 = vmul.f32 %v782, 1.442695
    %v787 = vpow.pop %v786
    %v788 = vmul.f32 %v783, 1.442695
    %v789 = vpow.pop %v788
    %v790 = vmul.f32 %v785, 0.0
    %v791 = vmul.f32 %v787, 0.0
    %v792 = vmul.f32 %v789, 0.0
    %v793 = vmul.f32 %v651, %v503
    %795 = vset.pattern.permute.xlu0 0
    %796 = vperm.xlu0 %795, %v746
    %v797 = vpop.permute.xlu0 %796
    %800 = vset.pattern.permute.xlu0 0
    %801 = vperm.xlu0 %800, %v751
    %v802 = vpop.permute.xlu0 %801
    %805 = vset.pattern.permute.xlu0 0
    %806 = vperm.xlu0 %805, %v756
    %v807 = vpop.permute.xlu0 %806
    %v809 = vlaneseq
    %v810 = vshrl.u32 %v809, 7
    %v811 = vsub.s32 0, %v810
    %v812 = vrot.slane %v793, %v811
    %v813 = vmul.f32 %v797, %v812
    %v814 = vmul.f32 %v802, %v812
    %v815 = vmul.f32 %v807, %v812
    %v816 = vadd.f32 %v790, %v813
    %v817 = vadd.f32 %v791, %v814
    %v818 = vadd.f32 %v792, %v815
    %820 = vset.pattern.permute.xlu0 0
    %821 = vperm.xlu0 %820, %v761
    %v822 = vpop.permute.xlu0 %821
    %825 = vset.pattern.permute.xlu0 0
    %826 = vperm.xlu0 %825, %v766
    %v827 = vpop.permute.xlu0 %826
    %830 = vset.pattern.permute.xlu0 0
    %831 = vperm.xlu0 %830, %v771
    %v832 = vpop.permute.xlu0 %831
    %vm837 = vcmask 1044480
    %v838 = vrot.slane %v816, 3
    %v839 = vrot.slane %v817, 3
    %v840 = vsel %vm837, %v838, %v839
    %v841 = vrot.slane %v818, 3
    %v842 = vsel %vm837, %v839, %v841
    %v847 = vmul.f32 %v807, %v838
    %v848 = vmul.f32 %v822, %v840
    %v849 = vmul.f32 %v827, %v842
    %v850 = vmul.f32 %v832, %v841
    %vm855 = vcmask 1042432
    %v856 = vrot.slane %v847, 5
    %v857 = vrot.slane %v848, 5
    %v858 = vsel %vm855, %v856, %v857
    %v859 = vrot.slane %v849, 5
    %v860 = vsel %vm855, %v857, %v859
    %v861 = vrot.slane %v850, 5
    %v862 = vsel %vm855, %v859, %v861
    %v866 = vsel %vm326, %v858, 0.0
    %v867 = vsel %vm326, %v860, 0.0
    %v868 = vadd.f32 %v866, %v867
    %vm869 = vcmask 520192
    %v870 = vsel %vm869, %v862, 0.0
    %v871 = vadd.f32 %v868, %v870
    %v872 = vrot.slane %v871, 4
    %v873 = vadd.f32 %v871, %v872
    %v874 = vrot.slane %v873, 2
    %v875 = vadd.f32 %v873, %v874
    %v876 = vrot.slane %v875, 1
    %v877 = vadd.f32 %v875, %v876
    %vm878 = vcmask 516096
    %879 = vst.msk [vmem:[#allocation3] sm:$0x1] %vm878, %v877
    %v880 = vlaneseq
    %v881 = vshrl.u32 %v880, 7
    %v882 = vsub.s32 1, %v881
    %v883 = vrot.slane %v651, %v882
    %v884 = vmul.f32 %v883, %v774
    %v885 = vmul.f32 %v883, %v775
    %v886 = vmul.f32 %v883, %v776
    %v887 = vmul.f32 %v884, 1.442695
    %v888 = vpow.pop %v887
    %v889 = vmul.f32 %v885, 1.442695
    %v890 = vpow.pop %v889
    %v891 = vmul.f32 %v886, 1.442695
    %v892 = vpow.pop %v891
    %v893 = vmul.f32 %v888, %v816
    %v894 = vmul.f32 %v890, %v817
    %v895 = vmul.f32 %v892, %v818
    %896 = vset.pattern.permute.xlu0 1
    %897 = vperm.xlu0 %896, %v746
    %v898 = vpop.permute.xlu0 %897
    %900 = vset.pattern.permute.xlu0 1
    %901 = vperm.xlu0 %900, %v751
    %v902 = vpop.permute.xlu0 %901
    %904 = vset.pattern.permute.xlu0 1
    %905 = vperm.xlu0 %904, %v756
    %v906 = vpop.permute.xlu0 %905
    %v908 = vlaneseq
    %v909 = vshrl.u32 %v908, 7
    %v910 = vsub.s32 1, %v909
    %v911 = vrot.slane %v793, %v910
    %v912 = vmul.f32 %v898, %v911
    %v913 = vmul.f32 %v902, %v911
    %v914 = vmul.f32 %v906, %v911
    %v915 = vadd.f32 %v893, %v912
    %v916 = vadd.f32 %v894, %v913
    %v917 = vadd.f32 %v895, %v914
    %918 = vset.pattern.permute.xlu0 1
    %919 = vperm.xlu0 %918, %v761
    %v920 = vpop.permute.xlu0 %919
    %922 = vset.pattern.permute.xlu0 1
    %923 = vperm.xlu0 %922, %v766
    %v924 = vpop.permute.xlu0 %923
    %926 = vset.pattern.permute.xlu0 1
    %927 = vperm.xlu0 %926, %v771
    %v928 = vpop.permute.xlu0 %927
    %v933 = vrot.slane %v915, 3
    %v934 = vrot.slane %v916, 3
    %v935 = vsel %vm837, %v933, %v934
    %v936 = vrot.slane %v917, 3
    %v937 = vsel %vm837, %v934, %v936
    %v942 = vmul.f32 %v906, %v933
    %v943 = vmul.f32 %v920, %v935
    %v944 = vmul.f32 %v924, %v937
    %v945 = vmul.f32 %v928, %v936
    %v950 = vrot.slane %v942, 5
    %v951 = vrot.slane %v943, 5
    %v952 = vsel %vm855, %v950, %v951
    %v953 = vrot.slane %v944, 5
    %v954 = vsel %vm855, %v951, %v953
    %v955 = vrot.slane %v945, 5
    %v956 = vsel %vm855, %v953, %v955
    %v960 = vsel %vm326, %v952, 0.0
    %v961 = vsel %vm326, %v954, 0.0
    %v962 = vadd.f32 %v960, %v961
    %v963 = vsel %vm869, %v956, 0.0
    %v964 = vadd.f32 %v962, %v963
    %v965 = vrot.slane %v964, 4
    %v966 = vadd.f32 %v964, %v965
    %v967 = vrot.slane %v966, 2
    %v968 = vadd.f32 %v966, %v967
    %v969 = vrot.slane %v968, 1
    %v970 = vadd.f32 %v968, %v969
    %971 = vst.msk [vmem:[#allocation3 + $0x1] sm:$0x1] %vm878, %v970
    %v972 = vlaneseq
    %v973 = vshrl.u32 %v972, 7
    %v974 = vsub.s32 2, %v973
    %v975 = vrot.slane %v651, %v974
    %v976 = vmul.f32 %v975, %v774
    %v977 = vmul.f32 %v975, %v775
    %v978 = vmul.f32 %v975, %v776
    %v979 = vmul.f32 %v976, 1.442695
    %v980 = vpow.pop %v979
    %v981 = vmul.f32 %v977, 1.442695
    %v982 = vpow.pop %v981
    %v983 = vmul.f32 %v978, 1.442695
    %v984 = vpow.pop %v983
    %v985 = vmul.f32 %v980, %v915
    %v986 = vmul.f32 %v982, %v916
    %v987 = vmul.f32 %v984, %v917
    %988 = vset.pattern.permute.xlu0 2
    %989 = vperm.xlu0 %988, %v746
    %v990 = vpop.permute.xlu0 %989
    %992 = vset.pattern.permute.xlu0 2
    %993 = vperm.xlu0 %992, %v751
    %v994 = vpop.permute.xlu0 %993
    %996 = vset.pattern.permute.xlu0 2
    %997 = vperm.xlu0 %996, %v756
    %v998 = vpop.permute.xlu0 %997
    %v1000 = vlaneseq
    %v1001 = vshrl.u32 %v1000, 7
    %v1002 = vsub.s32 2, %v1001
    %v1003 = vrot.slane %v793, %v1002
    %v1004 = vmul.f32 %v990, %v1003
    %v1005 = vmul.f32 %v994, %v1003
    %v1006 = vmul.f32 %v998, %v1003
    %v1007 = vadd.f32 %v985, %v1004
    %v1008 = vadd.f32 %v986, %v1005
    %v1009 = vadd.f32 %v987, %v1006
    %1010 = vset.pattern.permute.xlu0 2
    %1011 = vperm.xlu0 %1010, %v761
    %v1012 = vpop.permute.xlu0 %1011
    %1014 = vset.pattern.permute.xlu0 2
    %1015 = vperm.xlu0 %1014, %v766
    %v1016 = vpop.permute.xlu0 %1015
    %1018 = vset.pattern.permute.xlu0 2
    %1019 = vperm.xlu0 %1018, %v771
    %v1020 = vpop.permute.xlu0 %1019
    %v1025 = vrot.slane %v1007, 3
    %v1026 = vrot.slane %v1008, 3
    %v1027 = vsel %vm837, %v1025, %v1026
    %v1028 = vrot.slane %v1009, 3
    %v1029 = vsel %vm837, %v1026, %v1028
    %v1034 = vmul.f32 %v998, %v1025
    %v1035 = vmul.f32 %v1012, %v1027
    %v1036 = vmul.f32 %v1016, %v1029
    %v1037 = vmul.f32 %v1020, %v1028
    %v1042 = vrot.slane %v1034, 5
    %v1043 = vrot.slane %v1035, 5
    %v1044 = vsel %vm855, %v1042, %v1043
    %v1045 = vrot.slane %v1036, 5
    %v1046 = vsel %vm855, %v1043, %v1045
    %v1047 = vrot.slane %v1037, 5
    %v1048 = vsel %vm855, %v1045, %v1047
    %v1052 = vsel %vm326, %v1044, 0.0
    %v1053 = vsel %vm326, %v1046, 0.0
    %v1054 = vadd.f32 %v1052, %v1053
    %v1055 = vsel %vm869, %v1048, 0.0
    %v1056 = vadd.f32 %v1054, %v1055
    %v1057 = vrot.slane %v1056, 4
    %v1058 = vadd.f32 %v1056, %v1057
    %v1059 = vrot.slane %v1058, 2
    %v1060 = vadd.f32 %v1058, %v1059
    %v1061 = vrot.slane %v1060, 1
    %v1062 = vadd.f32 %v1060, %v1061
    %1063 = vst.msk [vmem:[#allocation3 + $0x2] sm:$0x1] %vm878, %v1062
    %v1064 = vlaneseq
    %v1065 = vshrl.u32 %v1064, 7
    %v1066 = vsub.s32 3, %v1065
    %v1067 = vrot.slane %v651, %v1066
    %v1068 = vmul.f32 %v1067, %v774
    %v1069 = vmul.f32 %v1067, %v775
    %v1070 = vmul.f32 %v1067, %v776
    %v1071 = vmul.f32 %v1068, 1.442695
    %v1072 = vpow.pop %v1071
    %v1073 = vmul.f32 %v1069, 1.442695
    %v1074 = vpow.pop %v1073
    %v1075 = vmul.f32 %v1070, 1.442695
    %v1076 = vpow.pop %v1075
    %v1077 = vmul.f32 %v1072, %v1007
    %v1078 = vmul.f32 %v1074, %v1008
    %v1079 = vmul.f32 %v1076, %v1009
    %1080 = vset.pattern.permute.xlu0 3
    %1081 = vperm.xlu0 %1080, %v746
    %v1082 = vpop.permute.xlu0 %1081
    %1084 = vset.pattern.permute.xlu0 3
    %1085 = vperm.xlu0 %1084, %v751
    %v1086 = vpop.permute.xlu0 %1085
    %1088 = vset.pattern.permute.xlu0 3
    %1089 = vperm.xlu0 %1088, %v756
    %v1090 = vpop.permute.xlu0 %1089
    %v1092 = vlaneseq
    %v1093 = vshrl.u32 %v1092, 7
    %v1094 = vsub.s32 3, %v1093
    %v1095 = vrot.slane %v793, %v1094
    %v1096 = vmul.f32 %v1082, %v1095
    %v1097 = vmul.f32 %v1086, %v1095
    %v1098 = vmul.f32 %v1090, %v1095
    %v1099 = vadd.f32 %v1077, %v1096
    %v1100 = vadd.f32 %v1078, %v1097
    %v1101 = vadd.f32 %v1079, %v1098
    %1102 = vset.pattern.permute.xlu0 3
    %1103 = vperm.xlu0 %1102, %v761
    %v1104 = vpop.permute.xlu0 %1103
    %1106 = vset.pattern.permute.xlu0 3
    %1107 = vperm.xlu0 %1106, %v766
    %v1108 = vpop.permute.xlu0 %1107
    %1110 = vset.pattern.permute.xlu0 3
    %1111 = vperm.xlu0 %1110, %v771
    %v1112 = vpop.permute.xlu0 %1111
    %v1117 = vrot.slane %v1099, 3
    %v1118 = vrot.slane %v1100, 3
    %v1119 = vsel %vm837, %v1117, %v1118
    %v1120 = vrot.slane %v1101, 3
    %v1121 = vsel %vm837, %v1118, %v1120
    %v1126 = vmul.f32 %v1090, %v1117
    %v1127 = vmul.f32 %v1104, %v1119
    %v1128 = vmul.f32 %v1108, %v1121
    %v1129 = vmul.f32 %v1112, %v1120
    %v1134 = vrot.slane %v1126, 5
    %v1135 = vrot.slane %v1127, 5
    %v1136 = vsel %vm855, %v1134, %v1135
    %v1137 = vrot.slane %v1128, 5
    %v1138 = vsel %vm855, %v1135, %v1137
    %v1139 = vrot.slane %v1129, 5
    %v1140 = vsel %vm855, %v1137, %v1139
    %v1144 = vsel %vm326, %v1136, 0.0
    %v1145 = vsel %vm326, %v1138, 0.0
    %v1146 = vadd.f32 %v1144, %v1145
    %v1147 = vsel %vm869, %v1140, 0.0
    %v1148 = vadd.f32 %v1146, %v1147
    %v1149 = vrot.slane %v1148, 4
    %v1150 = vadd.f32 %v1148, %v1149
    %v1151 = vrot.slane %v1150, 2
    %v1152 = vadd.f32 %v1150, %v1151
    %v1153 = vrot.slane %v1152, 1
    %v1154 = vadd.f32 %v1152, %v1153
    %1155 = vst.msk [vmem:[#allocation3 + $0x3] sm:$0x1] %vm878, %v1154
    %v1156 = vlaneseq
    %v1157 = vshrl.u32 %v1156, 7
    %v1158 = vsub.s32 4, %v1157
    %v1159 = vrot.slane %v651, %v1158
    %v1160 = vmul.f32 %v1159, %v774
    %v1161 = vmul.f32 %v1159, %v775
    %v1162 = vmul.f32 %v1159, %v776
    %v1163 = vmul.f32 %v1160, 1.442695
    %v1164 = vpow.pop %v1163
    %v1165 = vmul.f32 %v1161, 1.442695
    %v1166 = vpow.pop %v1165
    %v1167 = vmul.f32 %v1162, 1.442695
    %v1168 = vpow.pop %v1167
    %v1169 = vmul.f32 %v1164, %v1099
    %v1170 = vmul.f32 %v1166, %v1100
    %v1171 = vmul.f32 %v1168, %v1101
    %1172 = vset.pattern.permute.xlu0 4
    %1173 = vperm.xlu0 %1172, %v746
    %v1174 = vpop.permute.xlu0 %1173
    %1176 = vset.pattern.permute.xlu0 4
    %1177 = vperm.xlu0 %1176, %v751
    %v1178 = vpop.permute.xlu0 %1177
    %1180 = vset.pattern.permute.xlu0 4
    %1181 = vperm.xlu0 %1180, %v756
    %v1182 = vpop.permute.xlu0 %1181
    %v1184 = vlaneseq
    %v1185 = vshrl.u32 %v1184, 7
    %v1186 = vsub.s32 4, %v1185
    %v1187 = vrot.slane %v793, %v1186
    %v1188 = vmul.f32 %v1174, %v1187
    %v1189 = vmul.f32 %v1178, %v1187
    %v1190 = vmul.f32 %v1182, %v1187
    %v1191 = vadd.f32 %v1169, %v1188
    %v1192 = vadd.f32 %v1170, %v1189
    %v1193 = vadd.f32 %v1171, %v1190
    %1194 = vset.pattern.permute.xlu0 4
    %1195 = vperm.xlu0 %1194, %v761
    %v1196 = vpop.permute.xlu0 %1195
    %1198 = vset.pattern.permute.xlu0 4
    %1199 = vperm.xlu0 %1198, %v766
    %v1200 = vpop.permute.xlu0 %1199
    %1202 = vset.pattern.permute.xlu0 4
    %1203 = vperm.xlu0 %1202, %v771
    %v1204 = vpop.permute.xlu0 %1203
    %v1209 = vrot.slane %v1191, 3
    %v1210 = vrot.slane %v1192, 3
    %v1211 = vsel %vm837, %v1209, %v1210
    %v1212 = vrot.slane %v1193, 3
    %v1213 = vsel %vm837, %v1210, %v1212
    %v1218 = vmul.f32 %v1182, %v1209
    %v1219 = vmul.f32 %v1196, %v1211
    %v1220 = vmul.f32 %v1200, %v1213
    %v1221 = vmul.f32 %v1204, %v1212
    %v1226 = vrot.slane %v1218, 5
    %v1227 = vrot.slane %v1219, 5
    %v1228 = vsel %vm855, %v1226, %v1227
    %v1229 = vrot.slane %v1220, 5
    %v1230 = vsel %vm855, %v1227, %v1229
    %v1231 = vrot.slane %v1221, 5
    %v1232 = vsel %vm855, %v1229, %v1231
    %v1236 = vsel %vm326, %v1228, 0.0
    %v1237 = vsel %vm326, %v1230, 0.0
    %v1238 = vadd.f32 %v1236, %v1237
    %v1239 = vsel %vm869, %v1232, 0.0
    %v1240 = vadd.f32 %v1238, %v1239
    %v1241 = vrot.slane %v1240, 4
    %v1242 = vadd.f32 %v1240, %v1241
    %v1243 = vrot.slane %v1242, 2
    %v1244 = vadd.f32 %v1242, %v1243
    %v1245 = vrot.slane %v1244, 1
    %v1246 = vadd.f32 %v1244, %v1245
    %1247 = vst.msk [vmem:[#allocation3 + $0x4] sm:$0x1] %vm878, %v1246
    %v1248 = vlaneseq
    %v1249 = vshrl.u32 %v1248, 7
    %v1250 = vsub.s32 5, %v1249
    %v1251 = vrot.slane %v651, %v1250
    %v1252 = vmul.f32 %v1251, %v774
    %v1253 = vmul.f32 %v1251, %v775
    %v1254 = vmul.f32 %v1251, %v776
    %v1255 = vmul.f32 %v1252, 1.442695
    %v1256 = vpow.pop %v1255
    %v1257 = vmul.f32 %v1253, 1.442695
    %v1258 = vpow.pop %v1257
    %v1259 = vmul.f32 %v1254, 1.442695
    %v1260 = vpow.pop %v1259
    %v1261 = vmul.f32 %v1256, %v1191
    %v1262 = vmul.f32 %v1258, %v1192
    %v1263 = vmul.f32 %v1260, %v1193
    %1264 = vset.pattern.permute.xlu0 5
    %1265 = vperm.xlu0 %1264, %v746
    %v1266 = vpop.permute.xlu0 %1265
    %1268 = vset.pattern.permute.xlu0 5
    %1269 = vperm.xlu0 %1268, %v751
    %v1270 = vpop.permute.xlu0 %1269
    %1272 = vset.pattern.permute.xlu0 5
    %1273 = vperm.xlu0 %1272, %v756
    %v1274 = vpop.permute.xlu0 %1273
    %v1276 = vlaneseq
    %v1277 = vshrl.u32 %v1276, 7
    %v1278 = vsub.s32 5, %v1277
    %v1279 = vrot.slane %v793, %v1278
    %v1280 = vmul.f32 %v1266, %v1279
    %v1281 = vmul.f32 %v1270, %v1279
    %v1282 = vmul.f32 %v1274, %v1279
    %v1283 = vadd.f32 %v1261, %v1280
    %v1284 = vadd.f32 %v1262, %v1281
    %v1285 = vadd.f32 %v1263, %v1282
    %1286 = vset.pattern.permute.xlu0 5
    %1287 = vperm.xlu0 %1286, %v761
    %v1288 = vpop.permute.xlu0 %1287
    %1290 = vset.pattern.permute.xlu0 5
    %1291 = vperm.xlu0 %1290, %v766
    %v1292 = vpop.permute.xlu0 %1291
    %1294 = vset.pattern.permute.xlu0 5
    %1295 = vperm.xlu0 %1294, %v771
    %v1296 = vpop.permute.xlu0 %1295
    %v1301 = vrot.slane %v1283, 3
    %v1302 = vrot.slane %v1284, 3
    %v1303 = vsel %vm837, %v1301, %v1302
    %v1304 = vrot.slane %v1285, 3
    %v1305 = vsel %vm837, %v1302, %v1304
    %v1310 = vmul.f32 %v1274, %v1301
    %v1311 = vmul.f32 %v1288, %v1303
    %v1312 = vmul.f32 %v1292, %v1305
    %v1313 = vmul.f32 %v1296, %v1304
    %v1318 = vrot.slane %v1310, 5
    %v1319 = vrot.slane %v1311, 5
    %v1320 = vsel %vm855, %v1318, %v1319
    %v1321 = vrot.slane %v1312, 5
    %v1322 = vsel %vm855, %v1319, %v1321
    %v1323 = vrot.slane %v1313, 5
    %v1324 = vsel %vm855, %v1321, %v1323
    %v1328 = vsel %vm326, %v1320, 0.0
    %v1329 = vsel %vm326, %v1322, 0.0
    %v1330 = vadd.f32 %v1328, %v1329
    %v1331 = vsel %vm869, %v1324, 0.0
    %v1332 = vadd.f32 %v1330, %v1331
    %v1333 = vrot.slane %v1332, 4
    %v1334 = vadd.f32 %v1332, %v1333
    %v1335 = vrot.slane %v1334, 2
    %v1336 = vadd.f32 %v1334, %v1335
    %v1337 = vrot.slane %v1336, 1
    %v1338 = vadd.f32 %v1336, %v1337
    %1339 = vst.msk [vmem:[#allocation3 + $0x5] sm:$0x1] %vm878, %v1338
    %v1340 = vlaneseq
    %v1341 = vshrl.u32 %v1340, 7
    %v1342 = vsub.s32 6, %v1341
    %v1343 = vrot.slane %v651, %v1342
    %v1344 = vmul.f32 %v1343, %v774
    %v1345 = vmul.f32 %v1343, %v775
    %v1346 = vmul.f32 %v1343, %v776
    %v1347 = vmul.f32 %v1344, 1.442695
    %v1348 = vpow.pop %v1347
    %v1349 = vmul.f32 %v1345, 1.442695
    %v1350 = vpow.pop %v1349
    %v1351 = vmul.f32 %v1346, 1.442695
    %v1352 = vpow.pop %v1351
    %v1353 = vmul.f32 %v1348, %v1283
    %v1354 = vmul.f32 %v1350, %v1284
    %v1355 = vmul.f32 %v1352, %v1285
    %1356 = vset.pattern.permute.xlu0 6
    %1357 = vperm.xlu0 %1356, %v746
    %v1358 = vpop.permute.xlu0 %1357
    %1360 = vset.pattern.permute.xlu0 6
    %1361 = vperm.xlu0 %1360, %v751
    %v1362 = vpop.permute.xlu0 %1361
    %1364 = vset.pattern.permute.xlu0 6
    %1365 = vperm.xlu0 %1364, %v756
    %v1366 = vpop.permute.xlu0 %1365
    %v1368 = vlaneseq
    %v1369 = vshrl.u32 %v1368, 7
    %v1370 = vsub.s32 6, %v1369
    %v1371 = vrot.slane %v793, %v1370
    %v1372 = vmul.f32 %v1358, %v1371
    %v1373 = vmul.f32 %v1362, %v1371
    %v1374 = vmul.f32 %v1366, %v1371
    %v1375 = vadd.f32 %v1353, %v1372
    %v1376 = vadd.f32 %v1354, %v1373
    %v1377 = vadd.f32 %v1355, %v1374
    %1378 = vset.pattern.permute.xlu0 6
    %1379 = vperm.xlu0 %1378, %v761
    %v1380 = vpop.permute.xlu0 %1379
    %1382 = vset.pattern.permute.xlu0 6
    %1383 = vperm.xlu0 %1382, %v766
    %v1384 = vpop.permute.xlu0 %1383
    %1386 = vset.pattern.permute.xlu0 6
    %1387 = vperm.xlu0 %1386, %v771
    %v1388 = vpop.permute.xlu0 %1387
    %v1393 = vrot.slane %v1375, 3
    %v1394 = vrot.slane %v1376, 3
    %v1395 = vsel %vm837, %v1393, %v1394
    %v1396 = vrot.slane %v1377, 3
    %v1397 = vsel %vm837, %v1394, %v1396
    %v1402 = vmul.f32 %v1366, %v1393
    %v1403 = vmul.f32 %v1380, %v1395
    %v1404 = vmul.f32 %v1384, %v1397
    %v1405 = vmul.f32 %v1388, %v1396
    %v1410 = vrot.slane %v1402, 5
    %v1411 = vrot.slane %v1403, 5
    %v1412 = vsel %vm855, %v1410, %v1411
    %v1413 = vrot.slane %v1404, 5
    %v1414 = vsel %vm855, %v1411, %v1413
    %v1415 = vrot.slane %v1405, 5
    %v1416 = vsel %vm855, %v1413, %v1415
    %v1420 = vsel %vm326, %v1412, 0.0
    %v1421 = vsel %vm326, %v1414, 0.0
    %v1422 = vadd.f32 %v1420, %v1421
    %v1423 = vsel %vm869, %v1416, 0.0
    %v1424 = vadd.f32 %v1422, %v1423
    %v1425 = vrot.slane %v1424, 4
    %v1426 = vadd.f32 %v1424, %v1425
    %v1427 = vrot.slane %v1426, 2
    %v1428 = vadd.f32 %v1426, %v1427
    %v1429 = vrot.slane %v1428, 1
    %v1430 = vadd.f32 %v1428, %v1429
    %1431 = vst.msk [vmem:[#allocation3 + $0x6] sm:$0x1] %vm878, %v1430
    %v1432 = vlaneseq
    %v1433 = vshrl.u32 %v1432, 7
    %v1434 = vsub.s32 7, %v1433
    %v1435 = vrot.slane %v651, %v1434
    %v1436 = vmul.f32 %v1435, %v774
    %v1437 = vmul.f32 %v1435, %v775
    %v1438 = vmul.f32 %v1435, %v776
    %v1439 = vmul.f32 %v1436, 1.442695
    %v1440 = vpow.pop %v1439
    %v1441 = vmul.f32 %v1437, 1.442695
    %v1442 = vpow.pop %v1441
    %v1443 = vmul.f32 %v1438, 1.442695
    %v1444 = vpow.pop %v1443
    %v1445 = vmul.f32 %v1440, %v1375
    %v1446 = vmul.f32 %v1442, %v1376
    %v1447 = vmul.f32 %v1444, %v1377
    %1448 = vset.pattern.permute.xlu0 7
    %1449 = vperm.xlu0 %1448, %v746
    %v1450 = vpop.permute.xlu0 %1449
    %1452 = vset.pattern.permute.xlu0 7
    %1453 = vperm.xlu0 %1452, %v751
    %v1454 = vpop.permute.xlu0 %1453
    %1456 = vset.pattern.permute.xlu0 7
    %1457 = vperm.xlu0 %1456, %v756
    %v1458 = vpop.permute.xlu0 %1457
    %v1460 = vlaneseq
    %v1461 = vshrl.u32 %v1460, 7
    %v1462 = vsub.s32 7, %v1461
    %v1463 = vrot.slane %v793, %v1462
    %v1464 = vmul.f32 %v1450, %v1463
    %v1465 = vmul.f32 %v1454, %v1463
    %v1466 = vmul.f32 %v1458, %v1463
    %v1467 = vadd.f32 %v1445, %v1464
    %v1468 = vadd.f32 %v1446, %v1465
    %v1469 = vadd.f32 %v1447, %v1466
    %1470 = vset.pattern.permute.xlu0 7
    %1471 = vperm.xlu0 %1470, %v761
    %v1472 = vpop.permute.xlu0 %1471
    %1474 = vset.pattern.permute.xlu0 7
    %1475 = vperm.xlu0 %1474, %v766
    %v1476 = vpop.permute.xlu0 %1475
    %1478 = vset.pattern.permute.xlu0 7
    %1479 = vperm.xlu0 %1478, %v771
    %v1480 = vpop.permute.xlu0 %1479
    %v1485 = vrot.slane %v1467, 3
    %v1486 = vrot.slane %v1468, 3
    %v1487 = vsel %vm837, %v1485, %v1486
    %v1488 = vrot.slane %v1469, 3
    %v1489 = vsel %vm837, %v1486, %v1488
    %v1494 = vmul.f32 %v1458, %v1485
    %v1495 = vmul.f32 %v1472, %v1487
    %v1496 = vmul.f32 %v1476, %v1489
    %v1497 = vmul.f32 %v1480, %v1488
    %v1502 = vrot.slane %v1494, 5
    %v1503 = vrot.slane %v1495, 5
    %v1504 = vsel %vm855, %v1502, %v1503
    %v1505 = vrot.slane %v1496, 5
    %v1506 = vsel %vm855, %v1503, %v1505
    %v1507 = vrot.slane %v1497, 5
    %v1508 = vsel %vm855, %v1505, %v1507
    %v1512 = vsel %vm326, %v1504, 0.0
    %v1513 = vsel %vm326, %v1506, 0.0
    %v1514 = vadd.f32 %v1512, %v1513
    %v1515 = vsel %vm869, %v1508, 0.0
    %v1516 = vadd.f32 %v1514, %v1515
    %v1517 = vrot.slane %v1516, 4
    %v1518 = vadd.f32 %v1516, %v1517
    %v1519 = vrot.slane %v1518, 2
    %v1520 = vadd.f32 %v1518, %v1519
    %v1521 = vrot.slane %v1520, 1
    %v1522 = vadd.f32 %v1520, %v1521
    %1523 = vst.msk [vmem:[#allocation3 + $0x7] sm:$0x1] %vm878, %v1522
    %v1524 = vlaneseq
    %v1525 = vshrl.u32 %v1524, 7
    %v1526 = vsub.s32 0, %v1525
    %v1527 = vrot.slane %v652, %v1526
    %v1528 = vmul.f32 %v1527, %v774
    %v1529 = vmul.f32 %v1527, %v775
    %v1530 = vmul.f32 %v1527, %v776
    %v1531 = vmul.f32 %v1528, 1.442695
    %v1532 = vpow.pop %v1531
    %v1533 = vmul.f32 %v1529, 1.442695
    %v1534 = vpow.pop %v1533
    %v1535 = vmul.f32 %v1530, 1.442695
    %v1536 = vpow.pop %v1535
    %v1537 = vmul.f32 %v1532, %v1467
    %v1538 = vmul.f32 %v1534, %v1468
    %v1539 = vmul.f32 %v1536, %v1469
    %v1540 = vmul.f32 %v652, %v504
    %1541 = vset.pattern.permute.xlu0 8
    %1542 = vperm.xlu0 %1541, %v746
    %v1543 = vpop.permute.xlu0 %1542
    %1545 = vset.pattern.permute.xlu0 8
    %1546 = vperm.xlu0 %1545, %v751
    %v1547 = vpop.permute.xlu0 %1546
    %1549 = vset.pattern.permute.xlu0 8
    %1550 = vperm.xlu0 %1549, %v756
    %v1551 = vpop.permute.xlu0 %1550
    %v1553 = vlaneseq
    %v1554 = vshrl.u32 %v1553, 7
    %v1555 = vsub.s32 0, %v1554
    %v1556 = vrot.slane %v1540, %v1555
    %v1557 = vmul.f32 %v1543, %v1556
    %v1558 = vmul.f32 %v1547, %v1556
    %v1559 = vmul.f32 %v1551, %v1556
    %v1560 = vadd.f32 %v1537, %v1557
    %v1561 = vadd.f32 %v1538, %v1558
    %v1562 = vadd.f32 %v1539, %v1559
    %1563 = vset.pattern.permute.xlu0 8
    %1564 = vperm.xlu0 %1563, %v761
    %v1565 = vpop.permute.xlu0 %1564
    %1567 = vset.pattern.permute.xlu0 8
    %1568 = vperm.xlu0 %1567, %v766
    %v1569 = vpop.permute.xlu0 %1568
    %1571 = vset.pattern.permute.xlu0 8
    %1572 = vperm.xlu0 %1571, %v771
    %v1573 = vpop.permute.xlu0 %1572
    %v1578 = vrot.slane %v1560, 3
    %v1579 = vrot.slane %v1561, 3
    %v1580 = vsel %vm837, %v1578, %v1579
    %v1581 = vrot.slane %v1562, 3
    %v1582 = vsel %vm837, %v1579, %v1581
    %v1587 = vmul.f32 %v1551, %v1578
    %v1588 = vmul.f32 %v1565, %v1580
    %v1589 = vmul.f32 %v1569, %v1582
    %v1590 = vmul.f32 %v1573, %v1581
    %v1595 = vrot.slane %v1587, 5
    %v1596 = vrot.slane %v1588, 5
    %v1597 = vsel %vm855, %v1595, %v1596
    %v1598 = vrot.slane %v1589, 5
    %v1599 = vsel %vm855, %v1596, %v1598
    %v1600 = vrot.slane %v1590, 5
    %v1601 = vsel %vm855, %v1598, %v1600
    %v1605 = vsel %vm326, %v1597, 0.0
    %v1606 = vsel %vm326, %v1599, 0.0
    %v1607 = vadd.f32 %v1605, %v1606
    %v1608 = vsel %vm869, %v1601, 0.0
    %v1609 = vadd.f32 %v1607, %v1608
    %v1610 = vrot.slane %v1609, 4
    %v1611 = vadd.f32 %v1609, %v1610
    %v1612 = vrot.slane %v1611, 2
    %v1613 = vadd.f32 %v1611, %v1612
    %v1614 = vrot.slane %v1613, 1
    %v1615 = vadd.f32 %v1613, %v1614
    %1616 = vst.msk [vmem:[#allocation3 + $0x8] sm:$0x1] %vm878, %v1615
    %v1617 = vlaneseq
    %v1618 = vshrl.u32 %v1617, 7
    %v1619 = vsub.s32 1, %v1618
    %v1620 = vrot.slane %v652, %v1619
    %v1621 = vmul.f32 %v1620, %v774
    %v1622 = vmul.f32 %v1620, %v775
    %v1623 = vmul.f32 %v1620, %v776
    %v1624 = vmul.f32 %v1621, 1.442695
    %v1625 = vpow.pop %v1624
    %v1626 = vmul.f32 %v1622, 1.442695
    %v1627 = vpow.pop %v1626
    %v1628 = vmul.f32 %v1623, 1.442695
    %v1629 = vpow.pop %v1628
    %v1630 = vmul.f32 %v1625, %v1560
    %v1631 = vmul.f32 %v1627, %v1561
    %v1632 = vmul.f32 %v1629, %v1562
    %1633 = vset.pattern.permute.xlu0 9
    %1634 = vperm.xlu0 %1633, %v746
    %v1635 = vpop.permute.xlu0 %1634
    %1637 = vset.pattern.permute.xlu0 9
    %1638 = vperm.xlu0 %1637, %v751
    %v1639 = vpop.permute.xlu0 %1638
    %1641 = vset.pattern.permute.xlu0 9
    %1642 = vperm.xlu0 %1641, %v756
    %v1643 = vpop.permute.xlu0 %1642
    %v1645 = vlaneseq
    %v1646 = vshrl.u32 %v1645, 7
    %v1647 = vsub.s32 1, %v1646
    %v1648 = vrot.slane %v1540, %v1647
    %v1649 = vmul.f32 %v1635, %v1648
    %v1650 = vmul.f32 %v1639, %v1648
    %v1651 = vmul.f32 %v1643, %v1648
    %v1652 = vadd.f32 %v1630, %v1649
    %v1653 = vadd.f32 %v1631, %v1650
    %v1654 = vadd.f32 %v1632, %v1651
    %1655 = vset.pattern.permute.xlu0 9
    %1656 = vperm.xlu0 %1655, %v761
    %v1657 = vpop.permute.xlu0 %1656
    %1659 = vset.pattern.permute.xlu0 9
    %1660 = vperm.xlu0 %1659, %v766
    %v1661 = vpop.permute.xlu0 %1660
    %1663 = vset.pattern.permute.xlu0 9
    %1664 = vperm.xlu0 %1663, %v771
    %v1665 = vpop.permute.xlu0 %1664
    %v1670 = vrot.slane %v1652, 3
    %v1671 = vrot.slane %v1653, 3
    %v1672 = vsel %vm837, %v1670, %v1671
    %v1673 = vrot.slane %v1654, 3
    %v1674 = vsel %vm837, %v1671, %v1673
    %v1679 = vmul.f32 %v1643, %v1670
    %v1680 = vmul.f32 %v1657, %v1672
    %v1681 = vmul.f32 %v1661, %v1674
    %v1682 = vmul.f32 %v1665, %v1673
    %v1687 = vrot.slane %v1679, 5
    %v1688 = vrot.slane %v1680, 5
    %v1689 = vsel %vm855, %v1687, %v1688
    %v1690 = vrot.slane %v1681, 5
    %v1691 = vsel %vm855, %v1688, %v1690
    %v1692 = vrot.slane %v1682, 5
    %v1693 = vsel %vm855, %v1690, %v1692
    %v1697 = vsel %vm326, %v1689, 0.0
    %v1698 = vsel %vm326, %v1691, 0.0
    %v1699 = vadd.f32 %v1697, %v1698
    %v1700 = vsel %vm869, %v1693, 0.0
    %v1701 = vadd.f32 %v1699, %v1700
    %v1702 = vrot.slane %v1701, 4
    %v1703 = vadd.f32 %v1701, %v1702
    %v1704 = vrot.slane %v1703, 2
    %v1705 = vadd.f32 %v1703, %v1704
    %v1706 = vrot.slane %v1705, 1
    %v1707 = vadd.f32 %v1705, %v1706
    %1708 = vst.msk [vmem:[#allocation3 + $0x9] sm:$0x1] %vm878, %v1707
    %v1709 = vlaneseq
    %v1710 = vshrl.u32 %v1709, 7
    %v1711 = vsub.s32 2, %v1710
    %v1712 = vrot.slane %v652, %v1711
    %v1713 = vmul.f32 %v1712, %v774
    %v1714 = vmul.f32 %v1712, %v775
    %v1715 = vmul.f32 %v1712, %v776
    %v1716 = vmul.f32 %v1713, 1.442695
    %v1717 = vpow.pop %v1716
    %v1718 = vmul.f32 %v1714, 1.442695
    %v1719 = vpow.pop %v1718
    %v1720 = vmul.f32 %v1715, 1.442695
    %v1721 = vpow.pop %v1720
    %v1722 = vmul.f32 %v1717, %v1652
    %v1723 = vmul.f32 %v1719, %v1653
    %v1724 = vmul.f32 %v1721, %v1654
    %1725 = vset.pattern.permute.xlu0 10
    %1726 = vperm.xlu0 %1725, %v746
    %v1727 = vpop.permute.xlu0 %1726
    %1729 = vset.pattern.permute.xlu0 10
    %1730 = vperm.xlu0 %1729, %v751
    %v1731 = vpop.permute.xlu0 %1730
    %1733 = vset.pattern.permute.xlu0 10
    %1734 = vperm.xlu0 %1733, %v756
    %v1735 = vpop.permute.xlu0 %1734
    %v1737 = vlaneseq
    %v1738 = vshrl.u32 %v1737, 7
    %v1739 = vsub.s32 2, %v1738
    %v1740 = vrot.slane %v1540, %v1739
    %v1741 = vmul.f32 %v1727, %v1740
    %v1742 = vmul.f32 %v1731, %v1740
    %v1743 = vmul.f32 %v1735, %v1740
    %v1744 = vadd.f32 %v1722, %v1741
    %v1745 = vadd.f32 %v1723, %v1742
    %v1746 = vadd.f32 %v1724, %v1743
    %1747 = vset.pattern.permute.xlu0 10
    %1748 = vperm.xlu0 %1747, %v761
    %v1749 = vpop.permute.xlu0 %1748
    %1751 = vset.pattern.permute.xlu0 10
    %1752 = vperm.xlu0 %1751, %v766
    %v1753 = vpop.permute.xlu0 %1752
    %1755 = vset.pattern.permute.xlu0 10
    %1756 = vperm.xlu0 %1755, %v771
    %v1757 = vpop.permute.xlu0 %1756
    %v1762 = vrot.slane %v1744, 3
    %v1763 = vrot.slane %v1745, 3
    %v1764 = vsel %vm837, %v1762, %v1763
    %v1765 = vrot.slane %v1746, 3
    %v1766 = vsel %vm837, %v1763, %v1765
    %v1771 = vmul.f32 %v1735, %v1762
    %v1772 = vmul.f32 %v1749, %v1764
    %v1773 = vmul.f32 %v1753, %v1766
    %v1774 = vmul.f32 %v1757, %v1765
    %v1779 = vrot.slane %v1771, 5
    %v1780 = vrot.slane %v1772, 5
    %v1781 = vsel %vm855, %v1779, %v1780
    %v1782 = vrot.slane %v1773, 5
    %v1783 = vsel %vm855, %v1780, %v1782
    %v1784 = vrot.slane %v1774, 5
    %v1785 = vsel %vm855, %v1782, %v1784
    %v1789 = vsel %vm326, %v1781, 0.0
    %v1790 = vsel %vm326, %v1783, 0.0
    %v1791 = vadd.f32 %v1789, %v1790
    %v1792 = vsel %vm869, %v1785, 0.0
    %v1793 = vadd.f32 %v1791, %v1792
    %v1794 = vrot.slane %v1793, 4
    %v1795 = vadd.f32 %v1793, %v1794
    %v1796 = vrot.slane %v1795, 2
    %v1797 = vadd.f32 %v1795, %v1796
    %v1798 = vrot.slane %v1797, 1
    %v1799 = vadd.f32 %v1797, %v1798
    %1800 = vst.msk [vmem:[#allocation3 + $0xa] sm:$0x1] %vm878, %v1799
    %v1801 = vlaneseq
    %v1802 = vshrl.u32 %v1801, 7
    %v1803 = vsub.s32 3, %v1802
    %v1804 = vrot.slane %v652, %v1803
    %v1805 = vmul.f32 %v1804, %v774
    %v1806 = vmul.f32 %v1804, %v775
    %v1807 = vmul.f32 %v1804, %v776
    %v1808 = vmul.f32 %v1805, 1.442695
    %v1809 = vpow.pop %v1808
    %v1810 = vmul.f32 %v1806, 1.442695
    %v1811 = vpow.pop %v1810
    %v1812 = vmul.f32 %v1807, 1.442695
    %v1813 = vpow.pop %v1812
    %v1814 = vmul.f32 %v1809, %v1744
    %v1815 = vmul.f32 %v1811, %v1745
    %v1816 = vmul.f32 %v1813, %v1746
    %1817 = vset.pattern.permute.xlu0 11
    %1818 = vperm.xlu0 %1817, %v746
    %v1819 = vpop.permute.xlu0 %1818
    %1821 = vset.pattern.permute.xlu0 11
    %1822 = vperm.xlu0 %1821, %v751
    %v1823 = vpop.permute.xlu0 %1822
    %1825 = vset.pattern.permute.xlu0 11
    %1826 = vperm.xlu0 %1825, %v756
    %v1827 = vpop.permute.xlu0 %1826
    %v1829 = vlaneseq
    %v1830 = vshrl.u32 %v1829, 7
    %v1831 = vsub.s32 3, %v1830
    %v1832 = vrot.slane %v1540, %v1831
    %v1833 = vmul.f32 %v1819, %v1832
    %v1834 = vmul.f32 %v1823, %v1832
    %v1835 = vmul.f32 %v1827, %v1832
    %v1836 = vadd.f32 %v1814, %v1833
    %v1837 = vadd.f32 %v1815, %v1834
    %v1838 = vadd.f32 %v1816, %v1835
    %1839 = vset.pattern.permute.xlu0 11
    %1840 = vperm.xlu0 %1839, %v761
    %v1841 = vpop.permute.xlu0 %1840
    %1843 = vset.pattern.permute.xlu0 11
    %1844 = vperm.xlu0 %1843, %v766
    %v1845 = vpop.permute.xlu0 %1844
    %1847 = vset.pattern.permute.xlu0 11
    %1848 = vperm.xlu0 %1847, %v771
    %v1849 = vpop.permute.xlu0 %1848
    %v1854 = vrot.slane %v1836, 3
    %v1855 = vrot.slane %v1837, 3
    %v1856 = vsel %vm837, %v1854, %v1855
    %v1857 = vrot.slane %v1838, 3
    %v1858 = vsel %vm837, %v1855, %v1857
    %v1863 = vmul.f32 %v1827, %v1854
    %v1864 = vmul.f32 %v1841, %v1856
    %v1865 = vmul.f32 %v1845, %v1858
    %v1866 = vmul.f32 %v1849, %v1857
    %v1871 = vrot.slane %v1863, 5
    %v1872 = vrot.slane %v1864, 5
    %v1873 = vsel %vm855, %v1871, %v1872
    %v1874 = vrot.slane %v1865, 5
    %v1875 = vsel %vm855, %v1872, %v1874
    %v1876 = vrot.slane %v1866, 5
    %v1877 = vsel %vm855, %v1874, %v1876
    %v1881 = vsel %vm326, %v1873, 0.0
    %v1882 = vsel %vm326, %v1875, 0.0
    %v1883 = vadd.f32 %v1881, %v1882
    %v1884 = vsel %vm869, %v1877, 0.0
    %v1885 = vadd.f32 %v1883, %v1884
    %v1886 = vrot.slane %v1885, 4
    %v1887 = vadd.f32 %v1885, %v1886
    %v1888 = vrot.slane %v1887, 2
    %v1889 = vadd.f32 %v1887, %v1888
    %v1890 = vrot.slane %v1889, 1
    %v1891 = vadd.f32 %v1889, %v1890
    %1892 = vst.msk [vmem:[#allocation3 + $0xb] sm:$0x1] %vm878, %v1891
    %v1893 = vlaneseq
    %v1894 = vshrl.u32 %v1893, 7
    %v1895 = vsub.s32 4, %v1894
    %v1896 = vrot.slane %v652, %v1895
    %v1897 = vmul.f32 %v1896, %v774
    %v1898 = vmul.f32 %v1896, %v775
    %v1899 = vmul.f32 %v1896, %v776
    %v1900 = vmul.f32 %v1897, 1.442695
    %v1901 = vpow.pop %v1900
    %v1902 = vmul.f32 %v1898, 1.442695
    %v1903 = vpow.pop %v1902
    %v1904 = vmul.f32 %v1899, 1.442695
    %v1905 = vpow.pop %v1904
    %v1906 = vmul.f32 %v1901, %v1836
    %v1907 = vmul.f32 %v1903, %v1837
    %v1908 = vmul.f32 %v1905, %v1838
    %1909 = vset.pattern.permute.xlu0 12
    %1910 = vperm.xlu0 %1909, %v746
    %v1911 = vpop.permute.xlu0 %1910
    %1913 = vset.pattern.permute.xlu0 12
    %1914 = vperm.xlu0 %1913, %v751
    %v1915 = vpop.permute.xlu0 %1914
    %1917 = vset.pattern.permute.xlu0 12
    %1918 = vperm.xlu0 %1917, %v756
    %v1919 = vpop.permute.xlu0 %1918
    %v1921 = vlaneseq
    %v1922 = vshrl.u32 %v1921, 7
    %v1923 = vsub.s32 4, %v1922
    %v1924 = vrot.slane %v1540, %v1923
    %v1925 = vmul.f32 %v1911, %v1924
    %v1926 = vmul.f32 %v1915, %v1924
    %v1927 = vmul.f32 %v1919, %v1924
    %v1928 = vadd.f32 %v1906, %v1925
    %v1929 = vadd.f32 %v1907, %v1926
    %v1930 = vadd.f32 %v1908, %v1927
    %1931 = vset.pattern.permute.xlu0 12
    %1932 = vperm.xlu0 %1931, %v761
    %v1933 = vpop.permute.xlu0 %1932
    %1935 = vset.pattern.permute.xlu0 12
    %1936 = vperm.xlu0 %1935, %v766
    %v1937 = vpop.permute.xlu0 %1936
    %1939 = vset.pattern.permute.xlu0 12
    %1940 = vperm.xlu0 %1939, %v771
    %v1941 = vpop.permute.xlu0 %1940
    %v1946 = vrot.slane %v1928, 3
    %v1947 = vrot.slane %v1929, 3
    %v1948 = vsel %vm837, %v1946, %v1947
    %v1949 = vrot.slane %v1930, 3
    %v1950 = vsel %vm837, %v1947, %v1949
    %v1955 = vmul.f32 %v1919, %v1946
    %v1956 = vmul.f32 %v1933, %v1948
    %v1957 = vmul.f32 %v1937, %v1950
    %v1958 = vmul.f32 %v1941, %v1949
    %v1963 = vrot.slane %v1955, 5
    %v1964 = vrot.slane %v1956, 5
    %v1965 = vsel %vm855, %v1963, %v1964
    %v1966 = vrot.slane %v1957, 5
    %v1967 = vsel %vm855, %v1964, %v1966
    %v1968 = vrot.slane %v1958, 5
    %v1969 = vsel %vm855, %v1966, %v1968
    %v1973 = vsel %vm326, %v1965, 0.0
    %v1974 = vsel %vm326, %v1967, 0.0
    %v1975 = vadd.f32 %v1973, %v1974
    %v1976 = vsel %vm869, %v1969, 0.0
    %v1977 = vadd.f32 %v1975, %v1976
    %v1978 = vrot.slane %v1977, 4
    %v1979 = vadd.f32 %v1977, %v1978
    %v1980 = vrot.slane %v1979, 2
    %v1981 = vadd.f32 %v1979, %v1980
    %v1982 = vrot.slane %v1981, 1
    %v1983 = vadd.f32 %v1981, %v1982
    %1984 = vst.msk [vmem:[#allocation3 + $0xc] sm:$0x1] %vm878, %v1983
    %v1985 = vlaneseq
    %v1986 = vshrl.u32 %v1985, 7
    %v1987 = vsub.s32 5, %v1986
    %v1988 = vrot.slane %v652, %v1987
    %v1989 = vmul.f32 %v1988, %v774
    %v1990 = vmul.f32 %v1988, %v775
    %v1991 = vmul.f32 %v1988, %v776
    %v1992 = vmul.f32 %v1989, 1.442695
    %v1993 = vpow.pop %v1992
    %v1994 = vmul.f32 %v1990, 1.442695
    %v1995 = vpow.pop %v1994
    %v1996 = vmul.f32 %v1991, 1.442695
    %v1997 = vpow.pop %v1996
    %v1998 = vmul.f32 %v1993, %v1928
    %v1999 = vmul.f32 %v1995, %v1929
    %v2000 = vmul.f32 %v1997, %v1930
    %2001 = vset.pattern.permute.xlu0 13
    %2002 = vperm.xlu0 %2001, %v746
    %v2003 = vpop.permute.xlu0 %2002
    %2005 = vset.pattern.permute.xlu0 13
    %2006 = vperm.xlu0 %2005, %v751
    %v2007 = vpop.permute.xlu0 %2006
    %2009 = vset.pattern.permute.xlu0 13
    %2010 = vperm.xlu0 %2009, %v756
    %v2011 = vpop.permute.xlu0 %2010
    %v2013 = vlaneseq
    %v2014 = vshrl.u32 %v2013, 7
    %v2015 = vsub.s32 5, %v2014
    %v2016 = vrot.slane %v1540, %v2015
    %v2017 = vmul.f32 %v2003, %v2016
    %v2018 = vmul.f32 %v2007, %v2016
    %v2019 = vmul.f32 %v2011, %v2016
    %v2020 = vadd.f32 %v1998, %v2017
    %v2021 = vadd.f32 %v1999, %v2018
    %v2022 = vadd.f32 %v2000, %v2019
    %2023 = vset.pattern.permute.xlu0 13
    %2024 = vperm.xlu0 %2023, %v761
    %v2025 = vpop.permute.xlu0 %2024
    %2027 = vset.pattern.permute.xlu0 13
    %2028 = vperm.xlu0 %2027, %v766
    %v2029 = vpop.permute.xlu0 %2028
    %2031 = vset.pattern.permute.xlu0 13
    %2032 = vperm.xlu0 %2031, %v771
    %v2033 = vpop.permute.xlu0 %2032
    %v2038 = vrot.slane %v2020, 3
    %v2039 = vrot.slane %v2021, 3
    %v2040 = vsel %vm837, %v2038, %v2039
    %v2041 = vrot.slane %v2022, 3
    %v2042 = vsel %vm837, %v2039, %v2041
    %v2047 = vmul.f32 %v2011, %v2038
    %v2048 = vmul.f32 %v2025, %v2040
    %v2049 = vmul.f32 %v2029, %v2042
    %v2050 = vmul.f32 %v2033, %v2041
    %v2055 = vrot.slane %v2047, 5
    %v2056 = vrot.slane %v2048, 5
    %v2057 = vsel %vm855, %v2055, %v2056
    %v2058 = vrot.slane %v2049, 5
    %v2059 = vsel %vm855, %v2056, %v2058
    %v2060 = vrot.slane %v2050, 5
    %v2061 = vsel %vm855, %v2058, %v2060
    %v2065 = vsel %vm326, %v2057, 0.0
    %v2066 = vsel %vm326, %v2059, 0.0
    %v2067 = vadd.f32 %v2065, %v2066
    %v2068 = vsel %vm869, %v2061, 0.0
    %v2069 = vadd.f32 %v2067, %v2068
    %v2070 = vrot.slane %v2069, 4
    %v2071 = vadd.f32 %v2069, %v2070
    %v2072 = vrot.slane %v2071, 2
    %v2073 = vadd.f32 %v2071, %v2072
    %v2074 = vrot.slane %v2073, 1
    %v2075 = vadd.f32 %v2073, %v2074
    %2076 = vst.msk [vmem:[#allocation3 + $0xd] sm:$0x1] %vm878, %v2075
    %v2077 = vlaneseq
    %v2078 = vshrl.u32 %v2077, 7
    %v2079 = vsub.s32 6, %v2078
    %v2080 = vrot.slane %v652, %v2079
    %v2081 = vmul.f32 %v2080, %v774
    %v2082 = vmul.f32 %v2080, %v775
    %v2083 = vmul.f32 %v2080, %v776
    %v2084 = vmul.f32 %v2081, 1.442695
    %v2085 = vpow.pop %v2084
    %v2086 = vmul.f32 %v2082, 1.442695
    %v2087 = vpow.pop %v2086
    %v2088 = vmul.f32 %v2083, 1.442695
    %v2089 = vpow.pop %v2088
    %v2090 = vmul.f32 %v2085, %v2020
    %v2091 = vmul.f32 %v2087, %v2021
    %v2092 = vmul.f32 %v2089, %v2022
    %2093 = vset.pattern.permute.xlu0 14
    %2094 = vperm.xlu0 %2093, %v746
    %v2095 = vpop.permute.xlu0 %2094
    %2097 = vset.pattern.permute.xlu0 14
    %2098 = vperm.xlu0 %2097, %v751
    %v2099 = vpop.permute.xlu0 %2098
    %2101 = vset.pattern.permute.xlu0 14
    %2102 = vperm.xlu0 %2101, %v756
    %v2103 = vpop.permute.xlu0 %2102
    %v2105 = vlaneseq
    %v2106 = vshrl.u32 %v2105, 7
    %v2107 = vsub.s32 6, %v2106
    %v2108 = vrot.slane %v1540, %v2107
    %v2109 = vmul.f32 %v2095, %v2108
    %v2110 = vmul.f32 %v2099, %v2108
    %v2111 = vmul.f32 %v2103, %v2108
    %v2112 = vadd.f32 %v2090, %v2109
    %v2113 = vadd.f32 %v2091, %v2110
    %v2114 = vadd.f32 %v2092, %v2111
    %2115 = vset.pattern.permute.xlu0 14
    %2116 = vperm.xlu0 %2115, %v761
    %v2117 = vpop.permute.xlu0 %2116
    %2119 = vset.pattern.permute.xlu0 14
    %2120 = vperm.xlu0 %2119, %v766
    %v2121 = vpop.permute.xlu0 %2120
    %2123 = vset.pattern.permute.xlu0 14
    %2124 = vperm.xlu0 %2123, %v771
    %v2125 = vpop.permute.xlu0 %2124
    %v2130 = vrot.slane %v2112, 3
    %v2131 = vrot.slane %v2113, 3
    %v2132 = vsel %vm837, %v2130, %v2131
    %v2133 = vrot.slane %v2114, 3
    %v2134 = vsel %vm837, %v2131, %v2133
    %v2139 = vmul.f32 %v2103, %v2130
    %v2140 = vmul.f32 %v2117, %v2132
    %v2141 = vmul.f32 %v2121, %v2134
    %v2142 = vmul.f32 %v2125, %v2133
    %v2147 = vrot.slane %v2139, 5
    %v2148 = vrot.slane %v2140, 5
    %v2149 = vsel %vm855, %v2147, %v2148
    %v2150 = vrot.slane %v2141, 5
    %v2151 = vsel %vm855, %v2148, %v2150
    %v2152 = vrot.slane %v2142, 5
    %v2153 = vsel %vm855, %v2150, %v2152
    %v2157 = vsel %vm326, %v2149, 0.0
    %v2158 = vsel %vm326, %v2151, 0.0
    %v2159 = vadd.f32 %v2157, %v2158
    %v2160 = vsel %vm869, %v2153, 0.0
    %v2161 = vadd.f32 %v2159, %v2160
    %v2162 = vrot.slane %v2161, 4
    %v2163 = vadd.f32 %v2161, %v2162
    %v2164 = vrot.slane %v2163, 2
    %v2165 = vadd.f32 %v2163, %v2164
    %v2166 = vrot.slane %v2165, 1
    %v2167 = vadd.f32 %v2165, %v2166
    %2168 = vst.msk [vmem:[#allocation3 + $0xe] sm:$0x1] %vm878, %v2167
    %v2169 = vlaneseq
    %v2170 = vshrl.u32 %v2169, 7
    %v2171 = vsub.s32 7, %v2170
    %v2172 = vrot.slane %v652, %v2171
    %v2173 = vmul.f32 %v2172, %v774
    %v2174 = vmul.f32 %v2172, %v775
    %v2175 = vmul.f32 %v2172, %v776
    %v2176 = vmul.f32 %v2173, 1.442695
    %v2177 = vpow.pop %v2176
    %v2178 = vmul.f32 %v2174, 1.442695
    %v2179 = vpow.pop %v2178
    %v2180 = vmul.f32 %v2175, 1.442695
    %v2181 = vpow.pop %v2180
    %v2182 = vmul.f32 %v2177, %v2112
    %v2183 = vmul.f32 %v2179, %v2113
    %v2184 = vmul.f32 %v2181, %v2114
    %2185 = vset.pattern.permute.xlu0 15
    %2186 = vperm.xlu0 %2185, %v746
    %v2187 = vpop.permute.xlu0 %2186
    %2189 = vset.pattern.permute.xlu0 15
    %2190 = vperm.xlu0 %2189, %v751
    %v2191 = vpop.permute.xlu0 %2190
    %2193 = vset.pattern.permute.xlu0 15
    %2194 = vperm.xlu0 %2193, %v756
    %v2195 = vpop.permute.xlu0 %2194
    %v2197 = vlaneseq
    %v2198 = vshrl.u32 %v2197, 7
    %v2199 = vsub.s32 7, %v2198
    %v2200 = vrot.slane %v1540, %v2199
    %v2201 = vmul.f32 %v2187, %v2200
    %v2202 = vmul.f32 %v2191, %v2200
    %v2203 = vmul.f32 %v2195, %v2200
    %v2204 = vadd.f32 %v2182, %v2201
    %v2205 = vadd.f32 %v2183, %v2202
    %v2206 = vadd.f32 %v2184, %v2203
    %2207 = vset.pattern.permute.xlu0 15
    %2208 = vperm.xlu0 %2207, %v761
    %v2209 = vpop.permute.xlu0 %2208
    %2211 = vset.pattern.permute.xlu0 15
    %2212 = vperm.xlu0 %2211, %v766
    %v2213 = vpop.permute.xlu0 %2212
    %2215 = vset.pattern.permute.xlu0 15
    %2216 = vperm.xlu0 %2215, %v771
    %v2217 = vpop.permute.xlu0 %2216
    %v2222 = vrot.slane %v2204, 3
    %v2223 = vrot.slane %v2205, 3
    %v2224 = vsel %vm837, %v2222, %v2223
    %v2225 = vrot.slane %v2206, 3
    %v2226 = vsel %vm837, %v2223, %v2225
    %v2231 = vmul.f32 %v2195, %v2222
    %v2232 = vmul.f32 %v2209, %v2224
    %v2233 = vmul.f32 %v2213, %v2226
    %v2234 = vmul.f32 %v2217, %v2225
    %v2239 = vrot.slane %v2231, 5
    %v2240 = vrot.slane %v2232, 5
    %v2241 = vsel %vm855, %v2239, %v2240
    %v2242 = vrot.slane %v2233, 5
    %v2243 = vsel %vm855, %v2240, %v2242
    %v2244 = vrot.slane %v2234, 5
    %v2245 = vsel %vm855, %v2242, %v2244
    %v2249 = vsel %vm326, %v2241, 0.0
    %v2250 = vsel %vm326, %v2243, 0.0
    %v2251 = vadd.f32 %v2249, %v2250
    %v2252 = vsel %vm869, %v2245, 0.0
    %v2253 = vadd.f32 %v2251, %v2252
    %v2254 = vrot.slane %v2253, 4
    %v2255 = vadd.f32 %v2253, %v2254
    %v2256 = vrot.slane %v2255, 2
    %v2257 = vadd.f32 %v2255, %v2256
    %v2258 = vrot.slane %v2257, 1
    %v2259 = vadd.f32 %v2257, %v2258
    %2260 = vst.msk [vmem:[#allocation3 + $0xf] sm:$0x1] %vm878, %v2259
    %v2261 = vlaneseq
    %v2262 = vshrl.u32 %v2261, 7
    %v2263 = vsub.s32 0, %v2262
    %v2264 = vrot.slane %v653, %v2263
    %v2265 = vmul.f32 %v2264, %v774
    %v2266 = vmul.f32 %v2264, %v775
    %v2267 = vmul.f32 %v2264, %v776
    %v2268 = vmul.f32 %v2265, 1.442695
    %v2269 = vpow.pop %v2268
    %v2270 = vmul.f32 %v2266, 1.442695
    %v2271 = vpow.pop %v2270
    %v2272 = vmul.f32 %v2267, 1.442695
    %v2273 = vpow.pop %v2272
    %v2274 = vmul.f32 %v2269, 0.0
    %v2275 = vmul.f32 %v2271, 0.0
    %v2276 = vmul.f32 %v2273, 0.0
    %v2277 = vmul.f32 %v653, %v505
    %2278 = vset.pattern.permute.xlu0 16
    %2279 = vperm.xlu0 %2278, %v746
    %v2280 = vpop.permute.xlu0 %2279
    %2282 = vset.pattern.permute.xlu0 16
    %2283 = vperm.xlu0 %2282, %v751
    %v2284 = vpop.permute.xlu0 %2283
    %2286 = vset.pattern.permute.xlu0 16
    %2287 = vperm.xlu0 %2286, %v756
    %v2288 = vpop.permute.xlu0 %2287
    %v2290 = vlaneseq
    %v2291 = vshrl.u32 %v2290, 7
    %v2292 = vsub.s32 0, %v2291
    %v2293 = vrot.slane %v2277, %v2292
    %v2294 = vmul.f32 %v2280, %v2293
    %v2295 = vmul.f32 %v2284, %v2293
    %v2296 = vmul.f32 %v2288, %v2293
    %v2297 = vadd.f32 %v2274, %v2294
    %v2298 = vadd.f32 %v2275, %v2295
    %v2299 = vadd.f32 %v2276, %v2296
    %2300 = vset.pattern.permute.xlu0 16
    %2301 = vperm.xlu0 %2300, %v761
    %v2302 = vpop.permute.xlu0 %2301
    %2304 = vset.pattern.permute.xlu0 16
    %2305 = vperm.xlu0 %2304, %v766
    %v2306 = vpop.permute.xlu0 %2305
    %2308 = vset.pattern.permute.xlu0 16
    %2309 = vperm.xlu0 %2308, %v771
    %v2310 = vpop.permute.xlu0 %2309
    %v2315 = vrot.slane %v2297, 3
    %v2316 = vrot.slane %v2298, 3
    %v2317 = vsel %vm837, %v2315, %v2316
    %v2318 = vrot.slane %v2299, 3
    %v2319 = vsel %vm837, %v2316, %v2318
    %v2324 = vmul.f32 %v2288, %v2315
    %v2325 = vmul.f32 %v2302, %v2317
    %v2326 = vmul.f32 %v2306, %v2319
    %v2327 = vmul.f32 %v2310, %v2318
    %v2332 = vrot.slane %v2324, 5
    %v2333 = vrot.slane %v2325, 5
    %v2334 = vsel %vm855, %v2332, %v2333
    %v2335 = vrot.slane %v2326, 5
    %v2336 = vsel %vm855, %v2333, %v2335
    %v2337 = vrot.slane %v2327, 5
    %v2338 = vsel %vm855, %v2335, %v2337
    %v2342 = vsel %vm326, %v2334, 0.0
    %v2343 = vsel %vm326, %v2336, 0.0
    %v2344 = vadd.f32 %v2342, %v2343
    %v2345 = vsel %vm869, %v2338, 0.0
    %v2346 = vadd.f32 %v2344, %v2345
    %v2347 = vrot.slane %v2346, 4
    %v2348 = vadd.f32 %v2346, %v2347
    %v2349 = vrot.slane %v2348, 2
    %v2350 = vadd.f32 %v2348, %v2349
    %v2351 = vrot.slane %v2350, 1
    %v2352 = vadd.f32 %v2350, %v2351
    %2353 = vst.msk [vmem:[#allocation3 + $0x10] sm:$0x1] %vm878, %v2352
    %v2354 = vlaneseq
    %v2355 = vshrl.u32 %v2354, 7
    %v2356 = vsub.s32 1, %v2355
    %v2357 = vrot.slane %v653, %v2356
    %v2358 = vmul.f32 %v2357, %v774
    %v2359 = vmul.f32 %v2357, %v775
    %v2360 = vmul.f32 %v2357, %v776
    %v2361 = vmul.f32 %v2358, 1.442695
    %v2362 = vpow.pop %v2361
    %v2363 = vmul.f32 %v2359, 1.442695
    %v2364 = vpow.pop %v2363
    %v2365 = vmul.f32 %v2360, 1.442695
    %v2366 = vpow.pop %v2365
    %v2367 = vmul.f32 %v2362, %v2297
    %v2368 = vmul.f32 %v2364, %v2298
    %v2369 = vmul.f32 %v2366, %v2299
    %2370 = vset.pattern.permute.xlu0 17
    %2371 = vperm.xlu0 %2370, %v746
    %v2372 = vpop.permute.xlu0 %2371
    %2374 = vset.pattern.permute.xlu0 17
    %2375 = vperm.xlu0 %2374, %v751
    %v2376 = vpop.permute.xlu0 %2375
    %2378 = vset.pattern.permute.xlu0 17
    %2379 = vperm.xlu0 %2378, %v756
    %v2380 = vpop.permute.xlu0 %2379
    %v2382 = vlaneseq
    %v2383 = vshrl.u32 %v2382, 7
    %v2384 = vsub.s32 1, %v2383
    %v2385 = vrot.slane %v2277, %v2384
    %v2386 = vmul.f32 %v2372, %v2385
    %v2387 = vmul.f32 %v2376, %v2385
    %v2388 = vmul.f32 %v2380, %v2385
    %v2389 = vadd.f32 %v2367, %v2386
    %v2390 = vadd.f32 %v2368, %v2387
    %v2391 = vadd.f32 %v2369, %v2388
    %2392 = vset.pattern.permute.xlu0 17
    %2393 = vperm.xlu0 %2392, %v761
    %v2394 = vpop.permute.xlu0 %2393
    %2396 = vset.pattern.permute.xlu0 17
    %2397 = vperm.xlu0 %2396, %v766
    %v2398 = vpop.permute.xlu0 %2397
    %2400 = vset.pattern.permute.xlu0 17
    %2401 = vperm.xlu0 %2400, %v771
    %v2402 = vpop.permute.xlu0 %2401
    %v2407 = vrot.slane %v2389, 3
    %v2408 = vrot.slane %v2390, 3
    %v2409 = vsel %vm837, %v2407, %v2408
    %v2410 = vrot.slane %v2391, 3
    %v2411 = vsel %vm837, %v2408, %v2410
    %v2416 = vmul.f32 %v2380, %v2407
    %v2417 = vmul.f32 %v2394, %v2409
    %v2418 = vmul.f32 %v2398, %v2411
    %v2419 = vmul.f32 %v2402, %v2410
    %v2424 = vrot.slane %v2416, 5
    %v2425 = vrot.slane %v2417, 5
    %v2426 = vsel %vm855, %v2424, %v2425
    %v2427 = vrot.slane %v2418, 5
    %v2428 = vsel %vm855, %v2425, %v2427
    %v2429 = vrot.slane %v2419, 5
    %v2430 = vsel %vm855, %v2427, %v2429
    %v2434 = vsel %vm326, %v2426, 0.0
    %v2435 = vsel %vm326, %v2428, 0.0
    %v2436 = vadd.f32 %v2434, %v2435
    %v2437 = vsel %vm869, %v2430, 0.0
    %v2438 = vadd.f32 %v2436, %v2437
    %v2439 = vrot.slane %v2438, 4
    %v2440 = vadd.f32 %v2438, %v2439
    %v2441 = vrot.slane %v2440, 2
    %v2442 = vadd.f32 %v2440, %v2441
    %v2443 = vrot.slane %v2442, 1
    %v2444 = vadd.f32 %v2442, %v2443
    %2445 = vst.msk [vmem:[#allocation3 + $0x11] sm:$0x1] %vm878, %v2444
    %v2446 = vlaneseq
    %v2447 = vshrl.u32 %v2446, 7
    %v2448 = vsub.s32 2, %v2447
    %v2449 = vrot.slane %v653, %v2448
    %v2450 = vmul.f32 %v2449, %v774
    %v2451 = vmul.f32 %v2449, %v775
    %v2452 = vmul.f32 %v2449, %v776
    %v2453 = vmul.f32 %v2450, 1.442695
    %v2454 = vpow.pop %v2453
    %v2455 = vmul.f32 %v2451, 1.442695
    %v2456 = vpow.pop %v2455
    %v2457 = vmul.f32 %v2452, 1.442695
    %v2458 = vpow.pop %v2457
    %v2459 = vmul.f32 %v2454, %v2389
    %v2460 = vmul.f32 %v2456, %v2390
    %v2461 = vmul.f32 %v2458, %v2391
    %2462 = vset.pattern.permute.xlu0 18
    %2463 = vperm.xlu0 %2462, %v746
    %v2464 = vpop.permute.xlu0 %2463
    %2466 = vset.pattern.permute.xlu0 18
    %2467 = vperm.xlu0 %2466, %v751
    %v2468 = vpop.permute.xlu0 %2467
    %2470 = vset.pattern.permute.xlu0 18
    %2471 = vperm.xlu0 %2470, %v756
    %v2472 = vpop.permute.xlu0 %2471
    %v2474 = vlaneseq
    %v2475 = vshrl.u32 %v2474, 7
    %v2476 = vsub.s32 2, %v2475
    %v2477 = vrot.slane %v2277, %v2476
    %v2478 = vmul.f32 %v2464, %v2477
    %v2479 = vmul.f32 %v2468, %v2477
    %v2480 = vmul.f32 %v2472, %v2477
    %v2481 = vadd.f32 %v2459, %v2478
    %v2482 = vadd.f32 %v2460, %v2479
    %v2483 = vadd.f32 %v2461, %v2480
    %2484 = vset.pattern.permute.xlu0 18
    %2485 = vperm.xlu0 %2484, %v761
    %v2486 = vpop.permute.xlu0 %2485
    %2488 = vset.pattern.permute.xlu0 18
    %2489 = vperm.xlu0 %2488, %v766
    %v2490 = vpop.permute.xlu0 %2489
    %2492 = vset.pattern.permute.xlu0 18
    %2493 = vperm.xlu0 %2492, %v771
    %v2494 = vpop.permute.xlu0 %2493
    %v2499 = vrot.slane %v2481, 3
    %v2500 = vrot.slane %v2482, 3
    %v2501 = vsel %vm837, %v2499, %v2500
    %v2502 = vrot.slane %v2483, 3
    %v2503 = vsel %vm837, %v2500, %v2502
    %v2508 = vmul.f32 %v2472, %v2499
    %v2509 = vmul.f32 %v2486, %v2501
    %v2510 = vmul.f32 %v2490, %v2503
    %v2511 = vmul.f32 %v2494, %v2502
    %v2516 = vrot.slane %v2508, 5
    %v2517 = vrot.slane %v2509, 5
    %v2518 = vsel %vm855, %v2516, %v2517
    %v2519 = vrot.slane %v2510, 5
    %v2520 = vsel %vm855, %v2517, %v2519
    %v2521 = vrot.slane %v2511, 5
    %v2522 = vsel %vm855, %v2519, %v2521
    %v2526 = vsel %vm326, %v2518, 0.0
    %v2527 = vsel %vm326, %v2520, 0.0
    %v2528 = vadd.f32 %v2526, %v2527
    %v2529 = vsel %vm869, %v2522, 0.0
    %v2530 = vadd.f32 %v2528, %v2529
    %v2531 = vrot.slane %v2530, 4
    %v2532 = vadd.f32 %v2530, %v2531
    %v2533 = vrot.slane %v2532, 2
    %v2534 = vadd.f32 %v2532, %v2533
    %v2535 = vrot.slane %v2534, 1
    %v2536 = vadd.f32 %v2534, %v2535
    %2537 = vst.msk [vmem:[#allocation3 + $0x12] sm:$0x1] %vm878, %v2536
    %v2538 = vlaneseq
    %v2539 = vshrl.u32 %v2538, 7
    %v2540 = vsub.s32 3, %v2539
    %v2541 = vrot.slane %v653, %v2540
    %v2542 = vmul.f32 %v2541, %v774
    %v2543 = vmul.f32 %v2541, %v775
    %v2544 = vmul.f32 %v2541, %v776
    %v2545 = vmul.f32 %v2542, 1.442695
    %v2546 = vpow.pop %v2545
    %v2547 = vmul.f32 %v2543, 1.442695
    %v2548 = vpow.pop %v2547
    %v2549 = vmul.f32 %v2544, 1.442695
    %v2550 = vpow.pop %v2549
    %v2551 = vmul.f32 %v2546, %v2481
    %v2552 = vmul.f32 %v2548, %v2482
    %v2553 = vmul.f32 %v2550, %v2483
    %2554 = vset.pattern.permute.xlu0 19
    %2555 = vperm.xlu0 %2554, %v746
    %v2556 = vpop.permute.xlu0 %2555
    %2558 = vset.pattern.permute.xlu0 19
    %2559 = vperm.xlu0 %2558, %v751
    %v2560 = vpop.permute.xlu0 %2559
    %2562 = vset.pattern.permute.xlu0 19
    %2563 = vperm.xlu0 %2562, %v756
    %v2564 = vpop.permute.xlu0 %2563
    %v2566 = vlaneseq
    %v2567 = vshrl.u32 %v2566, 7
    %v2568 = vsub.s32 3, %v2567
    %v2569 = vrot.slane %v2277, %v2568
    %v2570 = vmul.f32 %v2556, %v2569
    %v2571 = vmul.f32 %v2560, %v2569
    %v2572 = vmul.f32 %v2564, %v2569
    %v2573 = vadd.f32 %v2551, %v2570
    %v2574 = vadd.f32 %v2552, %v2571
    %v2575 = vadd.f32 %v2553, %v2572
    %2576 = vset.pattern.permute.xlu0 19
    %2577 = vperm.xlu0 %2576, %v761
    %v2578 = vpop.permute.xlu0 %2577
    %2580 = vset.pattern.permute.xlu0 19
    %2581 = vperm.xlu0 %2580, %v766
    %v2582 = vpop.permute.xlu0 %2581
    %2584 = vset.pattern.permute.xlu0 19
    %2585 = vperm.xlu0 %2584, %v771
    %v2586 = vpop.permute.xlu0 %2585
    %v2591 = vrot.slane %v2573, 3
    %v2592 = vrot.slane %v2574, 3
    %v2593 = vsel %vm837, %v2591, %v2592
    %v2594 = vrot.slane %v2575, 3
    %v2595 = vsel %vm837, %v2592, %v2594
    %v2600 = vmul.f32 %v2564, %v2591
    %v2601 = vmul.f32 %v2578, %v2593
    %v2602 = vmul.f32 %v2582, %v2595
    %v2603 = vmul.f32 %v2586, %v2594
    %v2608 = vrot.slane %v2600, 5
    %v2609 = vrot.slane %v2601, 5
    %v2610 = vsel %vm855, %v2608, %v2609
    %v2611 = vrot.slane %v2602, 5
    %v2612 = vsel %vm855, %v2609, %v2611
    %v2613 = vrot.slane %v2603, 5
    %v2614 = vsel %vm855, %v2611, %v2613
    %v2618 = vsel %vm326, %v2610, 0.0
    %v2619 = vsel %vm326, %v2612, 0.0
    %v2620 = vadd.f32 %v2618, %v2619
    %v2621 = vsel %vm869, %v2614, 0.0
    %v2622 = vadd.f32 %v2620, %v2621
    %v2623 = vrot.slane %v2622, 4
    %v2624 = vadd.f32 %v2622, %v2623
    %v2625 = vrot.slane %v2624, 2
    %v2626 = vadd.f32 %v2624, %v2625
    %v2627 = vrot.slane %v2626, 1
    %v2628 = vadd.f32 %v2626, %v2627
    %2629 = vst.msk [vmem:[#allocation3 + $0x13] sm:$0x1] %vm878, %v2628
    %v2630 = vlaneseq
    %v2631 = vshrl.u32 %v2630, 7
    %v2632 = vsub.s32 4, %v2631
    %v2633 = vrot.slane %v653, %v2632
    %v2634 = vmul.f32 %v2633, %v774
    %v2635 = vmul.f32 %v2633, %v775
    %v2636 = vmul.f32 %v2633, %v776
    %v2637 = vmul.f32 %v2634, 1.442695
    %v2638 = vpow.pop %v2637
    %v2639 = vmul.f32 %v2635, 1.442695
    %v2640 = vpow.pop %v2639
    %v2641 = vmul.f32 %v2636, 1.442695
    %v2642 = vpow.pop %v2641
    %v2643 = vmul.f32 %v2638, %v2573
    %v2644 = vmul.f32 %v2640, %v2574
    %v2645 = vmul.f32 %v2642, %v2575
    %2646 = vset.pattern.permute.xlu0 20
    %2647 = vperm.xlu0 %2646, %v746
    %v2648 = vpop.permute.xlu0 %2647
    %2650 = vset.pattern.permute.xlu0 20
    %2651 = vperm.xlu0 %2650, %v751
    %v2652 = vpop.permute.xlu0 %2651
    %2654 = vset.pattern.permute.xlu0 20
    %2655 = vperm.xlu0 %2654, %v756
    %v2656 = vpop.permute.xlu0 %2655
    %v2658 = vlaneseq
    %v2659 = vshrl.u32 %v2658, 7
    %v2660 = vsub.s32 4, %v2659
    %v2661 = vrot.slane %v2277, %v2660
    %v2662 = vmul.f32 %v2648, %v2661
    %v2663 = vmul.f32 %v2652, %v2661
    %v2664 = vmul.f32 %v2656, %v2661
    %v2665 = vadd.f32 %v2643, %v2662
    %v2666 = vadd.f32 %v2644, %v2663
    %v2667 = vadd.f32 %v2645, %v2664
    %2668 = vset.pattern.permute.xlu0 20
    %2669 = vperm.xlu0 %2668, %v761
    %v2670 = vpop.permute.xlu0 %2669
    %2672 = vset.pattern.permute.xlu0 20
    %2673 = vperm.xlu0 %2672, %v766
    %v2674 = vpop.permute.xlu0 %2673
    %2676 = vset.pattern.permute.xlu0 20
    %2677 = vperm.xlu0 %2676, %v771
    %v2678 = vpop.permute.xlu0 %2677
    %v2683 = vrot.slane %v2665, 3
    %v2684 = vrot.slane %v2666, 3
    %v2685 = vsel %vm837, %v2683, %v2684
    %v2686 = vrot.slane %v2667, 3
    %v2687 = vsel %vm837, %v2684, %v2686
    %v2692 = vmul.f32 %v2656, %v2683
    %v2693 = vmul.f32 %v2670, %v2685
    %v2694 = vmul.f32 %v2674, %v2687
    %v2695 = vmul.f32 %v2678, %v2686
    %v2700 = vrot.slane %v2692, 5
    %v2701 = vrot.slane %v2693, 5
    %v2702 = vsel %vm855, %v2700, %v2701
    %v2703 = vrot.slane %v2694, 5
    %v2704 = vsel %vm855, %v2701, %v2703
    %v2705 = vrot.slane %v2695, 5
    %v2706 = vsel %vm855, %v2703, %v2705
    %v2710 = vsel %vm326, %v2702, 0.0
    %v2711 = vsel %vm326, %v2704, 0.0
    %v2712 = vadd.f32 %v2710, %v2711
    %v2713 = vsel %vm869, %v2706, 0.0
    %v2714 = vadd.f32 %v2712, %v2713
    %v2715 = vrot.slane %v2714, 4
    %v2716 = vadd.f32 %v2714, %v2715
    %v2717 = vrot.slane %v2716, 2
    %v2718 = vadd.f32 %v2716, %v2717
    %v2719 = vrot.slane %v2718, 1
    %v2720 = vadd.f32 %v2718, %v2719
    %2721 = vst.msk [vmem:[#allocation3 + $0x14] sm:$0x1] %vm878, %v2720
    %v2722 = vlaneseq
    %v2723 = vshrl.u32 %v2722, 7
    %v2724 = vsub.s32 5, %v2723
    %v2725 = vrot.slane %v653, %v2724
    %v2726 = vmul.f32 %v2725, %v774
    %v2727 = vmul.f32 %v2725, %v775
    %v2728 = vmul.f32 %v2725, %v776
    %v2729 = vmul.f32 %v2726, 1.442695
    %v2730 = vpow.pop %v2729
    %v2731 = vmul.f32 %v2727, 1.442695
    %v2732 = vpow.pop %v2731
    %v2733 = vmul.f32 %v2728, 1.442695
    %v2734 = vpow.pop %v2733
    %v2735 = vmul.f32 %v2730, %v2665
    %v2736 = vmul.f32 %v2732, %v2666
    %v2737 = vmul.f32 %v2734, %v2667
    %2738 = vset.pattern.permute.xlu0 21
    %2739 = vperm.xlu0 %2738, %v746
    %v2740 = vpop.permute.xlu0 %2739
    %2742 = vset.pattern.permute.xlu0 21
    %2743 = vperm.xlu0 %2742, %v751
    %v2744 = vpop.permute.xlu0 %2743
    %2746 = vset.pattern.permute.xlu0 21
    %2747 = vperm.xlu0 %2746, %v756
    %v2748 = vpop.permute.xlu0 %2747
    %v2750 = vlaneseq
    %v2751 = vshrl.u32 %v2750, 7
    %v2752 = vsub.s32 5, %v2751
    %v2753 = vrot.slane %v2277, %v2752
    %v2754 = vmul.f32 %v2740, %v2753
    %v2755 = vmul.f32 %v2744, %v2753
    %v2756 = vmul.f32 %v2748, %v2753
    %v2757 = vadd.f32 %v2735, %v2754
    %v2758 = vadd.f32 %v2736, %v2755
    %v2759 = vadd.f32 %v2737, %v2756
    %2760 = vset.pattern.permute.xlu0 21
    %2761 = vperm.xlu0 %2760, %v761
    %v2762 = vpop.permute.xlu0 %2761
    %2764 = vset.pattern.permute.xlu0 21
    %2765 = vperm.xlu0 %2764, %v766
    %v2766 = vpop.permute.xlu0 %2765
    %2768 = vset.pattern.permute.xlu0 21
    %2769 = vperm.xlu0 %2768, %v771
    %v2770 = vpop.permute.xlu0 %2769
    %v2775 = vrot.slane %v2757, 3
    %v2776 = vrot.slane %v2758, 3
    %v2777 = vsel %vm837, %v2775, %v2776
    %v2778 = vrot.slane %v2759, 3
    %v2779 = vsel %vm837, %v2776, %v2778
    %v2784 = vmul.f32 %v2748, %v2775
    %v2785 = vmul.f32 %v2762, %v2777
    %v2786 = vmul.f32 %v2766, %v2779
    %v2787 = vmul.f32 %v2770, %v2778
    %v2792 = vrot.slane %v2784, 5
    %v2793 = vrot.slane %v2785, 5
    %v2794 = vsel %vm855, %v2792, %v2793
    %v2795 = vrot.slane %v2786, 5
    %v2796 = vsel %vm855, %v2793, %v2795
    %v2797 = vrot.slane %v2787, 5
    %v2798 = vsel %vm855, %v2795, %v2797
    %v2802 = vsel %vm326, %v2794, 0.0
    %v2803 = vsel %vm326, %v2796, 0.0
    %v2804 = vadd.f32 %v2802, %v2803
    %v2805 = vsel %vm869, %v2798, 0.0
    %v2806 = vadd.f32 %v2804, %v2805
    %v2807 = vrot.slane %v2806, 4
    %v2808 = vadd.f32 %v2806, %v2807
    %v2809 = vrot.slane %v2808, 2
    %v2810 = vadd.f32 %v2808, %v2809
    %v2811 = vrot.slane %v2810, 1
    %v2812 = vadd.f32 %v2810, %v2811
    %2813 = vst.msk [vmem:[#allocation3 + $0x15] sm:$0x1] %vm878, %v2812
    %v2814 = vlaneseq
    %v2815 = vshrl.u32 %v2814, 7
    %v2816 = vsub.s32 6, %v2815
    %v2817 = vrot.slane %v653, %v2816
    %v2818 = vmul.f32 %v2817, %v774
    %v2819 = vmul.f32 %v2817, %v775
    %v2820 = vmul.f32 %v2817, %v776
    %v2821 = vmul.f32 %v2818, 1.442695
    %v2822 = vpow.pop %v2821
    %v2823 = vmul.f32 %v2819, 1.442695
    %v2824 = vpow.pop %v2823
    %v2825 = vmul.f32 %v2820, 1.442695
    %v2826 = vpow.pop %v2825
    %v2827 = vmul.f32 %v2822, %v2757
    %v2828 = vmul.f32 %v2824, %v2758
    %v2829 = vmul.f32 %v2826, %v2759
    %2830 = vset.pattern.permute.xlu0 22
    %2831 = vperm.xlu0 %2830, %v746
    %v2832 = vpop.permute.xlu0 %2831
    %2834 = vset.pattern.permute.xlu0 22
    %2835 = vperm.xlu0 %2834, %v751
    %v2836 = vpop.permute.xlu0 %2835
    %2838 = vset.pattern.permute.xlu0 22
    %2839 = vperm.xlu0 %2838, %v756
    %v2840 = vpop.permute.xlu0 %2839
    %v2842 = vlaneseq
    %v2843 = vshrl.u32 %v2842, 7
    %v2844 = vsub.s32 6, %v2843
    %v2845 = vrot.slane %v2277, %v2844
    %v2846 = vmul.f32 %v2832, %v2845
    %v2847 = vmul.f32 %v2836, %v2845
    %v2848 = vmul.f32 %v2840, %v2845
    %v2849 = vadd.f32 %v2827, %v2846
    %v2850 = vadd.f32 %v2828, %v2847
    %v2851 = vadd.f32 %v2829, %v2848
    %2852 = vset.pattern.permute.xlu0 22
    %2853 = vperm.xlu0 %2852, %v761
    %v2854 = vpop.permute.xlu0 %2853
    %2856 = vset.pattern.permute.xlu0 22
    %2857 = vperm.xlu0 %2856, %v766
    %v2858 = vpop.permute.xlu0 %2857
    %2860 = vset.pattern.permute.xlu0 22
    %2861 = vperm.xlu0 %2860, %v771
    %v2862 = vpop.permute.xlu0 %2861
    %v2867 = vrot.slane %v2849, 3
    %v2868 = vrot.slane %v2850, 3
    %v2869 = vsel %vm837, %v2867, %v2868
    %v2870 = vrot.slane %v2851, 3
    %v2871 = vsel %vm837, %v2868, %v2870
    %v2876 = vmul.f32 %v2840, %v2867
    %v2877 = vmul.f32 %v2854, %v2869
    %v2878 = vmul.f32 %v2858, %v2871
    %v2879 = vmul.f32 %v2862, %v2870
    %v2884 = vrot.slane %v2876, 5
    %v2885 = vrot.slane %v2877, 5
    %v2886 = vsel %vm855, %v2884, %v2885
    %v2887 = vrot.slane %v2878, 5
    %v2888 = vsel %vm855, %v2885, %v2887
    %v2889 = vrot.slane %v2879, 5
    %v2890 = vsel %vm855, %v2887, %v2889
    %v2894 = vsel %vm326, %v2886, 0.0
    %v2895 = vsel %vm326, %v2888, 0.0
    %v2896 = vadd.f32 %v2894, %v2895
    %v2897 = vsel %vm869, %v2890, 0.0
    %v2898 = vadd.f32 %v2896, %v2897
    %v2899 = vrot.slane %v2898, 4
    %v2900 = vadd.f32 %v2898, %v2899
    %v2901 = vrot.slane %v2900, 2
    %v2902 = vadd.f32 %v2900, %v2901
    %v2903 = vrot.slane %v2902, 1
    %v2904 = vadd.f32 %v2902, %v2903
    %2905 = vst.msk [vmem:[#allocation3 + $0x16] sm:$0x1] %vm878, %v2904
    %v2906 = vlaneseq
    %v2907 = vshrl.u32 %v2906, 7
    %v2908 = vsub.s32 7, %v2907
    %v2909 = vrot.slane %v653, %v2908
    %v2910 = vmul.f32 %v2909, %v774
    %v2911 = vmul.f32 %v2909, %v775
    %v2912 = vmul.f32 %v2909, %v776
    %v2913 = vmul.f32 %v2910, 1.442695
    %v2914 = vpow.pop %v2913
    %v2915 = vmul.f32 %v2911, 1.442695
    %v2916 = vpow.pop %v2915
    %v2917 = vmul.f32 %v2912, 1.442695
    %v2918 = vpow.pop %v2917
    %v2919 = vmul.f32 %v2914, %v2849
    %v2920 = vmul.f32 %v2916, %v2850
    %v2921 = vmul.f32 %v2918, %v2851
    %2922 = vset.pattern.permute.xlu0 23
    %2923 = vperm.xlu0 %2922, %v746
    %v2924 = vpop.permute.xlu0 %2923
    %2926 = vset.pattern.permute.xlu0 23
    %2927 = vperm.xlu0 %2926, %v751
    %v2928 = vpop.permute.xlu0 %2927
    %2930 = vset.pattern.permute.xlu0 23
    %2931 = vperm.xlu0 %2930, %v756
    %v2932 = vpop.permute.xlu0 %2931
    %v2934 = vlaneseq
    %v2935 = vshrl.u32 %v2934, 7
    %v2936 = vsub.s32 7, %v2935
    %v2937 = vrot.slane %v2277, %v2936
    %v2938 = vmul.f32 %v2924, %v2937
    %v2939 = vmul.f32 %v2928, %v2937
    %v2940 = vmul.f32 %v2932, %v2937
    %v2941 = vadd.f32 %v2919, %v2938
    %v2942 = vadd.f32 %v2920, %v2939
    %v2943 = vadd.f32 %v2921, %v2940
    %2944 = vset.pattern.permute.xlu0 23
    %2945 = vperm.xlu0 %2944, %v761
    %v2946 = vpop.permute.xlu0 %2945
    %2948 = vset.pattern.permute.xlu0 23
    %2949 = vperm.xlu0 %2948, %v766
    %v2950 = vpop.permute.xlu0 %2949
    %2952 = vset.pattern.permute.xlu0 23
    %2953 = vperm.xlu0 %2952, %v771
    %v2954 = vpop.permute.xlu0 %2953
    %v2959 = vrot.slane %v2941, 3
    %v2960 = vrot.slane %v2942, 3
    %v2961 = vsel %vm837, %v2959, %v2960
    %v2962 = vrot.slane %v2943, 3
    %v2963 = vsel %vm837, %v2960, %v2962
    %v2968 = vmul.f32 %v2932, %v2959
    %v2969 = vmul.f32 %v2946, %v2961
    %v2970 = vmul.f32 %v2950, %v2963
    %v2971 = vmul.f32 %v2954, %v2962
    %v2976 = vrot.slane %v2968, 5
    %v2977 = vrot.slane %v2969, 5
    %v2978 = vsel %vm855, %v2976, %v2977
    %v2979 = vrot.slane %v2970, 5
    %v2980 = vsel %vm855, %v2977, %v2979
    %v2981 = vrot.slane %v2971, 5
    %v2982 = vsel %vm855, %v2979, %v2981
    %v2986 = vsel %vm326, %v2978, 0.0
    %v2987 = vsel %vm326, %v2980, 0.0
    %v2988 = vadd.f32 %v2986, %v2987
    %v2989 = vsel %vm869, %v2982, 0.0
    %v2990 = vadd.f32 %v2988, %v2989
    %v2991 = vrot.slane %v2990, 4
    %v2992 = vadd.f32 %v2990, %v2991
    %v2993 = vrot.slane %v2992, 2
    %v2994 = vadd.f32 %v2992, %v2993
    %v2995 = vrot.slane %v2994, 1
    %v2996 = vadd.f32 %v2994, %v2995
    %2997 = vst.msk [vmem:[#allocation3 + $0x17] sm:$0x1] %vm878, %v2996
    %v2998 = vlaneseq
    %v2999 = vshrl.u32 %v2998, 7
    %v3000 = vsub.s32 0, %v2999
    %v3001 = vrot.slane %v654, %v3000
    %v3002 = vmul.f32 %v3001, %v774
    %v3003 = vmul.f32 %v3001, %v775
    %v3004 = vmul.f32 %v3001, %v776
    %v3005 = vmul.f32 %v3002, 1.442695
    %v3006 = vpow.pop %v3005
    %v3007 = vmul.f32 %v3003, 1.442695
    %v3008 = vpow.pop %v3007
    %v3009 = vmul.f32 %v3004, 1.442695
    %v3010 = vpow.pop %v3009
    %v3011 = vmul.f32 %v3006, %v2941
    %v3012 = vmul.f32 %v3008, %v2942
    %v3013 = vmul.f32 %v3010, %v2943
    %v3014 = vmul.f32 %v654, %v506
    %3015 = vset.pattern.permute.xlu0 24
    %3016 = vperm.xlu0 %3015, %v746
    %v3017 = vpop.permute.xlu0 %3016
    %3019 = vset.pattern.permute.xlu0 24
    %3020 = vperm.xlu0 %3019, %v751
    %v3021 = vpop.permute.xlu0 %3020
    %3023 = vset.pattern.permute.xlu0 24
    %3024 = vperm.xlu0 %3023, %v756
    %v3025 = vpop.permute.xlu0 %3024
    %v3027 = vlaneseq
    %v3028 = vshrl.u32 %v3027, 7
    %v3029 = vsub.s32 0, %v3028
    %v3030 = vrot.slane %v3014, %v3029
    %v3031 = vmul.f32 %v3017, %v3030
    %v3032 = vmul.f32 %v3021, %v3030
    %v3033 = vmul.f32 %v3025, %v3030
    %v3034 = vadd.f32 %v3011, %v3031
    %v3035 = vadd.f32 %v3012, %v3032
    %v3036 = vadd.f32 %v3013, %v3033
    %3037 = vset.pattern.permute.xlu0 24
    %3038 = vperm.xlu0 %3037, %v761
    %v3039 = vpop.permute.xlu0 %3038
    %3041 = vset.pattern.permute.xlu0 24
    %3042 = vperm.xlu0 %3041, %v766
    %v3043 = vpop.permute.xlu0 %3042
    %3045 = vset.pattern.permute.xlu0 24
    %3046 = vperm.xlu0 %3045, %v771
    %v3047 = vpop.permute.xlu0 %3046
    %v3052 = vrot.slane %v3034, 3
    %v3053 = vrot.slane %v3035, 3
    %v3054 = vsel %vm837, %v3052, %v3053
    %v3055 = vrot.slane %v3036, 3
    %v3056 = vsel %vm837, %v3053, %v3055
    %v3061 = vmul.f32 %v3025, %v3052
    %v3062 = vmul.f32 %v3039, %v3054
    %v3063 = vmul.f32 %v3043, %v3056
    %v3064 = vmul.f32 %v3047, %v3055
    %v3069 = vrot.slane %v3061, 5
    %v3070 = vrot.slane %v3062, 5
    %v3071 = vsel %vm855, %v3069, %v3070
    %v3072 = vrot.slane %v3063, 5
    %v3073 = vsel %vm855, %v3070, %v3072
    %v3074 = vrot.slane %v3064, 5
    %v3075 = vsel %vm855, %v3072, %v3074
    %v3079 = vsel %vm326, %v3071, 0.0
    %v3080 = vsel %vm326, %v3073, 0.0
    %v3081 = vadd.f32 %v3079, %v3080
    %v3082 = vsel %vm869, %v3075, 0.0
    %v3083 = vadd.f32 %v3081, %v3082
    %v3084 = vrot.slane %v3083, 4
    %v3085 = vadd.f32 %v3083, %v3084
    %v3086 = vrot.slane %v3085, 2
    %v3087 = vadd.f32 %v3085, %v3086
    %v3088 = vrot.slane %v3087, 1
    %v3089 = vadd.f32 %v3087, %v3088
    %3090 = vst.msk [vmem:[#allocation3 + $0x18] sm:$0x1] %vm878, %v3089
    %v3091 = vlaneseq
    %v3092 = vshrl.u32 %v3091, 7
    %v3093 = vsub.s32 1, %v3092
    %v3094 = vrot.slane %v654, %v3093
    %v3095 = vmul.f32 %v3094, %v774
    %v3096 = vmul.f32 %v3094, %v775
    %v3097 = vmul.f32 %v3094, %v776
    %v3098 = vmul.f32 %v3095, 1.442695
    %v3099 = vpow.pop %v3098
    %v3100 = vmul.f32 %v3096, 1.442695
    %v3101 = vpow.pop %v3100
    %v3102 = vmul.f32 %v3097, 1.442695
    %v3103 = vpow.pop %v3102
    %v3104 = vmul.f32 %v3099, %v3034
    %v3105 = vmul.f32 %v3101, %v3035
    %v3106 = vmul.f32 %v3103, %v3036
    %3107 = vset.pattern.permute.xlu0 25
    %3108 = vperm.xlu0 %3107, %v746
    %v3109 = vpop.permute.xlu0 %3108
    %3111 = vset.pattern.permute.xlu0 25
    %3112 = vperm.xlu0 %3111, %v751
    %v3113 = vpop.permute.xlu0 %3112
    %3115 = vset.pattern.permute.xlu0 25
    %3116 = vperm.xlu0 %3115, %v756
    %v3117 = vpop.permute.xlu0 %3116
    %v3119 = vlaneseq
    %v3120 = vshrl.u32 %v3119, 7
    %v3121 = vsub.s32 1, %v3120
    %v3122 = vrot.slane %v3014, %v3121
    %v3123 = vmul.f32 %v3109, %v3122
    %v3124 = vmul.f32 %v3113, %v3122
    %v3125 = vmul.f32 %v3117, %v3122
    %v3126 = vadd.f32 %v3104, %v3123
    %v3127 = vadd.f32 %v3105, %v3124
    %v3128 = vadd.f32 %v3106, %v3125
    %3129 = vset.pattern.permute.xlu0 25
    %3130 = vperm.xlu0 %3129, %v761
    %v3131 = vpop.permute.xlu0 %3130
    %3133 = vset.pattern.permute.xlu0 25
    %3134 = vperm.xlu0 %3133, %v766
    %v3135 = vpop.permute.xlu0 %3134
    %3137 = vset.pattern.permute.xlu0 25
    %3138 = vperm.xlu0 %3137, %v771
    %v3139 = vpop.permute.xlu0 %3138
    %v3144 = vrot.slane %v3126, 3
    %v3145 = vrot.slane %v3127, 3
    %v3146 = vsel %vm837, %v3144, %v3145
    %v3147 = vrot.slane %v3128, 3
    %v3148 = vsel %vm837, %v3145, %v3147
    %v3153 = vmul.f32 %v3117, %v3144
    %v3154 = vmul.f32 %v3131, %v3146
    %v3155 = vmul.f32 %v3135, %v3148
    %v3156 = vmul.f32 %v3139, %v3147
    %v3161 = vrot.slane %v3153, 5
    %v3162 = vrot.slane %v3154, 5
    %v3163 = vsel %vm855, %v3161, %v3162
    %v3164 = vrot.slane %v3155, 5
    %v3165 = vsel %vm855, %v3162, %v3164
    %v3166 = vrot.slane %v3156, 5
    %v3167 = vsel %vm855, %v3164, %v3166
    %v3171 = vsel %vm326, %v3163, 0.0
    %v3172 = vsel %vm326, %v3165, 0.0
    %v3173 = vadd.f32 %v3171, %v3172
    %v3174 = vsel %vm869, %v3167, 0.0
    %v3175 = vadd.f32 %v3173, %v3174
    %v3176 = vrot.slane %v3175, 4
    %v3177 = vadd.f32 %v3175, %v3176
    %v3178 = vrot.slane %v3177, 2
    %v3179 = vadd.f32 %v3177, %v3178
    %v3180 = vrot.slane %v3179, 1
    %v3181 = vadd.f32 %v3179, %v3180
    %3182 = vst.msk [vmem:[#allocation3 + $0x19] sm:$0x1] %vm878, %v3181
    %v3183 = vlaneseq
    %v3184 = vshrl.u32 %v3183, 7
    %v3185 = vsub.s32 2, %v3184
    %v3186 = vrot.slane %v654, %v3185
    %v3187 = vmul.f32 %v3186, %v774
    %v3188 = vmul.f32 %v3186, %v775
    %v3189 = vmul.f32 %v3186, %v776
    %v3190 = vmul.f32 %v3187, 1.442695
    %v3191 = vpow.pop %v3190
    %v3192 = vmul.f32 %v3188, 1.442695
    %v3193 = vpow.pop %v3192
    %v3194 = vmul.f32 %v3189, 1.442695
    %v3195 = vpow.pop %v3194
    %v3196 = vmul.f32 %v3191, %v3126
    %v3197 = vmul.f32 %v3193, %v3127
    %v3198 = vmul.f32 %v3195, %v3128
    %3199 = vset.pattern.permute.xlu0 26
    %3200 = vperm.xlu0 %3199, %v746
    %v3201 = vpop.permute.xlu0 %3200
    %3203 = vset.pattern.permute.xlu0 26
    %3204 = vperm.xlu0 %3203, %v751
    %v3205 = vpop.permute.xlu0 %3204
    %3207 = vset.pattern.permute.xlu0 26
    %3208 = vperm.xlu0 %3207, %v756
    %v3209 = vpop.permute.xlu0 %3208
    %v3211 = vlaneseq
    %v3212 = vshrl.u32 %v3211, 7
    %v3213 = vsub.s32 2, %v3212
    %v3214 = vrot.slane %v3014, %v3213
    %v3215 = vmul.f32 %v3201, %v3214
    %v3216 = vmul.f32 %v3205, %v3214
    %v3217 = vmul.f32 %v3209, %v3214
    %v3218 = vadd.f32 %v3196, %v3215
    %v3219 = vadd.f32 %v3197, %v3216
    %v3220 = vadd.f32 %v3198, %v3217
    %3221 = vset.pattern.permute.xlu0 26
    %3222 = vperm.xlu0 %3221, %v761
    %v3223 = vpop.permute.xlu0 %3222
    %3225 = vset.pattern.permute.xlu0 26
    %3226 = vperm.xlu0 %3225, %v766
    %v3227 = vpop.permute.xlu0 %3226
    %3229 = vset.pattern.permute.xlu0 26
    %3230 = vperm.xlu0 %3229, %v771
    %v3231 = vpop.permute.xlu0 %3230
    %v3236 = vrot.slane %v3218, 3
    %v3237 = vrot.slane %v3219, 3
    %v3238 = vsel %vm837, %v3236, %v3237
    %v3239 = vrot.slane %v3220, 3
    %v3240 = vsel %vm837, %v3237, %v3239
    %v3245 = vmul.f32 %v3209, %v3236
    %v3246 = vmul.f32 %v3223, %v3238
    %v3247 = vmul.f32 %v3227, %v3240
    %v3248 = vmul.f32 %v3231, %v3239
    %v3253 = vrot.slane %v3245, 5
    %v3254 = vrot.slane %v3246, 5
    %v3255 = vsel %vm855, %v3253, %v3254
    %v3256 = vrot.slane %v3247, 5
    %v3257 = vsel %vm855, %v3254, %v3256
    %v3258 = vrot.slane %v3248, 5
    %v3259 = vsel %vm855, %v3256, %v3258
    %v3263 = vsel %vm326, %v3255, 0.0
    %v3264 = vsel %vm326, %v3257, 0.0
    %v3265 = vadd.f32 %v3263, %v3264
    %v3266 = vsel %vm869, %v3259, 0.0
    %v3267 = vadd.f32 %v3265, %v3266
    %v3268 = vrot.slane %v3267, 4
    %v3269 = vadd.f32 %v3267, %v3268
    %v3270 = vrot.slane %v3269, 2
    %v3271 = vadd.f32 %v3269, %v3270
    %v3272 = vrot.slane %v3271, 1
    %v3273 = vadd.f32 %v3271, %v3272
    %3274 = vst.msk [vmem:[#allocation3 + $0x1a] sm:$0x1] %vm878, %v3273
    %v3275 = vlaneseq
    %v3276 = vshrl.u32 %v3275, 7
    %v3277 = vsub.s32 3, %v3276
    %v3278 = vrot.slane %v654, %v3277
    %v3279 = vmul.f32 %v3278, %v774
    %v3280 = vmul.f32 %v3278, %v775
    %v3281 = vmul.f32 %v3278, %v776
    %v3282 = vmul.f32 %v3279, 1.442695
    %v3283 = vpow.pop %v3282
    %v3284 = vmul.f32 %v3280, 1.442695
    %v3285 = vpow.pop %v3284
    %v3286 = vmul.f32 %v3281, 1.442695
    %v3287 = vpow.pop %v3286
    %v3288 = vmul.f32 %v3283, %v3218
    %v3289 = vmul.f32 %v3285, %v3219
    %v3290 = vmul.f32 %v3287, %v3220
    %3291 = vset.pattern.permute.xlu0 27
    %3292 = vperm.xlu0 %3291, %v746
    %v3293 = vpop.permute.xlu0 %3292
    %3295 = vset.pattern.permute.xlu0 27
    %3296 = vperm.xlu0 %3295, %v751
    %v3297 = vpop.permute.xlu0 %3296
    %3299 = vset.pattern.permute.xlu0 27
    %3300 = vperm.xlu0 %3299, %v756
    %v3301 = vpop.permute.xlu0 %3300
    %v3303 = vlaneseq
    %v3304 = vshrl.u32 %v3303, 7
    %v3305 = vsub.s32 3, %v3304
    %v3306 = vrot.slane %v3014, %v3305
    %v3307 = vmul.f32 %v3293, %v3306
    %v3308 = vmul.f32 %v3297, %v3306
    %v3309 = vmul.f32 %v3301, %v3306
    %v3310 = vadd.f32 %v3288, %v3307
    %v3311 = vadd.f32 %v3289, %v3308
    %v3312 = vadd.f32 %v3290, %v3309
    %3313 = vset.pattern.permute.xlu0 27
    %3314 = vperm.xlu0 %3313, %v761
    %v3315 = vpop.permute.xlu0 %3314
    %3317 = vset.pattern.permute.xlu0 27
    %3318 = vperm.xlu0 %3317, %v766
    %v3319 = vpop.permute.xlu0 %3318
    %3321 = vset.pattern.permute.xlu0 27
    %3322 = vperm.xlu0 %3321, %v771
    %v3323 = vpop.permute.xlu0 %3322
    %v3328 = vrot.slane %v3310, 3
    %v3329 = vrot.slane %v3311, 3
    %v3330 = vsel %vm837, %v3328, %v3329
    %v3331 = vrot.slane %v3312, 3
    %v3332 = vsel %vm837, %v3329, %v3331
    %v3337 = vmul.f32 %v3301, %v3328
    %v3338 = vmul.f32 %v3315, %v3330
    %v3339 = vmul.f32 %v3319, %v3332
    %v3340 = vmul.f32 %v3323, %v3331
    %v3345 = vrot.slane %v3337, 5
    %v3346 = vrot.slane %v3338, 5
    %v3347 = vsel %vm855, %v3345, %v3346
    %v3348 = vrot.slane %v3339, 5
    %v3349 = vsel %vm855, %v3346, %v3348
    %v3350 = vrot.slane %v3340, 5
    %v3351 = vsel %vm855, %v3348, %v3350
    %v3355 = vsel %vm326, %v3347, 0.0
    %v3356 = vsel %vm326, %v3349, 0.0
    %v3357 = vadd.f32 %v3355, %v3356
    %v3358 = vsel %vm869, %v3351, 0.0
    %v3359 = vadd.f32 %v3357, %v3358
    %v3360 = vrot.slane %v3359, 4
    %v3361 = vadd.f32 %v3359, %v3360
    %v3362 = vrot.slane %v3361, 2
    %v3363 = vadd.f32 %v3361, %v3362
    %v3364 = vrot.slane %v3363, 1
    %v3365 = vadd.f32 %v3363, %v3364
    %3366 = vst.msk [vmem:[#allocation3 + $0x1b] sm:$0x1] %vm878, %v3365
    %v3367 = vlaneseq
    %v3368 = vshrl.u32 %v3367, 7
    %v3369 = vsub.s32 4, %v3368
    %v3370 = vrot.slane %v654, %v3369
    %v3371 = vmul.f32 %v3370, %v774
    %v3372 = vmul.f32 %v3370, %v775
    %v3373 = vmul.f32 %v3370, %v776
    %v3374 = vmul.f32 %v3371, 1.442695
    %v3375 = vpow.pop %v3374
    %v3376 = vmul.f32 %v3372, 1.442695
    %v3377 = vpow.pop %v3376
    %v3378 = vmul.f32 %v3373, 1.442695
    %v3379 = vpow.pop %v3378
    %v3380 = vmul.f32 %v3375, %v3310
    %v3381 = vmul.f32 %v3377, %v3311
    %v3382 = vmul.f32 %v3379, %v3312
    %3383 = vset.pattern.permute.xlu0 28
    %3384 = vperm.xlu0 %3383, %v746
    %v3385 = vpop.permute.xlu0 %3384
    %3387 = vset.pattern.permute.xlu0 28
    %3388 = vperm.xlu0 %3387, %v751
    %v3389 = vpop.permute.xlu0 %3388
    %3391 = vset.pattern.permute.xlu0 28
    %3392 = vperm.xlu0 %3391, %v756
    %v3393 = vpop.permute.xlu0 %3392
    %v3395 = vlaneseq
    %v3396 = vshrl.u32 %v3395, 7
    %v3397 = vsub.s32 4, %v3396
    %v3398 = vrot.slane %v3014, %v3397
    %v3399 = vmul.f32 %v3385, %v3398
    %v3400 = vmul.f32 %v3389, %v3398
    %v3401 = vmul.f32 %v3393, %v3398
    %v3402 = vadd.f32 %v3380, %v3399
    %v3403 = vadd.f32 %v3381, %v3400
    %v3404 = vadd.f32 %v3382, %v3401
    %3405 = vset.pattern.permute.xlu0 28
    %3406 = vperm.xlu0 %3405, %v761
    %v3407 = vpop.permute.xlu0 %3406
    %3409 = vset.pattern.permute.xlu0 28
    %3410 = vperm.xlu0 %3409, %v766
    %v3411 = vpop.permute.xlu0 %3410
    %3413 = vset.pattern.permute.xlu0 28
    %3414 = vperm.xlu0 %3413, %v771
    %v3415 = vpop.permute.xlu0 %3414
    %v3420 = vrot.slane %v3402, 3
    %v3421 = vrot.slane %v3403, 3
    %v3422 = vsel %vm837, %v3420, %v3421
    %v3423 = vrot.slane %v3404, 3
    %v3424 = vsel %vm837, %v3421, %v3423
    %v3429 = vmul.f32 %v3393, %v3420
    %v3430 = vmul.f32 %v3407, %v3422
    %v3431 = vmul.f32 %v3411, %v3424
    %v3432 = vmul.f32 %v3415, %v3423
    %v3437 = vrot.slane %v3429, 5
    %v3438 = vrot.slane %v3430, 5
    %v3439 = vsel %vm855, %v3437, %v3438
    %v3440 = vrot.slane %v3431, 5
    %v3441 = vsel %vm855, %v3438, %v3440
    %v3442 = vrot.slane %v3432, 5
    %v3443 = vsel %vm855, %v3440, %v3442
    %v3447 = vsel %vm326, %v3439, 0.0
    %v3448 = vsel %vm326, %v3441, 0.0
    %v3449 = vadd.f32 %v3447, %v3448
    %v3450 = vsel %vm869, %v3443, 0.0
    %v3451 = vadd.f32 %v3449, %v3450
    %v3452 = vrot.slane %v3451, 4
    %v3453 = vadd.f32 %v3451, %v3452
    %v3454 = vrot.slane %v3453, 2
    %v3455 = vadd.f32 %v3453, %v3454
    %v3456 = vrot.slane %v3455, 1
    %v3457 = vadd.f32 %v3455, %v3456
    %3458 = vst.msk [vmem:[#allocation3 + $0x1c] sm:$0x1] %vm878, %v3457
    %v3459 = vlaneseq
    %v3460 = vshrl.u32 %v3459, 7
    %v3461 = vsub.s32 5, %v3460
    %v3462 = vrot.slane %v654, %v3461
    %v3463 = vmul.f32 %v3462, %v774
    %v3464 = vmul.f32 %v3462, %v775
    %v3465 = vmul.f32 %v3462, %v776
    %v3466 = vmul.f32 %v3463, 1.442695
    %v3467 = vpow.pop %v3466
    %v3468 = vmul.f32 %v3464, 1.442695
    %v3469 = vpow.pop %v3468
    %v3470 = vmul.f32 %v3465, 1.442695
    %v3471 = vpow.pop %v3470
    %v3472 = vmul.f32 %v3467, %v3402
    %v3473 = vmul.f32 %v3469, %v3403
    %v3474 = vmul.f32 %v3471, %v3404
    %3475 = vset.pattern.permute.xlu0 29
    %3476 = vperm.xlu0 %3475, %v746
    %v3477 = vpop.permute.xlu0 %3476
    %3479 = vset.pattern.permute.xlu0 29
    %3480 = vperm.xlu0 %3479, %v751
    %v3481 = vpop.permute.xlu0 %3480
    %3483 = vset.pattern.permute.xlu0 29
    %3484 = vperm.xlu0 %3483, %v756
    %v3485 = vpop.permute.xlu0 %3484
    %v3487 = vlaneseq
    %v3488 = vshrl.u32 %v3487, 7
    %v3489 = vsub.s32 5, %v3488
    %v3490 = vrot.slane %v3014, %v3489
    %v3491 = vmul.f32 %v3477, %v3490
    %v3492 = vmul.f32 %v3481, %v3490
    %v3493 = vmul.f32 %v3485, %v3490
    %v3494 = vadd.f32 %v3472, %v3491
    %v3495 = vadd.f32 %v3473, %v3492
    %v3496 = vadd.f32 %v3474, %v3493
    %3497 = vset.pattern.permute.xlu0 29
    %3498 = vperm.xlu0 %3497, %v761
    %v3499 = vpop.permute.xlu0 %3498
    %3501 = vset.pattern.permute.xlu0 29
    %3502 = vperm.xlu0 %3501, %v766
    %v3503 = vpop.permute.xlu0 %3502
    %3505 = vset.pattern.permute.xlu0 29
    %3506 = vperm.xlu0 %3505, %v771
    %v3507 = vpop.permute.xlu0 %3506
    %v3512 = vrot.slane %v3494, 3
    %v3513 = vrot.slane %v3495, 3
    %v3514 = vsel %vm837, %v3512, %v3513
    %v3515 = vrot.slane %v3496, 3
    %v3516 = vsel %vm837, %v3513, %v3515
    %v3521 = vmul.f32 %v3485, %v3512
    %v3522 = vmul.f32 %v3499, %v3514
    %v3523 = vmul.f32 %v3503, %v3516
    %v3524 = vmul.f32 %v3507, %v3515
    %v3529 = vrot.slane %v3521, 5
    %v3530 = vrot.slane %v3522, 5
    %v3531 = vsel %vm855, %v3529, %v3530
    %v3532 = vrot.slane %v3523, 5
    %v3533 = vsel %vm855, %v3530, %v3532
    %v3534 = vrot.slane %v3524, 5
    %v3535 = vsel %vm855, %v3532, %v3534
    %v3539 = vsel %vm326, %v3531, 0.0
    %v3540 = vsel %vm326, %v3533, 0.0
    %v3541 = vadd.f32 %v3539, %v3540
    %v3542 = vsel %vm869, %v3535, 0.0
    %v3543 = vadd.f32 %v3541, %v3542
    %v3544 = vrot.slane %v3543, 4
    %v3545 = vadd.f32 %v3543, %v3544
    %v3546 = vrot.slane %v3545, 2
    %v3547 = vadd.f32 %v3545, %v3546
    %v3548 = vrot.slane %v3547, 1
    %v3549 = vadd.f32 %v3547, %v3548
    %3550 = vst.msk [vmem:[#allocation3 + $0x1d] sm:$0x1] %vm878, %v3549
    %v3551 = vlaneseq
    %v3552 = vshrl.u32 %v3551, 7
    %v3553 = vsub.s32 6, %v3552
    %v3554 = vrot.slane %v654, %v3553
    %v3555 = vmul.f32 %v3554, %v774
    %v3556 = vmul.f32 %v3554, %v775
    %v3557 = vmul.f32 %v3554, %v776
    %v3558 = vmul.f32 %v3555, 1.442695
    %v3559 = vpow.pop %v3558
    %v3560 = vmul.f32 %v3556, 1.442695
    %v3561 = vpow.pop %v3560
    %v3562 = vmul.f32 %v3557, 1.442695
    %v3563 = vpow.pop %v3562
    %v3564 = vmul.f32 %v3559, %v3494
    %v3565 = vmul.f32 %v3561, %v3495
    %v3566 = vmul.f32 %v3563, %v3496
    %3567 = vset.pattern.permute.xlu0 30
    %3568 = vperm.xlu0 %3567, %v746
    %v3569 = vpop.permute.xlu0 %3568
    %3571 = vset.pattern.permute.xlu0 30
    %3572 = vperm.xlu0 %3571, %v751
    %v3573 = vpop.permute.xlu0 %3572
    %3575 = vset.pattern.permute.xlu0 30
    %3576 = vperm.xlu0 %3575, %v756
    %v3577 = vpop.permute.xlu0 %3576
    %v3579 = vlaneseq
    %v3580 = vshrl.u32 %v3579, 7
    %v3581 = vsub.s32 6, %v3580
    %v3582 = vrot.slane %v3014, %v3581
    %v3583 = vmul.f32 %v3569, %v3582
    %v3584 = vmul.f32 %v3573, %v3582
    %v3585 = vmul.f32 %v3577, %v3582
    %v3586 = vadd.f32 %v3564, %v3583
    %v3587 = vadd.f32 %v3565, %v3584
    %v3588 = vadd.f32 %v3566, %v3585
    %3589 = vset.pattern.permute.xlu0 30
    %3590 = vperm.xlu0 %3589, %v761
    %v3591 = vpop.permute.xlu0 %3590
    %3593 = vset.pattern.permute.xlu0 30
    %3594 = vperm.xlu0 %3593, %v766
    %v3595 = vpop.permute.xlu0 %3594
    %3597 = vset.pattern.permute.xlu0 30
    %3598 = vperm.xlu0 %3597, %v771
    %v3599 = vpop.permute.xlu0 %3598
    %v3604 = vrot.slane %v3586, 3
    %v3605 = vrot.slane %v3587, 3
    %v3606 = vsel %vm837, %v3604, %v3605
    %v3607 = vrot.slane %v3588, 3
    %v3608 = vsel %vm837, %v3605, %v3607
    %v3613 = vmul.f32 %v3577, %v3604
    %v3614 = vmul.f32 %v3591, %v3606
    %v3615 = vmul.f32 %v3595, %v3608
    %v3616 = vmul.f32 %v3599, %v3607
    %v3621 = vrot.slane %v3613, 5
    %v3622 = vrot.slane %v3614, 5
    %v3623 = vsel %vm855, %v3621, %v3622
    %v3624 = vrot.slane %v3615, 5
    %v3625 = vsel %vm855, %v3622, %v3624
    %v3626 = vrot.slane %v3616, 5
    %v3627 = vsel %vm855, %v3624, %v3626
    %v3631 = vsel %vm326, %v3623, 0.0
    %v3632 = vsel %vm326, %v3625, 0.0
    %v3633 = vadd.f32 %v3631, %v3632
    %v3634 = vsel %vm869, %v3627, 0.0
    %v3635 = vadd.f32 %v3633, %v3634
    %v3636 = vrot.slane %v3635, 4
    %v3637 = vadd.f32 %v3635, %v3636
    %v3638 = vrot.slane %v3637, 2
    %v3639 = vadd.f32 %v3637, %v3638
    %v3640 = vrot.slane %v3639, 1
    %v3641 = vadd.f32 %v3639, %v3640
    %3642 = vst.msk [vmem:[#allocation3 + $0x1e] sm:$0x1] %vm878, %v3641
    %v3643 = vlaneseq
    %v3644 = vshrl.u32 %v3643, 7
    %v3645 = vsub.s32 7, %v3644
    %v3646 = vrot.slane %v654, %v3645
    %v3647 = vmul.f32 %v3646, %v774
    %v3648 = vmul.f32 %v3646, %v775
    %v3649 = vmul.f32 %v3646, %v776
    %v3650 = vmul.f32 %v3647, 1.442695
    %v3651 = vpow.pop %v3650
    %v3652 = vmul.f32 %v3648, 1.442695
    %v3653 = vpow.pop %v3652
    %v3654 = vmul.f32 %v3649, 1.442695
    %v3655 = vpow.pop %v3654
    %v3656 = vmul.f32 %v3651, %v3586
    %v3657 = vmul.f32 %v3653, %v3587
    %v3658 = vmul.f32 %v3655, %v3588
    %3659 = vset.pattern.permute.xlu0 31
    %3660 = vperm.xlu0 %3659, %v746
    %v3661 = vpop.permute.xlu0 %3660
    %3663 = vset.pattern.permute.xlu0 31
    %3664 = vperm.xlu0 %3663, %v751
    %v3665 = vpop.permute.xlu0 %3664
    %3667 = vset.pattern.permute.xlu0 31
    %3668 = vperm.xlu0 %3667, %v756
    %v3669 = vpop.permute.xlu0 %3668
    %v3671 = vlaneseq
    %v3672 = vshrl.u32 %v3671, 7
    %v3673 = vsub.s32 7, %v3672
    %v3674 = vrot.slane %v3014, %v3673
    %v3675 = vmul.f32 %v3661, %v3674
    %v3676 = vmul.f32 %v3665, %v3674
    %v3677 = vmul.f32 %v3669, %v3674
    %v3678 = vadd.f32 %v3656, %v3675
    %v3679 = vadd.f32 %v3657, %v3676
    %v3680 = vadd.f32 %v3658, %v3677
    %3681 = vset.pattern.permute.xlu0 31
    %3682 = vperm.xlu0 %3681, %v761
    %v3683 = vpop.permute.xlu0 %3682
    %3685 = vset.pattern.permute.xlu0 31
    %3686 = vperm.xlu0 %3685, %v766
    %v3687 = vpop.permute.xlu0 %3686
    %3689 = vset.pattern.permute.xlu0 31
    %3690 = vperm.xlu0 %3689, %v771
    %v3691 = vpop.permute.xlu0 %3690
    %v3696 = vrot.slane %v3678, 3
    %v3697 = vrot.slane %v3679, 3
    %v3698 = vsel %vm837, %v3696, %v3697
    %v3699 = vrot.slane %v3680, 3
    %v3700 = vsel %vm837, %v3697, %v3699
    %v3705 = vmul.f32 %v3669, %v3696
    %v3706 = vmul.f32 %v3683, %v3698
    %v3707 = vmul.f32 %v3687, %v3700
    %v3708 = vmul.f32 %v3691, %v3699
    %v3713 = vrot.slane %v3705, 5
    %v3714 = vrot.slane %v3706, 5
    %v3715 = vsel %vm855, %v3713, %v3714
    %v3716 = vrot.slane %v3707, 5
    %v3717 = vsel %vm855, %v3714, %v3716
    %v3718 = vrot.slane %v3708, 5
    %v3719 = vsel %vm855, %v3716, %v3718
    %v3723 = vsel %vm326, %v3715, 0.0
    %v3724 = vsel %vm326, %v3717, 0.0
    %v3725 = vadd.f32 %v3723, %v3724
    %v3726 = vsel %vm869, %v3719, 0.0
    %v3727 = vadd.f32 %v3725, %v3726
    %v3728 = vrot.slane %v3727, 4
    %v3729 = vadd.f32 %v3727, %v3728
    %v3730 = vrot.slane %v3729, 2
    %v3731 = vadd.f32 %v3729, %v3730
    %v3732 = vrot.slane %v3731, 1
    %v3733 = vadd.f32 %v3731, %v3732
    %3734 = vst.msk [vmem:[#allocation3 + $0x1f] sm:$0x1] %vm878, %v3733
    %v3735 = vld [vmem:[#allocation3] sm:$0xff]
    %v3736 = vld [vmem:[#allocation3 + $0x8] sm:$0xff]
    %v3737 = vld [vmem:[#allocation3 + $0x10] sm:$0xff]
    %v3738 = vld [vmem:[#allocation3 + $0x18] sm:$0xff]
    %v3739 = vld [vmem:[%s9] sm:$0x1]
    %v3741 = vlaneseq
    %v3742 = vshrl.u32 %v3741, 7
    %v3743 = vsub.s32 0, %v3742
    %v3744 = vrot.slane %v3739, %v3743
    %v3746 = vmul.f32 %v503, %v3744
    %v3747 = vmul.f32 %v504, %v3744
    %v3748 = vmul.f32 %v505, %v3744
    %v3749 = vmul.f32 %v506, %v3744
    %v3750 = vadd.f32 %v3735, %v3746
    %v3751 = vadd.f32 %v3736, %v3747
    %v3752 = vadd.f32 %v3737, %v3748
    %v3753 = vadd.f32 %v3738, %v3749
    %v3754 = vsub.f32 0.0, %v307
    %v3755 = vsub.f32 0.0, %v312
    %v3756 = vsub.f32 0.0, %v317
    %v3757 = vsub.f32 0.0, %v322
    %v3758 = vmul.f32 %v3754, 1.442695
    %v3759 = vpow.pop %v3758
    %v3760 = vmul.f32 %v3755, 1.442695
    %v3761 = vpow.pop %v3760
    %v3762 = vmul.f32 %v3756, 1.442695
    %v3763 = vpow.pop %v3762
    %v3764 = vmul.f32 %v3757, 1.442695
    %v3765 = vpow.pop %v3764
    %v3766 = vadd.f32 %v3759, 1.0
    %v3767 = vadd.f32 %v3761, 1.0
    %v3768 = vadd.f32 %v3763, 1.0
    %v3769 = vadd.f32 %v3765, 1.0
    %v3770 = vrcp.pop %v3766
    %v3771 = vrcp.pop %v3767
    %v3772 = vrcp.pop %v3768
    %v3773 = vrcp.pop %v3769
    %v3774 = vmul.f32 %v307, %v3770
    %v3775 = vmul.f32 %v312, %v3771
    %v3776 = vmul.f32 %v317, %v3772
    %v3777 = vmul.f32 %v322, %v3773
    %3782 = vrot.lane.b32.xlu0 %v3774, 64
    %v3783 = vpop.permute.xlu0 %3782
    %3784 = vrot.lane.b32.xlu0 %v3775, 64
    %v3785 = vpop.permute.xlu0 %3784
    %3786 = vrot.lane.b32.xlu0 %v3776, 64
    %v3787 = vpop.permute.xlu0 %3786
    %3788 = vrot.lane.b32.xlu0 %v3777, 64
    %v3789 = vpop.permute.xlu0 %3788
    %v3794 = vmul.f32 %v3750, %v3783
    %v3795 = vmul.f32 %v3751, %v3785
    %v3796 = vmul.f32 %v3752, %v3787
    %v3797 = vmul.f32 %v3753, %v3789
    %v3798 = vld [vmem:[%s10] sm:$0xff]
    %v3799 = vld [vmem:[%s10 + $0x8] sm:$0xff]
    %v3800 = vld [vmem:[%s10 + $0x10] sm:$0xff]
    %v3801 = vld [vmem:[%s10 + $0x18] sm:$0xff]
    %v3802 = vld [vmem:[%s10 + $0x20] sm:$0xff]
    %v3803 = vld [vmem:[%s10 + $0x28] sm:$0xff]
    %v3804 = vld [vmem:[%s10 + $0x30] sm:$0xff]
    %v3805 = vld [vmem:[%s10 + $0x38] sm:$0xff]
    %v3807 = vsel %vm326, %v3794, 0
    %v3810 = vsel %vm326, %v3795, 0
    %v3813 = vsel %vm326, %v3796, 0
    %v3816 = vsel %vm326, %v3797, 0
    %3818 = vmatprep.subr.mxu0 0.0
    %3819 = vmatpush1.msra.mxu0 %v3798
    %3820 = vmatprep.subr.mxu0 0.0
    %3821 = vmatpush1.msra.mxu0 %v3799
    %3822 = vmatprep.subr.mxu0 0.0
    %3823 = vmatpush1.msra.mxu0 %v3800
    %3824 = vmatprep.subr.mxu0 0.0
    %3825 = vmatpush1.msra.mxu0 %v3801
    %3826 = vmatprep.subr.mxu0 0.0
    %3827 = vmatpush1.msra.mxu0 %v3802
    %3828 = vmatprep.subr.mxu0 0.0
    %3829 = vmatpush1.msra.mxu0 %v3803
    %3830 = vmatprep.subr.mxu0 0.0
    %3831 = vmatpush1.msra.mxu0 %v3804
    %3832 = vmatprep.subr.mxu0 0.0
    %3833 = vmatpush1.msra.mxu0 %v3805
    %3834 = vmatprep.subr.mxu0 0.0
    %3835 = vmatpush1.msra.mxu0 0.0
    %3836 = vmatprep.subr.mxu0 0.0
    %3837 = vmatpush1.msra.mxu0 0.0
    %3838 = vmatprep.subr.mxu0 0.0
    %3839 = vmatpush1.msra.mxu0 0.0
    %3840 = vmatprep.subr.mxu0 0.0
    %3841 = vmatpush1.msra.mxu0 0.0
    %3842 = vmatprep.subr.mxu0 0.0
    %3843 = vmatpush1.msra.mxu0 0.0
    %3844 = vmatprep.subr.mxu0 0.0
    %3845 = vmatpush1.msra.mxu0 0.0
    %3846 = vmatprep.subr.mxu0 0.0
    %3847 = vmatpush1.msra.mxu0 0.0
    %3848 = vmatprep.subr.mxu0 0.0
    %3849 = vmatpush1.msra.mxu0 0.0
    %3850 = vmatprep.subr.mxu0 0.0
    %3851 = vmatpush1.msra.mxu0 0.0
    %3852 = vmatprep.subr.mxu0 0.0
    %3853 = vmatpush1.msra.mxu0 0.0
    %3854 = vmatprep.subr.mxu0 0.0
    %3855 = vmatpush1.msra.mxu0 0.0
    %3856 = vmatprep.subr.mxu0 0.0
    %3857 = vmatpush1.msra.mxu0 0.0
    %3858 = vmatprep.subr.mxu0 0.0
    %3859 = vmatpush1.msra.mxu0 0.0
    %3860 = vmatprep.subr.mxu0 0.0
    %3861 = vmatpush1.msra.mxu0 0.0
    %3862 = vmatprep.subr.mxu0 0.0
    %3863 = vmatpush1.msra.mxu0 0.0
    %3864 = vmatprep.subr.mxu0 0.0
    %3865 = vmatpush1.msra.mxu0 0.0
    %3866 = vmatprep.subr.mxu0 0.0
    %3867 = vmatpush1.msra.mxu0 0.0
    %3868 = vmatprep.subr.mxu0 0.0
    %3869 = vmatpush1.msra.mxu0 0.0
    %3870 = vmatprep.subr.mxu0 0.0
    %3871 = vmatpush1.msra.mxu0 0.0
    %3872 = vmatprep.subr.mxu0 0.0
    %3873 = vmatpush1.msra.mxu0 0.0
    %3874 = vmatprep.subr.mxu0 0.0
    %3875 = vmatpush1.msra.mxu0 0.0
    %3876 = vmatprep.subr.mxu0 0.0
    %3877 = vmatpush1.msra.mxu0 0.0
    %3878 = vmatprep.subr.mxu0 0.0
    %3879 = vmatpush1.msra.mxu0 0.0
    %3880 = vmatprep.subr.mxu0 0.0
    %3881 = vmatpush1.msra.mxu0 0.0
    %3882 = vmatprep.mubr.f32.mxu0 0.0
    %3883 = vmatmul.mubr.f32.gmra.mrb[0].mxu0 %v3807
    %v3884 = vpop.f32.mrb[0].mxu0
    %v3885 = vadd.f32 0.0, %v3884
    %v3886 = vpop.f32.mrb[0].mxu0
    %3887 = vmatprep.mubr.f32.mxu0 0.0
    %3888 = vmatmul.mubr.f32.gmra.mrb[0].mxu0 %v3810
    %v3889 = vpop.f32.mrb[0].mxu0
    %v3890 = vadd.f32 0.0, %v3889
    %v3891 = vpop.f32.mrb[0].mxu0
    %3892 = vmatprep.mubr.f32.mxu0 0.0
    %3893 = vmatmul.mubr.f32.gmra.mrb[0].mxu0 %v3813
    %v3894 = vpop.f32.mrb[0].mxu0
    %v3895 = vadd.f32 0.0, %v3894
    %v3896 = vpop.f32.mrb[0].mxu0
    %3897 = vmatprep.mubr.f32.mxu0 0.0
    %3898 = vmatmul.mubr.f32.gmra.mrb[0].mxu0 %v3816
    %v3899 = vpop.f32.mrb[0].mxu0
    %v3900 = vadd.f32 0.0, %v3899
    %v3901 = vpop.f32.mrb[0].mxu0
    %3902 = vdwg.mxu0
    %v3903 = vadd.f32 %v215, %v3885
    %v3904 = vadd.f32 %v216, %v3890
    %v3905 = vadd.f32 %v217, %v3895
    %v3906 = vadd.f32 %v218, %v3900
    %v3907 = vld [vmem:[#allocation18] sm:$0x1]
    %v3908 = vld [vmem:[#allocation20] sm:$0x1]
    %v3909 = vsel %vm227, %v3903, 0.0
    %v3910 = vsel %vm227, %v3904, 0.0
    %v3911 = vadd.f32 %v3909, %v3910
    %v3912 = vsel %vm227, %v3905, 0.0
    %v3913 = vadd.f32 %v3911, %v3912
    %v3914 = vsel %vm227, %v3906, 0.0
    %v3915 = vadd.f32 %v3913, %v3914
    %v3916 = vrot.slane %v3915, 4
    %v3917 = vadd.f32 %v3915, %v3916
    %v3918 = vrot.slane %v3917, 2
    %v3919 = vadd.f32 %v3917, %v3918
    %v3920 = vrot.slane %v3919, 1
    %v3921 = vadd.f32 %v3919, %v3920
    %v3922 = vrcp.pop 32.0
    %v3923 = vmul.f32 %v3921, %v3922
    %v3924 = vsub.f32 %v3903, %v3923
    %v3925 = vsub.f32 %v3904, %v3923
    %v3926 = vsub.f32 %v3905, %v3923
    %v3927 = vsub.f32 %v3906, %v3923
    %v3928 = vmul.f32 %v3924, %v3924
    %v3929 = vmul.f32 %v3925, %v3925
    %v3930 = vmul.f32 %v3926, %v3926
    %v3931 = vmul.f32 %v3927, %v3927
    %v3932 = vsel %vm227, %v3928, 0.0
    %v3933 = vsel %vm227, %v3929, 0.0
    %v3934 = vadd.f32 %v3932, %v3933
    %v3935 = vsel %vm227, %v3930, 0.0
    %v3936 = vadd.f32 %v3934, %v3935
    %v3937 = vsel %vm227, %v3931, 0.0
    %v3938 = vadd.f32 %v3936, %v3937
    %v3939 = vrot.slane %v3938, 4
    %v3940 = vadd.f32 %v3938, %v3939
    %v3941 = vrot.slane %v3940, 2
    %v3942 = vadd.f32 %v3940, %v3941
    %v3943 = vrot.slane %v3942, 1
    %v3944 = vadd.f32 %v3942, %v3943
    %v3945 = vmul.f32 %v3944, %v3922
    %v3946 = vadd.f32 %v3945, 1e-05
    %v3947 = vrsqrt.pop %v3946
    %v3948 = vmul.f32 %v3924, %v3947
    %v3949 = vmul.f32 %v3925, %v3947
    %v3950 = vmul.f32 %v3926, %v3947
    %v3951 = vmul.f32 %v3927, %v3947
    %v3953 = vlaneseq
    %v3954 = vshrl.u32 %v3953, 7
    %v3955 = vsub.s32 0, %v3954
    %v3956 = vrot.slane %v3907, %v3955
    %v3958 = vmul.f32 %v3948, %v3956
    %v3959 = vmul.f32 %v3949, %v3956
    %v3960 = vmul.f32 %v3950, %v3956
    %v3961 = vmul.f32 %v3951, %v3956
    %v3963 = vlaneseq
    %v3964 = vshrl.u32 %v3963, 7
    %v3965 = vsub.s32 0, %v3964
    %v3966 = vrot.slane %v3908, %v3965
    %v3968 = vadd.f32 %v3958, %v3966
    %v3969 = vadd.f32 %v3959, %v3966
    %v3970 = vadd.f32 %v3960, %v3966
    %v3971 = vadd.f32 %v3961, %v3966
    %v3972 = vld [vmem:[#allocation21] sm:$0xff]
    %v3973 = vld [vmem:[#allocation21 + $0x8] sm:$0xff]
    %v3974 = vld [vmem:[#allocation21 + $0x10] sm:$0xff]
    %v3975 = vld [vmem:[#allocation21 + $0x18] sm:$0xff]
    %v3976 = vld [vmem:[%s14] sm:$0x1]
    %v3978 = vlaneseq
    %v3979 = vshrl.u32 %v3978, 7
    %v3980 = vsub.s32 0, %v3979
    %v3981 = vrot.slane %v3976, %v3980
    %v3984 = vsel %vm227, %v3968, 0
    %v3987 = vsel %vm227, %v3969, 0
    %v3990 = vsel %vm227, %v3970, 0
    %v3993 = vsel %vm227, %v3971, 0
    %3995 = vmatprep.subr.mxu0 0.0
    %3996 = vmatpush1.msra.mxu0 %v3972
    %3997 = vmatprep.subr.mxu0 0.0
    %3998 = vmatpush1.msra.mxu0 %v3973
    %3999 = vmatprep.subr.mxu0 0.0
    %4000 = vmatpush1.msra.mxu0 %v3974
    %4001 = vmatprep.subr.mxu0 0.0
    %4002 = vmatpush1.msra.mxu0 %v3975
    %4003 = vmatprep.subr.mxu0 0.0
    %4004 = vmatpush1.msra.mxu0 0.0
    %4005 = vmatprep.subr.mxu0 0.0
    %4006 = vmatpush1.msra.mxu0 0.0
    %4007 = vmatprep.subr.mxu0 0.0
    %4008 = vmatpush1.msra.mxu0 0.0
    %4009 = vmatprep.subr.mxu0 0.0
    %4010 = vmatpush1.msra.mxu0 0.0
    %4011 = vmatprep.subr.mxu0 0.0
    %4012 = vmatpush1.msra.mxu0 0.0
    %4013 = vmatprep.subr.mxu0 0.0
    %4014 = vmatpush1.msra.mxu0 0.0
    %4015 = vmatprep.subr.mxu0 0.0
    %4016 = vmatpush1.msra.mxu0 0.0
    %4017 = vmatprep.subr.mxu0 0.0
    %4018 = vmatpush1.msra.mxu0 0.0
    %4019 = vmatprep.subr.mxu0 0.0
    %4020 = vmatpush1.msra.mxu0 0.0
    %4021 = vmatprep.subr.mxu0 0.0
    %4022 = vmatpush1.msra.mxu0 0.0
    %4023 = vmatprep.subr.mxu0 0.0
    %4024 = vmatpush1.msra.mxu0 0.0
    %4025 = vmatprep.subr.mxu0 0.0
    %4026 = vmatpush1.msra.mxu0 0.0
    %4027 = vmatprep.subr.mxu0 0.0
    %4028 = vmatpush1.msra.mxu0 0.0
    %4029 = vmatprep.subr.mxu0 0.0
    %4030 = vmatpush1.msra.mxu0 0.0
    %4031 = vmatprep.subr.mxu0 0.0
    %4032 = vmatpush1.msra.mxu0 0.0
    %4033 = vmatprep.subr.mxu0 0.0
    %4034 = vmatpush1.msra.mxu0 0.0
    %4035 = vmatprep.subr.mxu0 0.0
    %4036 = vmatpush1.msra.mxu0 0.0
    %4037 = vmatprep.subr.mxu0 0.0
    %4038 = vmatpush1.msra.mxu0 0.0
    %4039 = vmatprep.subr.mxu0 0.0
    %4040 = vmatpush1.msra.mxu0 0.0
    %4041 = vmatprep.subr.mxu0 0.0
    %4042 = vmatpush1.msra.mxu0 0.0
    %4043 = vmatprep.subr.mxu0 0.0
    %4044 = vmatpush1.msra.mxu0 0.0
    %4045 = vmatprep.subr.mxu0 0.0
    %4046 = vmatpush1.msra.mxu0 0.0
    %4047 = vmatprep.subr.mxu0 0.0
    %4048 = vmatpush1.msra.mxu0 0.0
    %4049 = vmatprep.subr.mxu0 0.0
    %4050 = vmatpush1.msra.mxu0 0.0
    %4051 = vmatprep.subr.mxu0 0.0
    %4052 = vmatpush1.msra.mxu0 0.0
    %4053 = vmatprep.subr.mxu0 0.0
    %4054 = vmatpush1.msra.mxu0 0.0
    %4055 = vmatprep.subr.mxu0 0.0
    %4056 = vmatpush1.msra.mxu0 0.0
    %4057 = vmatprep.subr.mxu0 0.0
    %4058 = vmatpush1.msra.mxu0 0.0
    %4059 = vmatprep.mubr.f32.mxu0 0.0
    %4060 = vmatmul.mubr.f32.gmra.mrb[0].mxu0 %v3984
    %v4061 = vpop.f32.mrb[0].mxu0
    %v4062 = vadd.f32 %v3981, %v4061
    %v4063 = vpop.f32.mrb[0].mxu0
    %4064 = vmatprep.mubr.f32.mxu0 0.0
    %4065 = vmatmul.mubr.f32.gmra.mrb[0].mxu0 %v3987
    %v4066 = vpop.f32.mrb[0].mxu0
    %v4067 = vadd.f32 %v3981, %v4066
    %v4068 = vpop.f32.mrb[0].mxu0
    %4069 = vmatprep.mubr.f32.mxu0 0.0
    %4070 = vmatmul.mubr.f32.gmra.mrb[0].mxu0 %v3990
    %v4071 = vpop.f32.mrb[0].mxu0
    %v4072 = vadd.f32 %v3981, %v4071
    %v4073 = vpop.f32.mrb[0].mxu0
    %4074 = vmatprep.mubr.f32.mxu0 0.0
    %4075 = vmatmul.mubr.f32.gmra.mrb[0].mxu0 %v3993
    %v4076 = vpop.f32.mrb[0].mxu0
    %v4077 = vadd.f32 %v3981, %v4076
    %v4078 = vpop.f32.mrb[0].mxu0
    %4079 = vdwg.mxu0
    %v4080 = vmul.f32 %v4062, 0.5
    %v4081 = vmul.f32 %v4067, 0.5
    %v4082 = vmul.f32 %v4072, 0.5
    %v4083 = vmul.f32 %v4077, 0.5
    %v4084 = vmul.f32 %v4062, 0.044715
    %v4085 = vmul.f32 %v4067, 0.044715
    %v4086 = vmul.f32 %v4072, 0.044715
    %v4087 = vmul.f32 %v4077, 0.044715
    %v4088 = vmul.f32 %v4084, %v4062
    %v4089 = vmul.f32 %v4085, %v4067
    %v4090 = vmul.f32 %v4086, %v4072
    %v4091 = vmul.f32 %v4087, %v4077
    %v4092 = vmul.f32 %v4088, %v4062
    %v4093 = vmul.f32 %v4089, %v4067
    %v4094 = vmul.f32 %v4090, %v4072
    %v4095 = vmul.f32 %v4091, %v4077
    %v4096 = vadd.f32 %v4062, %v4092
    %v4097 = vadd.f32 %v4067, %v4093
    %v4098 = vadd.f32 %v4072, %v4094
    %v4099 = vadd.f32 %v4077, %v4095
    %v4100 = vmul.f32 %v4096, 0.7978846
    %v4101 = vmul.f32 %v4097, 0.7978846
    %v4102 = vmul.f32 %v4098, 0.7978846
    %v4103 = vmul.f32 %v4099, 0.7978846
    %v4104 = vtanh.pop %v4100
    %v4105 = vtanh.pop %v4101
    %v4106 = vtanh.pop %v4102
    %v4107 = vtanh.pop %v4103
    %v4108 = vadd.f32 %v4104, 1.0
    %v4109 = vadd.f32 %v4105, 1.0
    %v4110 = vadd.f32 %v4106, 1.0
    %v4111 = vadd.f32 %v4107, 1.0
    %v4112 = vmul.f32 %v4080, %v4108
    %v4113 = vmul.f32 %v4081, %v4109
    %v4114 = vmul.f32 %v4082, %v4110
    %v4115 = vmul.f32 %v4083, %v4111
    %v4116 = vld [vmem:[%s15] sm:$0xff]
    %v4117 = vld [vmem:[%s15 + $0x8] sm:$0xff]
    %v4118 = vld [vmem:[%s15 + $0x10] sm:$0xff]
    %v4119 = vld [vmem:[%s15 + $0x18] sm:$0xff]
    %v4120 = vld [vmem:[%s16] sm:$0x1]
    %v4122 = vlaneseq
    %v4123 = vshrl.u32 %v4122, 7
    %v4124 = vsub.s32 0, %v4123
    %v4125 = vrot.slane %v4120, %v4124
    %v4128 = vsel %vm227, %v4112, 0
    %v4131 = vsel %vm227, %v4113, 0
    %v4134 = vsel %vm227, %v4114, 0
    %v4137 = vsel %vm227, %v4115, 0
    %4139 = vmatprep.subr.mxu0 0.0
    %4140 = vmatpush1.msra.mxu0 %v4116
    %4141 = vmatprep.subr.mxu0 0.0
    %4142 = vmatpush1.msra.mxu0 %v4117
    %4143 = vmatprep.subr.mxu0 0.0
    %4144 = vmatpush1.msra.mxu0 %v4118
    %4145 = vmatprep.subr.mxu0 0.0
    %4146 = vmatpush1.msra.mxu0 %v4119
    %4147 = vmatprep.subr.mxu0 0.0
    %4148 = vmatpush1.msra.mxu0 0.0
    %4149 = vmatprep.subr.mxu0 0.0
    %4150 = vmatpush1.msra.mxu0 0.0
    %4151 = vmatprep.subr.mxu0 0.0
    %4152 = vmatpush1.msra.mxu0 0.0
    %4153 = vmatprep.subr.mxu0 0.0
    %4154 = vmatpush1.msra.mxu0 0.0
    %4155 = vmatprep.subr.mxu0 0.0
    %4156 = vmatpush1.msra.mxu0 0.0
    %4157 = vmatprep.subr.mxu0 0.0
    %4158 = vmatpush1.msra.mxu0 0.0
    %4159 = vmatprep.subr.mxu0 0.0
    %4160 = vmatpush1.msra.mxu0 0.0
    %4161 = vmatprep.subr.mxu0 0.0
    %4162 = vmatpush1.msra.mxu0 0.0
    %4163 = vmatprep.subr.mxu0 0.0
    %4164 = vmatpush1.msra.mxu0 0.0
    %4165 = vmatprep.subr.mxu0 0.0
    %4166 = vmatpush1.msra.mxu0 0.0
    %4167 = vmatprep.subr.mxu0 0.0
    %4168 = vmatpush1.msra.mxu0 0.0
    %4169 = vmatprep.subr.mxu0 0.0
    %4170 = vmatpush1.msra.mxu0 0.0
    %4171 = vmatprep.subr.mxu0 0.0
    %4172 = vmatpush1.msra.mxu0 0.0
    %4173 = vmatprep.subr.mxu0 0.0
    %4174 = vmatpush1.msra.mxu0 0.0
    %4175 = vmatprep.subr.mxu0 0.0
    %4176 = vmatpush1.msra.mxu0 0.0
    %4177 = vmatprep.subr.mxu0 0.0
    %4178 = vmatpush1.msra.mxu0 0.0
    %4179 = vmatprep.subr.mxu0 0.0
    %4180 = vmatpush1.msra.mxu0 0.0
    %4181 = vmatprep.subr.mxu0 0.0
    %4182 = vmatpush1.msra.mxu0 0.0
    %4183 = vmatprep.subr.mxu0 0.0
    %4184 = vmatpush1.msra.mxu0 0.0
    %4185 = vmatprep.subr.mxu0 0.0
    %4186 = vmatpush1.msra.mxu0 0.0
    %4187 = vmatprep.subr.mxu0 0.0
    %4188 = vmatpush1.msra.mxu0 0.0
    %4189 = vmatprep.subr.mxu0 0.0
    %4190 = vmatpush1.msra.mxu0 0.0
    %4191 = vmatprep.subr.mxu0 0.0
    %4192 = vmatpush1.msra.mxu0 0.0
    %4193 = vmatprep.subr.mxu0 0.0
    %4194 = vmatpush1.msra.mxu0 0.0
    %4195 = vmatprep.subr.mxu0 0.0
    %4196 = vmatpush1.msra.mxu0 0.0
    %4197 = vmatprep.subr.mxu0 0.0
    %4198 = vmatpush1.msra.mxu0 0.0
    %4199 = vmatprep.subr.mxu0 0.0
    %4200 = vmatpush1.msra.mxu0 0.0
    %4201 = vmatprep.subr.mxu0 0.0
    %4202 = vmatpush1.msra.mxu0 0.0
    %4203 = vmatprep.mubr.f32.mxu0 0.0
    %4204 = vmatmul.mubr.f32.gmra.mrb[0].mxu0 %v4128
    %v4205 = vpop.f32.mrb[0].mxu0
    %v4206 = vadd.f32 %v4125, %v4205
    %v4207 = vpop.f32.mrb[0].mxu0
    %4208 = vmatprep.mubr.f32.mxu0 0.0
    %4209 = vmatmul.mubr.f32.gmra.mrb[0].mxu0 %v4131
    %v4210 = vpop.f32.mrb[0].mxu0
    %v4211 = vadd.f32 %v4125, %v4210
    %v4212 = vpop.f32.mrb[0].mxu0
    %4213 = vmatprep.mubr.f32.mxu0 0.0
    %4214 = vmatmul.mubr.f32.gmra.mrb[0].mxu0 %v4134
    %v4215 = vpop.f32.mrb[0].mxu0
    %v4216 = vadd.f32 %v4125, %v4215
    %v4217 = vpop.f32.mrb[0].mxu0
    %4218 = vmatprep.mubr.f32.mxu0 0.0
    %4219 = vmatmul.mubr.f32.gmra.mrb[0].mxu0 %v4137
    %v4220 = vpop.f32.mrb[0].mxu0
    %v4221 = vadd.f32 %v4125, %v4220
    %v4222 = vpop.f32.mrb[0].mxu0
    %4223 = vdwg.mxu0
    %v4224 = vadd.f32 %v3968, %v4206
    %v4225 = vadd.f32 %v3969, %v4211
    %v4226 = vadd.f32 %v3970, %v4216
    %v4227 = vadd.f32 %v3971, %v4221
    %v4228 = vld [vmem:[%s17] sm:$0x1]
    %v4229 = vld [vmem:[%s18] sm:$0x1]
    %v4230 = vsel %vm227, %v4224, 0.0
    %v4231 = vsel %vm227, %v4225, 0.0
    %v4232 = vadd.f32 %v4230, %v4231
    %v4233 = vsel %vm227, %v4226, 0.0
    %v4234 = vadd.f32 %v4232, %v4233
    %v4235 = vsel %vm227, %v4227, 0.0
    %v4236 = vadd.f32 %v4234, %v4235
    %v4237 = vrot.slane %v4236, 4
    %v4238 = vadd.f32 %v4236, %v4237
    %v4239 = vrot.slane %v4238, 2
    %v4240 = vadd.f32 %v4238, %v4239
    %v4241 = vrot.slane %v4240, 1
    %v4242 = vadd.f32 %v4240, %v4241
    %v4243 = vmul.f32 %v4242, %v3922
    %v4244 = vsub.f32 %v4224, %v4243
    %v4245 = vsub.f32 %v4225, %v4243
    %v4246 = vsub.f32 %v4226, %v4243
    %v4247 = vsub.f32 %v4227, %v4243
    %v4248 = vmul.f32 %v4244, %v4244
    %v4249 = vmul.f32 %v4245, %v4245
    %v4250 = vmul.f32 %v4246, %v4246
    %v4251 = vmul.f32 %v4247, %v4247
    %v4252 = vsel %vm227, %v4248, 0.0
    %v4253 = vsel %vm227, %v4249, 0.0
    %v4254 = vadd.f32 %v4252, %v4253
    %v4255 = vsel %vm227, %v4250, 0.0
    %v4256 = vadd.f32 %v4254, %v4255
    %v4257 = vsel %vm227, %v4251, 0.0
    %v4258 = vadd.f32 %v4256, %v4257
    %v4259 = vrot.slane %v4258, 4
    %v4260 = vadd.f32 %v4258, %v4259
    %v4261 = vrot.slane %v4260, 2
    %v4262 = vadd.f32 %v4260, %v4261
    %v4263 = vrot.slane %v4262, 1
    %v4264 = vadd.f32 %v4262, %v4263
    %v4265 = vmul.f32 %v4264, %v3922
    %v4266 = vadd.f32 %v4265, 1e-05
    %v4267 = vrsqrt.pop %v4266
    %v4268 = vmul.f32 %v4244, %v4267
    %v4269 = vmul.f32 %v4245, %v4267
    %v4270 = vmul.f32 %v4246, %v4267
    %v4271 = vmul.f32 %v4247, %v4267
    %v4273 = vlaneseq
    %v4274 = vshrl.u32 %v4273, 7
    %v4275 = vsub.s32 0, %v4274
    %v4276 = vrot.slane %v4228, %v4275
    %v4278 = vmul.f32 %v4268, %v4276
    %v4279 = vmul.f32 %v4269, %v4276
    %v4280 = vmul.f32 %v4270, %v4276
    %v4281 = vmul.f32 %v4271, %v4276
    %v4283 = vlaneseq
    %v4284 = vshrl.u32 %v4283, 7
    %v4285 = vsub.s32 0, %v4284
    %v4286 = vrot.slane %v4229, %v4285
    %v4288 = vadd.f32 %v4278, %v4286
    %v4289 = vadd.f32 %v4279, %v4286
    %v4290 = vadd.f32 %v4280, %v4286
    %v4291 = vadd.f32 %v4281, %v4286
    %4292 = vst.msk [vmem:[%s19] sm:$0xff] %vm227, %v4288
    %4293 = vst.msk [vmem:[%s19 + $0x8] sm:$0xff] %vm227, %v4289
    %4294 = vst.msk [vmem:[%s19 + $0x10] sm:$0xff] %vm227, %v4290
    %4295 = vst.msk [vmem:[%s19 + $0x18] sm:$0xff] %vm227, %v4291
    // Predicated region
    $region126: #{_lambda_.2} parent=1 // pred_check
      _
    $region127: #{_lambda_.2} parent=1 // pred_check_branch
      %4297 = sbr.rel (0) target = $region129
    $region128: #{_lambda_.2} parent=1 // pred_region
      _
    $region129: #{_lambda_.2} parent=1 // pred_fallthru
      _
    // Predicated region
    $region130: #{_lambda_.2} parent=1 // pred_check
      _
    $region131: #{_lambda_.2} parent=1 // pred_check_branch
      %4299 = sbr.rel (0) target = $region133
    $region132: #{_lambda_.2} parent=1 // pred_region
      _
    $region133: #{_lambda_.2} parent=1 // pred_fallthru
      _
    %4300 = vsyncpa [#allocation5], 1
    %4301 = vsyncpa [#allocation7], 1
    %4302 = vsyncpa [#allocation10], 1
    %4303 = vsyncpa [#allocation13], 1
    %4304 = vsyncpa [#allocation16], 1
    %4305 = vsyncpa [#allocation19], 1
    %4306 = vsyncpa [#allocation22], 1

</llo_original>
